<compile_context>
chip_gen: v6e
topology: v6e:2x2x1
jax: 0.10.0
libtpu: 0.0.40
codegen_flags: <defaults>
</compile_context>

<pallas_src>
import math

import jax
import jax.numpy as jnp
from jax.experimental import pallas as pl
from jax.experimental.pallas import tpu as pltpu

LANE = 128   # lane-dense matmul width (all output-channel dims padded to this)
NB = 8       # samples per grid block (keeps every in-kernel row slice 8-aligned)

_COMPILER_PARAMS = pltpu.CompilerParams(
    dimension_semantics=("parallel",),
    vmem_limit_bytes=32 * 1024 * 1024,
)


def _round_up(x, m):
    return (x + m - 1) // m * m


# ---------------------------------------------------------------------------
# Pallas kernels
# ---------------------------------------------------------------------------
def _conv1_pool_kernel(p_ref, w_ref, b_ref, o_ref):
    """Fused conv1 (im2col matmul) + bias + ReLU + 2x2 AvgPool.

    p_ref : (4*MB, K1) bf16  merged pool-quadrant patches, rows = (q, n, pos).
    w_ref : (K1, 128) bf16   conv1 weights, 0.25 pool factor folded in.
    b_ref : (1, 128)  f32    conv1 bias, 0.25 folded in, zero-padded lanes.
    o_ref : (MB, 128) bf16   pooled activation, rows = (n, pos).
    """
    mb = o_ref.shape[0]
    r = jnp.dot(p_ref[...], w_ref[...], preferred_element_type=jnp.float32)
    r = jnp.maximum(r + b_ref[...], 0.0)
    s = r[0:mb] + r[mb:2 * mb] + r[2 * mb:3 * mb] + r[3 * mb:4 * mb]
    o_ref[...] = s.astype(o_ref.dtype)


def _conv2_head_kernel(p_ref, w2_ref, b2_ref, w3_ref, b3_ref, w4_ref, b4_ref,
                       w5_ref, b5_ref, o_ref):
    """Fused conv2 + ReLU + AvgPool + conv3 + ReLU + fc1 + ReLU + fc2.

    p_ref : (4*25*NB, K2) bf16  merged quadrant patches, rows = (q, tap, n).
    w2_ref: (K2, 128) bf16 (0.25 folded);  b2_ref: (1, 128) f32 (0.25 folded).
    w3_ref: (25, 128, 128) bf16  one (in_ch -> out_ch) slab per conv3 tap.
    w4/w5 : (128, 128) bf16 fc weights;  b3/b4/b5: (1, 128) f32 biases.
    o_ref : (NB, 128) f32  final logits (lane-dense, padded past num_classes).
    """
    n_taps = w3_ref.shape[0]            # 25 = 5x5 conv3 spatial taps
    nb = o_ref.shape[0]                 # samples in this block
    ms = n_taps * nb                    # rows per pool quadrant

    # conv2: one merged 4-quadrant matmul, then quadrant sum == AvgPool2d(2,2).
    r = jnp.dot(p_ref[...], w2_ref[...], preferred_element_type=jnp.float32)
    r = jnp.maximum(r + b2_ref[...], 0.0)
    pooled = r[0:ms] + r[ms:2 * ms] + r[2 * ms:3 * ms] + r[3 * ms:4 * ms]
    pooled = pooled.astype(jnp.bfloat16)          # rows = (tap, n), lanes = ch

    # conv3: accumulate one channel-contraction matmul per spatial tap.
    # Row slices are static and 8-aligned -> no relayout, pure MXU work.
    acc = jnp.dot(pooled[0:nb], w3_ref[0], preferred_element_type=jnp.float32)
    for s in range(1, n_taps):
        acc = acc + jnp.dot(pooled[s * nb:(s + 1) * nb], w3_ref[s],
                            preferred_element_type=jnp.float32)
    h = jnp.maximum(acc + b3_ref[...], 0.0).astype(jnp.bfloat16)

    # fc1 + ReLU + fc2, all in VMEM/vregs.
    h = jnp.maximum(jnp.dot(h, w4_ref[...], preferred_element_type=jnp.float32)
                    + b4_ref[...], 0.0).astype(jnp.bfloat16)
    out = jnp.dot(h, w5_ref[...], preferred_element_type=jnp.float32) + b5_ref[...]
    o_ref[...] = out.astype(o_ref.dtype)


# ---------------------------------------------------------------------------
# Wrapper-side im2col (XLA gathers; fused with the boundary slices / casts)
# ---------------------------------------------------------------------------
def _conv1_quadrant_patches(x_nhwc):
    """x_nhwc: (NP, 32, 32, CI) bf16, NP a multiple of NB.

    Returns (NBLK*4*NB*196, 25*CI) patches, row order (block, quad, n, pos),
    plus pooled spatial dims (14, 14).  K ordered (kh, kw, c).
    """
    npad, h, w, ci = x_nhwc.shape
    kh = kw = 5
    oh, ow = h - kh + 1, w - kw + 1          # 28, 28
    ph, pw = oh // 2, ow // 2                # 14, 14
    k = kh * kw * ci
    cols = [x_nhwc[:, i:i + oh, j:j + ow, :]
            for i in range(kh) for j in range(kw)]
    patches = jnp.concatenate(cols, axis=-1)             # (NP, 28, 28, K)
    quads = [patches[:, dy::2, dx::2, :].reshape(npad, ph * pw, k)
             for dy in (0, 1) for dx in (0, 1)]
    q = jnp.stack(quads, axis=0)                         # (4, NP, 196, K)
    nblk = npad // NB
    q = q.reshape(4, nblk, NB, ph * pw, k).transpose(1, 0, 2, 3, 4)
    return q.reshape(nblk * 4 * NB * ph * pw, k), ph, pw


def _conv2_quadrant_patches(y1, npad, ph1, pw1, c_real):
    """y1: (NP*ph1*pw1, 128) bf16 pooled conv1 activation (lane-padded).

    Channel slice [:c_real] is folded into the gather (no padded-lane copy).
    Returns (NBLK*4*25*NB, 25*c_real) patches, row order (block, quad, tap, n),
    plus the pooled spatial count (25).
    """
    kh = kw = 5
    act = y1.reshape(npad, ph1, pw1, y1.shape[-1])
    oh, ow = ph1 - kh + 1, pw1 - kw + 1      # 10, 10
    ph, pw = oh // 2, ow // 2                # 5, 5
    k = kh * kw * c_real                     # 150
    cols = [act[:, i:i + oh, j:j + ow, :c_real]
            for i in range(kh) for j in range(kw)]
    patches = jnp.concatenate(cols, axis=-1)             # (NP, 10, 10, 150)
    quads = [patches[:, dy::2, dx::2, :].reshape(npad, ph * pw, k)
             for dy in (0, 1) for dx in (0, 1)]
    q = jnp.stack(quads, axis=0)                         # (4, NP, 25, 150)
    nblk = npad // NB
    q = q.reshape(4, nblk, NB, ph * pw, k).transpose(1, 0, 3, 2, 4)
    return q.reshape(nblk * 4 * ph * pw * NB, k), ph * pw


# ---------------------------------------------------------------------------
# Parameters: PyTorch-style init, then one-time packing (outside jit)
# ---------------------------------------------------------------------------
def init_lenet_params(key, in_channels=1, num_classes=10):
    def uniform(k, shape, fan_in):
        bound = 1.0 / math.sqrt(fan_in)
        return jax.random.uniform(k, shape, jnp.float32, -bound, bound)

    ks = jax.random.split(key, 10)
    p = {}
    p["conv1_w"] = uniform(ks[0], (6, in_channels, 5, 5), in_channels * 25)
    p["conv1_b"] = uniform(ks[1], (6,), in_channels * 25)
    p["conv2_w"] = uniform(ks[2], (16, 6, 5, 5), 6 * 25)
    p["conv2_b"] = uniform(ks[3], (16,), 6 * 25)
    p["conv3_w"] = uniform(ks[4], (120, 16, 5, 5), 16 * 25)
    p["conv3_b"] = uniform(ks[5], (120,), 16 * 25)
    p["fc1_w"] = uniform(ks[6], (84, 120), 120)
    p["fc1_b"] = uniform(ks[7], (84,), 120)
    p["fc2_w"] = uniform(ks[8], (num_classes, 84), 84)
    p["fc2_b"] = uniform(ks[9], (num_classes,), 84)
    return p


def pack_lenet_params(params):
    """One-time weight packing: transpose / reshape / zero-pad to 128 lanes,
    fold the 0.25 AvgPool factor into conv1/conv2, cast matmul operands to
    bf16 (biases stay f32, added post-accumulation)."""
    def pack_conv(w, b, scale):
        oc, ic, kh, kw = w.shape
        wm = jnp.transpose(w, (2, 3, 1, 0)).reshape(kh * kw * ic, oc) * scale
        wm = jnp.pad(wm, ((0, 0), (0, LANE - oc))).astype(jnp.bfloat16)
        bm = (jnp.pad(b, (0, LANE - oc)) * scale).reshape(1, LANE)
        return wm, bm.astype(jnp.float32)

    def pack_fc(w, b):
        outf, inf = w.shape
        wm = jnp.pad(w.T, ((0, LANE - inf), (0, LANE - outf))).astype(jnp.bfloat16)
        bm = jnp.pad(b, (0, LANE - outf)).reshape(1, LANE).astype(jnp.float32)
        return wm, bm

    packed = {}
    packed["w1"], packed["b1"] = pack_conv(params["conv1_w"], params["conv1_b"], 0.25)
    packed["w2"], packed["b2"] = pack_conv(params["conv2_w"], params["conv2_b"], 0.25)
    # conv3: 5x5 over the 5x5 pooled map == full contraction.  Keep one
    # (in_ch -> out_ch) slab per spatial tap so the kernel contracts channels
    # on the MXU and accumulates taps without any activation relayout.
    w3 = params["conv3_w"]                               # (120, 16, 5, 5)
    oc3, ic3, kh3, kw3 = w3.shape
    w3t = jnp.transpose(w3, (2, 3, 1, 0)).reshape(kh3 * kw3, ic3, oc3)
    packed["w3"] = jnp.pad(
        w3t, ((0, 0), (0, LANE - ic3), (0, LANE - oc3))).astype(jnp.bfloat16)
    packed["b3"] = jnp.pad(params["conv3_b"],
                           (0, LANE - oc3)).reshape(1, LANE).astype(jnp.float32)
    packed["w4"], packed["b4"] = pack_fc(params["fc1_w"], params["fc1_b"])
    packed["w5"], packed["b5"] = pack_fc(params["fc2_w"], params["fc2_b"])
    return packed


# ---------------------------------------------------------------------------
# Forward pass (mirrors LeNet.forward; 2 Pallas kernel launches total)
# ---------------------------------------------------------------------------
def lenet_forward(packed, x_nchw, num_classes=10):
    n = x_nchw.shape[0]
    x = jnp.transpose(x_nchw, (0, 2, 3, 1)).astype(jnp.bfloat16)  # NHWC, bf16
    npad = _round_up(n, NB)
    if npad != n:                       # pad batch to a full 8-sample block
        x = jnp.pad(x, ((0, npad - n), (0, 0), (0, 0), (0, 0)))
    nblk = npad // NB

    # ---- kernel 1: conv1 + ReLU + AvgPool --------------------------------
    p1, ph1, pw1 = _conv1_quadrant_patches(x)
    mb1 = NB * ph1 * pw1
    y1 = pl.pallas_call(
        _conv1_pool_kernel,
        out_shape=jax.ShapeDtypeStruct((nblk * mb1, LANE), jnp.bfloat16),
        grid=(nblk,),
        in_specs=[
            pl.BlockSpec((4 * mb1, p1.shape[1]), lambda b: (b, 0)),
            pl.BlockSpec(packed["w1"].shape, lambda b: (0, 0)),
            pl.BlockSpec(packed["b1"].shape, lambda b: (0, 0)),
        ],
        out_specs=pl.BlockSpec((mb1, LANE), lambda b: (b, 0)),
        compiler_params=_COMPILER_PARAMS,
    )(p1, packed["w1"], packed["b1"])

    # ---- kernel 2: conv2 + ReLU + AvgPool + conv3 + ReLU + fc1 + ReLU + fc2
    c1 = packed["w2"].shape[0] // 25            # real conv1 channels (6)
    p2, _ = _conv2_quadrant_patches(y1, npad, ph1, pw1, c1)
    mb2 = NB * 25
    out = pl.pallas_call(
        _conv2_head_kernel,
        out_shape=jax.ShapeDtypeStruct((npad, LANE), jnp.float32),
        grid=(nblk,),
        in_specs=[
            pl.BlockSpec((4 * mb2, p2.shape[1]), lambda b: (b, 0)),
            pl.BlockSpec(packed["w2"].shape, lambda b: (0, 0)),
            pl.BlockSpec(packed["b2"].shape, lambda b: (0, 0)),
            pl.BlockSpec(packed["w3"].shape, lambda b: (0, 0, 0)),
            pl.BlockSpec(packed["b3"].shape, lambda b: (0, 0)),
            pl.BlockSpec(packed["w4"].shape, lambda b: (0, 0)),
            pl.BlockSpec(packed["b4"].shape, lambda b: (0, 0)),
            pl.BlockSpec(packed["w5"].shape, lambda b: (0, 0)),
            pl.BlockSpec(packed["b5"].shape, lambda b: (0, 0)),
        ],
        out_specs=pl.BlockSpec((NB, LANE), lambda b: (b, 0)),
        compiler_params=_COMPILER_PARAMS,
    )(p2, packed["w2"], packed["b2"], packed["w3"], packed["b3"],
      packed["w4"], packed["b4"], packed["w5"], packed["b5"])

    return out[:n, :num_classes]


# ---------------------------------------------------------------------------
# Pure-JAX reference (PyTorch semantics, f32) for the correctness check
# ---------------------------------------------------------------------------
def lenet_reference(params, x):
    dn = ("NCHW", "OIHW", "NCHW")

    def conv(x, w, b):
        y = jax.lax.conv_general_dilated(x, w, (1, 1), "VALID",
                                         dimension_numbers=dn)
        return jnp.maximum(y + b[None, :, None, None], 0.0)

    def pool(x):
        return 0.25 * (x[:, :, 0::2, 0::2] + x[:, :, 0::2, 1::2]
                       + x[:, :, 1::2, 0::2] + x[:, :, 1::2, 1::2])

    x = pool(conv(x, params["conv1_w"], params["conv1_b"]))
    x = pool(conv(x, params["conv2_w"], params["conv2_b"]))
    x = conv(x, params["conv3_w"], params["conv3_b"])
    x = x.reshape(x.shape[0], -1)
    x = jnp.maximum(x @ params["fc1_w"].T + params["fc1_b"], 0.0)
    return x @ params["fc2_w"].T + params["fc2_b"]


if __name__ == "__main__":
    key = jax.random.PRNGKey(0)
    kp, kx = jax.random.split(key)

    params = init_lenet_params(kp, in_channels=1, num_classes=10)
    packed = pack_lenet_params(params)   # one-time bf16 weight packing
    # LeNet needs 32x32 spatial input so conv3 sees a 5x5 feature map.
    x = jax.random.normal(kx, (2, 1, 32, 32), dtype=jnp.float32)

    fwd = jax.jit(lenet_forward)
    out = jax.block_until_ready(fwd(packed, x))

    assert out.shape == (2, 10), out.shape
    assert out.dtype == jnp.float32

    ref = lenet_reference(params, x)
    # bf16 MXU operands -> slightly looser tolerance than pure-f32.
    assert jnp.allclose(out, ref, atol=2e-2, rtol=2e-2), (out, ref)
    print("KERNEL_OK")
</pallas_src>

<mosaic_0001>
module attributes {stable_mosaic.version = 11 : i64} {
  func.func @_conv1_pool_kernel(%arg0: i32, %arg1: memref<6272x25xbf16, #tpu.memory_space<vmem>>, %arg2: memref<25x128xbf16, #tpu.memory_space<vmem>>, %arg3: memref<1x128xf32, #tpu.memory_space<vmem>>, %arg4: memref<1568x128xbf16, #tpu.memory_space<vmem>>) attributes {dimension_semantics = [#tpu.dimension_semantics<parallel>], iteration_bounds = array<i64: 1>, scalar_prefetch = 0 : i64, scratch_operands = 0 : i64, tpu.core_type = #tpu.core_type<tc>, window_params = [{transform_indices = @transform_0, window_bounds = array<i64: 6272, 25>}, {pipeline_mode = #tpu.pipeline_mode<synchronous>, transform_indices = @transform_1, window_bounds = array<i64: 25, 128>}, {pipeline_mode = #tpu.pipeline_mode<synchronous>, transform_indices = @transform_2, window_bounds = array<i64: 1, 128>}, {transform_indices = @transform_3, window_bounds = array<i64: 1568, 128>}]} {
    %c0 = arith.constant 0 : index
    %c0_0 = arith.constant 0 : index
    %0 = vector.load %arg1[%c0, %c0_0] : memref<6272x25xbf16, #tpu.memory_space<vmem>>, vector<6272x25xbf16>
    %c0_1 = arith.constant 0 : index
    %c0_2 = arith.constant 0 : index
    %1 = vector.load %arg2[%c0_1, %c0_2] : memref<25x128xbf16, #tpu.memory_space<vmem>>, vector<25x128xbf16>
    %cst = arith.constant dense<0.000000e+00> : vector<6272x128xf32>
    %2 = tpu.matmul %0, %1, %cst {dimension_numbers = #tpu.dot_dimension_numbers<[1], [0], [0], [1], [0, 0, 1, 1], [], []>} : vector<6272x25xbf16>, vector<25x128xbf16>, vector<6272x128xf32> -> vector<6272x128xf32>
    %c0_3 = arith.constant 0 : index
    %c0_4 = arith.constant 0 : index
    %3 = vector.load %arg3[%c0_3, %c0_4] : memref<1x128xf32, #tpu.memory_space<vmem>>, vector<1x128xf32>
    %4 = vector.broadcast %3 : vector<1x128xf32> to vector<6272x128xf32>
    %5 = arith.addf %2, %4 : vector<6272x128xf32>
    %cst_5 = arith.constant 0.000000e+00 : f32
    %6 = vector.broadcast %cst_5 : f32 to vector<6272x128xf32>
    %7 = arith.maximumf %5, %6 : vector<6272x128xf32>
    %8 = vector.extract_strided_slice %7 {offsets = [0, 0], sizes = [1568, 128], strides = [1, 1]} : vector<6272x128xf32> to vector<1568x128xf32>
    %9 = vector.extract_strided_slice %7 {offsets = [1568, 0], sizes = [1568, 128], strides = [1, 1]} : vector<6272x128xf32> to vector<1568x128xf32>
    %10 = arith.addf %8, %9 : vector<1568x128xf32>
    %11 = vector.extract_strided_slice %7 {offsets = [3136, 0], sizes = [1568, 128], strides = [1, 1]} : vector<6272x128xf32> to vector<1568x128xf32>
    %12 = arith.addf %10, %11 : vector<1568x128xf32>
    %13 = vector.extract_strided_slice %7 {offsets = [4704, 0], sizes = [1568, 128], strides = [1, 1]} : vector<6272x128xf32> to vector<1568x128xf32>
    %14 = arith.addf %12, %13 : vector<1568x128xf32>
    %15 = arith.truncf %14 : vector<1568x128xf32> to vector<1568x128xbf16>
    %c0_6 = arith.constant 0 : index
    %c0_7 = arith.constant 0 : index
    %16 = vector.load %arg4[%c0_6, %c0_7] : memref<1568x128xbf16, #tpu.memory_space<vmem>>, vector<1568x128xbf16>
    tpu.vector_store %arg4[%c0_6, %c0_7], %15 {strides = array<i32>} : memref<1568x128xbf16, #tpu.memory_space<vmem>>, vector<1568x128xbf16>,
    return
  }
  func.func @transform_0(%arg0: i32) -> (i32, i32) {
    %c0_i32 = arith.constant 0 : i32
    %c0_i32_0 = arith.constant 0 : i32
    return %arg0, %c0_i32 : i32, i32
  }
  func.func @transform_1(%arg0: i32) -> (i32, i32) {
    %c0_i32 = arith.constant 0 : i32
    %c0_i32_0 = arith.constant 0 : i32
    %c0_i32_1 = arith.constant 0 : i32
    return %c0_i32, %c0_i32_0 : i32, i32
  }
  func.func @transform_2(%arg0: i32) -> (i32, i32) {
    %c0_i32 = arith.constant 0 : i32
    %c0_i32_0 = arith.constant 0 : i32
    %c0_i32_1 = arith.constant 0 : i32
    return %c0_i32, %c0_i32_0 : i32, i32
  }
  func.func @transform_3(%arg0: i32) -> (i32, i32) {
    %c0_i32 = arith.constant 0 : i32
    %c0_i32_0 = arith.constant 0 : i32
    return %arg0, %c0_i32 : i32, i32
  }
}

module attributes {stable_mosaic.version = 11 : i64} {
  func.func @_conv2_head_kernel(%arg0: i32, %arg1: memref<800x150xbf16, #tpu.memory_space<vmem>>, %arg2: memref<150x128xbf16, #tpu.memory_space<vmem>>, %arg3: memref<1x128xf32, #tpu.memory_space<vmem>>, %arg4: memref<25x128x128xbf16, #tpu.memory_space<vmem>>, %arg5: memref<1x128xf32, #tpu.memory_space<vmem>>, %arg6: memref<128x128xbf16, #tpu.memory_space<vmem>>, %arg7: memref<1x128xf32, #tpu.memory_space<vmem>>, %arg8: memref<128x128xbf16, #tpu.memory_space<vmem>>, %arg9: memref<1x128xf32, #tpu.memory_space<vmem>>, %arg10: memref<8x128xf32, #tpu.memory_space<vmem>>) attributes {dimension_semantics = [#tpu.dimension_semantics<parallel>], iteration_bounds = array<i64: 1>, scalar_prefetch = 0 : i64, scratch_operands = 0 : i64, tpu.core_type = #tpu.core_type<tc>, window_params = [{transform_indices = @transform_0, window_bounds = array<i64: 800, 150>}, {pipeline_mode = #tpu.pipeline_mode<synchronous>, transform_indices = @transform_1, window_bounds = array<i64: 150, 128>}, {pipeline_mode = #tpu.pipeline_mode<synchronous>, transform_indices = @transform_2, window_bounds = array<i64: 1, 128>}, {pipeline_mode = #tpu.pipeline_mode<synchronous>, transform_indices = @transform_3, window_bounds = array<i64: 25, 128, 128>}, {pipeline_mode = #tpu.pipeline_mode<synchronous>, transform_indices = @transform_4, window_bounds = array<i64: 1, 128>}, {pipeline_mode = #tpu.pipeline_mode<synchronous>, transform_indices = @transform_5, window_bounds = array<i64: 128, 128>}, {pipeline_mode = #tpu.pipeline_mode<synchronous>, transform_indices = @transform_6, window_bounds = array<i64: 1, 128>}, {pipeline_mode = #tpu.pipeline_mode<synchronous>, transform_indices = @transform_7, window_bounds = array<i64: 128, 128>}, {pipeline_mode = #tpu.pipeline_mode<synchronous>, transform_indices = @transform_8, window_bounds = array<i64: 1, 128>}, {transform_indices = @transform_9, window_bounds = array<i64: 8, 128>}]} {
    %c0 = arith.constant 0 : index
    %c0_0 = arith.constant 0 : index
    %0 = vector.load %arg1[%c0, %c0_0] : memref<800x150xbf16, #tpu.memory_space<vmem>>, vector<800x150xbf16>
    %c0_1 = arith.constant 0 : index
    %c0_2 = arith.constant 0 : index
    %1 = vector.load %arg2[%c0_1, %c0_2] : memref<150x128xbf16, #tpu.memory_space<vmem>>, vector<150x128xbf16>
    %cst = arith.constant dense<0.000000e+00> : vector<800x128xf32>
    %2 = tpu.matmul %0, %1, %cst {dimension_numbers = #tpu.dot_dimension_numbers<[1], [0], [0], [1], [0, 0, 1, 1], [], []>} : vector<800x150xbf16>, vector<150x128xbf16>, vector<800x128xf32> -> vector<800x128xf32>
    %c0_3 = arith.constant 0 : index
    %c0_4 = arith.constant 0 : index
    %3 = vector.load %arg3[%c0_3, %c0_4] : memref<1x128xf32, #tpu.memory_space<vmem>>, vector<1x128xf32>
    %4 = vector.broadcast %3 : vector<1x128xf32> to vector<800x128xf32>
    %5 = arith.addf %2, %4 : vector<800x128xf32>
    %cst_5 = arith.constant 0.000000e+00 : f32
    %6 = vector.broadcast %cst_5 : f32 to vector<800x128xf32>
    %7 = arith.maximumf %5, %6 : vector<800x128xf32>
    %8 = vector.extract_strided_slice %7 {offsets = [0, 0], sizes = [200, 128], strides = [1, 1]} : vector<800x128xf32> to vector<200x128xf32>
    %9 = vector.extract_strided_slice %7 {offsets = [200, 0], sizes = [200, 128], strides = [1, 1]} : vector<800x128xf32> to vector<200x128xf32>
    %10 = arith.addf %8, %9 : vector<200x128xf32>
    %11 = vector.extract_strided_slice %7 {offsets = [400, 0], sizes = [200, 128], strides = [1, 1]} : vector<800x128xf32> to vector<200x128xf32>
    %12 = arith.addf %10, %11 : vector<200x128xf32>
    %13 = vector.extract_strided_slice %7 {offsets = [600, 0], sizes = [200, 128], strides = [1, 1]} : vector<800x128xf32> to vector<200x128xf32>
    %14 = arith.addf %12, %13 : vector<200x128xf32>
    %15 = arith.truncf %14 : vector<200x128xf32> to vector<200x128xbf16>
    %16 = vector.extract_strided_slice %15 {offsets = [0, 0], sizes = [8, 128], strides = [1, 1]} : vector<200x128xbf16> to vector<8x128xbf16>
    %c0_6 = arith.constant 0 : index
    %c0_7 = arith.constant 0 : index
    %c0_8 = arith.constant 0 : index
    %17 = vector.load %arg4[%c0_6, %c0_7, %c0_8] : memref<25x128x128xbf16, #tpu.memory_space<vmem>>, vector<1x128x128xbf16>
    %18 = vector.shape_cast %17 : vector<1x128x128xbf16> to vector<128x128xbf16>
    %cst_9 = arith.constant dense<0.000000e+00> : vector<8x128xf32>
    %19 = tpu.matmul %16, %18, %cst_9 {dimension_numbers = #tpu.dot_dimension_numbers<[1], [0], [0], [1], [0, 0, 1, 1], [], []>} : vector<8x128xbf16>, vector<128x128xbf16>, vector<8x128xf32> -> vector<8x128xf32>
    %20 = vector.extract_strided_slice %15 {offsets = [8, 0], sizes = [8, 128], strides = [1, 1]} : vector<200x128xbf16> to vector<8x128xbf16>
    %c1 = arith.constant 1 : index
    %c0_10 = arith.constant 0 : index
    %c0_11 = arith.constant 0 : index
    %21 = vector.load %arg4[%c1, %c0_10, %c0_11] : memref<25x128x128xbf16, #tpu.memory_space<vmem>>, vector<1x128x128xbf16>
    %22 = vector.shape_cast %21 : vector<1x128x128xbf16> to vector<128x128xbf16>
    %cst_12 = arith.constant dense<0.000000e+00> : vector<8x128xf32>
    %23 = tpu.matmul %20, %22, %cst_12 {dimension_numbers = #tpu.dot_dimension_numbers<[1], [0], [0], [1], [0, 0, 1, 1], [], []>} : vector<8x128xbf16>, vector<128x128xbf16>, vector<8x128xf32> -> vector<8x128xf32>
    %24 = arith.addf %19, %23 : vector<8x128xf32>
    %25 = vector.extract_strided_slice %15 {offsets = [16, 0], sizes = [8, 128], strides = [1, 1]} : vector<200x128xbf16> to vector<8x128xbf16>
    %c2 = arith.constant 2 : index
    %c0_13 = arith.constant 0 : index
    %c0_14 = arith.constant 0 : index
    %26 = vector.load %arg4[%c2, %c0_13, %c0_14] : memref<25x128x128xbf16, #tpu.memory_space<vmem>>, vector<1x128x128xbf16>
    %27 = vector.shape_cast %26 : vector<1x128x128xbf16> to vector<128x128xbf16>
    %cst_15 = arith.constant dense<0.000000e+00> : vector<8x128xf32>
    %28 = tpu.matmul %25, %27, %cst_15 {dimension_numbers = #tpu.dot_dimension_numbers<[1], [0], [0], [1], [0, 0, 1, 1], [], []>} : vector<8x128xbf16>, vector<128x128xbf16>, vector<8x128xf32> -> vector<8x128xf32>
    %29 = arith.addf %24, %28 : vector<8x128xf32>
    %30 = vector.extract_strided_slice %15 {offsets = [24, 0], sizes = [8, 128], strides = [1, 1]} : vector<200x128xbf16> to vector<8x128xbf16>
    %c3 = arith.constant 3 : index
    %c0_16 = arith.constant 0 : index
    %c0_17 = arith.constant 0 : index
    %31 = vector.load %arg4[%c3, %c0_16, %c0_17] : memref<25x128x128xbf16, #tpu.memory_space<vmem>>, vector<1x128x128xbf16>
    %32 = vector.shape_cast %31 : vector<1x128x128xbf16> to vector<128x128xbf16>
    %cst_18 = arith.constant dense<0.000000e+00> : vector<8x128xf32>
    %33 = tpu.matmul %30, %32, %cst_18 {dimension_numbers = #tpu.dot_dimension_numbers<[1], [0], [0], [1], [0, 0, 1, 1], [], []>} : vector<8x128xbf16>, vector<128x128xbf16>, vector<8x128xf32> -> vector<8x128xf32>
    %34 = arith.addf %29, %33 : vector<8x128xf32>
    %35 = vector.extract_strided_slice %15 {offsets = [32, 0], sizes = [8, 128], strides = [1, 1]} : vector<200x128xbf16> to vector<8x128xbf16>
    %c4 = arith.constant 4 : index
    %c0_19 = arith.constant 0 : index
    %c0_20 = arith.constant 0 : index
    %36 = vector.load %arg4[%c4, %c0_19, %c0_20] : memref<25x128x128xbf16, #tpu.memory_space<vmem>>, vector<1x128x128xbf16>
    %37 = vector.shape_cast %36 : vector<1x128x128xbf16> to vector<128x128xbf16>
    %cst_21 = arith.constant dense<0.000000e+00> : vector<8x128xf32>
    %38 = tpu.matmul %35, %37, %cst_21 {dimension_numbers = #tpu.dot_dimension_numbers<[1], [0], [0], [1], [0, 0, 1, 1], [], []>} : vector<8x128xbf16>, vector<128x128xbf16>, vector<8x128xf32> -> vector<8x128xf32>
    %39 = arith.addf %34, %38 : vector<8x128xf32>
    %40 = vector.extract_strided_slice %15 {offsets = [40, 0], sizes = [8, 128], strides = [1, 1]} : vector<200x128xbf16> to vector<8x128xbf16>
    %c5 = arith.constant 5 : index
    %c0_22 = arith.constant 0 : index
    %c0_23 = arith.constant 0 : index
    %41 = vector.load %arg4[%c5, %c0_22, %c0_23] : memref<25x128x128xbf16, #tpu.memory_space<vmem>>, vector<1x128x128xbf16>
    %42 = vector.shape_cast %41 : vector<1x128x128xbf16> to vector<128x128xbf16>
    %cst_24 = arith.constant dense<0.000000e+00> : vector<8x128xf32>
    %43 = tpu.matmul %40, %42, %cst_24 {dimension_numbers = #tpu.dot_dimension_numbers<[1], [0], [0], [1], [0, 0, 1, 1], [], []>} : vector<8x128xbf16>, vector<128x128xbf16>, vector<8x128xf32> -> vector<8x128xf32>
    %44 = arith.addf %39, %43 : vector<8x128xf32>
    %45 = vector.extract_strided_slice %15 {offsets = [48, 0], sizes = [8, 128], strides = [1, 1]} : vector<200x128xbf16> to vector<8x128xbf16>
    %c6 = arith.constant 6 : index
    %c0_25 = arith.constant 0 : index
    %c0_26 = arith.constant 0 : index
    %46 = vector.load %arg4[%c6, %c0_25, %c0_26] : memref<25x128x128xbf16, #tpu.memory_space<vmem>>, vector<1x128x128xbf16>
    %47 = vector.shape_cast %46 : vector<1x128x128xbf16> to vector<128x128xbf16>
    %cst_27 = arith.constant dense<0.000000e+00> : vector<8x128xf32>
    %48 = tpu.matmul %45, %47, %cst_27 {dimension_numbers = #tpu.dot_dimension_numbers<[1], [0], [0], [1], [0, 0, 1, 1], [], []>} : vector<8x128xbf16>, vector<128x128xbf16>, vector<8x128xf32> -> vector<8x128xf32>
    %49 = arith.addf %44, %48 : vector<8x128xf32>
    %50 = vector.extract_strided_slice %15 {offsets = [56, 0], sizes = [8, 128], strides = [1, 1]} : vector<200x128xbf16> to vector<8x128xbf16>
    %c7 = arith.constant 7 : index
    %c0_28 = arith.constant 0 : index
    %c0_29 = arith.constant 0 : index
    %51 = vector.load %arg4[%c7, %c0_28, %c0_29] : memref<25x128x128xbf16, #tpu.memory_space<vmem>>, vector<1x128x128xbf16>
    %52 = vector.shape_cast %51 : vector<1x128x128xbf16> to vector<128x128xbf16>
    %cst_30 = arith.constant dense<0.000000e+00> : vector<8x128xf32>
    %53 = tpu.matmul %50, %52, %cst_30 {dimension_numbers = #tpu.dot_dimension_numbers<[1], [0], [0], [1], [0, 0, 1, 1], [], []>} : vector<8x128xbf16>, vector<128x128xbf16>, vector<8x128xf32> -> vector<8x128xf32>
    %54 = arith.addf %49, %53 : vector<8x128xf32>
    %55 = vector.extract_strided_slice %15 {offsets = [64, 0], sizes = [8, 128], strides = [1, 1]} : vector<200x128xbf16> to vector<8x128xbf16>
    %c8 = arith.constant 8 : index
    %c0_31 = arith.constant 0 : index
    %c0_32 = arith.constant 0 : index
    %56 = vector.load %arg4[%c8, %c0_31, %c0_32] : memref<25x128x128xbf16, #tpu.memory_space<vmem>>, vector<1x128x128xbf16>
    %57 = vector.shape_cast %56 : vector<1x128x128xbf16> to vector<128x128xbf16>
    %cst_33 = arith.constant dense<0.000000e+00> : vector<8x128xf32>
    %58 = tpu.matmul %55, %57, %cst_33 {dimension_numbers = #tpu.dot_dimension_numbers<[1], [0], [0], [1], [0, 0, 1, 1], [], []>} : vector<8x128xbf16>, vector<128x128xbf16>, vector<8x128xf32> -> vector<8x128xf32>
    %59 = arith.addf %54, %58 : vector<8x128xf32>
    %60 = vector.extract_strided_slice %15 {offsets = [72, 0], sizes = [8, 128], strides = [1, 1]} : vector<200x128xbf16> to vector<8x128xbf16>
    %c9 = arith.constant 9 : index
    %c0_34 = arith.constant 0 : index
    %c0_35 = arith.constant 0 : index
    %61 = vector.load %arg4[%c9, %c0_34, %c0_35] : memref<25x128x128xbf16, #tpu.memory_space<vmem>>, vector<1x128x128xbf16>
    %62 = vector.shape_cast %61 : vector<1x128x128xbf16> to vector<128x128xbf16>
    %cst_36 = arith.constant dense<0.000000e+00> : vector<8x128xf32>
    %63 = tpu.matmul %60, %62, %cst_36 {dimension_numbers = #tpu.dot_dimension_numbers<[1], [0], [0], [1], [0, 0, 1, 1], [], []>} : vector<8x128xbf16>, vector<128x128xbf16>, vector<8x128xf32> -> vector<8x128xf32>
    %64 = arith.addf %59, %63 : vector<8x128xf32>
    %65 = vector.extract_strided_slice %15 {offsets = [80, 0], sizes = [8, 128], strides = [1, 1]} : vector<200x128xbf16> to vector<8x128xbf16>
    %c10 = arith.constant 10 : index
    %c0_37 = arith.constant 0 : index
    %c0_38 = arith.constant 0 : index
    %66 = vector.load %arg4[%c10, %c0_37, %c0_38] : memref<25x128x128xbf16, #tpu.memory_space<vmem>>, vector<1x128x128xbf16>
    %67 = vector.shape_cast %66 : vector<1x128x128xbf16> to vector<128x128xbf16>
    %cst_39 = arith.constant dense<0.000000e+00> : vector<8x128xf32>
    %68 = tpu.matmul %65, %67, %cst_39 {dimension_numbers = #tpu.dot_dimension_numbers<[1], [0], [0], [1], [0, 0, 1, 1], [], []>} : vector<8x128xbf16>, vector<128x128xbf16>, vector<8x128xf32> -> vector<8x128xf32>
    %69 = arith.addf %64, %68 : vector<8x128xf32>
    %70 = vector.extract_strided_slice %15 {offsets = [88, 0], sizes = [8, 128], strides = [1, 1]} : vector<200x128xbf16> to vector<8x128xbf16>
    %c11 = arith.constant 11 : index
    %c0_40 = arith.constant 0 : index
    %c0_41 = arith.constant 0 : index
    %71 = vector.load %arg4[%c11, %c0_40, %c0_41] : memref<25x128x128xbf16, #tpu.memory_space<vmem>>, vector<1x128x128xbf16>
    %72 = vector.shape_cast %71 : vector<1x128x128xbf16> to vector<128x128xbf16>
    %cst_42 = arith.constant dense<0.000000e+00> : vector<8x128xf32>
    %73 = tpu.matmul %70, %72, %cst_42 {dimension_numbers = #tpu.dot_dimension_numbers<[1], [0], [0], [1], [0, 0, 1, 1], [], []>} : vector<8x128xbf16>, vector<128x128xbf16>, vector<8x128xf32> -> vector<8x128xf32>
    %74 = arith.addf %69, %73 : vector<8x128xf32>
    %75 = vector.extract_strided_slice %15 {offsets = [96, 0], sizes = [8, 128], strides = [1, 1]} : vector<200x128xbf16> to vector<8x128xbf16>
    %c12 = arith.constant 12 : index
    %c0_43 = arith.constant 0 : index
    %c0_44 = arith.constant 0 : index
    %76 = vector.load %arg4[%c12, %c0_43, %c0_44] : memref<25x128x128xbf16, #tpu.memory_space<vmem>>, vector<1x128x128xbf16>
    %77 = vector.shape_cast %76 : vector<1x128x128xbf16> to vector<128x128xbf16>
    %cst_45 = arith.constant dense<0.000000e+00> : vector<8x128xf32>
    %78 = tpu.matmul %75, %77, %cst_45 {dimension_numbers = #tpu.dot_dimension_numbers<[1], [0], [0], [1], [0, 0, 1, 1], [], []>} : vector<8x128xbf16>, vector<128x128xbf16>, vector<8x128xf32> -> vector<8x128xf32>
    %79 = arith.addf %74, %78 : vector<8x128xf32>
    %80 = vector.extract_strided_slice %15 {offsets = [104, 0], sizes = [8, 128], strides = [1, 1]} : vector<200x128xbf16> to vector<8x128xbf16>
    %c13 = arith.constant 13 : index
    %c0_46 = arith.constant 0 : index
    %c0_47 = arith.constant 0 : index
    %81 = vector.load %arg4[%c13, %c0_46, %c0_47] : memref<25x128x128xbf16, #tpu.memory_space<vmem>>, vector<1x128x128xbf16>
    %82 = vector.shape_cast %81 : vector<1x128x128xbf16> to vector<128x128xbf16>
    %cst_48 = arith.constant dense<0.000000e+00> : vector<8x128xf32>
    %83 = tpu.matmul %80, %82, %cst_48 {dimension_numbers = #tpu.dot_dimension_numbers<[1], [0], [0], [1], [0, 0, 1, 1], [], []>} : vector<8x128xbf16>, vector<128x128xbf16>, vector<8x128xf32> -> vector<8x128xf32>
    %84 = arith.addf %79, %83 : vector<8x128xf32>
    %85 = vector.extract_strided_slice %15 {offsets = [112, 0], sizes = [8, 128], strides = [1, 1]} : vector<200x128xbf16> to vector<8x128xbf16>
    %c14 = arith.constant 14 : index
    %c0_49 = arith.constant 0 : index
    %c0_50 = arith.constant 0 : index
    %86 = vector.load %arg4[%c14, %c0_49, %c0_50] : memref<25x128x128xbf16, #tpu.memory_space<vmem>>, vector<1x128x128xbf16>
    %87 = vector.shape_cast %86 : vector<1x128x128xbf16> to vector<128x128xbf16>
    %cst_51 = arith.constant dense<0.000000e+00> : vector<8x128xf32>
    %88 = tpu.matmul %85, %87, %cst_51 {dimension_numbers = #tpu.dot_dimension_numbers<[1], [0], [0], [1], [0, 0, 1, 1], [], []>} : vector<8x128xbf16>, vector<128x128xbf16>, vector<8x128xf32> -> vector<8x128xf32>
    %89 = arith.addf %84, %88 : vector<8x128xf32>
    %90 = vector.extract_strided_slice %15 {offsets = [120, 0], sizes = [8, 128], strides = [1, 1]} : vector<200x128xbf16> to vector<8x128xbf16>
    %c15 = arith.constant 15 : index
    %c0_52 = arith.constant 0 : index
    %c0_53 = arith.constant 0 : index
    %91 = vector.load %arg4[%c15, %c0_52, %c0_53] : memref<25x128x128xbf16, #tpu.memory_space<vmem>>, vector<1x128x128xbf16>
    %92 = vector.shape_cast %91 : vector<1x128x128xbf16> to vector<128x128xbf16>
    %cst_54 = arith.constant dense<0.000000e+00> : vector<8x128xf32>
    %93 = tpu.matmul %90, %92, %cst_54 {dimension_numbers = #tpu.dot_dimension_numbers<[1], [0], [0], [1], [0, 0, 1, 1], [], []>} : vector<8x128xbf16>, vector<128x128xbf16>, vector<8x128xf32> -> vector<8x128xf32>
    %94 = arith.addf %89, %93 : vector<8x128xf32>
    %95 = vector.extract_strided_slice %15 {offsets = [128, 0], sizes = [8, 128], strides = [1, 1]} : vector<200x128xbf16> to vector<8x128xbf16>
    %c16 = arith.constant 16 : index
    %c0_55 = arith.constant 0 : index
    %c0_56 = arith.constant 0 : index
    %96 = vector.load %arg4[%c16, %c0_55, %c0_56] : memref<25x128x128xbf16, #tpu.memory_space<vmem>>, vector<1x128x128xbf16>
    %97 = vector.shape_cast %96 : vector<1x128x128xbf16> to vector<128x128xbf16>
    %cst_57 = arith.constant dense<0.000000e+00> : vector<8x128xf32>
    %98 = tpu.matmul %95, %97, %cst_57 {dimension_numbers = #tpu.dot_dimension_numbers<[1], [0], [0], [1], [0, 0, 1, 1], [], []>} : vector<8x128xbf16>, vector<128x128xbf16>, vector<8x128xf32> -> vector<8x128xf32>
    %99 = arith.addf %94, %98 : vector<8x128xf32>
    %100 = vector.extract_strided_slice %15 {offsets = [136, 0], sizes = [8, 128], strides = [1, 1]} : vector<200x128xbf16> to vector<8x128xbf16>
    %c17 = arith.constant 17 : index
    %c0_58 = arith.constant 0 : index
    %c0_59 = arith.constant 0 : index
    %101 = vector.load %arg4[%c17, %c0_58, %c0_59] : memref<25x128x128xbf16, #tpu.memory_space<vmem>>, vector<1x128x128xbf16>
    %102 = vector.shape_cast %101 : vector<1x128x128xbf16> to vector<128x128xbf16>
    %cst_60 = arith.constant dense<0.000000e+00> : vector<8x128xf32>
    %103 = tpu.matmul %100, %102, %cst_60 {dimension_numbers = #tpu.dot_dimension_numbers<[1], [0], [0], [1], [0, 0, 1, 1], [], []>} : vector<8x128xbf16>, vector<128x128xbf16>, vector<8x128xf32> -> vector<8x128xf32>
    %104 = arith.addf %99, %103 : vector<8x128xf32>
    %105 = vector.extract_strided_slice %15 {offsets = [144, 0], sizes = [8, 128], strides = [1, 1]} : vector<200x128xbf16> to vector<8x128xbf16>
    %c18 = arith.constant 18 : index
    %c0_61 = arith.constant 0 : index
    %c0_62 = arith.constant 0 : index
    %106 = vector.load %arg4[%c18, %c0_61, %c0_62] : memref<25x128x128xbf16, #tpu.memory_space<vmem>>, vector<1x128x128xbf16>
    %107 = vector.shape_cast %106 : vector<1x128x128xbf16> to vector<128x128xbf16>
    %cst_63 = arith.constant dense<0.000000e+00> : vector<8x128xf32>
    %108 = tpu.matmul %105, %107, %cst_63 {dimension_numbers = #tpu.dot_dimension_numbers<[1], [0], [0], [1], [0, 0, 1, 1], [], []>} : vector<8x128xbf16>, vector<128x128xbf16>, vector<8x128xf32> -> vector<8x128xf32>
    %109 = arith.addf %104, %108 : vector<8x128xf32>
    %110 = vector.extract_strided_slice %15 {offsets = [152, 0], sizes = [8, 128], strides = [1, 1]} : vector<200x128xbf16> to vector<8x128xbf16>
    %c19 = arith.constant 19 : index
    %c0_64 = arith.constant 0 : index
    %c0_65 = arith.constant 0 : index
    %111 = vector.load %arg4[%c19, %c0_64, %c0_65] : memref<25x128x128xbf16, #tpu.memory_space<vmem>>, vector<1x128x128xbf16>
    %112 = vector.shape_cast %111 : vector<1x128x128xbf16> to vector<128x128xbf16>
    %cst_66 = arith.constant dense<0.000000e+00> : vector<8x128xf32>
    %113 = tpu.matmul %110, %112, %cst_66 {dimension_numbers = #tpu.dot_dimension_numbers<[1], [0], [0], [1], [0, 0, 1, 1], [], []>} : vector<8x128xbf16>, vector<128x128xbf16>, vector<8x128xf32> -> vector<8x128xf32>
    %114 = arith.addf %109, %113 : vector<8x128xf32>
    %115 = vector.extract_strided_slice %15 {offsets = [160, 0], sizes = [8, 128], strides = [1, 1]} : vector<200x128xbf16> to vector<8x128xbf16>
    %c20 = arith.constant 20 : index
    %c0_67 = arith.constant 0 : index
    %c0_68 = arith.constant 0 : index
    %116 = vector.load %arg4[%c20, %c0_67, %c0_68] : memref<25x128x128xbf16, #tpu.memory_space<vmem>>, vector<1x128x128xbf16>
    %117 = vector.shape_cast %116 : vector<1x128x128xbf16> to vector<128x128xbf16>
    %cst_69 = arith.constant dense<0.000000e+00> : vector<8x128xf32>
    %118 = tpu.matmul %115, %117, %cst_69 {dimension_numbers = #tpu.dot_dimension_numbers<[1], [0], [0], [1], [0, 0, 1, 1], [], []>} : vector<8x128xbf16>, vector<128x128xbf16>, vector<8x128xf32> -> vector<8x128xf32>
    %119 = arith.addf %114, %118 : vector<8x128xf32>
    %120 = vector.extract_strided_slice %15 {offsets = [168, 0], sizes = [8, 128], strides = [1, 1]} : vector<200x128xbf16> to vector<8x128xbf16>
    %c21 = arith.constant 21 : index
    %c0_70 = arith.constant 0 : index
    %c0_71 = arith.constant 0 : index
    %121 = vector.load %arg4[%c21, %c0_70, %c0_71] : memref<25x128x128xbf16, #tpu.memory_space<vmem>>, vector<1x128x128xbf16>
    %122 = vector.shape_cast %121 : vector<1x128x128xbf16> to vector<128x128xbf16>
    %cst_72 = arith.constant dense<0.000000e+00> : vector<8x128xf32>
    %123 = tpu.matmul %120, %122, %cst_72 {dimension_numbers = #tpu.dot_dimension_numbers<[1], [0], [0], [1], [0, 0, 1, 1], [], []>} : vector<8x128xbf16>, vector<128x128xbf16>, vector<8x128xf32> -> vector<8x128xf32>
    %124 = arith.addf %119, %123 : vector<8x128xf32>
    %125 = vector.extract_strided_slice %15 {offsets = [176, 0], sizes = [8, 128], strides = [1, 1]} : vector<200x128xbf16> to vector<8x128xbf16>
    %c22 = arith.constant 22 : index
    %c0_73 = arith.constant 0 : index
    %c0_74 = arith.constant 0 : index
    %126 = vector.load %arg4[%c22, %c0_73, %c0_74] : memref<25x128x128xbf16, #tpu.memory_space<vmem>>, vector<1x128x128xbf16>
    %127 = vector.shape_cast %126 : vector<1x128x128xbf16> to vector<128x128xbf16>
    %cst_75 = arith.constant dense<0.000000e+00> : vector<8x128xf32>
    %128 = tpu.matmul %125, %127, %cst_75 {dimension_numbers = #tpu.dot_dimension_numbers<[1], [0], [0], [1], [0, 0, 1, 1], [], []>} : vector<8x128xbf16>, vector<128x128xbf16>, vector<8x128xf32> -> vector<8x128xf32>
    %129 = arith.addf %124, %128 : vector<8x128xf32>
    %130 = vector.extract_strided_slice %15 {offsets = [184, 0], sizes = [8, 128], strides = [1, 1]} : vector<200x128xbf16> to vector<8x128xbf16>
    %c23 = arith.constant 23 : index
    %c0_76 = arith.constant 0 : index
    %c0_77 = arith.constant 0 : index
    %131 = vector.load %arg4[%c23, %c0_76, %c0_77] : memref<25x128x128xbf16, #tpu.memory_space<vmem>>, vector<1x128x128xbf16>
    %132 = vector.shape_cast %131 : vector<1x128x128xbf16> to vector<128x128xbf16>
    %cst_78 = arith.constant dense<0.000000e+00> : vector<8x128xf32>
    %133 = tpu.matmul %130, %132, %cst_78 {dimension_numbers = #tpu.dot_dimension_numbers<[1], [0], [0], [1], [0, 0, 1, 1], [], []>} : vector<8x128xbf16>, vector<128x128xbf16>, vector<8x128xf32> -> vector<8x128xf32>
    %134 = arith.addf %129, %133 : vector<8x128xf32>
    %135 = vector.extract_strided_slice %15 {offsets = [192, 0], sizes = [8, 128], strides = [1, 1]} : vector<200x128xbf16> to vector<8x128xbf16>
    %c24 = arith.constant 24 : index
    %c0_79 = arith.constant 0 : index
    %c0_80 = arith.constant 0 : index
    %136 = vector.load %arg4[%c24, %c0_79, %c0_80] : memref<25x128x128xbf16, #tpu.memory_space<vmem>>, vector<1x128x128xbf16>
    %137 = vector.shape_cast %136 : vector<1x128x128xbf16> to vector<128x128xbf16>
    %cst_81 = arith.constant dense<0.000000e+00> : vector<8x128xf32>
    %138 = tpu.matmul %135, %137, %cst_81 {dimension_numbers = #tpu.dot_dimension_numbers<[1], [0], [0], [1], [0, 0, 1, 1], [], []>} : vector<8x128xbf16>, vector<128x128xbf16>, vector<8x128xf32> -> vector<8x128xf32>
    %139 = arith.addf %134, %138 : vector<8x128xf32>
    %c0_82 = arith.constant 0 : index
    %c0_83 = arith.constant 0 : index
    %140 = vector.load %arg5[%c0_82, %c0_83] : memref<1x128xf32, #tpu.memory_space<vmem>>, vector<1x128xf32>
    %141 = vector.broadcast %140 : vector<1x128xf32> to vector<8x128xf32>
    %142 = arith.addf %139, %141 : vector<8x128xf32>
    %cst_84 = arith.constant 0.000000e+00 : f32
    %143 = vector.broadcast %cst_84 : f32 to vector<8x128xf32>
    %144 = arith.maximumf %142, %143 : vector<8x128xf32>
    %145 = arith.truncf %144 : vector<8x128xf32> to vector<8x128xbf16>
    %c0_85 = arith.constant 0 : index
    %c0_86 = arith.constant 0 : index
    %146 = vector.load %arg6[%c0_85, %c0_86] : memref<128x128xbf16, #tpu.memory_space<vmem>>, vector<128x128xbf16>
    %cst_87 = arith.constant dense<0.000000e+00> : vector<8x128xf32>
    %147 = tpu.matmul %145, %146, %cst_87 {dimension_numbers = #tpu.dot_dimension_numbers<[1], [0], [0], [1], [0, 0, 1, 1], [], []>} : vector<8x128xbf16>, vector<128x128xbf16>, vector<8x128xf32> -> vector<8x128xf32>
    %c0_88 = arith.constant 0 : index
    %c0_89 = arith.constant 0 : index
    %148 = vector.load %arg7[%c0_88, %c0_89] : memref<1x128xf32, #tpu.memory_space<vmem>>, vector<1x128xf32>
    %149 = vector.broadcast %148 : vector<1x128xf32> to vector<8x128xf32>
    %150 = arith.addf %147, %149 : vector<8x128xf32>
    %cst_90 = arith.constant 0.000000e+00 : f32
    %151 = vector.broadcast %cst_90 : f32 to vector<8x128xf32>
    %152 = arith.maximumf %150, %151 : vector<8x128xf32>
    %153 = arith.truncf %152 : vector<8x128xf32> to vector<8x128xbf16>
    %c0_91 = arith.constant 0 : index
    %c0_92 = arith.constant 0 : index
    %154 = vector.load %arg8[%c0_91, %c0_92] : memref<128x128xbf16, #tpu.memory_space<vmem>>, vector<128x128xbf16>
    %cst_93 = arith.constant dense<0.000000e+00> : vector<8x128xf32>
    %155 = tpu.matmul %153, %154, %cst_93 {dimension_numbers = #tpu.dot_dimension_numbers<[1], [0], [0], [1], [0, 0, 1, 1], [], []>} : vector<8x128xbf16>, vector<128x128xbf16>, vector<8x128xf32> -> vector<8x128xf32>
    %c0_94 = arith.constant 0 : index
    %c0_95 = arith.constant 0 : index
    %156 = vector.load %arg9[%c0_94, %c0_95] : memref<1x128xf32, #tpu.memory_space<vmem>>, vector<1x128xf32>
    %157 = vector.broadcast %156 : vector<1x128xf32> to vector<8x128xf32>
    %158 = arith.addf %155, %157 : vector<8x128xf32>
    %c0_96 = arith.constant 0 : index
    %c0_97 = arith.constant 0 : index
    %159 = vector.load %arg10[%c0_96, %c0_97] : memref<8x128xf32, #tpu.memory_space<vmem>>, vector<8x128xf32>
    tpu.vector_store %arg10[%c0_96, %c0_97], %158 {strides = array<i32>} : memref<8x128xf32, #tpu.memory_space<vmem>>, vector<8x128xf32>,
    return
  }
  func.func @transform_0(%arg0: i32) -> (i32, i32) {
    %c0_i32 = arith.constant 0 : i32
    %c0_i32_0 = arith.constant 0 : i32
    return %arg0, %c0_i32 : i32, i32
  }
  func.func @transform_1(%arg0: i32) -> (i32, i32) {
    %c0_i32 = arith.constant 0 : i32
    %c0_i32_0 = arith.constant 0 : i32
    %c0_i32_1 = arith.constant 0 : i32
    return %c0_i32, %c0_i32_0 : i32, i32
  }
  func.func @transform_2(%arg0: i32) -> (i32, i32) {
    %c0_i32 = arith.constant 0 : i32
    %c0_i32_0 = arith.constant 0 : i32
    %c0_i32_1 = arith.constant 0 : i32
    return %c0_i32, %c0_i32_0 : i32, i32
  }
  func.func @transform_3(%arg0: i32) -> (i32, i32, i32) {
    %c0_i32 = arith.constant 0 : i32
    %c0_i32_0 = arith.constant 0 : i32
    %c0_i32_1 = arith.constant 0 : i32
    %c0_i32_2 = arith.constant 0 : i32
    return %c0_i32, %c0_i32_0, %c0_i32_1 : i32, i32, i32
  }
  func.func @transform_4(%arg0: i32) -> (i32, i32) {
    %c0_i32 = arith.constant 0 : i32
    %c0_i32_0 = arith.constant 0 : i32
    %c0_i32_1 = arith.constant 0 : i32
    return %c0_i32, %c0_i32_0 : i32, i32
  }
  func.func @transform_5(%arg0: i32) -> (i32, i32) {
    %c0_i32 = arith.constant 0 : i32
    %c0_i32_0 = arith.constant 0 : i32
    %c0_i32_1 = arith.constant 0 : i32
    return %c0_i32, %c0_i32_0 : i32, i32
  }
  func.func @transform_6(%arg0: i32) -> (i32, i32) {
    %c0_i32 = arith.constant 0 : i32
    %c0_i32_0 = arith.constant 0 : i32
    %c0_i32_1 = arith.constant 0 : i32
    return %c0_i32, %c0_i32_0 : i32, i32
  }
  func.func @transform_7(%arg0: i32) -> (i32, i32) {
    %c0_i32 = arith.constant 0 : i32
    %c0_i32_0 = arith.constant 0 : i32
    %c0_i32_1 = arith.constant 0 : i32
    return %c0_i32, %c0_i32_0 : i32, i32
  }
  func.func @transform_8(%arg0: i32) -> (i32, i32) {
    %c0_i32 = arith.constant 0 : i32
    %c0_i32_0 = arith.constant 0 : i32
    %c0_i32_1 = arith.constant 0 : i32
    return %c0_i32, %c0_i32_0 : i32, i32
  }
  func.func @transform_9(%arg0: i32) -> (i32, i32) {
    %c0_i32 = arith.constant 0 : i32
    %c0_i32_0 = arith.constant 0 : i32
    return %arg0, %c0_i32 : i32, i32
  }
}

</mosaic_0001>

<llo_original>
// kernel: lenet_forward.2
$region0: #{lenet_forward.2}
  #allocation0 [shape = 'u32[]', space=smem, size = 0x4, offset = 0x4, fixed_abs, tag = 'smem constant byte address 0x4 - core index']
  #allocation1 [shape = 'u32[144,128]{1,0:T(1,128)}', space=vmem, size = 0x12000, scoped, tag = 'internal scratch']
  %s0 = inlined_call_operand.vmem [shape: bf16[6272,25], index: 0, kind: input, shape index: {}]
  %s1 = inlined_call_operand.vmem [shape: bf16[25,128], index: 1, kind: input, shape index: {}]
  %s2 = inlined_call_operand.vmem [shape: f32[1,128], index: 2, kind: input, shape index: {}]
  %s3 = inlined_call_operand.vmem [shape: bf16[1568,128], index: 3, kind: output, shape index: {}]
  %s4 = sld [smem:[#allocation0]]
  $region22: #{lenet_forward.2} parent=0
    _
  %s6 = ssub.s32 1, %s4
  %s7 = scalar_select 0, %s6, %s4
  // Predicated region
  $region2: #{lenet_forward.2} parent=0 // pred_check
    _
  $region3: #{lenet_forward.2} parent=0 // pred_check_branch
    %9 = sbr.rel (0) target = $region5
  $region4: #{lenet_forward.2} parent=0 // pred_region
    _
  $region5: #{lenet_forward.2} parent=0 // pred_fallthru
    _
  // Predicated region
  $region6: #{lenet_forward.2} parent=0 // pred_check
    _
  $region7: #{lenet_forward.2} parent=0 // pred_check_branch
    %11 = sbr.rel (0) target = $region9
  $region8: #{lenet_forward.2} parent=0 // pred_region
    _
  $region9: #{lenet_forward.2} parent=0 // pred_fallthru
    _
  // Predicated region
  $region10: #{lenet_forward.2} parent=0 // pred_check
    _
  $region11: #{lenet_forward.2} parent=0 // pred_check_branch
    %13 = sbr.rel (0) target = $region13
  $region12: #{lenet_forward.2} parent=0 // pred_region
    _
  $region13: #{lenet_forward.2} parent=0 // pred_fallthru
    _
  %v15 = vld [vmem:[%s0] sm:$0xf]
  %v16 = vld [vmem:[%s0 + $0x4] sm:$0xf]
  %v17 = vld [vmem:[%s0 + $0x8] sm:$0xf]
  %v18 = vld [vmem:[%s0 + $0xc] sm:$0xf]
  %v19 = vld [vmem:[%s0 + $0x10] sm:$0xf]
  %v20 = vld [vmem:[%s0 + $0x14] sm:$0xf]
  %v21 = vld [vmem:[%s0 + $0x18] sm:$0xf]
  %v22 = vld [vmem:[%s0 + $0x1c] sm:$0xf]
  %v23 = vld [vmem:[%s0 + $0x20] sm:$0xf]
  %v24 = vld [vmem:[%s0 + $0x24] sm:$0xf]
  %v25 = vld [vmem:[%s0 + $0x28] sm:$0xf]
  %v26 = vld [vmem:[%s0 + $0x2c] sm:$0xf]
  %v27 = vld [vmem:[%s0 + $0x30] sm:$0xf]
  %v28 = vld [vmem:[%s0 + $0x34] sm:$0xf]
  %v29 = vld [vmem:[%s0 + $0x38] sm:$0xf]
  %v30 = vld [vmem:[%s0 + $0x3c] sm:$0xf]
  %v31 = vld [vmem:[%s0 + $0x40] sm:$0xf]
  %v32 = vld [vmem:[%s0 + $0x44] sm:$0xf]
  %v33 = vld [vmem:[%s0 + $0x48] sm:$0xf]
  %v34 = vld [vmem:[%s0 + $0x4c] sm:$0xf]
  %v35 = vld [vmem:[%s0 + $0x50] sm:$0xf]
  %v36 = vld [vmem:[%s0 + $0x54] sm:$0xf]
  %v37 = vld [vmem:[%s0 + $0x58] sm:$0xf]
  %v38 = vld [vmem:[%s0 + $0x5c] sm:$0xf]
  %v39 = vld [vmem:[%s0 + $0x60] sm:$0xf]
  %v40 = vld [vmem:[%s0 + $0x64] sm:$0xf]
  %v41 = vld [vmem:[%s0 + $0x68] sm:$0xf]
  %v42 = vld [vmem:[%s0 + $0x6c] sm:$0xf]
  %v43 = vld [vmem:[%s0 + $0x70] sm:$0xf]
  %v44 = vld [vmem:[%s0 + $0x74] sm:$0xf]
  %v45 = vld [vmem:[%s0 + $0x78] sm:$0xf]
  %v46 = vld [vmem:[%s0 + $0x7c] sm:$0xf]
  %v47 = vld [vmem:[%s0 + $0x80] sm:$0xf]
  %v48 = vld [vmem:[%s0 + $0x84] sm:$0xf]
  %v49 = vld [vmem:[%s0 + $0x88] sm:$0xf]
  %v50 = vld [vmem:[%s0 + $0x8c] sm:$0xf]
  %v51 = vld [vmem:[%s0 + $0x90] sm:$0xf]
  %v52 = vld [vmem:[%s0 + $0x94] sm:$0xf]
  %v53 = vld [vmem:[%s0 + $0x98] sm:$0xf]
  %v54 = vld [vmem:[%s0 + $0x9c] sm:$0xf]
  %v55 = vld [vmem:[%s0 + $0xa0] sm:$0xf]
  %v56 = vld [vmem:[%s0 + $0xa4] sm:$0xf]
  %v57 = vld [vmem:[%s0 + $0xa8] sm:$0xf]
  %v58 = vld [vmem:[%s0 + $0xac] sm:$0xf]
  %v59 = vld [vmem:[%s0 + $0xb0] sm:$0xf]
  %v60 = vld [vmem:[%s0 + $0xb4] sm:$0xf]
  %v61 = vld [vmem:[%s0 + $0xb8] sm:$0xf]
  %v62 = vld [vmem:[%s0 + $0xbc] sm:$0xf]
  %v63 = vld [vmem:[%s0 + $0xc0] sm:$0xf]
  %v64 = vld [vmem:[%s0 + $0xc4] sm:$0xf]
  %v65 = vld [vmem:[%s0 + $0xc8] sm:$0xf]
  %v66 = vld [vmem:[%s0 + $0xcc] sm:$0xf]
  %v67 = vld [vmem:[%s0 + $0xd0] sm:$0xf]
  %v68 = vld [vmem:[%s0 + $0xd4] sm:$0xf]
  %v69 = vld [vmem:[%s0 + $0xd8] sm:$0xf]
  %v70 = vld [vmem:[%s0 + $0xdc] sm:$0xf]
  %v71 = vld [vmem:[%s0 + $0xe0] sm:$0xf]
  %v72 = vld [vmem:[%s0 + $0xe4] sm:$0xf]
  %v73 = vld [vmem:[%s0 + $0xe8] sm:$0xf]
  %v74 = vld [vmem:[%s0 + $0xec] sm:$0xf]
  %v75 = vld [vmem:[%s0 + $0xf0] sm:$0xf]
  %v76 = vld [vmem:[%s0 + $0xf4] sm:$0xf]
  %v77 = vld [vmem:[%s0 + $0xf8] sm:$0xf]
  %v78 = vld [vmem:[%s0 + $0xfc] sm:$0xf]
  %v79 = vld [vmem:[%s0 + $0x100] sm:$0xf]
  %v80 = vld [vmem:[%s0 + $0x104] sm:$0xf]
  %v81 = vld [vmem:[%s0 + $0x108] sm:$0xf]
  %v82 = vld [vmem:[%s0 + $0x10c] sm:$0xf]
  %v83 = vld [vmem:[%s0 + $0x110] sm:$0xf]
  %v84 = vld [vmem:[%s0 + $0x114] sm:$0xf]
  %v85 = vld [vmem:[%s0 + $0x118] sm:$0xf]
  %v86 = vld [vmem:[%s0 + $0x11c] sm:$0xf]
  %v87 = vld [vmem:[%s0 + $0x120] sm:$0xf]
  %v88 = vld [vmem:[%s0 + $0x124] sm:$0xf]
  %v89 = vld [vmem:[%s0 + $0x128] sm:$0xf]
  %v90 = vld [vmem:[%s0 + $0x12c] sm:$0xf]
  %v91 = vld [vmem:[%s0 + $0x130] sm:$0xf]
  %v92 = vld [vmem:[%s0 + $0x134] sm:$0xf]
  %v93 = vld [vmem:[%s0 + $0x138] sm:$0xf]
  %v94 = vld [vmem:[%s0 + $0x13c] sm:$0xf]
  %v95 = vld [vmem:[%s0 + $0x140] sm:$0xf]
  %v96 = vld [vmem:[%s0 + $0x144] sm:$0xf]
  %v97 = vld [vmem:[%s0 + $0x148] sm:$0xf]
  %v98 = vld [vmem:[%s0 + $0x14c] sm:$0xf]
  %v99 = vld [vmem:[%s0 + $0x150] sm:$0xf]
  %v100 = vld [vmem:[%s0 + $0x154] sm:$0xf]
  %v101 = vld [vmem:[%s0 + $0x158] sm:$0xf]
  %v102 = vld [vmem:[%s0 + $0x15c] sm:$0xf]
  %v103 = vld [vmem:[%s0 + $0x160] sm:$0xf]
  %v104 = vld [vmem:[%s0 + $0x164] sm:$0xf]
  %v105 = vld [vmem:[%s0 + $0x168] sm:$0xf]
  %v106 = vld [vmem:[%s0 + $0x16c] sm:$0xf]
  %v107 = vld [vmem:[%s0 + $0x170] sm:$0xf]
  %v108 = vld [vmem:[%s0 + $0x174] sm:$0xf]
  %v109 = vld [vmem:[%s0 + $0x178] sm:$0xf]
  %v110 = vld [vmem:[%s0 + $0x17c] sm:$0xf]
  %v111 = vld [vmem:[%s0 + $0x180] sm:$0xf]
  %v112 = vld [vmem:[%s0 + $0x184] sm:$0xf]
  %v113 = vld [vmem:[%s0 + $0x188] sm:$0xf]
  %v114 = vld [vmem:[%s0 + $0x18c] sm:$0xf]
  %v115 = vld [vmem:[%s0 + $0x190] sm:$0xf]
  %v116 = vld [vmem:[%s0 + $0x194] sm:$0xf]
  %v117 = vld [vmem:[%s0 + $0x198] sm:$0xf]
  %v118 = vld [vmem:[%s0 + $0x19c] sm:$0xf]
  %v119 = vld [vmem:[%s0 + $0x1a0] sm:$0xf]
  %v120 = vld [vmem:[%s0 + $0x1a4] sm:$0xf]
  %v121 = vld [vmem:[%s0 + $0x1a8] sm:$0xf]
  %v122 = vld [vmem:[%s0 + $0x1ac] sm:$0xf]
  %v123 = vld [vmem:[%s0 + $0x1b0] sm:$0xf]
  %v124 = vld [vmem:[%s0 + $0x1b4] sm:$0xf]
  %v125 = vld [vmem:[%s0 + $0x1b8] sm:$0xf]
  %v126 = vld [vmem:[%s0 + $0x1bc] sm:$0xf]
  %v127 = vld [vmem:[%s0 + $0x1c0] sm:$0xf]
  %v128 = vld [vmem:[%s0 + $0x1c4] sm:$0xf]
  %v129 = vld [vmem:[%s0 + $0x1c8] sm:$0xf]
  %v130 = vld [vmem:[%s0 + $0x1cc] sm:$0xf]
  %v131 = vld [vmem:[%s0 + $0x1d0] sm:$0xf]
  %v132 = vld [vmem:[%s0 + $0x1d4] sm:$0xf]
  %v133 = vld [vmem:[%s0 + $0x1d8] sm:$0xf]
  %v134 = vld [vmem:[%s0 + $0x1dc] sm:$0xf]
  %v135 = vld [vmem:[%s0 + $0x1e0] sm:$0xf]
  %v136 = vld [vmem:[%s0 + $0x1e4] sm:$0xf]
  %v137 = vld [vmem:[%s0 + $0x1e8] sm:$0xf]
  %v138 = vld [vmem:[%s0 + $0x1ec] sm:$0xf]
  %v139 = vld [vmem:[%s0 + $0x1f0] sm:$0xf]
  %v140 = vld [vmem:[%s0 + $0x1f4] sm:$0xf]
  %v141 = vld [vmem:[%s0 + $0x1f8] sm:$0xf]
  %v142 = vld [vmem:[%s0 + $0x1fc] sm:$0xf]
  %v143 = vld [vmem:[%s0 + $0x200] sm:$0xf]
  %v144 = vld [vmem:[%s0 + $0x204] sm:$0xf]
  %v145 = vld [vmem:[%s0 + $0x208] sm:$0xf]
  %v146 = vld [vmem:[%s0 + $0x20c] sm:$0xf]
  %v147 = vld [vmem:[%s0 + $0x210] sm:$0xf]
  %v148 = vld [vmem:[%s0 + $0x214] sm:$0xf]
  %v149 = vld [vmem:[%s0 + $0x218] sm:$0xf]
  %v150 = vld [vmem:[%s0 + $0x21c] sm:$0xf]
  %v151 = vld [vmem:[%s0 + $0x220] sm:$0xf]
  %v152 = vld [vmem:[%s0 + $0x224] sm:$0xf]
  %v153 = vld [vmem:[%s0 + $0x228] sm:$0xf]
  %v154 = vld [vmem:[%s0 + $0x22c] sm:$0xf]
  %v155 = vld [vmem:[%s0 + $0x230] sm:$0xf]
  %v156 = vld [vmem:[%s0 + $0x234] sm:$0xf]
  %v157 = vld [vmem:[%s0 + $0x238] sm:$0xf]
  %v158 = vld [vmem:[%s0 + $0x23c] sm:$0xf]
  %v159 = vld [vmem:[%s0 + $0x240] sm:$0xf]
  %v160 = vld [vmem:[%s0 + $0x244] sm:$0xf]
  %v161 = vld [vmem:[%s0 + $0x248] sm:$0xf]
  %v162 = vld [vmem:[%s0 + $0x24c] sm:$0xf]
  %v163 = vld [vmem:[%s0 + $0x250] sm:$0xf]
  %v164 = vld [vmem:[%s0 + $0x254] sm:$0xf]
  %v165 = vld [vmem:[%s0 + $0x258] sm:$0xf]
  %v166 = vld [vmem:[%s0 + $0x25c] sm:$0xf]
  %v167 = vld [vmem:[%s0 + $0x260] sm:$0xf]
  %v168 = vld [vmem:[%s0 + $0x264] sm:$0xf]
  %v169 = vld [vmem:[%s0 + $0x268] sm:$0xf]
  %v170 = vld [vmem:[%s0 + $0x26c] sm:$0xf]
  %v171 = vld [vmem:[%s0 + $0x270] sm:$0xf]
  %v172 = vld [vmem:[%s0 + $0x274] sm:$0xf]
  %v173 = vld [vmem:[%s0 + $0x278] sm:$0xf]
  %v174 = vld [vmem:[%s0 + $0x27c] sm:$0xf]
  %v175 = vld [vmem:[%s0 + $0x280] sm:$0xf]
  %v176 = vld [vmem:[%s0 + $0x284] sm:$0xf]
  %v177 = vld [vmem:[%s0 + $0x288] sm:$0xf]
  %v178 = vld [vmem:[%s0 + $0x28c] sm:$0xf]
  %v179 = vld [vmem:[%s0 + $0x290] sm:$0xf]
  %v180 = vld [vmem:[%s0 + $0x294] sm:$0xf]
  %v181 = vld [vmem:[%s0 + $0x298] sm:$0xf]
  %v182 = vld [vmem:[%s0 + $0x29c] sm:$0xf]
  %v183 = vld [vmem:[%s0 + $0x2a0] sm:$0xf]
  %v184 = vld [vmem:[%s0 + $0x2a4] sm:$0xf]
  %v185 = vld [vmem:[%s0 + $0x2a8] sm:$0xf]
  %v186 = vld [vmem:[%s0 + $0x2ac] sm:$0xf]
  %v187 = vld [vmem:[%s0 + $0x2b0] sm:$0xf]
  %v188 = vld [vmem:[%s0 + $0x2b4] sm:$0xf]
  %v189 = vld [vmem:[%s0 + $0x2b8] sm:$0xf]
  %v190 = vld [vmem:[%s0 + $0x2bc] sm:$0xf]
  %v191 = vld [vmem:[%s0 + $0x2c0] sm:$0xf]
  %v192 = vld [vmem:[%s0 + $0x2c4] sm:$0xf]
  %v193 = vld [vmem:[%s0 + $0x2c8] sm:$0xf]
  %v194 = vld [vmem:[%s0 + $0x2cc] sm:$0xf]
  %v195 = vld [vmem:[%s0 + $0x2d0] sm:$0xf]
  %v196 = vld [vmem:[%s0 + $0x2d4] sm:$0xf]
  %v197 = vld [vmem:[%s0 + $0x2d8] sm:$0xf]
  %v198 = vld [vmem:[%s0 + $0x2dc] sm:$0xf]
  %v199 = vld [vmem:[%s0 + $0x2e0] sm:$0xf]
  %v200 = vld [vmem:[%s0 + $0x2e4] sm:$0xf]
  %v201 = vld [vmem:[%s0 + $0x2e8] sm:$0xf]
  %v202 = vld [vmem:[%s0 + $0x2ec] sm:$0xf]
  %v203 = vld [vmem:[%s0 + $0x2f0] sm:$0xf]
  %v204 = vld [vmem:[%s0 + $0x2f4] sm:$0xf]
  %v205 = vld [vmem:[%s0 + $0x2f8] sm:$0xf]
  %v206 = vld [vmem:[%s0 + $0x2fc] sm:$0xf]
  %v207 = vld [vmem:[%s0 + $0x300] sm:$0xf]
  %v208 = vld [vmem:[%s0 + $0x304] sm:$0xf]
  %v209 = vld [vmem:[%s0 + $0x308] sm:$0xf]
  %v210 = vld [vmem:[%s0 + $0x30c] sm:$0xf]
  %v211 = vld [vmem:[%s0 + $0x310] sm:$0xf]
  %v212 = vld [vmem:[%s0 + $0x314] sm:$0xf]
  %v213 = vld [vmem:[%s0 + $0x318] sm:$0xf]
  %v214 = vld [vmem:[%s0 + $0x31c] sm:$0xf]
  %v215 = vld [vmem:[%s0 + $0x320] sm:$0xf]
  %v216 = vld [vmem:[%s0 + $0x324] sm:$0xf]
  %v217 = vld [vmem:[%s0 + $0x328] sm:$0xf]
  %v218 = vld [vmem:[%s0 + $0x32c] sm:$0xf]
  %v219 = vld [vmem:[%s0 + $0x330] sm:$0xf]
  %v220 = vld [vmem:[%s0 + $0x334] sm:$0xf]
  %v221 = vld [vmem:[%s0 + $0x338] sm:$0xf]
  %v222 = vld [vmem:[%s0 + $0x33c] sm:$0xf]
  %v223 = vld [vmem:[%s0 + $0x340] sm:$0xf]
  %v224 = vld [vmem:[%s0 + $0x344] sm:$0xf]
  %v225 = vld [vmem:[%s0 + $0x348] sm:$0xf]
  %v226 = vld [vmem:[%s0 + $0x34c] sm:$0xf]
  %v227 = vld [vmem:[%s0 + $0x350] sm:$0xf]
  %v228 = vld [vmem:[%s0 + $0x354] sm:$0xf]
  %v229 = vld [vmem:[%s0 + $0x358] sm:$0xf]
  %v230 = vld [vmem:[%s0 + $0x35c] sm:$0xf]
  %v231 = vld [vmem:[%s0 + $0x360] sm:$0xf]
  %v232 = vld [vmem:[%s0 + $0x364] sm:$0xf]
  %v233 = vld [vmem:[%s0 + $0x368] sm:$0xf]
  %v234 = vld [vmem:[%s0 + $0x36c] sm:$0xf]
  %v235 = vld [vmem:[%s0 + $0x370] sm:$0xf]
  %v236 = vld [vmem:[%s0 + $0x374] sm:$0xf]
  %v237 = vld [vmem:[%s0 + $0x378] sm:$0xf]
  %v238 = vld [vmem:[%s0 + $0x37c] sm:$0xf]
  %v239 = vld [vmem:[%s0 + $0x380] sm:$0xf]
  %v240 = vld [vmem:[%s0 + $0x384] sm:$0xf]
  %v241 = vld [vmem:[%s0 + $0x388] sm:$0xf]
  %v242 = vld [vmem:[%s0 + $0x38c] sm:$0xf]
  %v243 = vld [vmem:[%s0 + $0x390] sm:$0xf]
  %v244 = vld [vmem:[%s0 + $0x394] sm:$0xf]
  %v245 = vld [vmem:[%s0 + $0x398] sm:$0xf]
  %v246 = vld [vmem:[%s0 + $0x39c] sm:$0xf]
  %v247 = vld [vmem:[%s0 + $0x3a0] sm:$0xf]
  %v248 = vld [vmem:[%s0 + $0x3a4] sm:$0xf]
  %v249 = vld [vmem:[%s0 + $0x3a8] sm:$0xf]
  %v250 = vld [vmem:[%s0 + $0x3ac] sm:$0xf]
  %v251 = vld [vmem:[%s0 + $0x3b0] sm:$0xf]
  %v252 = vld [vmem:[%s0 + $0x3b4] sm:$0xf]
  %v253 = vld [vmem:[%s0 + $0x3b8] sm:$0xf]
  %v254 = vld [vmem:[%s0 + $0x3bc] sm:$0xf]
  %v255 = vld [vmem:[%s0 + $0x3c0] sm:$0xf]
  %v256 = vld [vmem:[%s0 + $0x3c4] sm:$0xf]
  %v257 = vld [vmem:[%s0 + $0x3c8] sm:$0xf]
  %v258 = vld [vmem:[%s0 + $0x3cc] sm:$0xf]
  %v259 = vld [vmem:[%s0 + $0x3d0] sm:$0xf]
  %v260 = vld [vmem:[%s0 + $0x3d4] sm:$0xf]
  %v261 = vld [vmem:[%s0 + $0x3d8] sm:$0xf]
  %v262 = vld [vmem:[%s0 + $0x3dc] sm:$0xf]
  %v263 = vld [vmem:[%s0 + $0x3e0] sm:$0xf]
  %v264 = vld [vmem:[%s0 + $0x3e4] sm:$0xf]
  %v265 = vld [vmem:[%s0 + $0x3e8] sm:$0xf]
  %v266 = vld [vmem:[%s0 + $0x3ec] sm:$0xf]
  %v267 = vld [vmem:[%s0 + $0x3f0] sm:$0xf]
  %v268 = vld [vmem:[%s0 + $0x3f4] sm:$0xf]
  %v269 = vld [vmem:[%s0 + $0x3f8] sm:$0xf]
  %v270 = vld [vmem:[%s0 + $0x3fc] sm:$0xf]
  %v271 = vld [vmem:[%s0 + $0x400] sm:$0xf]
  %v272 = vld [vmem:[%s0 + $0x404] sm:$0xf]
  %v273 = vld [vmem:[%s0 + $0x408] sm:$0xf]
  %v274 = vld [vmem:[%s0 + $0x40c] sm:$0xf]
  %v275 = vld [vmem:[%s0 + $0x410] sm:$0xf]
  %v276 = vld [vmem:[%s0 + $0x414] sm:$0xf]
  %v277 = vld [vmem:[%s0 + $0x418] sm:$0xf]
  %v278 = vld [vmem:[%s0 + $0x41c] sm:$0xf]
  %v279 = vld [vmem:[%s0 + $0x420] sm:$0xf]
  %v280 = vld [vmem:[%s0 + $0x424] sm:$0xf]
  %v281 = vld [vmem:[%s0 + $0x428] sm:$0xf]
  %v282 = vld [vmem:[%s0 + $0x42c] sm:$0xf]
  %v283 = vld [vmem:[%s0 + $0x430] sm:$0xf]
  %v284 = vld [vmem:[%s0 + $0x434] sm:$0xf]
  %v285 = vld [vmem:[%s0 + $0x438] sm:$0xf]
  %v286 = vld [vmem:[%s0 + $0x43c] sm:$0xf]
  %v287 = vld [vmem:[%s0 + $0x440] sm:$0xf]
  %v288 = vld [vmem:[%s0 + $0x444] sm:$0xf]
  %v289 = vld [vmem:[%s0 + $0x448] sm:$0xf]
  %v290 = vld [vmem:[%s0 + $0x44c] sm:$0xf]
  %v291 = vld [vmem:[%s0 + $0x450] sm:$0xf]
  %v292 = vld [vmem:[%s0 + $0x454] sm:$0xf]
  %v293 = vld [vmem:[%s0 + $0x458] sm:$0xf]
  %v294 = vld [vmem:[%s0 + $0x45c] sm:$0xf]
  %v295 = vld [vmem:[%s0 + $0x460] sm:$0xf]
  %v296 = vld [vmem:[%s0 + $0x464] sm:$0xf]
  %v297 = vld [vmem:[%s0 + $0x468] sm:$0xf]
  %v298 = vld [vmem:[%s0 + $0x46c] sm:$0xf]
  %v299 = vld [vmem:[%s0 + $0x470] sm:$0xf]
  %v300 = vld [vmem:[%s0 + $0x474] sm:$0xf]
  %v301 = vld [vmem:[%s0 + $0x478] sm:$0xf]
  %v302 = vld [vmem:[%s0 + $0x47c] sm:$0xf]
  %v303 = vld [vmem:[%s0 + $0x480] sm:$0xf]
  %v304 = vld [vmem:[%s0 + $0x484] sm:$0xf]
  %v305 = vld [vmem:[%s0 + $0x488] sm:$0xf]
  %v306 = vld [vmem:[%s0 + $0x48c] sm:$0xf]
  %v307 = vld [vmem:[%s0 + $0x490] sm:$0xf]
  %v308 = vld [vmem:[%s0 + $0x494] sm:$0xf]
  %v309 = vld [vmem:[%s0 + $0x498] sm:$0xf]
  %v310 = vld [vmem:[%s0 + $0x49c] sm:$0xf]
  %v311 = vld [vmem:[%s0 + $0x4a0] sm:$0xf]
  %v312 = vld [vmem:[%s0 + $0x4a4] sm:$0xf]
  %v313 = vld [vmem:[%s0 + $0x4a8] sm:$0xf]
  %v314 = vld [vmem:[%s0 + $0x4ac] sm:$0xf]
  %v315 = vld [vmem:[%s0 + $0x4b0] sm:$0xf]
  %v316 = vld [vmem:[%s0 + $0x4b4] sm:$0xf]
  %v317 = vld [vmem:[%s0 + $0x4b8] sm:$0xf]
  %v318 = vld [vmem:[%s0 + $0x4bc] sm:$0xf]
  %v319 = vld [vmem:[%s0 + $0x4c0] sm:$0xf]
  %v320 = vld [vmem:[%s0 + $0x4c4] sm:$0xf]
  %v321 = vld [vmem:[%s0 + $0x4c8] sm:$0xf]
  %v322 = vld [vmem:[%s0 + $0x4cc] sm:$0xf]
  %v323 = vld [vmem:[%s0 + $0x4d0] sm:$0xf]
  %v324 = vld [vmem:[%s0 + $0x4d4] sm:$0xf]
  %v325 = vld [vmem:[%s0 + $0x4d8] sm:$0xf]
  %v326 = vld [vmem:[%s0 + $0x4dc] sm:$0xf]
  %v327 = vld [vmem:[%s0 + $0x4e0] sm:$0xf]
  %v328 = vld [vmem:[%s0 + $0x4e4] sm:$0xf]
  %v329 = vld [vmem:[%s0 + $0x4e8] sm:$0xf]
  %v330 = vld [vmem:[%s0 + $0x4ec] sm:$0xf]
  %v331 = vld [vmem:[%s0 + $0x4f0] sm:$0xf]
  %v332 = vld [vmem:[%s0 + $0x4f4] sm:$0xf]
  %v333 = vld [vmem:[%s0 + $0x4f8] sm:$0xf]
  %v334 = vld [vmem:[%s0 + $0x4fc] sm:$0xf]
  %v335 = vld [vmem:[%s0 + $0x500] sm:$0xf]
  %v336 = vld [vmem:[%s0 + $0x504] sm:$0xf]
  %v337 = vld [vmem:[%s0 + $0x508] sm:$0xf]
  %v338 = vld [vmem:[%s0 + $0x50c] sm:$0xf]
  %v339 = vld [vmem:[%s0 + $0x510] sm:$0xf]
  %v340 = vld [vmem:[%s0 + $0x514] sm:$0xf]
  %v341 = vld [vmem:[%s0 + $0x518] sm:$0xf]
  %v342 = vld [vmem:[%s0 + $0x51c] sm:$0xf]
  %v343 = vld [vmem:[%s0 + $0x520] sm:$0xf]
  %v344 = vld [vmem:[%s0 + $0x524] sm:$0xf]
  %v345 = vld [vmem:[%s0 + $0x528] sm:$0xf]
  %v346 = vld [vmem:[%s0 + $0x52c] sm:$0xf]
  %v347 = vld [vmem:[%s0 + $0x530] sm:$0xf]
  %v348 = vld [vmem:[%s0 + $0x534] sm:$0xf]
  %v349 = vld [vmem:[%s0 + $0x538] sm:$0xf]
  %v350 = vld [vmem:[%s0 + $0x53c] sm:$0xf]
  %v351 = vld [vmem:[%s0 + $0x540] sm:$0xf]
  %v352 = vld [vmem:[%s0 + $0x544] sm:$0xf]
  %v353 = vld [vmem:[%s0 + $0x548] sm:$0xf]
  %v354 = vld [vmem:[%s0 + $0x54c] sm:$0xf]
  %v355 = vld [vmem:[%s0 + $0x550] sm:$0xf]
  %v356 = vld [vmem:[%s0 + $0x554] sm:$0xf]
  %v357 = vld [vmem:[%s0 + $0x558] sm:$0xf]
  %v358 = vld [vmem:[%s0 + $0x55c] sm:$0xf]
  %v359 = vld [vmem:[%s0 + $0x560] sm:$0xf]
  %v360 = vld [vmem:[%s0 + $0x564] sm:$0xf]
  %v361 = vld [vmem:[%s0 + $0x568] sm:$0xf]
  %v362 = vld [vmem:[%s0 + $0x56c] sm:$0xf]
  %v363 = vld [vmem:[%s0 + $0x570] sm:$0xf]
  %v364 = vld [vmem:[%s0 + $0x574] sm:$0xf]
  %v365 = vld [vmem:[%s0 + $0x578] sm:$0xf]
  %v366 = vld [vmem:[%s0 + $0x57c] sm:$0xf]
  %v367 = vld [vmem:[%s0 + $0x580] sm:$0xf]
  %v368 = vld [vmem:[%s0 + $0x584] sm:$0xf]
  %v369 = vld [vmem:[%s0 + $0x588] sm:$0xf]
  %v370 = vld [vmem:[%s0 + $0x58c] sm:$0xf]
  %v371 = vld [vmem:[%s0 + $0x590] sm:$0xf]
  %v372 = vld [vmem:[%s0 + $0x594] sm:$0xf]
  %v373 = vld [vmem:[%s0 + $0x598] sm:$0xf]
  %v374 = vld [vmem:[%s0 + $0x59c] sm:$0xf]
  %v375 = vld [vmem:[%s0 + $0x5a0] sm:$0xf]
  %v376 = vld [vmem:[%s0 + $0x5a4] sm:$0xf]
  %v377 = vld [vmem:[%s0 + $0x5a8] sm:$0xf]
  %v378 = vld [vmem:[%s0 + $0x5ac] sm:$0xf]
  %v379 = vld [vmem:[%s0 + $0x5b0] sm:$0xf]
  %v380 = vld [vmem:[%s0 + $0x5b4] sm:$0xf]
  %v381 = vld [vmem:[%s0 + $0x5b8] sm:$0xf]
  %v382 = vld [vmem:[%s0 + $0x5bc] sm:$0xf]
  %v383 = vld [vmem:[%s0 + $0x5c0] sm:$0xf]
  %v384 = vld [vmem:[%s0 + $0x5c4] sm:$0xf]
  %v385 = vld [vmem:[%s0 + $0x5c8] sm:$0xf]
  %v386 = vld [vmem:[%s0 + $0x5cc] sm:$0xf]
  %v387 = vld [vmem:[%s0 + $0x5d0] sm:$0xf]
  %v388 = vld [vmem:[%s0 + $0x5d4] sm:$0xf]
  %v389 = vld [vmem:[%s0 + $0x5d8] sm:$0xf]
  %v390 = vld [vmem:[%s0 + $0x5dc] sm:$0xf]
  %v391 = vld [vmem:[%s0 + $0x5e0] sm:$0xf]
  %v392 = vld [vmem:[%s0 + $0x5e4] sm:$0xf]
  %v393 = vld [vmem:[%s0 + $0x5e8] sm:$0xf]
  %v394 = vld [vmem:[%s0 + $0x5ec] sm:$0xf]
  %v395 = vld [vmem:[%s0 + $0x5f0] sm:$0xf]
  %v396 = vld [vmem:[%s0 + $0x5f4] sm:$0xf]
  %v397 = vld [vmem:[%s0 + $0x5f8] sm:$0xf]
  %v398 = vld [vmem:[%s0 + $0x5fc] sm:$0xf]
  %v399 = vld [vmem:[%s0 + $0x600] sm:$0xf]
  %v400 = vld [vmem:[%s0 + $0x604] sm:$0xf]
  %v401 = vld [vmem:[%s0 + $0x608] sm:$0xf]
  %v402 = vld [vmem:[%s0 + $0x60c] sm:$0xf]
  %v403 = vld [vmem:[%s0 + $0x610] sm:$0xf]
  %v404 = vld [vmem:[%s0 + $0x614] sm:$0xf]
  %v405 = vld [vmem:[%s0 + $0x618] sm:$0xf]
  %v406 = vld [vmem:[%s0 + $0x61c] sm:$0xf]
  %v407 = vld [vmem:[%s0 + $0x620] sm:$0xf]
  %v408 = vld [vmem:[%s0 + $0x624] sm:$0xf]
  %v409 = vld [vmem:[%s0 + $0x628] sm:$0xf]
  %v410 = vld [vmem:[%s0 + $0x62c] sm:$0xf]
  %v411 = vld [vmem:[%s0 + $0x630] sm:$0xf]
  %v412 = vld [vmem:[%s0 + $0x634] sm:$0xf]
  %v413 = vld [vmem:[%s0 + $0x638] sm:$0xf]
  %v414 = vld [vmem:[%s0 + $0x63c] sm:$0xf]
  %v415 = vld [vmem:[%s0 + $0x640] sm:$0xf]
  %v416 = vld [vmem:[%s0 + $0x644] sm:$0xf]
  %v417 = vld [vmem:[%s0 + $0x648] sm:$0xf]
  %v418 = vld [vmem:[%s0 + $0x64c] sm:$0xf]
  %v419 = vld [vmem:[%s0 + $0x650] sm:$0xf]
  %v420 = vld [vmem:[%s0 + $0x654] sm:$0xf]
  %v421 = vld [vmem:[%s0 + $0x658] sm:$0xf]
  %v422 = vld [vmem:[%s0 + $0x65c] sm:$0xf]
  %v423 = vld [vmem:[%s0 + $0x660] sm:$0xf]
  %v424 = vld [vmem:[%s0 + $0x664] sm:$0xf]
  %v425 = vld [vmem:[%s0 + $0x668] sm:$0xf]
  %v426 = vld [vmem:[%s0 + $0x66c] sm:$0xf]
  %v427 = vld [vmem:[%s0 + $0x670] sm:$0xf]
  %v428 = vld [vmem:[%s0 + $0x674] sm:$0xf]
  %v429 = vld [vmem:[%s0 + $0x678] sm:$0xf]
  %v430 = vld [vmem:[%s0 + $0x67c] sm:$0xf]
  %v431 = vld [vmem:[%s0 + $0x680] sm:$0xf]
  %v432 = vld [vmem:[%s0 + $0x684] sm:$0xf]
  %v433 = vld [vmem:[%s0 + $0x688] sm:$0xf]
  %v434 = vld [vmem:[%s0 + $0x68c] sm:$0xf]
  %v435 = vld [vmem:[%s0 + $0x690] sm:$0xf]
  %v436 = vld [vmem:[%s0 + $0x694] sm:$0xf]
  %v437 = vld [vmem:[%s0 + $0x698] sm:$0xf]
  %v438 = vld [vmem:[%s0 + $0x69c] sm:$0xf]
  %v439 = vld [vmem:[%s0 + $0x6a0] sm:$0xf]
  %v440 = vld [vmem:[%s0 + $0x6a4] sm:$0xf]
  %v441 = vld [vmem:[%s0 + $0x6a8] sm:$0xf]
  %v442 = vld [vmem:[%s0 + $0x6ac] sm:$0xf]
  %v443 = vld [vmem:[%s0 + $0x6b0] sm:$0xf]
  %v444 = vld [vmem:[%s0 + $0x6b4] sm:$0xf]
  %v445 = vld [vmem:[%s0 + $0x6b8] sm:$0xf]
  %v446 = vld [vmem:[%s0 + $0x6bc] sm:$0xf]
  %v447 = vld [vmem:[%s0 + $0x6c0] sm:$0xf]
  %v448 = vld [vmem:[%s0 + $0x6c4] sm:$0xf]
  %v449 = vld [vmem:[%s0 + $0x6c8] sm:$0xf]
  %v450 = vld [vmem:[%s0 + $0x6cc] sm:$0xf]
  %v451 = vld [vmem:[%s0 + $0x6d0] sm:$0xf]
  %v452 = vld [vmem:[%s0 + $0x6d4] sm:$0xf]
  %v453 = vld [vmem:[%s0 + $0x6d8] sm:$0xf]
  %v454 = vld [vmem:[%s0 + $0x6dc] sm:$0xf]
  %v455 = vld [vmem:[%s0 + $0x6e0] sm:$0xf]
  %v456 = vld [vmem:[%s0 + $0x6e4] sm:$0xf]
  %v457 = vld [vmem:[%s0 + $0x6e8] sm:$0xf]
  %v458 = vld [vmem:[%s0 + $0x6ec] sm:$0xf]
  %v459 = vld [vmem:[%s0 + $0x6f0] sm:$0xf]
  %v460 = vld [vmem:[%s0 + $0x6f4] sm:$0xf]
  %v461 = vld [vmem:[%s0 + $0x6f8] sm:$0xf]
  %v462 = vld [vmem:[%s0 + $0x6fc] sm:$0xf]
  %v463 = vld [vmem:[%s0 + $0x700] sm:$0xf]
  %v464 = vld [vmem:[%s0 + $0x704] sm:$0xf]
  %v465 = vld [vmem:[%s0 + $0x708] sm:$0xf]
  %v466 = vld [vmem:[%s0 + $0x70c] sm:$0xf]
  %v467 = vld [vmem:[%s0 + $0x710] sm:$0xf]
  %v468 = vld [vmem:[%s0 + $0x714] sm:$0xf]
  %v469 = vld [vmem:[%s0 + $0x718] sm:$0xf]
  %v470 = vld [vmem:[%s0 + $0x71c] sm:$0xf]
  %v471 = vld [vmem:[%s0 + $0x720] sm:$0xf]
  %v472 = vld [vmem:[%s0 + $0x724] sm:$0xf]
  %v473 = vld [vmem:[%s0 + $0x728] sm:$0xf]
  %v474 = vld [vmem:[%s0 + $0x72c] sm:$0xf]
  %v475 = vld [vmem:[%s0 + $0x730] sm:$0xf]
  %v476 = vld [vmem:[%s0 + $0x734] sm:$0xf]
  %v477 = vld [vmem:[%s0 + $0x738] sm:$0xf]
  %v478 = vld [vmem:[%s0 + $0x73c] sm:$0xf]
  %v479 = vld [vmem:[%s0 + $0x740] sm:$0xf]
  %v480 = vld [vmem:[%s0 + $0x744] sm:$0xf]
  %v481 = vld [vmem:[%s0 + $0x748] sm:$0xf]
  %v482 = vld [vmem:[%s0 + $0x74c] sm:$0xf]
  %v483 = vld [vmem:[%s0 + $0x750] sm:$0xf]
  %v484 = vld [vmem:[%s0 + $0x754] sm:$0xf]
  %v485 = vld [vmem:[%s0 + $0x758] sm:$0xf]
  %v486 = vld [vmem:[%s0 + $0x75c] sm:$0xf]
  %v487 = vld [vmem:[%s0 + $0x760] sm:$0xf]
  %v488 = vld [vmem:[%s0 + $0x764] sm:$0xf]
  %v489 = vld [vmem:[%s0 + $0x768] sm:$0xf]
  %v490 = vld [vmem:[%s0 + $0x76c] sm:$0xf]
  %v491 = vld [vmem:[%s0 + $0x770] sm:$0xf]
  %v492 = vld [vmem:[%s0 + $0x774] sm:$0xf]
  %v493 = vld [vmem:[%s0 + $0x778] sm:$0xf]
  %v494 = vld [vmem:[%s0 + $0x77c] sm:$0xf]
  %v495 = vld [vmem:[%s0 + $0x780] sm:$0xf]
  %v496 = vld [vmem:[%s0 + $0x784] sm:$0xf]
  %v497 = vld [vmem:[%s0 + $0x788] sm:$0xf]
  %v498 = vld [vmem:[%s0 + $0x78c] sm:$0xf]
  %v499 = vld [vmem:[%s0 + $0x790] sm:$0xf]
  %v500 = vld [vmem:[%s0 + $0x794] sm:$0xf]
  %v501 = vld [vmem:[%s0 + $0x798] sm:$0xf]
  %v502 = vld [vmem:[%s0 + $0x79c] sm:$0xf]
  %v503 = vld [vmem:[%s0 + $0x7a0] sm:$0xf]
  %v504 = vld [vmem:[%s0 + $0x7a4] sm:$0xf]
  %v505 = vld [vmem:[%s0 + $0x7a8] sm:$0xf]
  %v506 = vld [vmem:[%s0 + $0x7ac] sm:$0xf]
  %v507 = vld [vmem:[%s0 + $0x7b0] sm:$0xf]
  %v508 = vld [vmem:[%s0 + $0x7b4] sm:$0xf]
  %v509 = vld [vmem:[%s0 + $0x7b8] sm:$0xf]
  %v510 = vld [vmem:[%s0 + $0x7bc] sm:$0xf]
  %v511 = vld [vmem:[%s0 + $0x7c0] sm:$0xf]
  %v512 = vld [vmem:[%s0 + $0x7c4] sm:$0xf]
  %v513 = vld [vmem:[%s0 + $0x7c8] sm:$0xf]
  %v514 = vld [vmem:[%s0 + $0x7cc] sm:$0xf]
  %v515 = vld [vmem:[%s0 + $0x7d0] sm:$0xf]
  %v516 = vld [vmem:[%s0 + $0x7d4] sm:$0xf]
  %v517 = vld [vmem:[%s0 + $0x7d8] sm:$0xf]
  %v518 = vld [vmem:[%s0 + $0x7dc] sm:$0xf]
  %v519 = vld [vmem:[%s0 + $0x7e0] sm:$0xf]
  %v520 = vld [vmem:[%s0 + $0x7e4] sm:$0xf]
  %v521 = vld [vmem:[%s0 + $0x7e8] sm:$0xf]
  %v522 = vld [vmem:[%s0 + $0x7ec] sm:$0xf]
  %v523 = vld [vmem:[%s0 + $0x7f0] sm:$0xf]
  %v524 = vld [vmem:[%s0 + $0x7f4] sm:$0xf]
  %v525 = vld [vmem:[%s0 + $0x7f8] sm:$0xf]
  %v526 = vld [vmem:[%s0 + $0x7fc] sm:$0xf]
  %v527 = vld [vmem:[%s0 + $0x800] sm:$0xf]
  %v528 = vld [vmem:[%s0 + $0x804] sm:$0xf]
  %v529 = vld [vmem:[%s0 + $0x808] sm:$0xf]
  %v530 = vld [vmem:[%s0 + $0x80c] sm:$0xf]
  %v531 = vld [vmem:[%s0 + $0x810] sm:$0xf]
  %v532 = vld [vmem:[%s0 + $0x814] sm:$0xf]
  %v533 = vld [vmem:[%s0 + $0x818] sm:$0xf]
  %v534 = vld [vmem:[%s0 + $0x81c] sm:$0xf]
  %v535 = vld [vmem:[%s0 + $0x820] sm:$0xf]
  %v536 = vld [vmem:[%s0 + $0x824] sm:$0xf]
  %v537 = vld [vmem:[%s0 + $0x828] sm:$0xf]
  %v538 = vld [vmem:[%s0 + $0x82c] sm:$0xf]
  %v539 = vld [vmem:[%s0 + $0x830] sm:$0xf]
  %v540 = vld [vmem:[%s0 + $0x834] sm:$0xf]
  %v541 = vld [vmem:[%s0 + $0x838] sm:$0xf]
  %v542 = vld [vmem:[%s0 + $0x83c] sm:$0xf]
  %v543 = vld [vmem:[%s0 + $0x840] sm:$0xf]
  %v544 = vld [vmem:[%s0 + $0x844] sm:$0xf]
  %v545 = vld [vmem:[%s0 + $0x848] sm:$0xf]
  %v546 = vld [vmem:[%s0 + $0x84c] sm:$0xf]
  %v547 = vld [vmem:[%s0 + $0x850] sm:$0xf]
  %v548 = vld [vmem:[%s0 + $0x854] sm:$0xf]
  %v549 = vld [vmem:[%s0 + $0x858] sm:$0xf]
  %v550 = vld [vmem:[%s0 + $0x85c] sm:$0xf]
  %v551 = vld [vmem:[%s0 + $0x860] sm:$0xf]
  %v552 = vld [vmem:[%s0 + $0x864] sm:$0xf]
  %v553 = vld [vmem:[%s0 + $0x868] sm:$0xf]
  %v554 = vld [vmem:[%s0 + $0x86c] sm:$0xf]
  %v555 = vld [vmem:[%s0 + $0x870] sm:$0xf]
  %v556 = vld [vmem:[%s0 + $0x874] sm:$0xf]
  %v557 = vld [vmem:[%s0 + $0x878] sm:$0xf]
  %v558 = vld [vmem:[%s0 + $0x87c] sm:$0xf]
  %v559 = vld [vmem:[%s0 + $0x880] sm:$0xf]
  %v560 = vld [vmem:[%s0 + $0x884] sm:$0xf]
  %v561 = vld [vmem:[%s0 + $0x888] sm:$0xf]
  %v562 = vld [vmem:[%s0 + $0x88c] sm:$0xf]
  %v563 = vld [vmem:[%s0 + $0x890] sm:$0xf]
  %v564 = vld [vmem:[%s0 + $0x894] sm:$0xf]
  %v565 = vld [vmem:[%s0 + $0x898] sm:$0xf]
  %v566 = vld [vmem:[%s0 + $0x89c] sm:$0xf]
  %v567 = vld [vmem:[%s0 + $0x8a0] sm:$0xf]
  %v568 = vld [vmem:[%s0 + $0x8a4] sm:$0xf]
  %v569 = vld [vmem:[%s0 + $0x8a8] sm:$0xf]
  %v570 = vld [vmem:[%s0 + $0x8ac] sm:$0xf]
  %v571 = vld [vmem:[%s0 + $0x8b0] sm:$0xf]
  %v572 = vld [vmem:[%s0 + $0x8b4] sm:$0xf]
  %v573 = vld [vmem:[%s0 + $0x8b8] sm:$0xf]
  %v574 = vld [vmem:[%s0 + $0x8bc] sm:$0xf]
  %v575 = vld [vmem:[%s0 + $0x8c0] sm:$0xf]
  %v576 = vld [vmem:[%s0 + $0x8c4] sm:$0xf]
  %v577 = vld [vmem:[%s0 + $0x8c8] sm:$0xf]
  %v578 = vld [vmem:[%s0 + $0x8cc] sm:$0xf]
  %v579 = vld [vmem:[%s0 + $0x8d0] sm:$0xf]
  %v580 = vld [vmem:[%s0 + $0x8d4] sm:$0xf]
  %v581 = vld [vmem:[%s0 + $0x8d8] sm:$0xf]
  %v582 = vld [vmem:[%s0 + $0x8dc] sm:$0xf]
  %v583 = vld [vmem:[%s0 + $0x8e0] sm:$0xf]
  %v584 = vld [vmem:[%s0 + $0x8e4] sm:$0xf]
  %v585 = vld [vmem:[%s0 + $0x8e8] sm:$0xf]
  %v586 = vld [vmem:[%s0 + $0x8ec] sm:$0xf]
  %v587 = vld [vmem:[%s0 + $0x8f0] sm:$0xf]
  %v588 = vld [vmem:[%s0 + $0x8f4] sm:$0xf]
  %v589 = vld [vmem:[%s0 + $0x8f8] sm:$0xf]
  %v590 = vld [vmem:[%s0 + $0x8fc] sm:$0xf]
  %v591 = vld [vmem:[%s0 + $0x900] sm:$0xf]
  %v592 = vld [vmem:[%s0 + $0x904] sm:$0xf]
  %v593 = vld [vmem:[%s0 + $0x908] sm:$0xf]
  %v594 = vld [vmem:[%s0 + $0x90c] sm:$0xf]
  %v595 = vld [vmem:[%s0 + $0x910] sm:$0xf]
  %v596 = vld [vmem:[%s0 + $0x914] sm:$0xf]
  %v597 = vld [vmem:[%s0 + $0x918] sm:$0xf]
  %v598 = vld [vmem:[%s0 + $0x91c] sm:$0xf]
  %v599 = vld [vmem:[%s0 + $0x920] sm:$0xf]
  %v600 = vld [vmem:[%s0 + $0x924] sm:$0xf]
  %v601 = vld [vmem:[%s0 + $0x928] sm:$0xf]
  %v602 = vld [vmem:[%s0 + $0x92c] sm:$0xf]
  %v603 = vld [vmem:[%s0 + $0x930] sm:$0xf]
  %v604 = vld [vmem:[%s0 + $0x934] sm:$0xf]
  %v605 = vld [vmem:[%s0 + $0x938] sm:$0xf]
  %v606 = vld [vmem:[%s0 + $0x93c] sm:$0xf]
  %v607 = vld [vmem:[%s0 + $0x940] sm:$0xf]
  %v608 = vld [vmem:[%s0 + $0x944] sm:$0xf]
  %v609 = vld [vmem:[%s0 + $0x948] sm:$0xf]
  %v610 = vld [vmem:[%s0 + $0x94c] sm:$0xf]
  %v611 = vld [vmem:[%s0 + $0x950] sm:$0xf]
  %v612 = vld [vmem:[%s0 + $0x954] sm:$0xf]
  %v613 = vld [vmem:[%s0 + $0x958] sm:$0xf]
  %v614 = vld [vmem:[%s0 + $0x95c] sm:$0xf]
  %v615 = vld [vmem:[%s0 + $0x960] sm:$0xf]
  %v616 = vld [vmem:[%s0 + $0x964] sm:$0xf]
  %v617 = vld [vmem:[%s0 + $0x968] sm:$0xf]
  %v618 = vld [vmem:[%s0 + $0x96c] sm:$0xf]
  %v619 = vld [vmem:[%s0 + $0x970] sm:$0xf]
  %v620 = vld [vmem:[%s0 + $0x974] sm:$0xf]
  %v621 = vld [vmem:[%s0 + $0x978] sm:$0xf]
  %v622 = vld [vmem:[%s0 + $0x97c] sm:$0xf]
  %v623 = vld [vmem:[%s0 + $0x980] sm:$0xf]
  %v624 = vld [vmem:[%s0 + $0x984] sm:$0xf]
  %v625 = vld [vmem:[%s0 + $0x988] sm:$0xf]
  %v626 = vld [vmem:[%s0 + $0x98c] sm:$0xf]
  %v627 = vld [vmem:[%s0 + $0x990] sm:$0xf]
  %v628 = vld [vmem:[%s0 + $0x994] sm:$0xf]
  %v629 = vld [vmem:[%s0 + $0x998] sm:$0xf]
  %v630 = vld [vmem:[%s0 + $0x99c] sm:$0xf]
  %v631 = vld [vmem:[%s0 + $0x9a0] sm:$0xf]
  %v632 = vld [vmem:[%s0 + $0x9a4] sm:$0xf]
  %v633 = vld [vmem:[%s0 + $0x9a8] sm:$0xf]
  %v634 = vld [vmem:[%s0 + $0x9ac] sm:$0xf]
  %v635 = vld [vmem:[%s0 + $0x9b0] sm:$0xf]
  %v636 = vld [vmem:[%s0 + $0x9b4] sm:$0xf]
  %v637 = vld [vmem:[%s0 + $0x9b8] sm:$0xf]
  %v638 = vld [vmem:[%s0 + $0x9bc] sm:$0xf]
  %v639 = vld [vmem:[%s0 + $0x9c0] sm:$0xf]
  %v640 = vld [vmem:[%s0 + $0x9c4] sm:$0xf]
  %v641 = vld [vmem:[%s0 + $0x9c8] sm:$0xf]
  %v642 = vld [vmem:[%s0 + $0x9cc] sm:$0xf]
  %v643 = vld [vmem:[%s0 + $0x9d0] sm:$0xf]
  %v644 = vld [vmem:[%s0 + $0x9d4] sm:$0xf]
  %v645 = vld [vmem:[%s0 + $0x9d8] sm:$0xf]
  %v646 = vld [vmem:[%s0 + $0x9dc] sm:$0xf]
  %v647 = vld [vmem:[%s0 + $0x9e0] sm:$0xf]
  %v648 = vld [vmem:[%s0 + $0x9e4] sm:$0xf]
  %v649 = vld [vmem:[%s0 + $0x9e8] sm:$0xf]
  %v650 = vld [vmem:[%s0 + $0x9ec] sm:$0xf]
  %v651 = vld [vmem:[%s0 + $0x9f0] sm:$0xf]
  %v652 = vld [vmem:[%s0 + $0x9f4] sm:$0xf]
  %v653 = vld [vmem:[%s0 + $0x9f8] sm:$0xf]
  %v654 = vld [vmem:[%s0 + $0x9fc] sm:$0xf]
  %v655 = vld [vmem:[%s0 + $0xa00] sm:$0xf]
  %v656 = vld [vmem:[%s0 + $0xa04] sm:$0xf]
  %v657 = vld [vmem:[%s0 + $0xa08] sm:$0xf]
  %v658 = vld [vmem:[%s0 + $0xa0c] sm:$0xf]
  %v659 = vld [vmem:[%s0 + $0xa10] sm:$0xf]
  %v660 = vld [vmem:[%s0 + $0xa14] sm:$0xf]
  %v661 = vld [vmem:[%s0 + $0xa18] sm:$0xf]
  %v662 = vld [vmem:[%s0 + $0xa1c] sm:$0xf]
  %v663 = vld [vmem:[%s0 + $0xa20] sm:$0xf]
  %v664 = vld [vmem:[%s0 + $0xa24] sm:$0xf]
  %v665 = vld [vmem:[%s0 + $0xa28] sm:$0xf]
  %v666 = vld [vmem:[%s0 + $0xa2c] sm:$0xf]
  %v667 = vld [vmem:[%s0 + $0xa30] sm:$0xf]
  %v668 = vld [vmem:[%s0 + $0xa34] sm:$0xf]
  %v669 = vld [vmem:[%s0 + $0xa38] sm:$0xf]
  %v670 = vld [vmem:[%s0 + $0xa3c] sm:$0xf]
  %v671 = vld [vmem:[%s0 + $0xa40] sm:$0xf]
  %v672 = vld [vmem:[%s0 + $0xa44] sm:$0xf]
  %v673 = vld [vmem:[%s0 + $0xa48] sm:$0xf]
  %v674 = vld [vmem:[%s0 + $0xa4c] sm:$0xf]
  %v675 = vld [vmem:[%s0 + $0xa50] sm:$0xf]
  %v676 = vld [vmem:[%s0 + $0xa54] sm:$0xf]
  %v677 = vld [vmem:[%s0 + $0xa58] sm:$0xf]
  %v678 = vld [vmem:[%s0 + $0xa5c] sm:$0xf]
  %v679 = vld [vmem:[%s0 + $0xa60] sm:$0xf]
  %v680 = vld [vmem:[%s0 + $0xa64] sm:$0xf]
  %v681 = vld [vmem:[%s0 + $0xa68] sm:$0xf]
  %v682 = vld [vmem:[%s0 + $0xa6c] sm:$0xf]
  %v683 = vld [vmem:[%s0 + $0xa70] sm:$0xf]
  %v684 = vld [vmem:[%s0 + $0xa74] sm:$0xf]
  %v685 = vld [vmem:[%s0 + $0xa78] sm:$0xf]
  %v686 = vld [vmem:[%s0 + $0xa7c] sm:$0xf]
  %v687 = vld [vmem:[%s0 + $0xa80] sm:$0xf]
  %v688 = vld [vmem:[%s0 + $0xa84] sm:$0xf]
  %v689 = vld [vmem:[%s0 + $0xa88] sm:$0xf]
  %v690 = vld [vmem:[%s0 + $0xa8c] sm:$0xf]
  %v691 = vld [vmem:[%s0 + $0xa90] sm:$0xf]
  %v692 = vld [vmem:[%s0 + $0xa94] sm:$0xf]
  %v693 = vld [vmem:[%s0 + $0xa98] sm:$0xf]
  %v694 = vld [vmem:[%s0 + $0xa9c] sm:$0xf]
  %v695 = vld [vmem:[%s0 + $0xaa0] sm:$0xf]
  %v696 = vld [vmem:[%s0 + $0xaa4] sm:$0xf]
  %v697 = vld [vmem:[%s0 + $0xaa8] sm:$0xf]
  %v698 = vld [vmem:[%s0 + $0xaac] sm:$0xf]
  %v699 = vld [vmem:[%s0 + $0xab0] sm:$0xf]
  %v700 = vld [vmem:[%s0 + $0xab4] sm:$0xf]
  %v701 = vld [vmem:[%s0 + $0xab8] sm:$0xf]
  %v702 = vld [vmem:[%s0 + $0xabc] sm:$0xf]
  %v703 = vld [vmem:[%s0 + $0xac0] sm:$0xf]
  %v704 = vld [vmem:[%s0 + $0xac4] sm:$0xf]
  %v705 = vld [vmem:[%s0 + $0xac8] sm:$0xf]
  %v706 = vld [vmem:[%s0 + $0xacc] sm:$0xf]
  %v707 = vld [vmem:[%s0 + $0xad0] sm:$0xf]
  %v708 = vld [vmem:[%s0 + $0xad4] sm:$0xf]
  %v709 = vld [vmem:[%s0 + $0xad8] sm:$0xf]
  %v710 = vld [vmem:[%s0 + $0xadc] sm:$0xf]
  %v711 = vld [vmem:[%s0 + $0xae0] sm:$0xf]
  %v712 = vld [vmem:[%s0 + $0xae4] sm:$0xf]
  %v713 = vld [vmem:[%s0 + $0xae8] sm:$0xf]
  %v714 = vld [vmem:[%s0 + $0xaec] sm:$0xf]
  %v715 = vld [vmem:[%s0 + $0xaf0] sm:$0xf]
  %v716 = vld [vmem:[%s0 + $0xaf4] sm:$0xf]
  %v717 = vld [vmem:[%s0 + $0xaf8] sm:$0xf]
  %v718 = vld [vmem:[%s0 + $0xafc] sm:$0xf]
  %v719 = vld [vmem:[%s0 + $0xb00] sm:$0xf]
  %v720 = vld [vmem:[%s0 + $0xb04] sm:$0xf]
  %v721 = vld [vmem:[%s0 + $0xb08] sm:$0xf]
  %v722 = vld [vmem:[%s0 + $0xb0c] sm:$0xf]
  %v723 = vld [vmem:[%s0 + $0xb10] sm:$0xf]
  %v724 = vld [vmem:[%s0 + $0xb14] sm:$0xf]
  %v725 = vld [vmem:[%s0 + $0xb18] sm:$0xf]
  %v726 = vld [vmem:[%s0 + $0xb1c] sm:$0xf]
  %v727 = vld [vmem:[%s0 + $0xb20] sm:$0xf]
  %v728 = vld [vmem:[%s0 + $0xb24] sm:$0xf]
  %v729 = vld [vmem:[%s0 + $0xb28] sm:$0xf]
  %v730 = vld [vmem:[%s0 + $0xb2c] sm:$0xf]
  %v731 = vld [vmem:[%s0 + $0xb30] sm:$0xf]
  %v732 = vld [vmem:[%s0 + $0xb34] sm:$0xf]
  %v733 = vld [vmem:[%s0 + $0xb38] sm:$0xf]
  %v734 = vld [vmem:[%s0 + $0xb3c] sm:$0xf]
  %v735 = vld [vmem:[%s0 + $0xb40] sm:$0xf]
  %v736 = vld [vmem:[%s0 + $0xb44] sm:$0xf]
  %v737 = vld [vmem:[%s0 + $0xb48] sm:$0xf]
  %v738 = vld [vmem:[%s0 + $0xb4c] sm:$0xf]
  %v739 = vld [vmem:[%s0 + $0xb50] sm:$0xf]
  %v740 = vld [vmem:[%s0 + $0xb54] sm:$0xf]
  %v741 = vld [vmem:[%s0 + $0xb58] sm:$0xf]
  %v742 = vld [vmem:[%s0 + $0xb5c] sm:$0xf]
  %v743 = vld [vmem:[%s0 + $0xb60] sm:$0xf]
  %v744 = vld [vmem:[%s0 + $0xb64] sm:$0xf]
  %v745 = vld [vmem:[%s0 + $0xb68] sm:$0xf]
  %v746 = vld [vmem:[%s0 + $0xb6c] sm:$0xf]
  %v747 = vld [vmem:[%s0 + $0xb70] sm:$0xf]
  %v748 = vld [vmem:[%s0 + $0xb74] sm:$0xf]
  %v749 = vld [vmem:[%s0 + $0xb78] sm:$0xf]
  %v750 = vld [vmem:[%s0 + $0xb7c] sm:$0xf]
  %v751 = vld [vmem:[%s0 + $0xb80] sm:$0xf]
  %v752 = vld [vmem:[%s0 + $0xb84] sm:$0xf]
  %v753 = vld [vmem:[%s0 + $0xb88] sm:$0xf]
  %v754 = vld [vmem:[%s0 + $0xb8c] sm:$0xf]
  %v755 = vld [vmem:[%s0 + $0xb90] sm:$0xf]
  %v756 = vld [vmem:[%s0 + $0xb94] sm:$0xf]
  %v757 = vld [vmem:[%s0 + $0xb98] sm:$0xf]
  %v758 = vld [vmem:[%s0 + $0xb9c] sm:$0xf]
  %v759 = vld [vmem:[%s0 + $0xba0] sm:$0xf]
  %v760 = vld [vmem:[%s0 + $0xba4] sm:$0xf]
  %v761 = vld [vmem:[%s0 + $0xba8] sm:$0xf]
  %v762 = vld [vmem:[%s0 + $0xbac] sm:$0xf]
  %v763 = vld [vmem:[%s0 + $0xbb0] sm:$0xf]
  %v764 = vld [vmem:[%s0 + $0xbb4] sm:$0xf]
  %v765 = vld [vmem:[%s0 + $0xbb8] sm:$0xf]
  %v766 = vld [vmem:[%s0 + $0xbbc] sm:$0xf]
  %v767 = vld [vmem:[%s0 + $0xbc0] sm:$0xf]
  %v768 = vld [vmem:[%s0 + $0xbc4] sm:$0xf]
  %v769 = vld [vmem:[%s0 + $0xbc8] sm:$0xf]
  %v770 = vld [vmem:[%s0 + $0xbcc] sm:$0xf]
  %v771 = vld [vmem:[%s0 + $0xbd0] sm:$0xf]
  %v772 = vld [vmem:[%s0 + $0xbd4] sm:$0xf]
  %v773 = vld [vmem:[%s0 + $0xbd8] sm:$0xf]
  %v774 = vld [vmem:[%s0 + $0xbdc] sm:$0xf]
  %v775 = vld [vmem:[%s0 + $0xbe0] sm:$0xf]
  %v776 = vld [vmem:[%s0 + $0xbe4] sm:$0xf]
  %v777 = vld [vmem:[%s0 + $0xbe8] sm:$0xf]
  %v778 = vld [vmem:[%s0 + $0xbec] sm:$0xf]
  %v779 = vld [vmem:[%s0 + $0xbf0] sm:$0xf]
  %v780 = vld [vmem:[%s0 + $0xbf4] sm:$0xf]
  %v781 = vld [vmem:[%s0 + $0xbf8] sm:$0xf]
  %v782 = vld [vmem:[%s0 + $0xbfc] sm:$0xf]
  %v783 = vld [vmem:[%s0 + $0xc00] sm:$0xf]
  %v784 = vld [vmem:[%s0 + $0xc04] sm:$0xf]
  %v785 = vld [vmem:[%s0 + $0xc08] sm:$0xf]
  %v786 = vld [vmem:[%s0 + $0xc0c] sm:$0xf]
  %v787 = vld [vmem:[%s0 + $0xc10] sm:$0xf]
  %v788 = vld [vmem:[%s0 + $0xc14] sm:$0xf]
  %v789 = vld [vmem:[%s0 + $0xc18] sm:$0xf]
  %v790 = vld [vmem:[%s0 + $0xc1c] sm:$0xf]
  %v791 = vld [vmem:[%s0 + $0xc20] sm:$0xf]
  %v792 = vld [vmem:[%s0 + $0xc24] sm:$0xf]
  %v793 = vld [vmem:[%s0 + $0xc28] sm:$0xf]
  %v794 = vld [vmem:[%s0 + $0xc2c] sm:$0xf]
  %v795 = vld [vmem:[%s0 + $0xc30] sm:$0xf]
  %v796 = vld [vmem:[%s0 + $0xc34] sm:$0xf]
  %v797 = vld [vmem:[%s0 + $0xc38] sm:$0xf]
  %v798 = vld [vmem:[%s0 + $0xc3c] sm:$0xf]
  %v799 = vld [vmem:[%s1] sm:$0xf]
  %v800 = vld [vmem:[%s1 + $0x4] sm:$0xf]
  %v801 = vld [vmem:[%s1 + $0x8] sm:$0xf]
  %v802 = vld [vmem:[%s1 + $0xc] sm:$0x1]
  %v803 = vld [vmem:[%s2] sm:$0x1]
  %v805 = vlaneseq
  %v806 = vshrl.u32 %v805, 7
  %v807 = vsub.s32 0, %v806
  %v808 = vrot.slane %v803, %v807
  %v1594 = vunpack.c.l.b16 %v15
  %v1595 = vunpack.c.l.b16 %v16
  %v1596 = vunpack.c.l.b16 %v17
  %v1597 = vunpack.c.l.b16 %v18
  %v1598 = vunpack.c.l.b16 %v19
  %v1599 = vunpack.c.l.b16 %v20
  %v1600 = vunpack.c.l.b16 %v21
  %v1601 = vunpack.c.l.b16 %v22
  %v1602 = vunpack.c.l.b16 %v23
  %v1603 = vunpack.c.l.b16 %v24
  %v1604 = vunpack.c.l.b16 %v25
  %v1605 = vunpack.c.l.b16 %v26
  %v1606 = vunpack.c.l.b16 %v27
  %v1607 = vunpack.c.l.b16 %v28
  %v1608 = vunpack.c.l.b16 %v29
  %v1609 = vunpack.c.l.b16 %v30
  %v1610 = vunpack.c.l.b16 %v31
  %v1611 = vunpack.c.l.b16 %v32
  %v1612 = vunpack.c.l.b16 %v33
  %v1613 = vunpack.c.l.b16 %v34
  %v1614 = vunpack.c.l.b16 %v35
  %v1615 = vunpack.c.l.b16 %v36
  %v1616 = vunpack.c.l.b16 %v37
  %v1617 = vunpack.c.l.b16 %v38
  %v1618 = vunpack.c.l.b16 %v39
  %v1619 = vunpack.c.l.b16 %v40
  %v1620 = vunpack.c.l.b16 %v41
  %v1621 = vunpack.c.l.b16 %v42
  %v1622 = vunpack.c.l.b16 %v43
  %v1623 = vunpack.c.l.b16 %v44
  %v1624 = vunpack.c.l.b16 %v45
  %v1625 = vunpack.c.l.b16 %v46
  %v1626 = vunpack.c.l.b16 %v47
  %v1627 = vunpack.c.l.b16 %v48
  %v1628 = vunpack.c.l.b16 %v49
  %v1629 = vunpack.c.l.b16 %v50
  %v1630 = vunpack.c.l.b16 %v51
  %v1631 = vunpack.c.l.b16 %v52
  %v1632 = vunpack.c.l.b16 %v53
  %v1633 = vunpack.c.l.b16 %v54
  %v1634 = vunpack.c.l.b16 %v55
  %v1635 = vunpack.c.l.b16 %v56
  %v1636 = vunpack.c.l.b16 %v57
  %v1637 = vunpack.c.l.b16 %v58
  %v1638 = vunpack.c.l.b16 %v59
  %v1639 = vunpack.c.l.b16 %v60
  %v1640 = vunpack.c.l.b16 %v61
  %v1641 = vunpack.c.l.b16 %v62
  %v1642 = vunpack.c.l.b16 %v63
  %v1643 = vunpack.c.l.b16 %v64
  %v1644 = vunpack.c.l.b16 %v65
  %v1645 = vunpack.c.l.b16 %v66
  %v1646 = vunpack.c.l.b16 %v67
  %v1647 = vunpack.c.l.b16 %v68
  %v1648 = vunpack.c.l.b16 %v69
  %v1649 = vunpack.c.l.b16 %v70
  %v1650 = vunpack.c.l.b16 %v71
  %v1651 = vunpack.c.l.b16 %v72
  %v1652 = vunpack.c.l.b16 %v73
  %v1653 = vunpack.c.l.b16 %v74
  %v1654 = vunpack.c.l.b16 %v75
  %v1655 = vunpack.c.l.b16 %v76
  %v1656 = vunpack.c.l.b16 %v77
  %v1657 = vunpack.c.l.b16 %v78
  %v1658 = vunpack.c.l.b16 %v79
  %v1659 = vunpack.c.l.b16 %v80
  %v1660 = vunpack.c.l.b16 %v81
  %v1661 = vunpack.c.l.b16 %v82
  %v1662 = vunpack.c.l.b16 %v83
  %v1663 = vunpack.c.l.b16 %v84
  %v1664 = vunpack.c.l.b16 %v85
  %v1665 = vunpack.c.l.b16 %v86
  %v1666 = vunpack.c.l.b16 %v87
  %v1667 = vunpack.c.l.b16 %v88
  %v1668 = vunpack.c.l.b16 %v89
  %v1669 = vunpack.c.l.b16 %v90
  %v1670 = vunpack.c.l.b16 %v91
  %v1671 = vunpack.c.l.b16 %v92
  %v1672 = vunpack.c.l.b16 %v93
  %v1673 = vunpack.c.l.b16 %v94
  %v1674 = vunpack.c.l.b16 %v95
  %v1675 = vunpack.c.l.b16 %v96
  %v1676 = vunpack.c.l.b16 %v97
  %v1677 = vunpack.c.l.b16 %v98
  %v1678 = vunpack.c.l.b16 %v99
  %v1679 = vunpack.c.l.b16 %v100
  %v1680 = vunpack.c.l.b16 %v101
  %v1681 = vunpack.c.l.b16 %v102
  %v1682 = vunpack.c.l.b16 %v103
  %v1683 = vunpack.c.l.b16 %v104
  %v1684 = vunpack.c.l.b16 %v105
  %v1685 = vunpack.c.l.b16 %v106
  %v1686 = vunpack.c.l.b16 %v107
  %v1687 = vunpack.c.l.b16 %v108
  %v1688 = vunpack.c.l.b16 %v109
  %v1689 = vunpack.c.l.b16 %v110
  %v1690 = vunpack.c.l.b16 %v111
  %v1691 = vunpack.c.l.b16 %v112
  %v1692 = vunpack.c.l.b16 %v113
  %v1693 = vunpack.c.l.b16 %v114
  %v1694 = vunpack.c.l.b16 %v115
  %v1695 = vunpack.c.l.b16 %v116
  %v1696 = vunpack.c.l.b16 %v117
  %v1697 = vunpack.c.l.b16 %v118
  %v1698 = vunpack.c.l.b16 %v119
  %v1699 = vunpack.c.l.b16 %v120
  %v1700 = vunpack.c.l.b16 %v121
  %v1701 = vunpack.c.l.b16 %v122
  %v1702 = vunpack.c.l.b16 %v123
  %v1703 = vunpack.c.l.b16 %v124
  %v1704 = vunpack.c.l.b16 %v125
  %v1705 = vunpack.c.l.b16 %v126
  %v1706 = vunpack.c.l.b16 %v127
  %v1707 = vunpack.c.l.b16 %v128
  %v1708 = vunpack.c.l.b16 %v129
  %v1709 = vunpack.c.l.b16 %v130
  %v1710 = vunpack.c.l.b16 %v131
  %v1711 = vunpack.c.l.b16 %v132
  %v1712 = vunpack.c.l.b16 %v133
  %v1713 = vunpack.c.l.b16 %v134
  %v1714 = vunpack.c.l.b16 %v135
  %v1715 = vunpack.c.l.b16 %v136
  %v1716 = vunpack.c.l.b16 %v137
  %v1717 = vunpack.c.l.b16 %v138
  %v1718 = vunpack.c.l.b16 %v139
  %v1719 = vunpack.c.l.b16 %v140
  %v1720 = vunpack.c.l.b16 %v141
  %v1721 = vunpack.c.l.b16 %v142
  %v1722 = vunpack.c.l.b16 %v143
  %v1723 = vunpack.c.l.b16 %v144
  %v1724 = vunpack.c.l.b16 %v145
  %v1725 = vunpack.c.l.b16 %v146
  %v1726 = vunpack.c.l.b16 %v147
  %v1727 = vunpack.c.l.b16 %v148
  %v1728 = vunpack.c.l.b16 %v149
  %v1729 = vunpack.c.l.b16 %v150
  %v1730 = vunpack.c.l.b16 %v151
  %v1731 = vunpack.c.l.b16 %v152
  %v1732 = vunpack.c.l.b16 %v153
  %v1733 = vunpack.c.l.b16 %v154
  %v1734 = vunpack.c.l.b16 %v155
  %v1735 = vunpack.c.l.b16 %v156
  %v1736 = vunpack.c.l.b16 %v157
  %v1737 = vunpack.c.l.b16 %v158
  %v1738 = vunpack.c.l.b16 %v159
  %v1739 = vunpack.c.l.b16 %v160
  %v1740 = vunpack.c.l.b16 %v161
  %v1741 = vunpack.c.l.b16 %v162
  %v1742 = vunpack.c.l.b16 %v163
  %v1743 = vunpack.c.l.b16 %v164
  %v1744 = vunpack.c.l.b16 %v165
  %v1745 = vunpack.c.l.b16 %v166
  %v1746 = vunpack.c.l.b16 %v167
  %v1747 = vunpack.c.l.b16 %v168
  %v1748 = vunpack.c.l.b16 %v169
  %v1749 = vunpack.c.l.b16 %v170
  %v1750 = vunpack.c.l.b16 %v171
  %v1751 = vunpack.c.l.b16 %v172
  %v1752 = vunpack.c.l.b16 %v173
  %v1753 = vunpack.c.l.b16 %v174
  %v1754 = vunpack.c.l.b16 %v175
  %v1755 = vunpack.c.l.b16 %v176
  %v1756 = vunpack.c.l.b16 %v177
  %v1757 = vunpack.c.l.b16 %v178
  %v1758 = vunpack.c.l.b16 %v179
  %v1759 = vunpack.c.l.b16 %v180
  %v1760 = vunpack.c.l.b16 %v181
  %v1761 = vunpack.c.l.b16 %v182
  %v1762 = vunpack.c.l.b16 %v183
  %v1763 = vunpack.c.l.b16 %v184
  %v1764 = vunpack.c.l.b16 %v185
  %v1765 = vunpack.c.l.b16 %v186
  %v1766 = vunpack.c.l.b16 %v187
  %v1767 = vunpack.c.l.b16 %v188
  %v1768 = vunpack.c.l.b16 %v189
  %v1769 = vunpack.c.l.b16 %v190
  %v1770 = vunpack.c.l.b16 %v191
  %v1771 = vunpack.c.l.b16 %v192
  %v1772 = vunpack.c.l.b16 %v193
  %v1773 = vunpack.c.l.b16 %v194
  %v1774 = vunpack.c.l.b16 %v195
  %v1775 = vunpack.c.l.b16 %v196
  %v1776 = vunpack.c.l.b16 %v197
  %v1777 = vunpack.c.l.b16 %v198
  %v1778 = vunpack.c.l.b16 %v199
  %v1779 = vunpack.c.l.b16 %v200
  %v1780 = vunpack.c.l.b16 %v201
  %v1781 = vunpack.c.l.b16 %v202
  %v1782 = vunpack.c.l.b16 %v203
  %v1783 = vunpack.c.l.b16 %v204
  %v1784 = vunpack.c.l.b16 %v205
  %v1785 = vunpack.c.l.b16 %v206
  %v1786 = vunpack.c.l.b16 %v207
  %v1787 = vunpack.c.l.b16 %v208
  %v1788 = vunpack.c.l.b16 %v209
  %v1789 = vunpack.c.l.b16 %v210
  %v1790 = vunpack.c.l.b16 %v211
  %v1791 = vunpack.c.l.b16 %v212
  %v1792 = vunpack.c.l.b16 %v213
  %v1793 = vunpack.c.l.b16 %v214
  %v1794 = vunpack.c.l.b16 %v215
  %v1795 = vunpack.c.l.b16 %v216
  %v1796 = vunpack.c.l.b16 %v217
  %v1797 = vunpack.c.l.b16 %v218
  %v1798 = vunpack.c.l.b16 %v219
  %v1799 = vunpack.c.l.b16 %v220
  %v1800 = vunpack.c.l.b16 %v221
  %v1801 = vunpack.c.l.b16 %v222
  %v1802 = vunpack.c.l.b16 %v223
  %v1803 = vunpack.c.l.b16 %v224
  %v1804 = vunpack.c.l.b16 %v225
  %v1805 = vunpack.c.l.b16 %v226
  %v1806 = vunpack.c.l.b16 %v227
  %v1807 = vunpack.c.l.b16 %v228
  %v1808 = vunpack.c.l.b16 %v229
  %v1809 = vunpack.c.l.b16 %v230
  %v1810 = vunpack.c.l.b16 %v231
  %v1811 = vunpack.c.l.b16 %v232
  %v1812 = vunpack.c.l.b16 %v233
  %v1813 = vunpack.c.l.b16 %v234
  %v1814 = vunpack.c.l.b16 %v235
  %v1815 = vunpack.c.l.b16 %v236
  %v1816 = vunpack.c.l.b16 %v237
  %v1817 = vunpack.c.l.b16 %v238
  %v1818 = vunpack.c.l.b16 %v239
  %v1819 = vunpack.c.l.b16 %v240
  %v1820 = vunpack.c.l.b16 %v241
  %v1821 = vunpack.c.l.b16 %v242
  %v1822 = vunpack.c.l.b16 %v243
  %v1823 = vunpack.c.l.b16 %v244
  %v1824 = vunpack.c.l.b16 %v245
  %v1825 = vunpack.c.l.b16 %v246
  %v1826 = vunpack.c.l.b16 %v247
  %v1827 = vunpack.c.l.b16 %v248
  %v1828 = vunpack.c.l.b16 %v249
  %v1829 = vunpack.c.l.b16 %v250
  %v1830 = vunpack.c.l.b16 %v251
  %v1831 = vunpack.c.l.b16 %v252
  %v1832 = vunpack.c.l.b16 %v253
  %v1833 = vunpack.c.l.b16 %v254
  %v1834 = vunpack.c.l.b16 %v255
  %v1835 = vunpack.c.l.b16 %v256
  %v1836 = vunpack.c.l.b16 %v257
  %v1837 = vunpack.c.l.b16 %v258
  %v1838 = vunpack.c.l.b16 %v259
  %v1839 = vunpack.c.l.b16 %v260
  %v1840 = vunpack.c.l.b16 %v261
  %v1841 = vunpack.c.l.b16 %v262
  %v1842 = vunpack.c.l.b16 %v263
  %v1843 = vunpack.c.l.b16 %v264
  %v1844 = vunpack.c.l.b16 %v265
  %v1845 = vunpack.c.l.b16 %v266
  %v1846 = vunpack.c.l.b16 %v267
  %v1847 = vunpack.c.l.b16 %v268
  %v1848 = vunpack.c.l.b16 %v269
  %v1849 = vunpack.c.l.b16 %v270
  %v1850 = vunpack.c.l.b16 %v271
  %v1851 = vunpack.c.l.b16 %v272
  %v1852 = vunpack.c.l.b16 %v273
  %v1853 = vunpack.c.l.b16 %v274
  %v1854 = vunpack.c.l.b16 %v275
  %v1855 = vunpack.c.l.b16 %v276
  %v1856 = vunpack.c.l.b16 %v277
  %v1857 = vunpack.c.l.b16 %v278
  %v1858 = vunpack.c.l.b16 %v279
  %v1859 = vunpack.c.l.b16 %v280
  %v1860 = vunpack.c.l.b16 %v281
  %v1861 = vunpack.c.l.b16 %v282
  %v1862 = vunpack.c.l.b16 %v283
  %v1863 = vunpack.c.l.b16 %v284
  %v1864 = vunpack.c.l.b16 %v285
  %v1865 = vunpack.c.l.b16 %v286
  %v1866 = vunpack.c.l.b16 %v287
  %v1867 = vunpack.c.l.b16 %v288
  %v1868 = vunpack.c.l.b16 %v289
  %v1869 = vunpack.c.l.b16 %v290
  %v1870 = vunpack.c.l.b16 %v291
  %v1871 = vunpack.c.l.b16 %v292
  %v1872 = vunpack.c.l.b16 %v293
  %v1873 = vunpack.c.l.b16 %v294
  %v1874 = vunpack.c.l.b16 %v295
  %v1875 = vunpack.c.l.b16 %v296
  %v1876 = vunpack.c.l.b16 %v297
  %v1877 = vunpack.c.l.b16 %v298
  %v1878 = vunpack.c.l.b16 %v299
  %v1879 = vunpack.c.l.b16 %v300
  %v1880 = vunpack.c.l.b16 %v301
  %v1881 = vunpack.c.l.b16 %v302
  %v1882 = vunpack.c.l.b16 %v303
  %v1883 = vunpack.c.l.b16 %v304
  %v1884 = vunpack.c.l.b16 %v305
  %v1885 = vunpack.c.l.b16 %v306
  %v1886 = vunpack.c.l.b16 %v307
  %v1887 = vunpack.c.l.b16 %v308
  %v1888 = vunpack.c.l.b16 %v309
  %v1889 = vunpack.c.l.b16 %v310
  %v1890 = vunpack.c.l.b16 %v311
  %v1891 = vunpack.c.l.b16 %v312
  %v1892 = vunpack.c.l.b16 %v313
  %v1893 = vunpack.c.l.b16 %v314
  %v1894 = vunpack.c.l.b16 %v315
  %v1895 = vunpack.c.l.b16 %v316
  %v1896 = vunpack.c.l.b16 %v317
  %v1897 = vunpack.c.l.b16 %v318
  %v1898 = vunpack.c.l.b16 %v319
  %v1899 = vunpack.c.l.b16 %v320
  %v1900 = vunpack.c.l.b16 %v321
  %v1901 = vunpack.c.l.b16 %v322
  %v1902 = vunpack.c.l.b16 %v323
  %v1903 = vunpack.c.l.b16 %v324
  %v1904 = vunpack.c.l.b16 %v325
  %v1905 = vunpack.c.l.b16 %v326
  %v1906 = vunpack.c.l.b16 %v327
  %v1907 = vunpack.c.l.b16 %v328
  %v1908 = vunpack.c.l.b16 %v329
  %v1909 = vunpack.c.l.b16 %v330
  %v1910 = vunpack.c.l.b16 %v331
  %v1911 = vunpack.c.l.b16 %v332
  %v1912 = vunpack.c.l.b16 %v333
  %v1913 = vunpack.c.l.b16 %v334
  %v1914 = vunpack.c.l.b16 %v335
  %v1915 = vunpack.c.l.b16 %v336
  %v1916 = vunpack.c.l.b16 %v337
  %v1917 = vunpack.c.l.b16 %v338
  %v1918 = vunpack.c.l.b16 %v339
  %v1919 = vunpack.c.l.b16 %v340
  %v1920 = vunpack.c.l.b16 %v341
  %v1921 = vunpack.c.l.b16 %v342
  %v1922 = vunpack.c.l.b16 %v343
  %v1923 = vunpack.c.l.b16 %v344
  %v1924 = vunpack.c.l.b16 %v345
  %v1925 = vunpack.c.l.b16 %v346
  %v1926 = vunpack.c.l.b16 %v347
  %v1927 = vunpack.c.l.b16 %v348
  %v1928 = vunpack.c.l.b16 %v349
  %v1929 = vunpack.c.l.b16 %v350
  %v1930 = vunpack.c.l.b16 %v351
  %v1931 = vunpack.c.l.b16 %v352
  %v1932 = vunpack.c.l.b16 %v353
  %v1933 = vunpack.c.l.b16 %v354
  %v1934 = vunpack.c.l.b16 %v355
  %v1935 = vunpack.c.l.b16 %v356
  %v1936 = vunpack.c.l.b16 %v357
  %v1937 = vunpack.c.l.b16 %v358
  %v1938 = vunpack.c.l.b16 %v359
  %v1939 = vunpack.c.l.b16 %v360
  %v1940 = vunpack.c.l.b16 %v361
  %v1941 = vunpack.c.l.b16 %v362
  %v1942 = vunpack.c.l.b16 %v363
  %v1943 = vunpack.c.l.b16 %v364
  %v1944 = vunpack.c.l.b16 %v365
  %v1945 = vunpack.c.l.b16 %v366
  %v1946 = vunpack.c.l.b16 %v367
  %v1947 = vunpack.c.l.b16 %v368
  %v1948 = vunpack.c.l.b16 %v369
  %v1949 = vunpack.c.l.b16 %v370
  %v1950 = vunpack.c.l.b16 %v371
  %v1951 = vunpack.c.l.b16 %v372
  %v1952 = vunpack.c.l.b16 %v373
  %v1953 = vunpack.c.l.b16 %v374
  %v1954 = vunpack.c.l.b16 %v375
  %v1955 = vunpack.c.l.b16 %v376
  %v1956 = vunpack.c.l.b16 %v377
  %v1957 = vunpack.c.l.b16 %v378
  %v1958 = vunpack.c.l.b16 %v379
  %v1959 = vunpack.c.l.b16 %v380
  %v1960 = vunpack.c.l.b16 %v381
  %v1961 = vunpack.c.l.b16 %v382
  %v1962 = vunpack.c.l.b16 %v383
  %v1963 = vunpack.c.l.b16 %v384
  %v1964 = vunpack.c.l.b16 %v385
  %v1965 = vunpack.c.l.b16 %v386
  %v1966 = vunpack.c.l.b16 %v387
  %v1967 = vunpack.c.l.b16 %v388
  %v1968 = vunpack.c.l.b16 %v389
  %v1969 = vunpack.c.l.b16 %v390
  %v1970 = vunpack.c.l.b16 %v391
  %v1971 = vunpack.c.l.b16 %v392
  %v1972 = vunpack.c.l.b16 %v393
  %v1973 = vunpack.c.l.b16 %v394
  %v1974 = vunpack.c.l.b16 %v395
  %v1975 = vunpack.c.l.b16 %v396
  %v1976 = vunpack.c.l.b16 %v397
  %v1977 = vunpack.c.l.b16 %v398
  %v1978 = vunpack.c.l.b16 %v399
  %v1979 = vunpack.c.l.b16 %v400
  %v1980 = vunpack.c.l.b16 %v401
  %v1981 = vunpack.c.l.b16 %v402
  %v1982 = vunpack.c.l.b16 %v403
  %v1983 = vunpack.c.l.b16 %v404
  %v1984 = vunpack.c.l.b16 %v405
  %v1985 = vunpack.c.l.b16 %v406
  %v1986 = vunpack.c.l.b16 %v407
  %v1987 = vunpack.c.l.b16 %v408
  %v1988 = vunpack.c.l.b16 %v409
  %v1989 = vunpack.c.l.b16 %v410
  %v1990 = vunpack.c.l.b16 %v411
  %v1991 = vunpack.c.l.b16 %v412
  %v1992 = vunpack.c.l.b16 %v413
  %v1993 = vunpack.c.l.b16 %v414
  %v1994 = vunpack.c.l.b16 %v415
  %v1995 = vunpack.c.l.b16 %v416
  %v1996 = vunpack.c.l.b16 %v417
  %v1997 = vunpack.c.l.b16 %v418
  %v1998 = vunpack.c.l.b16 %v419
  %v1999 = vunpack.c.l.b16 %v420
  %v2000 = vunpack.c.l.b16 %v421
  %v2001 = vunpack.c.l.b16 %v422
  %v2002 = vunpack.c.l.b16 %v423
  %v2003 = vunpack.c.l.b16 %v424
  %v2004 = vunpack.c.l.b16 %v425
  %v2005 = vunpack.c.l.b16 %v426
  %v2006 = vunpack.c.l.b16 %v427
  %v2007 = vunpack.c.l.b16 %v428
  %v2008 = vunpack.c.l.b16 %v429
  %v2009 = vunpack.c.l.b16 %v430
  %v2010 = vunpack.c.l.b16 %v431
  %v2011 = vunpack.c.l.b16 %v432
  %v2012 = vunpack.c.l.b16 %v433
  %v2013 = vunpack.c.l.b16 %v434
  %v2014 = vunpack.c.l.b16 %v435
  %v2015 = vunpack.c.l.b16 %v436
  %v2016 = vunpack.c.l.b16 %v437
  %v2017 = vunpack.c.l.b16 %v438
  %v2018 = vunpack.c.l.b16 %v439
  %v2019 = vunpack.c.l.b16 %v440
  %v2020 = vunpack.c.l.b16 %v441
  %v2021 = vunpack.c.l.b16 %v442
  %v2022 = vunpack.c.l.b16 %v443
  %v2023 = vunpack.c.l.b16 %v444
  %v2024 = vunpack.c.l.b16 %v445
  %v2025 = vunpack.c.l.b16 %v446
  %v2026 = vunpack.c.l.b16 %v447
  %v2027 = vunpack.c.l.b16 %v448
  %v2028 = vunpack.c.l.b16 %v449
  %v2029 = vunpack.c.l.b16 %v450
  %v2030 = vunpack.c.l.b16 %v451
  %v2031 = vunpack.c.l.b16 %v452
  %v2032 = vunpack.c.l.b16 %v453
  %v2033 = vunpack.c.l.b16 %v454
  %v2034 = vunpack.c.l.b16 %v455
  %v2035 = vunpack.c.l.b16 %v456
  %v2036 = vunpack.c.l.b16 %v457
  %v2037 = vunpack.c.l.b16 %v458
  %v2038 = vunpack.c.l.b16 %v459
  %v2039 = vunpack.c.l.b16 %v460
  %v2040 = vunpack.c.l.b16 %v461
  %v2041 = vunpack.c.l.b16 %v462
  %v2042 = vunpack.c.l.b16 %v463
  %v2043 = vunpack.c.l.b16 %v464
  %v2044 = vunpack.c.l.b16 %v465
  %v2045 = vunpack.c.l.b16 %v466
  %v2046 = vunpack.c.l.b16 %v467
  %v2047 = vunpack.c.l.b16 %v468
  %v2048 = vunpack.c.l.b16 %v469
  %v2049 = vunpack.c.l.b16 %v470
  %v2050 = vunpack.c.l.b16 %v471
  %v2051 = vunpack.c.l.b16 %v472
  %v2052 = vunpack.c.l.b16 %v473
  %v2053 = vunpack.c.l.b16 %v474
  %v2054 = vunpack.c.l.b16 %v475
  %v2055 = vunpack.c.l.b16 %v476
  %v2056 = vunpack.c.l.b16 %v477
  %v2057 = vunpack.c.l.b16 %v478
  %v2058 = vunpack.c.l.b16 %v479
  %v2059 = vunpack.c.l.b16 %v480
  %v2060 = vunpack.c.l.b16 %v481
  %v2061 = vunpack.c.l.b16 %v482
  %v2062 = vunpack.c.l.b16 %v483
  %v2063 = vunpack.c.l.b16 %v484
  %v2064 = vunpack.c.l.b16 %v485
  %v2065 = vunpack.c.l.b16 %v486
  %v2066 = vunpack.c.l.b16 %v487
  %v2067 = vunpack.c.l.b16 %v488
  %v2068 = vunpack.c.l.b16 %v489
  %v2069 = vunpack.c.l.b16 %v490
  %v2070 = vunpack.c.l.b16 %v491
  %v2071 = vunpack.c.l.b16 %v492
  %v2072 = vunpack.c.l.b16 %v493
  %v2073 = vunpack.c.l.b16 %v494
  %v2074 = vunpack.c.l.b16 %v495
  %v2075 = vunpack.c.l.b16 %v496
  %v2076 = vunpack.c.l.b16 %v497
  %v2077 = vunpack.c.l.b16 %v498
  %v2078 = vunpack.c.l.b16 %v499
  %v2079 = vunpack.c.l.b16 %v500
  %v2080 = vunpack.c.l.b16 %v501
  %v2081 = vunpack.c.l.b16 %v502
  %v2082 = vunpack.c.l.b16 %v503
  %v2083 = vunpack.c.l.b16 %v504
  %v2084 = vunpack.c.l.b16 %v505
  %v2085 = vunpack.c.l.b16 %v506
  %v2086 = vunpack.c.l.b16 %v507
  %v2087 = vunpack.c.l.b16 %v508
  %v2088 = vunpack.c.l.b16 %v509
  %v2089 = vunpack.c.l.b16 %v510
  %v2090 = vunpack.c.l.b16 %v511
  %v2091 = vunpack.c.l.b16 %v512
  %v2092 = vunpack.c.l.b16 %v513
  %v2093 = vunpack.c.l.b16 %v514
  %v2094 = vunpack.c.l.b16 %v515
  %v2095 = vunpack.c.l.b16 %v516
  %v2096 = vunpack.c.l.b16 %v517
  %v2097 = vunpack.c.l.b16 %v518
  %v2098 = vunpack.c.l.b16 %v519
  %v2099 = vunpack.c.l.b16 %v520
  %v2100 = vunpack.c.l.b16 %v521
  %v2101 = vunpack.c.l.b16 %v522
  %v2102 = vunpack.c.l.b16 %v523
  %v2103 = vunpack.c.l.b16 %v524
  %v2104 = vunpack.c.l.b16 %v525
  %v2105 = vunpack.c.l.b16 %v526
  %v2106 = vunpack.c.l.b16 %v527
  %v2107 = vunpack.c.l.b16 %v528
  %v2108 = vunpack.c.l.b16 %v529
  %v2109 = vunpack.c.l.b16 %v530
  %v2110 = vunpack.c.l.b16 %v531
  %v2111 = vunpack.c.l.b16 %v532
  %v2112 = vunpack.c.l.b16 %v533
  %v2113 = vunpack.c.l.b16 %v534
  %v2114 = vunpack.c.l.b16 %v535
  %v2115 = vunpack.c.l.b16 %v536
  %v2116 = vunpack.c.l.b16 %v537
  %v2117 = vunpack.c.l.b16 %v538
  %v2118 = vunpack.c.l.b16 %v539
  %v2119 = vunpack.c.l.b16 %v540
  %v2120 = vunpack.c.l.b16 %v541
  %v2121 = vunpack.c.l.b16 %v542
  %v2122 = vunpack.c.l.b16 %v543
  %v2123 = vunpack.c.l.b16 %v544
  %v2124 = vunpack.c.l.b16 %v545
  %v2125 = vunpack.c.l.b16 %v546
  %v2126 = vunpack.c.l.b16 %v547
  %v2127 = vunpack.c.l.b16 %v548
  %v2128 = vunpack.c.l.b16 %v549
  %v2129 = vunpack.c.l.b16 %v550
  %v2130 = vunpack.c.l.b16 %v551
  %v2131 = vunpack.c.l.b16 %v552
  %v2132 = vunpack.c.l.b16 %v553
  %v2133 = vunpack.c.l.b16 %v554
  %v2134 = vunpack.c.l.b16 %v555
  %v2135 = vunpack.c.l.b16 %v556
  %v2136 = vunpack.c.l.b16 %v557
  %v2137 = vunpack.c.l.b16 %v558
  %v2138 = vunpack.c.l.b16 %v559
  %v2139 = vunpack.c.l.b16 %v560
  %v2140 = vunpack.c.l.b16 %v561
  %v2141 = vunpack.c.l.b16 %v562
  %v2142 = vunpack.c.l.b16 %v563
  %v2143 = vunpack.c.l.b16 %v564
  %v2144 = vunpack.c.l.b16 %v565
  %v2145 = vunpack.c.l.b16 %v566
  %v2146 = vunpack.c.l.b16 %v567
  %v2147 = vunpack.c.l.b16 %v568
  %v2148 = vunpack.c.l.b16 %v569
  %v2149 = vunpack.c.l.b16 %v570
  %v2150 = vunpack.c.l.b16 %v571
  %v2151 = vunpack.c.l.b16 %v572
  %v2152 = vunpack.c.l.b16 %v573
  %v2153 = vunpack.c.l.b16 %v574
  %v2154 = vunpack.c.l.b16 %v575
  %v2155 = vunpack.c.l.b16 %v576
  %v2156 = vunpack.c.l.b16 %v577
  %v2157 = vunpack.c.l.b16 %v578
  %v2158 = vunpack.c.l.b16 %v579
  %v2159 = vunpack.c.l.b16 %v580
  %v2160 = vunpack.c.l.b16 %v581
  %v2161 = vunpack.c.l.b16 %v582
  %v2162 = vunpack.c.l.b16 %v583
  %v2163 = vunpack.c.l.b16 %v584
  %v2164 = vunpack.c.l.b16 %v585
  %v2165 = vunpack.c.l.b16 %v586
  %v2166 = vunpack.c.l.b16 %v587
  %v2167 = vunpack.c.l.b16 %v588
  %v2168 = vunpack.c.l.b16 %v589
  %v2169 = vunpack.c.l.b16 %v590
  %v2170 = vunpack.c.l.b16 %v591
  %v2171 = vunpack.c.l.b16 %v592
  %v2172 = vunpack.c.l.b16 %v593
  %v2173 = vunpack.c.l.b16 %v594
  %v2174 = vunpack.c.l.b16 %v595
  %v2175 = vunpack.c.l.b16 %v596
  %v2176 = vunpack.c.l.b16 %v597
  %v2177 = vunpack.c.l.b16 %v598
  %v2178 = vunpack.c.l.b16 %v599
  %v2179 = vunpack.c.l.b16 %v600
  %v2180 = vunpack.c.l.b16 %v601
  %v2181 = vunpack.c.l.b16 %v602
  %v2182 = vunpack.c.l.b16 %v603
  %v2183 = vunpack.c.l.b16 %v604
  %v2184 = vunpack.c.l.b16 %v605
  %v2185 = vunpack.c.l.b16 %v606
  %v2186 = vunpack.c.l.b16 %v607
  %v2187 = vunpack.c.l.b16 %v608
  %v2188 = vunpack.c.l.b16 %v609
  %v2189 = vunpack.c.l.b16 %v610
  %v2190 = vunpack.c.l.b16 %v611
  %v2191 = vunpack.c.l.b16 %v612
  %v2192 = vunpack.c.l.b16 %v613
  %v2193 = vunpack.c.l.b16 %v614
  %v2194 = vunpack.c.l.b16 %v615
  %v2195 = vunpack.c.l.b16 %v616
  %v2196 = vunpack.c.l.b16 %v617
  %v2197 = vunpack.c.l.b16 %v618
  %v2198 = vunpack.c.l.b16 %v619
  %v2199 = vunpack.c.l.b16 %v620
  %v2200 = vunpack.c.l.b16 %v621
  %v2201 = vunpack.c.l.b16 %v622
  %v2202 = vunpack.c.l.b16 %v623
  %v2203 = vunpack.c.l.b16 %v624
  %v2204 = vunpack.c.l.b16 %v625
  %v2205 = vunpack.c.l.b16 %v626
  %v2206 = vunpack.c.l.b16 %v627
  %v2207 = vunpack.c.l.b16 %v628
  %v2208 = vunpack.c.l.b16 %v629
  %v2209 = vunpack.c.l.b16 %v630
  %v2210 = vunpack.c.l.b16 %v631
  %v2211 = vunpack.c.l.b16 %v632
  %v2212 = vunpack.c.l.b16 %v633
  %v2213 = vunpack.c.l.b16 %v634
  %v2214 = vunpack.c.l.b16 %v635
  %v2215 = vunpack.c.l.b16 %v636
  %v2216 = vunpack.c.l.b16 %v637
  %v2217 = vunpack.c.l.b16 %v638
  %v2218 = vunpack.c.l.b16 %v639
  %v2219 = vunpack.c.l.b16 %v640
  %v2220 = vunpack.c.l.b16 %v641
  %v2221 = vunpack.c.l.b16 %v642
  %v2222 = vunpack.c.l.b16 %v643
  %v2223 = vunpack.c.l.b16 %v644
  %v2224 = vunpack.c.l.b16 %v645
  %v2225 = vunpack.c.l.b16 %v646
  %v2226 = vunpack.c.l.b16 %v647
  %v2227 = vunpack.c.l.b16 %v648
  %v2228 = vunpack.c.l.b16 %v649
  %v2229 = vunpack.c.l.b16 %v650
  %v2230 = vunpack.c.l.b16 %v651
  %v2231 = vunpack.c.l.b16 %v652
  %v2232 = vunpack.c.l.b16 %v653
  %v2233 = vunpack.c.l.b16 %v654
  %v2234 = vunpack.c.l.b16 %v655
  %v2235 = vunpack.c.l.b16 %v656
  %v2236 = vunpack.c.l.b16 %v657
  %v2237 = vunpack.c.l.b16 %v658
  %v2238 = vunpack.c.l.b16 %v659
  %v2239 = vunpack.c.l.b16 %v660
  %v2240 = vunpack.c.l.b16 %v661
  %v2241 = vunpack.c.l.b16 %v662
  %v2242 = vunpack.c.l.b16 %v663
  %v2243 = vunpack.c.l.b16 %v664
  %v2244 = vunpack.c.l.b16 %v665
  %v2245 = vunpack.c.l.b16 %v666
  %v2246 = vunpack.c.l.b16 %v667
  %v2247 = vunpack.c.l.b16 %v668
  %v2248 = vunpack.c.l.b16 %v669
  %v2249 = vunpack.c.l.b16 %v670
  %v2250 = vunpack.c.l.b16 %v671
  %v2251 = vunpack.c.l.b16 %v672
  %v2252 = vunpack.c.l.b16 %v673
  %v2253 = vunpack.c.l.b16 %v674
  %v2254 = vunpack.c.l.b16 %v675
  %v2255 = vunpack.c.l.b16 %v676
  %v2256 = vunpack.c.l.b16 %v677
  %v2257 = vunpack.c.l.b16 %v678
  %v2258 = vunpack.c.l.b16 %v679
  %v2259 = vunpack.c.l.b16 %v680
  %v2260 = vunpack.c.l.b16 %v681
  %v2261 = vunpack.c.l.b16 %v682
  %v2262 = vunpack.c.l.b16 %v683
  %v2263 = vunpack.c.l.b16 %v684
  %v2264 = vunpack.c.l.b16 %v685
  %v2265 = vunpack.c.l.b16 %v686
  %v2266 = vunpack.c.l.b16 %v687
  %v2267 = vunpack.c.l.b16 %v688
  %v2268 = vunpack.c.l.b16 %v689
  %v2269 = vunpack.c.l.b16 %v690
  %v2270 = vunpack.c.l.b16 %v691
  %v2271 = vunpack.c.l.b16 %v692
  %v2272 = vunpack.c.l.b16 %v693
  %v2273 = vunpack.c.l.b16 %v694
  %v2274 = vunpack.c.l.b16 %v695
  %v2275 = vunpack.c.l.b16 %v696
  %v2276 = vunpack.c.l.b16 %v697
  %v2277 = vunpack.c.l.b16 %v698
  %v2278 = vunpack.c.l.b16 %v699
  %v2279 = vunpack.c.l.b16 %v700
  %v2280 = vunpack.c.l.b16 %v701
  %v2281 = vunpack.c.l.b16 %v702
  %v2282 = vunpack.c.l.b16 %v703
  %v2283 = vunpack.c.l.b16 %v704
  %v2284 = vunpack.c.l.b16 %v705
  %v2285 = vunpack.c.l.b16 %v706
  %v2286 = vunpack.c.l.b16 %v707
  %v2287 = vunpack.c.l.b16 %v708
  %v2288 = vunpack.c.l.b16 %v709
  %v2289 = vunpack.c.l.b16 %v710
  %v2290 = vunpack.c.l.b16 %v711
  %v2291 = vunpack.c.l.b16 %v712
  %v2292 = vunpack.c.l.b16 %v713
  %v2293 = vunpack.c.l.b16 %v714
  %v2294 = vunpack.c.l.b16 %v715
  %v2295 = vunpack.c.l.b16 %v716
  %v2296 = vunpack.c.l.b16 %v717
  %v2297 = vunpack.c.l.b16 %v718
  %v2298 = vunpack.c.l.b16 %v719
  %v2299 = vunpack.c.l.b16 %v720
  %v2300 = vunpack.c.l.b16 %v721
  %v2301 = vunpack.c.l.b16 %v722
  %v2302 = vunpack.c.l.b16 %v723
  %v2303 = vunpack.c.l.b16 %v724
  %v2304 = vunpack.c.l.b16 %v725
  %v2305 = vunpack.c.l.b16 %v726
  %v2306 = vunpack.c.l.b16 %v727
  %v2307 = vunpack.c.l.b16 %v728
  %v2308 = vunpack.c.l.b16 %v729
  %v2309 = vunpack.c.l.b16 %v730
  %v2310 = vunpack.c.l.b16 %v731
  %v2311 = vunpack.c.l.b16 %v732
  %v2312 = vunpack.c.l.b16 %v733
  %v2313 = vunpack.c.l.b16 %v734
  %v2314 = vunpack.c.l.b16 %v735
  %v2315 = vunpack.c.l.b16 %v736
  %v2316 = vunpack.c.l.b16 %v737
  %v2317 = vunpack.c.l.b16 %v738
  %v2318 = vunpack.c.l.b16 %v739
  %v2319 = vunpack.c.l.b16 %v740
  %v2320 = vunpack.c.l.b16 %v741
  %v2321 = vunpack.c.l.b16 %v742
  %v2322 = vunpack.c.l.b16 %v743
  %v2323 = vunpack.c.l.b16 %v744
  %v2324 = vunpack.c.l.b16 %v745
  %v2325 = vunpack.c.l.b16 %v746
  %v2326 = vunpack.c.l.b16 %v747
  %v2327 = vunpack.c.l.b16 %v748
  %v2328 = vunpack.c.l.b16 %v749
  %v2329 = vunpack.c.l.b16 %v750
  %v2330 = vunpack.c.l.b16 %v751
  %v2331 = vunpack.c.l.b16 %v752
  %v2332 = vunpack.c.l.b16 %v753
  %v2333 = vunpack.c.l.b16 %v754
  %v2334 = vunpack.c.l.b16 %v755
  %v2335 = vunpack.c.l.b16 %v756
  %v2336 = vunpack.c.l.b16 %v757
  %v2337 = vunpack.c.l.b16 %v758
  %v2338 = vunpack.c.l.b16 %v759
  %v2339 = vunpack.c.l.b16 %v760
  %v2340 = vunpack.c.l.b16 %v761
  %v2341 = vunpack.c.l.b16 %v762
  %v2342 = vunpack.c.l.b16 %v763
  %v2343 = vunpack.c.l.b16 %v764
  %v2344 = vunpack.c.l.b16 %v765
  %v2345 = vunpack.c.l.b16 %v766
  %v2346 = vunpack.c.l.b16 %v767
  %v2347 = vunpack.c.l.b16 %v768
  %v2348 = vunpack.c.l.b16 %v769
  %v2349 = vunpack.c.l.b16 %v770
  %v2350 = vunpack.c.l.b16 %v771
  %v2351 = vunpack.c.l.b16 %v772
  %v2352 = vunpack.c.l.b16 %v773
  %v2353 = vunpack.c.l.b16 %v774
  %v2354 = vunpack.c.l.b16 %v775
  %v2355 = vunpack.c.l.b16 %v776
  %v2356 = vunpack.c.l.b16 %v777
  %v2357 = vunpack.c.l.b16 %v778
  %v2358 = vunpack.c.l.b16 %v779
  %v2359 = vunpack.c.l.b16 %v780
  %v2360 = vunpack.c.l.b16 %v781
  %v2361 = vunpack.c.l.b16 %v782
  %v2362 = vunpack.c.l.b16 %v783
  %v2363 = vunpack.c.l.b16 %v784
  %v2364 = vunpack.c.l.b16 %v785
  %v2365 = vunpack.c.l.b16 %v786
  %v2366 = vunpack.c.l.b16 %v787
  %v2367 = vunpack.c.l.b16 %v788
  %v2368 = vunpack.c.l.b16 %v789
  %v2369 = vunpack.c.l.b16 %v790
  %v2370 = vunpack.c.l.b16 %v791
  %v2371 = vunpack.c.l.b16 %v792
  %v2372 = vunpack.c.l.b16 %v793
  %v2373 = vunpack.c.l.b16 %v794
  %v2374 = vunpack.c.l.b16 %v795
  %v2375 = vunpack.c.l.b16 %v796
  %v2376 = vunpack.c.l.b16 %v797
  %v2377 = vunpack.c.l.b16 %v798
  %v2378 = vpack.c.b16 %v1595, %v1594
  %v2379 = vpack.c.b16 %v1597, %v1596
  %v2380 = vpack.c.b16 %v1599, %v1598
  %v2381 = vpack.c.b16 %v1601, %v1600
  %v2382 = vpack.c.b16 %v1603, %v1602
  %v2383 = vpack.c.b16 %v1605, %v1604
  %v2384 = vpack.c.b16 %v1607, %v1606
  %v2385 = vpack.c.b16 %v1609, %v1608
  %v2386 = vpack.c.b16 %v1611, %v1610
  %v2387 = vpack.c.b16 %v1613, %v1612
  %v2388 = vpack.c.b16 %v1615, %v1614
  %v2389 = vpack.c.b16 %v1617, %v1616
  %v2390 = vpack.c.b16 %v1619, %v1618
  %v2391 = vpack.c.b16 %v1621, %v1620
  %v2392 = vpack.c.b16 %v1623, %v1622
  %v2393 = vpack.c.b16 %v1625, %v1624
  %v2394 = vpack.c.b16 %v1627, %v1626
  %v2395 = vpack.c.b16 %v1629, %v1628
  %v2396 = vpack.c.b16 %v1631, %v1630
  %v2397 = vpack.c.b16 %v1633, %v1632
  %v2398 = vpack.c.b16 %v1635, %v1634
  %v2399 = vpack.c.b16 %v1637, %v1636
  %v2400 = vpack.c.b16 %v1639, %v1638
  %v2401 = vpack.c.b16 %v1641, %v1640
  %v2402 = vpack.c.b16 %v1643, %v1642
  %v2403 = vpack.c.b16 %v1645, %v1644
  %v2404 = vpack.c.b16 %v1647, %v1646
  %v2405 = vpack.c.b16 %v1649, %v1648
  %v2406 = vpack.c.b16 %v1651, %v1650
  %v2407 = vpack.c.b16 %v1653, %v1652
  %v2408 = vpack.c.b16 %v1655, %v1654
  %v2409 = vpack.c.b16 %v1657, %v1656
  %v2410 = vpack.c.b16 %v1659, %v1658
  %v2411 = vpack.c.b16 %v1661, %v1660
  %v2412 = vpack.c.b16 %v1663, %v1662
  %v2413 = vpack.c.b16 %v1665, %v1664
  %v2414 = vpack.c.b16 %v1667, %v1666
  %v2415 = vpack.c.b16 %v1669, %v1668
  %v2416 = vpack.c.b16 %v1671, %v1670
  %v2417 = vpack.c.b16 %v1673, %v1672
  %v2418 = vpack.c.b16 %v1675, %v1674
  %v2419 = vpack.c.b16 %v1677, %v1676
  %v2420 = vpack.c.b16 %v1679, %v1678
  %v2421 = vpack.c.b16 %v1681, %v1680
  %v2422 = vpack.c.b16 %v1683, %v1682
  %v2423 = vpack.c.b16 %v1685, %v1684
  %v2424 = vpack.c.b16 %v1687, %v1686
  %v2425 = vpack.c.b16 %v1689, %v1688
  %v2426 = vpack.c.b16 %v1691, %v1690
  %v2427 = vpack.c.b16 %v1693, %v1692
  %v2428 = vpack.c.b16 %v1695, %v1694
  %v2429 = vpack.c.b16 %v1697, %v1696
  %v2430 = vpack.c.b16 %v1699, %v1698
  %v2431 = vpack.c.b16 %v1701, %v1700
  %v2432 = vpack.c.b16 %v1703, %v1702
  %v2433 = vpack.c.b16 %v1705, %v1704
  %v2434 = vpack.c.b16 %v1707, %v1706
  %v2435 = vpack.c.b16 %v1709, %v1708
  %v2436 = vpack.c.b16 %v1711, %v1710
  %v2437 = vpack.c.b16 %v1713, %v1712
  %v2438 = vpack.c.b16 %v1715, %v1714
  %v2439 = vpack.c.b16 %v1717, %v1716
  %v2440 = vpack.c.b16 %v1719, %v1718
  %v2441 = vpack.c.b16 %v1721, %v1720
  %v2442 = vpack.c.b16 %v1723, %v1722
  %v2443 = vpack.c.b16 %v1725, %v1724
  %v2444 = vpack.c.b16 %v1727, %v1726
  %v2445 = vpack.c.b16 %v1729, %v1728
  %v2446 = vpack.c.b16 %v1731, %v1730
  %v2447 = vpack.c.b16 %v1733, %v1732
  %v2448 = vpack.c.b16 %v1735, %v1734
  %v2449 = vpack.c.b16 %v1737, %v1736
  %v2450 = vpack.c.b16 %v1739, %v1738
  %v2451 = vpack.c.b16 %v1741, %v1740
  %v2452 = vpack.c.b16 %v1743, %v1742
  %v2453 = vpack.c.b16 %v1745, %v1744
  %v2454 = vpack.c.b16 %v1747, %v1746
  %v2455 = vpack.c.b16 %v1749, %v1748
  %v2456 = vpack.c.b16 %v1751, %v1750
  %v2457 = vpack.c.b16 %v1753, %v1752
  %v2458 = vpack.c.b16 %v1755, %v1754
  %v2459 = vpack.c.b16 %v1757, %v1756
  %v2460 = vpack.c.b16 %v1759, %v1758
  %v2461 = vpack.c.b16 %v1761, %v1760
  %v2462 = vpack.c.b16 %v1763, %v1762
  %v2463 = vpack.c.b16 %v1765, %v1764
  %v2464 = vpack.c.b16 %v1767, %v1766
  %v2465 = vpack.c.b16 %v1769, %v1768
  %v2466 = vpack.c.b16 %v1771, %v1770
  %v2467 = vpack.c.b16 %v1773, %v1772
  %v2468 = vpack.c.b16 %v1775, %v1774
  %v2469 = vpack.c.b16 %v1777, %v1776
  %v2470 = vpack.c.b16 %v1779, %v1778
  %v2471 = vpack.c.b16 %v1781, %v1780
  %v2472 = vpack.c.b16 %v1783, %v1782
  %v2473 = vpack.c.b16 %v1785, %v1784
  %v2474 = vpack.c.b16 %v1787, %v1786
  %v2475 = vpack.c.b16 %v1789, %v1788
  %v2476 = vpack.c.b16 %v1791, %v1790
  %v2477 = vpack.c.b16 %v1793, %v1792
  %v2478 = vpack.c.b16 %v1795, %v1794
  %v2479 = vpack.c.b16 %v1797, %v1796
  %v2480 = vpack.c.b16 %v1799, %v1798
  %v2481 = vpack.c.b16 %v1801, %v1800
  %v2482 = vpack.c.b16 %v1803, %v1802
  %v2483 = vpack.c.b16 %v1805, %v1804
  %v2484 = vpack.c.b16 %v1807, %v1806
  %v2485 = vpack.c.b16 %v1809, %v1808
  %v2486 = vpack.c.b16 %v1811, %v1810
  %v2487 = vpack.c.b16 %v1813, %v1812
  %v2488 = vpack.c.b16 %v1815, %v1814
  %v2489 = vpack.c.b16 %v1817, %v1816
  %v2490 = vpack.c.b16 %v1819, %v1818
  %v2491 = vpack.c.b16 %v1821, %v1820
  %v2492 = vpack.c.b16 %v1823, %v1822
  %v2493 = vpack.c.b16 %v1825, %v1824
  %v2494 = vpack.c.b16 %v1827, %v1826
  %v2495 = vpack.c.b16 %v1829, %v1828
  %v2496 = vpack.c.b16 %v1831, %v1830
  %v2497 = vpack.c.b16 %v1833, %v1832
  %v2498 = vpack.c.b16 %v1835, %v1834
  %v2499 = vpack.c.b16 %v1837, %v1836
  %v2500 = vpack.c.b16 %v1839, %v1838
  %v2501 = vpack.c.b16 %v1841, %v1840
  %v2502 = vpack.c.b16 %v1843, %v1842
  %v2503 = vpack.c.b16 %v1845, %v1844
  %v2504 = vpack.c.b16 %v1847, %v1846
  %v2505 = vpack.c.b16 %v1849, %v1848
  %v2506 = vpack.c.b16 %v1851, %v1850
  %v2507 = vpack.c.b16 %v1853, %v1852
  %v2508 = vpack.c.b16 %v1855, %v1854
  %v2509 = vpack.c.b16 %v1857, %v1856
  %v2510 = vpack.c.b16 %v1859, %v1858
  %v2511 = vpack.c.b16 %v1861, %v1860
  %v2512 = vpack.c.b16 %v1863, %v1862
  %v2513 = vpack.c.b16 %v1865, %v1864
  %v2514 = vpack.c.b16 %v1867, %v1866
  %v2515 = vpack.c.b16 %v1869, %v1868
  %v2516 = vpack.c.b16 %v1871, %v1870
  %v2517 = vpack.c.b16 %v1873, %v1872
  %v2518 = vpack.c.b16 %v1875, %v1874
  %v2519 = vpack.c.b16 %v1877, %v1876
  %v2520 = vpack.c.b16 %v1879, %v1878
  %v2521 = vpack.c.b16 %v1881, %v1880
  %v2522 = vpack.c.b16 %v1883, %v1882
  %v2523 = vpack.c.b16 %v1885, %v1884
  %v2524 = vpack.c.b16 %v1887, %v1886
  %v2525 = vpack.c.b16 %v1889, %v1888
  %v2526 = vpack.c.b16 %v1891, %v1890
  %v2527 = vpack.c.b16 %v1893, %v1892
  %v2528 = vpack.c.b16 %v1895, %v1894
  %v2529 = vpack.c.b16 %v1897, %v1896
  %v2530 = vpack.c.b16 %v1899, %v1898
  %v2531 = vpack.c.b16 %v1901, %v1900
  %v2532 = vpack.c.b16 %v1903, %v1902
  %v2533 = vpack.c.b16 %v1905, %v1904
  %v2534 = vpack.c.b16 %v1907, %v1906
  %v2535 = vpack.c.b16 %v1909, %v1908
  %v2536 = vpack.c.b16 %v1911, %v1910
  %v2537 = vpack.c.b16 %v1913, %v1912
  %v2538 = vpack.c.b16 %v1915, %v1914
  %v2539 = vpack.c.b16 %v1917, %v1916
  %v2540 = vpack.c.b16 %v1919, %v1918
  %v2541 = vpack.c.b16 %v1921, %v1920
  %v2542 = vpack.c.b16 %v1923, %v1922
  %v2543 = vpack.c.b16 %v1925, %v1924
  %v2544 = vpack.c.b16 %v1927, %v1926
  %v2545 = vpack.c.b16 %v1929, %v1928
  %v2546 = vpack.c.b16 %v1931, %v1930
  %v2547 = vpack.c.b16 %v1933, %v1932
  %v2548 = vpack.c.b16 %v1935, %v1934
  %v2549 = vpack.c.b16 %v1937, %v1936
  %v2550 = vpack.c.b16 %v1939, %v1938
  %v2551 = vpack.c.b16 %v1941, %v1940
  %v2552 = vpack.c.b16 %v1943, %v1942
  %v2553 = vpack.c.b16 %v1945, %v1944
  %v2554 = vpack.c.b16 %v1947, %v1946
  %v2555 = vpack.c.b16 %v1949, %v1948
  %v2556 = vpack.c.b16 %v1951, %v1950
  %v2557 = vpack.c.b16 %v1953, %v1952
  %v2558 = vpack.c.b16 %v1955, %v1954
  %v2559 = vpack.c.b16 %v1957, %v1956
  %v2560 = vpack.c.b16 %v1959, %v1958
  %v2561 = vpack.c.b16 %v1961, %v1960
  %v2562 = vpack.c.b16 %v1963, %v1962
  %v2563 = vpack.c.b16 %v1965, %v1964
  %v2564 = vpack.c.b16 %v1967, %v1966
  %v2565 = vpack.c.b16 %v1969, %v1968
  %v2566 = vpack.c.b16 %v1971, %v1970
  %v2567 = vpack.c.b16 %v1973, %v1972
  %v2568 = vpack.c.b16 %v1975, %v1974
  %v2569 = vpack.c.b16 %v1977, %v1976
  %v2570 = vpack.c.b16 %v1979, %v1978
  %v2571 = vpack.c.b16 %v1981, %v1980
  %v2572 = vpack.c.b16 %v1983, %v1982
  %v2573 = vpack.c.b16 %v1985, %v1984
  %v2574 = vpack.c.b16 %v1987, %v1986
  %v2575 = vpack.c.b16 %v1989, %v1988
  %v2576 = vpack.c.b16 %v1991, %v1990
  %v2577 = vpack.c.b16 %v1993, %v1992
  %v2578 = vpack.c.b16 %v1995, %v1994
  %v2579 = vpack.c.b16 %v1997, %v1996
  %v2580 = vpack.c.b16 %v1999, %v1998
  %v2581 = vpack.c.b16 %v2001, %v2000
  %v2582 = vpack.c.b16 %v2003, %v2002
  %v2583 = vpack.c.b16 %v2005, %v2004
  %v2584 = vpack.c.b16 %v2007, %v2006
  %v2585 = vpack.c.b16 %v2009, %v2008
  %v2586 = vpack.c.b16 %v2011, %v2010
  %v2587 = vpack.c.b16 %v2013, %v2012
  %v2588 = vpack.c.b16 %v2015, %v2014
  %v2589 = vpack.c.b16 %v2017, %v2016
  %v2590 = vpack.c.b16 %v2019, %v2018
  %v2591 = vpack.c.b16 %v2021, %v2020
  %v2592 = vpack.c.b16 %v2023, %v2022
  %v2593 = vpack.c.b16 %v2025, %v2024
  %v2594 = vpack.c.b16 %v2027, %v2026
  %v2595 = vpack.c.b16 %v2029, %v2028
  %v2596 = vpack.c.b16 %v2031, %v2030
  %v2597 = vpack.c.b16 %v2033, %v2032
  %v2598 = vpack.c.b16 %v2035, %v2034
  %v2599 = vpack.c.b16 %v2037, %v2036
  %v2600 = vpack.c.b16 %v2039, %v2038
  %v2601 = vpack.c.b16 %v2041, %v2040
  %v2602 = vpack.c.b16 %v2043, %v2042
  %v2603 = vpack.c.b16 %v2045, %v2044
  %v2604 = vpack.c.b16 %v2047, %v2046
  %v2605 = vpack.c.b16 %v2049, %v2048
  %v2606 = vpack.c.b16 %v2051, %v2050
  %v2607 = vpack.c.b16 %v2053, %v2052
  %v2608 = vpack.c.b16 %v2055, %v2054
  %v2609 = vpack.c.b16 %v2057, %v2056
  %v2610 = vpack.c.b16 %v2059, %v2058
  %v2611 = vpack.c.b16 %v2061, %v2060
  %v2612 = vpack.c.b16 %v2063, %v2062
  %v2613 = vpack.c.b16 %v2065, %v2064
  %v2614 = vpack.c.b16 %v2067, %v2066
  %v2615 = vpack.c.b16 %v2069, %v2068
  %v2616 = vpack.c.b16 %v2071, %v2070
  %v2617 = vpack.c.b16 %v2073, %v2072
  %v2618 = vpack.c.b16 %v2075, %v2074
  %v2619 = vpack.c.b16 %v2077, %v2076
  %v2620 = vpack.c.b16 %v2079, %v2078
  %v2621 = vpack.c.b16 %v2081, %v2080
  %v2622 = vpack.c.b16 %v2083, %v2082
  %v2623 = vpack.c.b16 %v2085, %v2084
  %v2624 = vpack.c.b16 %v2087, %v2086
  %v2625 = vpack.c.b16 %v2089, %v2088
  %v2626 = vpack.c.b16 %v2091, %v2090
  %v2627 = vpack.c.b16 %v2093, %v2092
  %v2628 = vpack.c.b16 %v2095, %v2094
  %v2629 = vpack.c.b16 %v2097, %v2096
  %v2630 = vpack.c.b16 %v2099, %v2098
  %v2631 = vpack.c.b16 %v2101, %v2100
  %v2632 = vpack.c.b16 %v2103, %v2102
  %v2633 = vpack.c.b16 %v2105, %v2104
  %v2634 = vpack.c.b16 %v2107, %v2106
  %v2635 = vpack.c.b16 %v2109, %v2108
  %v2636 = vpack.c.b16 %v2111, %v2110
  %v2637 = vpack.c.b16 %v2113, %v2112
  %v2638 = vpack.c.b16 %v2115, %v2114
  %v2639 = vpack.c.b16 %v2117, %v2116
  %v2640 = vpack.c.b16 %v2119, %v2118
  %v2641 = vpack.c.b16 %v2121, %v2120
  %v2642 = vpack.c.b16 %v2123, %v2122
  %v2643 = vpack.c.b16 %v2125, %v2124
  %v2644 = vpack.c.b16 %v2127, %v2126
  %v2645 = vpack.c.b16 %v2129, %v2128
  %v2646 = vpack.c.b16 %v2131, %v2130
  %v2647 = vpack.c.b16 %v2133, %v2132
  %v2648 = vpack.c.b16 %v2135, %v2134
  %v2649 = vpack.c.b16 %v2137, %v2136
  %v2650 = vpack.c.b16 %v2139, %v2138
  %v2651 = vpack.c.b16 %v2141, %v2140
  %v2652 = vpack.c.b16 %v2143, %v2142
  %v2653 = vpack.c.b16 %v2145, %v2144
  %v2654 = vpack.c.b16 %v2147, %v2146
  %v2655 = vpack.c.b16 %v2149, %v2148
  %v2656 = vpack.c.b16 %v2151, %v2150
  %v2657 = vpack.c.b16 %v2153, %v2152
  %v2658 = vpack.c.b16 %v2155, %v2154
  %v2659 = vpack.c.b16 %v2157, %v2156
  %v2660 = vpack.c.b16 %v2159, %v2158
  %v2661 = vpack.c.b16 %v2161, %v2160
  %v2662 = vpack.c.b16 %v2163, %v2162
  %v2663 = vpack.c.b16 %v2165, %v2164
  %v2664 = vpack.c.b16 %v2167, %v2166
  %v2665 = vpack.c.b16 %v2169, %v2168
  %v2666 = vpack.c.b16 %v2171, %v2170
  %v2667 = vpack.c.b16 %v2173, %v2172
  %v2668 = vpack.c.b16 %v2175, %v2174
  %v2669 = vpack.c.b16 %v2177, %v2176
  %v2670 = vpack.c.b16 %v2179, %v2178
  %v2671 = vpack.c.b16 %v2181, %v2180
  %v2672 = vpack.c.b16 %v2183, %v2182
  %v2673 = vpack.c.b16 %v2185, %v2184
  %v2674 = vpack.c.b16 %v2187, %v2186
  %v2675 = vpack.c.b16 %v2189, %v2188
  %v2676 = vpack.c.b16 %v2191, %v2190
  %v2677 = vpack.c.b16 %v2193, %v2192
  %v2678 = vpack.c.b16 %v2195, %v2194
  %v2679 = vpack.c.b16 %v2197, %v2196
  %v2680 = vpack.c.b16 %v2199, %v2198
  %v2681 = vpack.c.b16 %v2201, %v2200
  %v2682 = vpack.c.b16 %v2203, %v2202
  %v2683 = vpack.c.b16 %v2205, %v2204
  %v2684 = vpack.c.b16 %v2207, %v2206
  %v2685 = vpack.c.b16 %v2209, %v2208
  %v2686 = vpack.c.b16 %v2211, %v2210
  %v2687 = vpack.c.b16 %v2213, %v2212
  %v2688 = vpack.c.b16 %v2215, %v2214
  %v2689 = vpack.c.b16 %v2217, %v2216
  %v2690 = vpack.c.b16 %v2219, %v2218
  %v2691 = vpack.c.b16 %v2221, %v2220
  %v2692 = vpack.c.b16 %v2223, %v2222
  %v2693 = vpack.c.b16 %v2225, %v2224
  %v2694 = vpack.c.b16 %v2227, %v2226
  %v2695 = vpack.c.b16 %v2229, %v2228
  %v2696 = vpack.c.b16 %v2231, %v2230
  %v2697 = vpack.c.b16 %v2233, %v2232
  %v2698 = vpack.c.b16 %v2235, %v2234
  %v2699 = vpack.c.b16 %v2237, %v2236
  %v2700 = vpack.c.b16 %v2239, %v2238
  %v2701 = vpack.c.b16 %v2241, %v2240
  %v2702 = vpack.c.b16 %v2243, %v2242
  %v2703 = vpack.c.b16 %v2245, %v2244
  %v2704 = vpack.c.b16 %v2247, %v2246
  %v2705 = vpack.c.b16 %v2249, %v2248
  %v2706 = vpack.c.b16 %v2251, %v2250
  %v2707 = vpack.c.b16 %v2253, %v2252
  %v2708 = vpack.c.b16 %v2255, %v2254
  %v2709 = vpack.c.b16 %v2257, %v2256
  %v2710 = vpack.c.b16 %v2259, %v2258
  %v2711 = vpack.c.b16 %v2261, %v2260
  %v2712 = vpack.c.b16 %v2263, %v2262
  %v2713 = vpack.c.b16 %v2265, %v2264
  %v2714 = vpack.c.b16 %v2267, %v2266
  %v2715 = vpack.c.b16 %v2269, %v2268
  %v2716 = vpack.c.b16 %v2271, %v2270
  %v2717 = vpack.c.b16 %v2273, %v2272
  %v2718 = vpack.c.b16 %v2275, %v2274
  %v2719 = vpack.c.b16 %v2277, %v2276
  %v2720 = vpack.c.b16 %v2279, %v2278
  %v2721 = vpack.c.b16 %v2281, %v2280
  %v2722 = vpack.c.b16 %v2283, %v2282
  %v2723 = vpack.c.b16 %v2285, %v2284
  %v2724 = vpack.c.b16 %v2287, %v2286
  %v2725 = vpack.c.b16 %v2289, %v2288
  %v2726 = vpack.c.b16 %v2291, %v2290
  %v2727 = vpack.c.b16 %v2293, %v2292
  %v2728 = vpack.c.b16 %v2295, %v2294
  %v2729 = vpack.c.b16 %v2297, %v2296
  %v2730 = vpack.c.b16 %v2299, %v2298
  %v2731 = vpack.c.b16 %v2301, %v2300
  %v2732 = vpack.c.b16 %v2303, %v2302
  %v2733 = vpack.c.b16 %v2305, %v2304
  %v2734 = vpack.c.b16 %v2307, %v2306
  %v2735 = vpack.c.b16 %v2309, %v2308
  %v2736 = vpack.c.b16 %v2311, %v2310
  %v2737 = vpack.c.b16 %v2313, %v2312
  %v2738 = vpack.c.b16 %v2315, %v2314
  %v2739 = vpack.c.b16 %v2317, %v2316
  %v2740 = vpack.c.b16 %v2319, %v2318
  %v2741 = vpack.c.b16 %v2321, %v2320
  %v2742 = vpack.c.b16 %v2323, %v2322
  %v2743 = vpack.c.b16 %v2325, %v2324
  %v2744 = vpack.c.b16 %v2327, %v2326
  %v2745 = vpack.c.b16 %v2329, %v2328
  %v2746 = vpack.c.b16 %v2331, %v2330
  %v2747 = vpack.c.b16 %v2333, %v2332
  %v2748 = vpack.c.b16 %v2335, %v2334
  %v2749 = vpack.c.b16 %v2337, %v2336
  %v2750 = vpack.c.b16 %v2339, %v2338
  %v2751 = vpack.c.b16 %v2341, %v2340
  %v2752 = vpack.c.b16 %v2343, %v2342
  %v2753 = vpack.c.b16 %v2345, %v2344
  %v2754 = vpack.c.b16 %v2347, %v2346
  %v2755 = vpack.c.b16 %v2349, %v2348
  %v2756 = vpack.c.b16 %v2351, %v2350
  %v2757 = vpack.c.b16 %v2353, %v2352
  %v2758 = vpack.c.b16 %v2355, %v2354
  %v2759 = vpack.c.b16 %v2357, %v2356
  %v2760 = vpack.c.b16 %v2359, %v2358
  %v2761 = vpack.c.b16 %v2361, %v2360
  %v2762 = vpack.c.b16 %v2363, %v2362
  %v2763 = vpack.c.b16 %v2365, %v2364
  %v2764 = vpack.c.b16 %v2367, %v2366
  %v2765 = vpack.c.b16 %v2369, %v2368
  %v2766 = vpack.c.b16 %v2371, %v2370
  %v2767 = vpack.c.b16 %v2373, %v2372
  %v2768 = vpack.c.b16 %v2375, %v2374
  %v2769 = vpack.c.b16 %v2377, %v2376
  %v2774 = vunpack.c.l.b16 %v799
  %v2775 = vunpack.c.l.b16 %v800
  %v2776 = vunpack.c.l.b16 %v801
  %v2777 = vunpack.c.l.b16 %v802
  %v2778 = vpack.c.b16 %v2775, %v2774
  %v2779 = vpack.c.b16 %v2777, %v2776
  %vm2781 = vcmask 203776
  %v2783 = vsel %vm2781, %v2378, 0
  %v2786 = vsel %vm2781, %v2379, 0
  %v2789 = vsel %vm2781, %v2380, 0
  %v2792 = vsel %vm2781, %v2381, 0
  %v2795 = vsel %vm2781, %v2382, 0
  %v2798 = vsel %vm2781, %v2383, 0
  %v2801 = vsel %vm2781, %v2384, 0
  %v2804 = vsel %vm2781, %v2385, 0
  %v2807 = vsel %vm2781, %v2386, 0
  %v2810 = vsel %vm2781, %v2387, 0
  %v2813 = vsel %vm2781, %v2388, 0
  %v2816 = vsel %vm2781, %v2389, 0
  %v2819 = vsel %vm2781, %v2390, 0
  %v2822 = vsel %vm2781, %v2391, 0
  %v2825 = vsel %vm2781, %v2392, 0
  %v2828 = vsel %vm2781, %v2393, 0
  %v2831 = vsel %vm2781, %v2394, 0
  %v2834 = vsel %vm2781, %v2395, 0
  %v2837 = vsel %vm2781, %v2396, 0
  %v2840 = vsel %vm2781, %v2397, 0
  %v2843 = vsel %vm2781, %v2398, 0
  %v2846 = vsel %vm2781, %v2399, 0
  %v2849 = vsel %vm2781, %v2400, 0
  %v2852 = vsel %vm2781, %v2401, 0
  %v2855 = vsel %vm2781, %v2402, 0
  %v2858 = vsel %vm2781, %v2403, 0
  %v2861 = vsel %vm2781, %v2404, 0
  %v2864 = vsel %vm2781, %v2405, 0
  %v2867 = vsel %vm2781, %v2406, 0
  %v2870 = vsel %vm2781, %v2407, 0
  %v2873 = vsel %vm2781, %v2408, 0
  %v2876 = vsel %vm2781, %v2409, 0
  %v2879 = vsel %vm2781, %v2410, 0
  %v2882 = vsel %vm2781, %v2411, 0
  %v2885 = vsel %vm2781, %v2412, 0
  %v2888 = vsel %vm2781, %v2413, 0
  %v2891 = vsel %vm2781, %v2414, 0
  %v2894 = vsel %vm2781, %v2415, 0
  %v2897 = vsel %vm2781, %v2416, 0
  %v2900 = vsel %vm2781, %v2417, 0
  %v2903 = vsel %vm2781, %v2418, 0
  %v2906 = vsel %vm2781, %v2419, 0
  %v2909 = vsel %vm2781, %v2420, 0
  %v2912 = vsel %vm2781, %v2421, 0
  %v2915 = vsel %vm2781, %v2422, 0
  %v2918 = vsel %vm2781, %v2423, 0
  %v2921 = vsel %vm2781, %v2424, 0
  %v2924 = vsel %vm2781, %v2425, 0
  %v2927 = vsel %vm2781, %v2426, 0
  %v2930 = vsel %vm2781, %v2427, 0
  %v2933 = vsel %vm2781, %v2428, 0
  %v2936 = vsel %vm2781, %v2429, 0
  %v2939 = vsel %vm2781, %v2430, 0
  %v2942 = vsel %vm2781, %v2431, 0
  %v2945 = vsel %vm2781, %v2432, 0
  %v2948 = vsel %vm2781, %v2433, 0
  %v2951 = vsel %vm2781, %v2434, 0
  %v2954 = vsel %vm2781, %v2435, 0
  %v2957 = vsel %vm2781, %v2436, 0
  %v2960 = vsel %vm2781, %v2437, 0
  %v2963 = vsel %vm2781, %v2438, 0
  %v2966 = vsel %vm2781, %v2439, 0
  %v2969 = vsel %vm2781, %v2440, 0
  %v2972 = vsel %vm2781, %v2441, 0
  %v2975 = vsel %vm2781, %v2442, 0
  %v2978 = vsel %vm2781, %v2443, 0
  %v2981 = vsel %vm2781, %v2444, 0
  %v2984 = vsel %vm2781, %v2445, 0
  %v2987 = vsel %vm2781, %v2446, 0
  %v2990 = vsel %vm2781, %v2447, 0
  %v2993 = vsel %vm2781, %v2448, 0
  %v2996 = vsel %vm2781, %v2449, 0
  %v2999 = vsel %vm2781, %v2450, 0
  %v3002 = vsel %vm2781, %v2451, 0
  %v3005 = vsel %vm2781, %v2452, 0
  %v3008 = vsel %vm2781, %v2453, 0
  %v3011 = vsel %vm2781, %v2454, 0
  %v3014 = vsel %vm2781, %v2455, 0
  %v3017 = vsel %vm2781, %v2456, 0
  %v3020 = vsel %vm2781, %v2457, 0
  %v3023 = vsel %vm2781, %v2458, 0
  %v3026 = vsel %vm2781, %v2459, 0
  %v3029 = vsel %vm2781, %v2460, 0
  %v3032 = vsel %vm2781, %v2461, 0
  %v3035 = vsel %vm2781, %v2462, 0
  %v3038 = vsel %vm2781, %v2463, 0
  %v3041 = vsel %vm2781, %v2464, 0
  %v3044 = vsel %vm2781, %v2465, 0
  %v3047 = vsel %vm2781, %v2466, 0
  %v3050 = vsel %vm2781, %v2467, 0
  %v3053 = vsel %vm2781, %v2468, 0
  %v3056 = vsel %vm2781, %v2469, 0
  %v3059 = vsel %vm2781, %v2470, 0
  %v3062 = vsel %vm2781, %v2471, 0
  %v3065 = vsel %vm2781, %v2472, 0
  %v3068 = vsel %vm2781, %v2473, 0
  %v3071 = vsel %vm2781, %v2474, 0
  %v3074 = vsel %vm2781, %v2475, 0
  %v3077 = vsel %vm2781, %v2476, 0
  %v3080 = vsel %vm2781, %v2477, 0
  %v3083 = vsel %vm2781, %v2478, 0
  %v3086 = vsel %vm2781, %v2479, 0
  %v3089 = vsel %vm2781, %v2480, 0
  %v3092 = vsel %vm2781, %v2481, 0
  %v3095 = vsel %vm2781, %v2482, 0
  %v3098 = vsel %vm2781, %v2483, 0
  %v3101 = vsel %vm2781, %v2484, 0
  %v3104 = vsel %vm2781, %v2485, 0
  %v3107 = vsel %vm2781, %v2486, 0
  %v3110 = vsel %vm2781, %v2487, 0
  %v3113 = vsel %vm2781, %v2488, 0
  %v3116 = vsel %vm2781, %v2489, 0
  %v3119 = vsel %vm2781, %v2490, 0
  %v3122 = vsel %vm2781, %v2491, 0
  %v3125 = vsel %vm2781, %v2492, 0
  %v3128 = vsel %vm2781, %v2493, 0
  %v3131 = vsel %vm2781, %v2494, 0
  %v3134 = vsel %vm2781, %v2495, 0
  %v3137 = vsel %vm2781, %v2496, 0
  %v3140 = vsel %vm2781, %v2497, 0
  %v3143 = vsel %vm2781, %v2498, 0
  %v3146 = vsel %vm2781, %v2499, 0
  %v3149 = vsel %vm2781, %v2500, 0
  %v3152 = vsel %vm2781, %v2501, 0
  %v3155 = vsel %vm2781, %v2502, 0
  %v3158 = vsel %vm2781, %v2503, 0
  %v3161 = vsel %vm2781, %v2504, 0
  %v3164 = vsel %vm2781, %v2505, 0
  %v3167 = vsel %vm2781, %v2506, 0
  %v3170 = vsel %vm2781, %v2507, 0
  %v3173 = vsel %vm2781, %v2508, 0
  %v3176 = vsel %vm2781, %v2509, 0
  %v3179 = vsel %vm2781, %v2510, 0
  %v3182 = vsel %vm2781, %v2511, 0
  %v3185 = vsel %vm2781, %v2512, 0
  %v3188 = vsel %vm2781, %v2513, 0
  %v3191 = vsel %vm2781, %v2514, 0
  %v3194 = vsel %vm2781, %v2515, 0
  %v3197 = vsel %vm2781, %v2516, 0
  %v3200 = vsel %vm2781, %v2517, 0
  %v3203 = vsel %vm2781, %v2518, 0
  %v3206 = vsel %vm2781, %v2519, 0
  %v3209 = vsel %vm2781, %v2520, 0
  %v3212 = vsel %vm2781, %v2521, 0
  %v3215 = vsel %vm2781, %v2522, 0
  %v3218 = vsel %vm2781, %v2523, 0
  %v3221 = vsel %vm2781, %v2524, 0
  %v3224 = vsel %vm2781, %v2525, 0
  %v3227 = vsel %vm2781, %v2526, 0
  %v3230 = vsel %vm2781, %v2527, 0
  %v3233 = vsel %vm2781, %v2528, 0
  %v3236 = vsel %vm2781, %v2529, 0
  %v3239 = vsel %vm2781, %v2530, 0
  %v3242 = vsel %vm2781, %v2531, 0
  %v3245 = vsel %vm2781, %v2532, 0
  %v3248 = vsel %vm2781, %v2533, 0
  %v3251 = vsel %vm2781, %v2534, 0
  %v3254 = vsel %vm2781, %v2535, 0
  %v3257 = vsel %vm2781, %v2536, 0
  %v3260 = vsel %vm2781, %v2537, 0
  %v3263 = vsel %vm2781, %v2538, 0
  %v3266 = vsel %vm2781, %v2539, 0
  %v3269 = vsel %vm2781, %v2540, 0
  %v3272 = vsel %vm2781, %v2541, 0
  %v3275 = vsel %vm2781, %v2542, 0
  %v3278 = vsel %vm2781, %v2543, 0
  %v3281 = vsel %vm2781, %v2544, 0
  %v3284 = vsel %vm2781, %v2545, 0
  %v3287 = vsel %vm2781, %v2546, 0
  %v3290 = vsel %vm2781, %v2547, 0
  %v3293 = vsel %vm2781, %v2548, 0
  %v3296 = vsel %vm2781, %v2549, 0
  %v3299 = vsel %vm2781, %v2550, 0
  %v3302 = vsel %vm2781, %v2551, 0
  %v3305 = vsel %vm2781, %v2552, 0
  %v3308 = vsel %vm2781, %v2553, 0
  %v3311 = vsel %vm2781, %v2554, 0
  %v3314 = vsel %vm2781, %v2555, 0
  %v3317 = vsel %vm2781, %v2556, 0
  %v3320 = vsel %vm2781, %v2557, 0
  %v3323 = vsel %vm2781, %v2558, 0
  %v3326 = vsel %vm2781, %v2559, 0
  %v3329 = vsel %vm2781, %v2560, 0
  %v3332 = vsel %vm2781, %v2561, 0
  %v3335 = vsel %vm2781, %v2562, 0
  %v3338 = vsel %vm2781, %v2563, 0
  %v3341 = vsel %vm2781, %v2564, 0
  %v3344 = vsel %vm2781, %v2565, 0
  %v3347 = vsel %vm2781, %v2566, 0
  %v3350 = vsel %vm2781, %v2567, 0
  %v3353 = vsel %vm2781, %v2568, 0
  %v3356 = vsel %vm2781, %v2569, 0
  %v3359 = vsel %vm2781, %v2570, 0
  %v3362 = vsel %vm2781, %v2571, 0
  %v3365 = vsel %vm2781, %v2572, 0
  %v3368 = vsel %vm2781, %v2573, 0
  %v3371 = vsel %vm2781, %v2574, 0
  %v3374 = vsel %vm2781, %v2575, 0
  %v3377 = vsel %vm2781, %v2576, 0
  %v3380 = vsel %vm2781, %v2577, 0
  %v3383 = vsel %vm2781, %v2578, 0
  %v3386 = vsel %vm2781, %v2579, 0
  %v3389 = vsel %vm2781, %v2580, 0
  %v3392 = vsel %vm2781, %v2581, 0
  %v3395 = vsel %vm2781, %v2582, 0
  %v3398 = vsel %vm2781, %v2583, 0
  %v3401 = vsel %vm2781, %v2584, 0
  %v3404 = vsel %vm2781, %v2585, 0
  %v3407 = vsel %vm2781, %v2586, 0
  %v3410 = vsel %vm2781, %v2587, 0
  %v3413 = vsel %vm2781, %v2588, 0
  %v3416 = vsel %vm2781, %v2589, 0
  %v3419 = vsel %vm2781, %v2590, 0
  %v3422 = vsel %vm2781, %v2591, 0
  %v3425 = vsel %vm2781, %v2592, 0
  %v3428 = vsel %vm2781, %v2593, 0
  %v3431 = vsel %vm2781, %v2594, 0
  %v3434 = vsel %vm2781, %v2595, 0
  %v3437 = vsel %vm2781, %v2596, 0
  %v3440 = vsel %vm2781, %v2597, 0
  %v3443 = vsel %vm2781, %v2598, 0
  %v3446 = vsel %vm2781, %v2599, 0
  %v3449 = vsel %vm2781, %v2600, 0
  %v3452 = vsel %vm2781, %v2601, 0
  %v3455 = vsel %vm2781, %v2602, 0
  %v3458 = vsel %vm2781, %v2603, 0
  %v3461 = vsel %vm2781, %v2604, 0
  %v3464 = vsel %vm2781, %v2605, 0
  %v3467 = vsel %vm2781, %v2606, 0
  %v3470 = vsel %vm2781, %v2607, 0
  %v3473 = vsel %vm2781, %v2608, 0
  %v3476 = vsel %vm2781, %v2609, 0
  %v3479 = vsel %vm2781, %v2610, 0
  %v3482 = vsel %vm2781, %v2611, 0
  %v3485 = vsel %vm2781, %v2612, 0
  %v3488 = vsel %vm2781, %v2613, 0
  %v3491 = vsel %vm2781, %v2614, 0
  %v3494 = vsel %vm2781, %v2615, 0
  %v3497 = vsel %vm2781, %v2616, 0
  %v3500 = vsel %vm2781, %v2617, 0
  %v3503 = vsel %vm2781, %v2618, 0
  %v3506 = vsel %vm2781, %v2619, 0
  %v3509 = vsel %vm2781, %v2620, 0
  %v3512 = vsel %vm2781, %v2621, 0
  %v3515 = vsel %vm2781, %v2622, 0
  %v3518 = vsel %vm2781, %v2623, 0
  %v3521 = vsel %vm2781, %v2624, 0
  %v3524 = vsel %vm2781, %v2625, 0
  %v3527 = vsel %vm2781, %v2626, 0
  %v3530 = vsel %vm2781, %v2627, 0
  %v3533 = vsel %vm2781, %v2628, 0
  %v3536 = vsel %vm2781, %v2629, 0
  %v3539 = vsel %vm2781, %v2630, 0
  %v3542 = vsel %vm2781, %v2631, 0
  %v3545 = vsel %vm2781, %v2632, 0
  %v3548 = vsel %vm2781, %v2633, 0
  %v3551 = vsel %vm2781, %v2634, 0
  %v3554 = vsel %vm2781, %v2635, 0
  %v3557 = vsel %vm2781, %v2636, 0
  %v3560 = vsel %vm2781, %v2637, 0
  %v3563 = vsel %vm2781, %v2638, 0
  %v3566 = vsel %vm2781, %v2639, 0
  %v3569 = vsel %vm2781, %v2640, 0
  %v3572 = vsel %vm2781, %v2641, 0
  %v3575 = vsel %vm2781, %v2642, 0
  %v3578 = vsel %vm2781, %v2643, 0
  %v3581 = vsel %vm2781, %v2644, 0
  %v3584 = vsel %vm2781, %v2645, 0
  %v3587 = vsel %vm2781, %v2646, 0
  %v3590 = vsel %vm2781, %v2647, 0
  %v3593 = vsel %vm2781, %v2648, 0
  %v3596 = vsel %vm2781, %v2649, 0
  %v3599 = vsel %vm2781, %v2650, 0
  %v3602 = vsel %vm2781, %v2651, 0
  %v3605 = vsel %vm2781, %v2652, 0
  %v3608 = vsel %vm2781, %v2653, 0
  %v3611 = vsel %vm2781, %v2654, 0
  %v3614 = vsel %vm2781, %v2655, 0
  %v3617 = vsel %vm2781, %v2656, 0
  %v3620 = vsel %vm2781, %v2657, 0
  %v3623 = vsel %vm2781, %v2658, 0
  %v3626 = vsel %vm2781, %v2659, 0
  %v3629 = vsel %vm2781, %v2660, 0
  %v3632 = vsel %vm2781, %v2661, 0
  %v3635 = vsel %vm2781, %v2662, 0
  %v3638 = vsel %vm2781, %v2663, 0
  %v3641 = vsel %vm2781, %v2664, 0
  %v3644 = vsel %vm2781, %v2665, 0
  %v3647 = vsel %vm2781, %v2666, 0
  %v3650 = vsel %vm2781, %v2667, 0
  %v3653 = vsel %vm2781, %v2668, 0
  %v3656 = vsel %vm2781, %v2669, 0
  %v3659 = vsel %vm2781, %v2670, 0
  %v3662 = vsel %vm2781, %v2671, 0
  %v3665 = vsel %vm2781, %v2672, 0
  %v3668 = vsel %vm2781, %v2673, 0
  %v3671 = vsel %vm2781, %v2674, 0
  %v3674 = vsel %vm2781, %v2675, 0
  %v3677 = vsel %vm2781, %v2676, 0
  %v3680 = vsel %vm2781, %v2677, 0
  %v3683 = vsel %vm2781, %v2678, 0
  %v3686 = vsel %vm2781, %v2679, 0
  %v3689 = vsel %vm2781, %v2680, 0
  %v3692 = vsel %vm2781, %v2681, 0
  %v3695 = vsel %vm2781, %v2682, 0
  %v3698 = vsel %vm2781, %v2683, 0
  %v3701 = vsel %vm2781, %v2684, 0
  %v3704 = vsel %vm2781, %v2685, 0
  %v3707 = vsel %vm2781, %v2686, 0
  %v3710 = vsel %vm2781, %v2687, 0
  %v3713 = vsel %vm2781, %v2688, 0
  %v3716 = vsel %vm2781, %v2689, 0
  %v3719 = vsel %vm2781, %v2690, 0
  %v3722 = vsel %vm2781, %v2691, 0
  %v3725 = vsel %vm2781, %v2692, 0
  %v3728 = vsel %vm2781, %v2693, 0
  %v3731 = vsel %vm2781, %v2694, 0
  %v3734 = vsel %vm2781, %v2695, 0
  %v3737 = vsel %vm2781, %v2696, 0
  %v3740 = vsel %vm2781, %v2697, 0
  %v3743 = vsel %vm2781, %v2698, 0
  %v3746 = vsel %vm2781, %v2699, 0
  %v3749 = vsel %vm2781, %v2700, 0
  %v3752 = vsel %vm2781, %v2701, 0
  %v3755 = vsel %vm2781, %v2702, 0
  %v3758 = vsel %vm2781, %v2703, 0
  %v3761 = vsel %vm2781, %v2704, 0
  %v3764 = vsel %vm2781, %v2705, 0
  %v3767 = vsel %vm2781, %v2706, 0
  %v3770 = vsel %vm2781, %v2707, 0
  %v3773 = vsel %vm2781, %v2708, 0
  %v3776 = vsel %vm2781, %v2709, 0
  %v3779 = vsel %vm2781, %v2710, 0
  %v3782 = vsel %vm2781, %v2711, 0
  %v3785 = vsel %vm2781, %v2712, 0
  %v3788 = vsel %vm2781, %v2713, 0
  %v3791 = vsel %vm2781, %v2714, 0
  %v3794 = vsel %vm2781, %v2715, 0
  %v3797 = vsel %vm2781, %v2716, 0
  %v3800 = vsel %vm2781, %v2717, 0
  %v3803 = vsel %vm2781, %v2718, 0
  %v3806 = vsel %vm2781, %v2719, 0
  %v3809 = vsel %vm2781, %v2720, 0
  %v3812 = vsel %vm2781, %v2721, 0
  %v3815 = vsel %vm2781, %v2722, 0
  %v3818 = vsel %vm2781, %v2723, 0
  %v3821 = vsel %vm2781, %v2724, 0
  %v3824 = vsel %vm2781, %v2725, 0
  %v3827 = vsel %vm2781, %v2726, 0
  %v3830 = vsel %vm2781, %v2727, 0
  %v3833 = vsel %vm2781, %v2728, 0
  %v3836 = vsel %vm2781, %v2729, 0
  %v3839 = vsel %vm2781, %v2730, 0
  %v3842 = vsel %vm2781, %v2731, 0
  %v3845 = vsel %vm2781, %v2732, 0
  %v3848 = vsel %vm2781, %v2733, 0
  %v3851 = vsel %vm2781, %v2734, 0
  %v3854 = vsel %vm2781, %v2735, 0
  %v3857 = vsel %vm2781, %v2736, 0
  %v3860 = vsel %vm2781, %v2737, 0
  %v3863 = vsel %vm2781, %v2738, 0
  %v3866 = vsel %vm2781, %v2739, 0
  %v3869 = vsel %vm2781, %v2740, 0
  %v3872 = vsel %vm2781, %v2741, 0
  %v3875 = vsel %vm2781, %v2742, 0
  %v3878 = vsel %vm2781, %v2743, 0
  %v3881 = vsel %vm2781, %v2744, 0
  %v3884 = vsel %vm2781, %v2745, 0
  %v3887 = vsel %vm2781, %v2746, 0
  %v3890 = vsel %vm2781, %v2747, 0
  %v3893 = vsel %vm2781, %v2748, 0
  %v3896 = vsel %vm2781, %v2749, 0
  %v3899 = vsel %vm2781, %v2750, 0
  %v3902 = vsel %vm2781, %v2751, 0
  %v3905 = vsel %vm2781, %v2752, 0
  %v3908 = vsel %vm2781, %v2753, 0
  %v3911 = vsel %vm2781, %v2754, 0
  %v3914 = vsel %vm2781, %v2755, 0
  %v3917 = vsel %vm2781, %v2756, 0
  %v3920 = vsel %vm2781, %v2757, 0
  %v3923 = vsel %vm2781, %v2758, 0
  %v3926 = vsel %vm2781, %v2759, 0
  %v3929 = vsel %vm2781, %v2760, 0
  %v3932 = vsel %vm2781, %v2761, 0
  %v3935 = vsel %vm2781, %v2762, 0
  %v3938 = vsel %vm2781, %v2763, 0
  %v3941 = vsel %vm2781, %v2764, 0
  %v3944 = vsel %vm2781, %v2765, 0
  %v3947 = vsel %vm2781, %v2766, 0
  %v3950 = vsel %vm2781, %v2767, 0
  %v3953 = vsel %vm2781, %v2768, 0
  %v3956 = vsel %vm2781, %v2769, 0
  %vm3958 = vcmask 1043456
  %vm3959 = vcmask 1044480
  %v3960 = vsel %vm3958, 4294967295, 65535
  %v3961 = vsel %vm3959, %v3960, 0
  %v3963 = vand.u32 %v2779, %v3961
  %3965 = vmatprep.subr.bf16.mxu0 0
  %3966 = vmatpush1.bf16.msra.mxu0 0
  %3967 = vmatprep.subr.bf16.mxu0 0
  %3968 = vmatpush1.bf16.msra.mxu0 0
  %3969 = vmatprep.subr.bf16.mxu0 0
  %3970 = vmatpush1.bf16.msra.mxu0 0
  %3971 = vmatprep.subr.bf16.mxu0 0
  %3972 = vmatpush1.bf16.msra.mxu0 0
  %3973 = vmatprep.subr.bf16.mxu0 0
  %3974 = vmatpush1.bf16.msra.mxu0 0
  %3975 = vmatprep.subr.bf16.mxu0 0
  %3976 = vmatpush1.bf16.msra.mxu0 0
  %3977 = vmatprep.subr.bf16.mxu0 0
  %3978 = vmatpush1.bf16.msra.mxu0 %v3963
  %3979 = vmatprep.subr.bf16.mxu0 0
  %3980 = vmatpush1.bf16.msra.mxu0 %v2778
  %3981 = vmatprep.subr.bf16.mxu0 0
  %3982 = vmatpush2.bf16.msra.mxu0 0
  %3983 = vmatprep.subr.bf16.mxu0 0
  %3984 = vmatpush2.bf16.msra.mxu0 0
  %3985 = vmatprep.subr.bf16.mxu0 0
  %3986 = vmatpush2.bf16.msra.mxu0 0
  %3987 = vmatprep.subr.bf16.mxu0 0
  %3988 = vmatpush2.bf16.msra.mxu0 0
  %3989 = vmatprep.subr.bf16.mxu0 0
  %3990 = vmatpush2.bf16.msra.mxu0 0
  %3991 = vmatprep.subr.bf16.mxu0 0
  %3992 = vmatpush2.bf16.msra.mxu0 0
  %3993 = vmatprep.subr.bf16.mxu0 0
  %3994 = vmatpush2.bf16.msra.mxu0 0
  %3995 = vmatprep.subr.bf16.mxu0 0
  %3996 = vmatpush2.bf16.msra.mxu0 0
  %3997 = vmatprep.mubr.bf16.mxu0 0
  %3998 = vmatmul.mubr.bf16.gmra.mxu0 %v2783
  %v3999 = vpop.f32.mrf.mxu0
  %v4000 = vadd.f32 %v808, %v3999
  %v4001 = vpop.f32.mrf.mxu0
  %v4002 = vpop.f32.mrf.mxu0
  %v4003 = vadd.f32 %v808, %v4002
  %v4004 = vpop.f32.mrf.mxu0
  %4005 = vmatprep.mubr.bf16.mxu0 0
  %4006 = vmatmul.mubr.bf16.gmra.mxu0 %v2786
  %v4007 = vpop.f32.mrf.mxu0
  %v4008 = vadd.f32 %v808, %v4007
  %v4009 = vpop.f32.mrf.mxu0
  %v4010 = vpop.f32.mrf.mxu0
  %v4011 = vadd.f32 %v808, %v4010
  %v4012 = vpop.f32.mrf.mxu0
  %4013 = vmatprep.mubr.bf16.mxu0 0
  %4014 = vmatmul.mubr.bf16.gmra.mxu0 %v2789
  %v4015 = vpop.f32.mrf.mxu0
  %v4016 = vadd.f32 %v808, %v4015
  %v4017 = vpop.f32.mrf.mxu0
  %v4018 = vpop.f32.mrf.mxu0
  %v4019 = vadd.f32 %v808, %v4018
  %v4020 = vpop.f32.mrf.mxu0
  %4021 = vmatprep.mubr.bf16.mxu0 0
  %4022 = vmatmul.mubr.bf16.gmra.mxu0 %v2792
  %v4023 = vpop.f32.mrf.mxu0
  %v4024 = vadd.f32 %v808, %v4023
  %v4025 = vpop.f32.mrf.mxu0
  %v4026 = vpop.f32.mrf.mxu0
  %v4027 = vadd.f32 %v808, %v4026
  %v4028 = vpop.f32.mrf.mxu0
  %4029 = vmatprep.mubr.bf16.mxu0 0
  %4030 = vmatmul.mubr.bf16.gmra.mxu0 %v2795
  %v4031 = vpop.f32.mrf.mxu0
  %v4032 = vadd.f32 %v808, %v4031
  %v4033 = vpop.f32.mrf.mxu0
  %v4034 = vpop.f32.mrf.mxu0
  %v4035 = vadd.f32 %v808, %v4034
  %v4036 = vpop.f32.mrf.mxu0
  %4037 = vmatprep.mubr.bf16.mxu0 0
  %4038 = vmatmul.mubr.bf16.gmra.mxu0 %v2798
  %v4039 = vpop.f32.mrf.mxu0
  %v4040 = vadd.f32 %v808, %v4039
  %v4041 = vpop.f32.mrf.mxu0
  %v4042 = vpop.f32.mrf.mxu0
  %v4043 = vadd.f32 %v808, %v4042
  %v4044 = vpop.f32.mrf.mxu0
  %4045 = vmatprep.mubr.bf16.mxu0 0
  %4046 = vmatmul.mubr.bf16.gmra.mxu0 %v2801
  %v4047 = vpop.f32.mrf.mxu0
  %v4048 = vadd.f32 %v808, %v4047
  %v4049 = vpop.f32.mrf.mxu0
  %v4050 = vpop.f32.mrf.mxu0
  %v4051 = vadd.f32 %v808, %v4050
  %v4052 = vpop.f32.mrf.mxu0
  %4053 = vmatprep.mubr.bf16.mxu0 0
  %4054 = vmatmul.mubr.bf16.gmra.mxu0 %v2804
  %v4055 = vpop.f32.mrf.mxu0
  %v4056 = vadd.f32 %v808, %v4055
  %v4057 = vpop.f32.mrf.mxu0
  %v4058 = vpop.f32.mrf.mxu0
  %v4059 = vadd.f32 %v808, %v4058
  %v4060 = vpop.f32.mrf.mxu0
  %4061 = vmatprep.mubr.bf16.mxu0 0
  %4062 = vmatmul.mubr.bf16.gmra.mxu0 %v2807
  %v4063 = vpop.f32.mrf.mxu0
  %v4064 = vadd.f32 %v808, %v4063
  %v4065 = vpop.f32.mrf.mxu0
  %v4066 = vpop.f32.mrf.mxu0
  %v4067 = vadd.f32 %v808, %v4066
  %v4068 = vpop.f32.mrf.mxu0
  %4069 = vmatprep.mubr.bf16.mxu0 0
  %4070 = vmatmul.mubr.bf16.gmra.mxu0 %v2810
  %v4071 = vpop.f32.mrf.mxu0
  %v4072 = vadd.f32 %v808, %v4071
  %v4073 = vpop.f32.mrf.mxu0
  %v4074 = vpop.f32.mrf.mxu0
  %v4075 = vadd.f32 %v808, %v4074
  %v4076 = vpop.f32.mrf.mxu0
  %4077 = vmatprep.mubr.bf16.mxu0 0
  %4078 = vmatmul.mubr.bf16.gmra.mxu0 %v2813
  %v4079 = vpop.f32.mrf.mxu0
  %v4080 = vadd.f32 %v808, %v4079
  %v4081 = vpop.f32.mrf.mxu0
  %v4082 = vpop.f32.mrf.mxu0
  %v4083 = vadd.f32 %v808, %v4082
  %v4084 = vpop.f32.mrf.mxu0
  %4085 = vmatprep.mubr.bf16.mxu0 0
  %4086 = vmatmul.mubr.bf16.gmra.mxu0 %v2816
  %v4087 = vpop.f32.mrf.mxu0
  %v4088 = vadd.f32 %v808, %v4087
  %v4089 = vpop.f32.mrf.mxu0
  %v4090 = vpop.f32.mrf.mxu0
  %v4091 = vadd.f32 %v808, %v4090
  %v4092 = vpop.f32.mrf.mxu0
  %4093 = vmatprep.mubr.bf16.mxu0 0
  %4094 = vmatmul.mubr.bf16.gmra.mxu0 %v2819
  %v4095 = vpop.f32.mrf.mxu0
  %v4096 = vadd.f32 %v808, %v4095
  %v4097 = vpop.f32.mrf.mxu0
  %v4098 = vpop.f32.mrf.mxu0
  %v4099 = vadd.f32 %v808, %v4098
  %v4100 = vpop.f32.mrf.mxu0
  %4101 = vmatprep.mubr.bf16.mxu0 0
  %4102 = vmatmul.mubr.bf16.gmra.mxu0 %v2822
  %v4103 = vpop.f32.mrf.mxu0
  %v4104 = vadd.f32 %v808, %v4103
  %v4105 = vpop.f32.mrf.mxu0
  %v4106 = vpop.f32.mrf.mxu0
  %v4107 = vadd.f32 %v808, %v4106
  %v4108 = vpop.f32.mrf.mxu0
  %4109 = vmatprep.mubr.bf16.mxu0 0
  %4110 = vmatmul.mubr.bf16.gmra.mxu0 %v2825
  %v4111 = vpop.f32.mrf.mxu0
  %v4112 = vadd.f32 %v808, %v4111
  %v4113 = vpop.f32.mrf.mxu0
  %v4114 = vpop.f32.mrf.mxu0
  %v4115 = vadd.f32 %v808, %v4114
  %v4116 = vpop.f32.mrf.mxu0
  %4117 = vmatprep.mubr.bf16.mxu0 0
  %4118 = vmatmul.mubr.bf16.gmra.mxu0 %v2828
  %v4119 = vpop.f32.mrf.mxu0
  %v4120 = vadd.f32 %v808, %v4119
  %v4121 = vpop.f32.mrf.mxu0
  %v4122 = vpop.f32.mrf.mxu0
  %v4123 = vadd.f32 %v808, %v4122
  %v4124 = vpop.f32.mrf.mxu0
  %4125 = vmatprep.mubr.bf16.mxu0 0
  %4126 = vmatmul.mubr.bf16.gmra.mxu0 %v2831
  %v4127 = vpop.f32.mrf.mxu0
  %v4128 = vadd.f32 %v808, %v4127
  %v4129 = vpop.f32.mrf.mxu0
  %v4130 = vpop.f32.mrf.mxu0
  %v4131 = vadd.f32 %v808, %v4130
  %v4132 = vpop.f32.mrf.mxu0
  %4133 = vmatprep.mubr.bf16.mxu0 0
  %4134 = vmatmul.mubr.bf16.gmra.mxu0 %v2834
  %v4135 = vpop.f32.mrf.mxu0
  %v4136 = vadd.f32 %v808, %v4135
  %v4137 = vpop.f32.mrf.mxu0
  %v4138 = vpop.f32.mrf.mxu0
  %v4139 = vadd.f32 %v808, %v4138
  %v4140 = vpop.f32.mrf.mxu0
  %4141 = vmatprep.mubr.bf16.mxu0 0
  %4142 = vmatmul.mubr.bf16.gmra.mxu0 %v2837
  %v4143 = vpop.f32.mrf.mxu0
  %v4144 = vadd.f32 %v808, %v4143
  %v4145 = vpop.f32.mrf.mxu0
  %v4146 = vpop.f32.mrf.mxu0
  %v4147 = vadd.f32 %v808, %v4146
  %v4148 = vpop.f32.mrf.mxu0
  %4149 = vmatprep.mubr.bf16.mxu0 0
  %4150 = vmatmul.mubr.bf16.gmra.mxu0 %v2840
  %v4151 = vpop.f32.mrf.mxu0
  %v4152 = vadd.f32 %v808, %v4151
  %v4153 = vpop.f32.mrf.mxu0
  %v4154 = vpop.f32.mrf.mxu0
  %v4155 = vadd.f32 %v808, %v4154
  %v4156 = vpop.f32.mrf.mxu0
  %4157 = vmatprep.mubr.bf16.mxu0 0
  %4158 = vmatmul.mubr.bf16.gmra.mxu0 %v2843
  %v4159 = vpop.f32.mrf.mxu0
  %v4160 = vadd.f32 %v808, %v4159
  %v4161 = vpop.f32.mrf.mxu0
  %v4162 = vpop.f32.mrf.mxu0
  %v4163 = vadd.f32 %v808, %v4162
  %v4164 = vpop.f32.mrf.mxu0
  %4165 = vmatprep.mubr.bf16.mxu0 0
  %4166 = vmatmul.mubr.bf16.gmra.mxu0 %v2846
  %v4167 = vpop.f32.mrf.mxu0
  %v4168 = vadd.f32 %v808, %v4167
  %v4169 = vpop.f32.mrf.mxu0
  %v4170 = vpop.f32.mrf.mxu0
  %v4171 = vadd.f32 %v808, %v4170
  %v4172 = vpop.f32.mrf.mxu0
  %4173 = vmatprep.mubr.bf16.mxu0 0
  %4174 = vmatmul.mubr.bf16.gmra.mxu0 %v2849
  %v4175 = vpop.f32.mrf.mxu0
  %v4176 = vadd.f32 %v808, %v4175
  %v4177 = vpop.f32.mrf.mxu0
  %v4178 = vpop.f32.mrf.mxu0
  %v4179 = vadd.f32 %v808, %v4178
  %v4180 = vpop.f32.mrf.mxu0
  %4181 = vmatprep.mubr.bf16.mxu0 0
  %4182 = vmatmul.mubr.bf16.gmra.mxu0 %v2852
  %v4183 = vpop.f32.mrf.mxu0
  %v4184 = vadd.f32 %v808, %v4183
  %v4185 = vpop.f32.mrf.mxu0
  %v4186 = vpop.f32.mrf.mxu0
  %v4187 = vadd.f32 %v808, %v4186
  %v4188 = vpop.f32.mrf.mxu0
  %4189 = vmatprep.mubr.bf16.mxu0 0
  %4190 = vmatmul.mubr.bf16.gmra.mxu0 %v2855
  %v4191 = vpop.f32.mrf.mxu0
  %v4192 = vadd.f32 %v808, %v4191
  %v4193 = vpop.f32.mrf.mxu0
  %v4194 = vpop.f32.mrf.mxu0
  %v4195 = vadd.f32 %v808, %v4194
  %v4196 = vpop.f32.mrf.mxu0
  %4197 = vmatprep.mubr.bf16.mxu0 0
  %4198 = vmatmul.mubr.bf16.gmra.mxu0 %v2858
  %v4199 = vpop.f32.mrf.mxu0
  %v4200 = vadd.f32 %v808, %v4199
  %v4201 = vpop.f32.mrf.mxu0
  %v4202 = vpop.f32.mrf.mxu0
  %v4203 = vadd.f32 %v808, %v4202
  %v4204 = vpop.f32.mrf.mxu0
  %4205 = vmatprep.mubr.bf16.mxu0 0
  %4206 = vmatmul.mubr.bf16.gmra.mxu0 %v2861
  %v4207 = vpop.f32.mrf.mxu0
  %v4208 = vadd.f32 %v808, %v4207
  %v4209 = vpop.f32.mrf.mxu0
  %v4210 = vpop.f32.mrf.mxu0
  %v4211 = vadd.f32 %v808, %v4210
  %v4212 = vpop.f32.mrf.mxu0
  %4213 = vmatprep.mubr.bf16.mxu0 0
  %4214 = vmatmul.mubr.bf16.gmra.mxu0 %v2864
  %v4215 = vpop.f32.mrf.mxu0
  %v4216 = vadd.f32 %v808, %v4215
  %v4217 = vpop.f32.mrf.mxu0
  %v4218 = vpop.f32.mrf.mxu0
  %v4219 = vadd.f32 %v808, %v4218
  %v4220 = vpop.f32.mrf.mxu0
  %4221 = vmatprep.mubr.bf16.mxu0 0
  %4222 = vmatmul.mubr.bf16.gmra.mxu0 %v2867
  %v4223 = vpop.f32.mrf.mxu0
  %v4224 = vadd.f32 %v808, %v4223
  %v4225 = vpop.f32.mrf.mxu0
  %v4226 = vpop.f32.mrf.mxu0
  %v4227 = vadd.f32 %v808, %v4226
  %v4228 = vpop.f32.mrf.mxu0
  %4229 = vmatprep.mubr.bf16.mxu0 0
  %4230 = vmatmul.mubr.bf16.gmra.mxu0 %v2870
  %v4231 = vpop.f32.mrf.mxu0
  %v4232 = vadd.f32 %v808, %v4231
  %v4233 = vpop.f32.mrf.mxu0
  %v4234 = vpop.f32.mrf.mxu0
  %v4235 = vadd.f32 %v808, %v4234
  %v4236 = vpop.f32.mrf.mxu0
  %4237 = vmatprep.mubr.bf16.mxu0 0
  %4238 = vmatmul.mubr.bf16.gmra.mxu0 %v2873
  %v4239 = vpop.f32.mrf.mxu0
  %v4240 = vadd.f32 %v808, %v4239
  %v4241 = vpop.f32.mrf.mxu0
  %v4242 = vpop.f32.mrf.mxu0
  %v4243 = vadd.f32 %v808, %v4242
  %v4244 = vpop.f32.mrf.mxu0
  %4245 = vmatprep.mubr.bf16.mxu0 0
  %4246 = vmatmul.mubr.bf16.gmra.mxu0 %v2876
  %v4247 = vpop.f32.mrf.mxu0
  %v4248 = vadd.f32 %v808, %v4247
  %v4249 = vpop.f32.mrf.mxu0
  %v4250 = vpop.f32.mrf.mxu0
  %v4251 = vadd.f32 %v808, %v4250
  %v4252 = vpop.f32.mrf.mxu0
  %4253 = vmatprep.mubr.bf16.mxu0 0
  %4254 = vmatmul.mubr.bf16.gmra.mxu0 %v2879
  %v4255 = vpop.f32.mrf.mxu0
  %v4256 = vadd.f32 %v808, %v4255
  %v4257 = vpop.f32.mrf.mxu0
  %v4258 = vpop.f32.mrf.mxu0
  %v4259 = vadd.f32 %v808, %v4258
  %v4260 = vpop.f32.mrf.mxu0
  %4261 = vmatprep.mubr.bf16.mxu0 0
  %4262 = vmatmul.mubr.bf16.gmra.mxu0 %v2882
  %v4263 = vpop.f32.mrf.mxu0
  %v4264 = vadd.f32 %v808, %v4263
  %v4265 = vpop.f32.mrf.mxu0
  %v4266 = vpop.f32.mrf.mxu0
  %v4267 = vadd.f32 %v808, %v4266
  %v4268 = vpop.f32.mrf.mxu0
  %4269 = vmatprep.mubr.bf16.mxu0 0
  %4270 = vmatmul.mubr.bf16.gmra.mxu0 %v2885
  %v4271 = vpop.f32.mrf.mxu0
  %v4272 = vadd.f32 %v808, %v4271
  %v4273 = vpop.f32.mrf.mxu0
  %v4274 = vpop.f32.mrf.mxu0
  %v4275 = vadd.f32 %v808, %v4274
  %v4276 = vpop.f32.mrf.mxu0
  %4277 = vmatprep.mubr.bf16.mxu0 0
  %4278 = vmatmul.mubr.bf16.gmra.mxu0 %v2888
  %v4279 = vpop.f32.mrf.mxu0
  %v4280 = vadd.f32 %v808, %v4279
  %v4281 = vpop.f32.mrf.mxu0
  %v4282 = vpop.f32.mrf.mxu0
  %v4283 = vadd.f32 %v808, %v4282
  %v4284 = vpop.f32.mrf.mxu0
  %4285 = vmatprep.mubr.bf16.mxu0 0
  %4286 = vmatmul.mubr.bf16.gmra.mxu0 %v2891
  %v4287 = vpop.f32.mrf.mxu0
  %v4288 = vadd.f32 %v808, %v4287
  %v4289 = vpop.f32.mrf.mxu0
  %v4290 = vpop.f32.mrf.mxu0
  %v4291 = vadd.f32 %v808, %v4290
  %v4292 = vpop.f32.mrf.mxu0
  %4293 = vmatprep.mubr.bf16.mxu0 0
  %4294 = vmatmul.mubr.bf16.gmra.mxu0 %v2894
  %v4295 = vpop.f32.mrf.mxu0
  %v4296 = vadd.f32 %v808, %v4295
  %v4297 = vpop.f32.mrf.mxu0
  %v4298 = vpop.f32.mrf.mxu0
  %v4299 = vadd.f32 %v808, %v4298
  %v4300 = vpop.f32.mrf.mxu0
  %4301 = vmatprep.mubr.bf16.mxu0 0
  %4302 = vmatmul.mubr.bf16.gmra.mxu0 %v2897
  %v4303 = vpop.f32.mrf.mxu0
  %v4304 = vadd.f32 %v808, %v4303
  %v4305 = vpop.f32.mrf.mxu0
  %v4306 = vpop.f32.mrf.mxu0
  %v4307 = vadd.f32 %v808, %v4306
  %v4308 = vpop.f32.mrf.mxu0
  %4309 = vmatprep.mubr.bf16.mxu0 0
  %4310 = vmatmul.mubr.bf16.gmra.mxu0 %v2900
  %v4311 = vpop.f32.mrf.mxu0
  %v4312 = vadd.f32 %v808, %v4311
  %v4313 = vpop.f32.mrf.mxu0
  %v4314 = vpop.f32.mrf.mxu0
  %v4315 = vadd.f32 %v808, %v4314
  %v4316 = vpop.f32.mrf.mxu0
  %4317 = vmatprep.mubr.bf16.mxu0 0
  %4318 = vmatmul.mubr.bf16.gmra.mxu0 %v2903
  %v4319 = vpop.f32.mrf.mxu0
  %v4320 = vadd.f32 %v808, %v4319
  %v4321 = vpop.f32.mrf.mxu0
  %v4322 = vpop.f32.mrf.mxu0
  %v4323 = vadd.f32 %v808, %v4322
  %v4324 = vpop.f32.mrf.mxu0
  %4325 = vmatprep.mubr.bf16.mxu0 0
  %4326 = vmatmul.mubr.bf16.gmra.mxu0 %v2906
  %v4327 = vpop.f32.mrf.mxu0
  %v4328 = vadd.f32 %v808, %v4327
  %v4329 = vpop.f32.mrf.mxu0
  %v4330 = vpop.f32.mrf.mxu0
  %v4331 = vadd.f32 %v808, %v4330
  %v4332 = vpop.f32.mrf.mxu0
  %4333 = vmatprep.mubr.bf16.mxu0 0
  %4334 = vmatmul.mubr.bf16.gmra.mxu0 %v2909
  %v4335 = vpop.f32.mrf.mxu0
  %v4336 = vadd.f32 %v808, %v4335
  %v4337 = vpop.f32.mrf.mxu0
  %v4338 = vpop.f32.mrf.mxu0
  %v4339 = vadd.f32 %v808, %v4338
  %v4340 = vpop.f32.mrf.mxu0
  %4341 = vmatprep.mubr.bf16.mxu0 0
  %4342 = vmatmul.mubr.bf16.gmra.mxu0 %v2912
  %v4343 = vpop.f32.mrf.mxu0
  %v4344 = vadd.f32 %v808, %v4343
  %v4345 = vpop.f32.mrf.mxu0
  %v4346 = vpop.f32.mrf.mxu0
  %v4347 = vadd.f32 %v808, %v4346
  %v4348 = vpop.f32.mrf.mxu0
  %4349 = vmatprep.mubr.bf16.mxu0 0
  %4350 = vmatmul.mubr.bf16.gmra.mxu0 %v2915
  %v4351 = vpop.f32.mrf.mxu0
  %v4352 = vadd.f32 %v808, %v4351
  %v4353 = vpop.f32.mrf.mxu0
  %v4354 = vpop.f32.mrf.mxu0
  %v4355 = vadd.f32 %v808, %v4354
  %v4356 = vpop.f32.mrf.mxu0
  %4357 = vmatprep.mubr.bf16.mxu0 0
  %4358 = vmatmul.mubr.bf16.gmra.mxu0 %v2918
  %v4359 = vpop.f32.mrf.mxu0
  %v4360 = vadd.f32 %v808, %v4359
  %v4361 = vpop.f32.mrf.mxu0
  %v4362 = vpop.f32.mrf.mxu0
  %v4363 = vadd.f32 %v808, %v4362
  %v4364 = vpop.f32.mrf.mxu0
  %4365 = vmatprep.mubr.bf16.mxu0 0
  %4366 = vmatmul.mubr.bf16.gmra.mxu0 %v2921
  %v4367 = vpop.f32.mrf.mxu0
  %v4368 = vadd.f32 %v808, %v4367
  %v4369 = vpop.f32.mrf.mxu0
  %v4370 = vpop.f32.mrf.mxu0
  %v4371 = vadd.f32 %v808, %v4370
  %v4372 = vpop.f32.mrf.mxu0
  %4373 = vmatprep.mubr.bf16.mxu0 0
  %4374 = vmatmul.mubr.bf16.gmra.mxu0 %v2924
  %v4375 = vpop.f32.mrf.mxu0
  %v4376 = vadd.f32 %v808, %v4375
  %v4377 = vpop.f32.mrf.mxu0
  %v4378 = vpop.f32.mrf.mxu0
  %v4379 = vadd.f32 %v808, %v4378
  %v4380 = vpop.f32.mrf.mxu0
  %4381 = vmatprep.mubr.bf16.mxu0 0
  %4382 = vmatmul.mubr.bf16.gmra.mxu0 %v2927
  %v4383 = vpop.f32.mrf.mxu0
  %v4384 = vadd.f32 %v808, %v4383
  %v4385 = vpop.f32.mrf.mxu0
  %v4386 = vpop.f32.mrf.mxu0
  %v4387 = vadd.f32 %v808, %v4386
  %v4388 = vpop.f32.mrf.mxu0
  %4389 = vmatprep.mubr.bf16.mxu0 0
  %4390 = vmatmul.mubr.bf16.gmra.mxu0 %v2930
  %v4391 = vpop.f32.mrf.mxu0
  %v4392 = vadd.f32 %v808, %v4391
  %v4393 = vpop.f32.mrf.mxu0
  %v4394 = vpop.f32.mrf.mxu0
  %v4395 = vadd.f32 %v808, %v4394
  %v4396 = vpop.f32.mrf.mxu0
  %4397 = vmatprep.mubr.bf16.mxu0 0
  %4398 = vmatmul.mubr.bf16.gmra.mxu0 %v2933
  %v4399 = vpop.f32.mrf.mxu0
  %v4400 = vadd.f32 %v808, %v4399
  %v4401 = vpop.f32.mrf.mxu0
  %v4402 = vpop.f32.mrf.mxu0
  %v4403 = vadd.f32 %v808, %v4402
  %v4404 = vpop.f32.mrf.mxu0
  %4405 = vmatprep.mubr.bf16.mxu0 0
  %4406 = vmatmul.mubr.bf16.gmra.mxu0 %v2936
  %v4407 = vpop.f32.mrf.mxu0
  %v4408 = vadd.f32 %v808, %v4407
  %v4409 = vpop.f32.mrf.mxu0
  %v4410 = vpop.f32.mrf.mxu0
  %v4411 = vadd.f32 %v808, %v4410
  %v4412 = vpop.f32.mrf.mxu0
  %4413 = vmatprep.mubr.bf16.mxu0 0
  %4414 = vmatmul.mubr.bf16.gmra.mxu0 %v2939
  %v4415 = vpop.f32.mrf.mxu0
  %v4416 = vadd.f32 %v808, %v4415
  %v4417 = vpop.f32.mrf.mxu0
  %v4418 = vpop.f32.mrf.mxu0
  %v4419 = vadd.f32 %v808, %v4418
  %v4420 = vpop.f32.mrf.mxu0
  %4421 = vmatprep.mubr.bf16.mxu0 0
  %4422 = vmatmul.mubr.bf16.gmra.mxu0 %v2942
  %v4423 = vpop.f32.mrf.mxu0
  %v4424 = vadd.f32 %v808, %v4423
  %v4425 = vpop.f32.mrf.mxu0
  %v4426 = vpop.f32.mrf.mxu0
  %v4427 = vadd.f32 %v808, %v4426
  %v4428 = vpop.f32.mrf.mxu0
  %4429 = vmatprep.mubr.bf16.mxu0 0
  %4430 = vmatmul.mubr.bf16.gmra.mxu0 %v2945
  %v4431 = vpop.f32.mrf.mxu0
  %v4432 = vadd.f32 %v808, %v4431
  %v4433 = vpop.f32.mrf.mxu0
  %v4434 = vpop.f32.mrf.mxu0
  %v4435 = vadd.f32 %v808, %v4434
  %v4436 = vpop.f32.mrf.mxu0
  %4437 = vmatprep.mubr.bf16.mxu0 0
  %4438 = vmatmul.mubr.bf16.gmra.mxu0 %v2948
  %v4439 = vpop.f32.mrf.mxu0
  %v4440 = vadd.f32 %v808, %v4439
  %v4441 = vpop.f32.mrf.mxu0
  %v4442 = vpop.f32.mrf.mxu0
  %v4443 = vadd.f32 %v808, %v4442
  %v4444 = vpop.f32.mrf.mxu0
  %4445 = vmatprep.mubr.bf16.mxu0 0
  %4446 = vmatmul.mubr.bf16.gmra.mxu0 %v2951
  %v4447 = vpop.f32.mrf.mxu0
  %v4448 = vadd.f32 %v808, %v4447
  %v4449 = vpop.f32.mrf.mxu0
  %v4450 = vpop.f32.mrf.mxu0
  %v4451 = vadd.f32 %v808, %v4450
  %v4452 = vpop.f32.mrf.mxu0
  %4453 = vmatprep.mubr.bf16.mxu0 0
  %4454 = vmatmul.mubr.bf16.gmra.mxu0 %v2954
  %v4455 = vpop.f32.mrf.mxu0
  %v4456 = vadd.f32 %v808, %v4455
  %v4457 = vpop.f32.mrf.mxu0
  %v4458 = vpop.f32.mrf.mxu0
  %v4459 = vadd.f32 %v808, %v4458
  %v4460 = vpop.f32.mrf.mxu0
  %4461 = vmatprep.mubr.bf16.mxu0 0
  %4462 = vmatmul.mubr.bf16.gmra.mxu0 %v2957
  %v4463 = vpop.f32.mrf.mxu0
  %v4464 = vadd.f32 %v808, %v4463
  %v4465 = vpop.f32.mrf.mxu0
  %v4466 = vpop.f32.mrf.mxu0
  %v4467 = vadd.f32 %v808, %v4466
  %v4468 = vpop.f32.mrf.mxu0
  %4469 = vmatprep.mubr.bf16.mxu0 0
  %4470 = vmatmul.mubr.bf16.gmra.mxu0 %v2960
  %v4471 = vpop.f32.mrf.mxu0
  %v4472 = vadd.f32 %v808, %v4471
  %v4473 = vpop.f32.mrf.mxu0
  %v4474 = vpop.f32.mrf.mxu0
  %v4475 = vadd.f32 %v808, %v4474
  %v4476 = vpop.f32.mrf.mxu0
  %4477 = vmatprep.mubr.bf16.mxu0 0
  %4478 = vmatmul.mubr.bf16.gmra.mxu0 %v2963
  %v4479 = vpop.f32.mrf.mxu0
  %v4480 = vadd.f32 %v808, %v4479
  %v4481 = vpop.f32.mrf.mxu0
  %v4482 = vpop.f32.mrf.mxu0
  %v4483 = vadd.f32 %v808, %v4482
  %v4484 = vpop.f32.mrf.mxu0
  %4485 = vmatprep.mubr.bf16.mxu0 0
  %4486 = vmatmul.mubr.bf16.gmra.mxu0 %v2966
  %v4487 = vpop.f32.mrf.mxu0
  %v4488 = vadd.f32 %v808, %v4487
  %v4489 = vpop.f32.mrf.mxu0
  %v4490 = vpop.f32.mrf.mxu0
  %v4491 = vadd.f32 %v808, %v4490
  %v4492 = vpop.f32.mrf.mxu0
  %4493 = vmatprep.mubr.bf16.mxu0 0
  %4494 = vmatmul.mubr.bf16.gmra.mxu0 %v2969
  %v4495 = vpop.f32.mrf.mxu0
  %v4496 = vadd.f32 %v808, %v4495
  %v4497 = vpop.f32.mrf.mxu0
  %v4498 = vpop.f32.mrf.mxu0
  %v4499 = vadd.f32 %v808, %v4498
  %v4500 = vpop.f32.mrf.mxu0
  %4501 = vmatprep.mubr.bf16.mxu0 0
  %4502 = vmatmul.mubr.bf16.gmra.mxu0 %v2972
  %v4503 = vpop.f32.mrf.mxu0
  %v4504 = vadd.f32 %v808, %v4503
  %v4505 = vpop.f32.mrf.mxu0
  %v4506 = vpop.f32.mrf.mxu0
  %v4507 = vadd.f32 %v808, %v4506
  %v4508 = vpop.f32.mrf.mxu0
  %4509 = vmatprep.mubr.bf16.mxu0 0
  %4510 = vmatmul.mubr.bf16.gmra.mxu0 %v2975
  %v4511 = vpop.f32.mrf.mxu0
  %v4512 = vadd.f32 %v808, %v4511
  %v4513 = vpop.f32.mrf.mxu0
  %v4514 = vpop.f32.mrf.mxu0
  %v4515 = vadd.f32 %v808, %v4514
  %v4516 = vpop.f32.mrf.mxu0
  %4517 = vmatprep.mubr.bf16.mxu0 0
  %4518 = vmatmul.mubr.bf16.gmra.mxu0 %v2978
  %v4519 = vpop.f32.mrf.mxu0
  %v4520 = vadd.f32 %v808, %v4519
  %v4521 = vpop.f32.mrf.mxu0
  %v4522 = vpop.f32.mrf.mxu0
  %v4523 = vadd.f32 %v808, %v4522
  %v4524 = vpop.f32.mrf.mxu0
  %4525 = vmatprep.mubr.bf16.mxu0 0
  %4526 = vmatmul.mubr.bf16.gmra.mxu0 %v2981
  %v4527 = vpop.f32.mrf.mxu0
  %v4528 = vadd.f32 %v808, %v4527
  %v4529 = vpop.f32.mrf.mxu0
  %v4530 = vpop.f32.mrf.mxu0
  %v4531 = vadd.f32 %v808, %v4530
  %v4532 = vpop.f32.mrf.mxu0
  %4533 = vmatprep.mubr.bf16.mxu0 0
  %4534 = vmatmul.mubr.bf16.gmra.mxu0 %v2984
  %v4535 = vpop.f32.mrf.mxu0
  %v4536 = vadd.f32 %v808, %v4535
  %v4537 = vpop.f32.mrf.mxu0
  %v4538 = vpop.f32.mrf.mxu0
  %v4539 = vadd.f32 %v808, %v4538
  %v4540 = vpop.f32.mrf.mxu0
  %4541 = vmatprep.mubr.bf16.mxu0 0
  %4542 = vmatmul.mubr.bf16.gmra.mxu0 %v2987
  %v4543 = vpop.f32.mrf.mxu0
  %v4544 = vadd.f32 %v808, %v4543
  %v4545 = vpop.f32.mrf.mxu0
  %v4546 = vpop.f32.mrf.mxu0
  %v4547 = vadd.f32 %v808, %v4546
  %v4548 = vpop.f32.mrf.mxu0
  %4549 = vmatprep.mubr.bf16.mxu0 0
  %4550 = vmatmul.mubr.bf16.gmra.mxu0 %v2990
  %v4551 = vpop.f32.mrf.mxu0
  %v4552 = vadd.f32 %v808, %v4551
  %v4553 = vpop.f32.mrf.mxu0
  %v4554 = vpop.f32.mrf.mxu0
  %v4555 = vadd.f32 %v808, %v4554
  %v4556 = vpop.f32.mrf.mxu0
  %4557 = vmatprep.mubr.bf16.mxu0 0
  %4558 = vmatmul.mubr.bf16.gmra.mxu0 %v2993
  %v4559 = vpop.f32.mrf.mxu0
  %v4560 = vadd.f32 %v808, %v4559
  %v4561 = vpop.f32.mrf.mxu0
  %v4562 = vpop.f32.mrf.mxu0
  %v4563 = vadd.f32 %v808, %v4562
  %v4564 = vpop.f32.mrf.mxu0
  %4565 = vmatprep.mubr.bf16.mxu0 0
  %4566 = vmatmul.mubr.bf16.gmra.mxu0 %v2996
  %v4567 = vpop.f32.mrf.mxu0
  %v4568 = vadd.f32 %v808, %v4567
  %v4569 = vpop.f32.mrf.mxu0
  %v4570 = vpop.f32.mrf.mxu0
  %v4571 = vadd.f32 %v808, %v4570
  %v4572 = vpop.f32.mrf.mxu0
  %4573 = vmatprep.mubr.bf16.mxu0 0
  %4574 = vmatmul.mubr.bf16.gmra.mxu0 %v2999
  %v4575 = vpop.f32.mrf.mxu0
  %v4576 = vadd.f32 %v808, %v4575
  %v4577 = vpop.f32.mrf.mxu0
  %v4578 = vpop.f32.mrf.mxu0
  %v4579 = vadd.f32 %v808, %v4578
  %v4580 = vpop.f32.mrf.mxu0
  %4581 = vmatprep.mubr.bf16.mxu0 0
  %4582 = vmatmul.mubr.bf16.gmra.mxu0 %v3002
  %v4583 = vpop.f32.mrf.mxu0
  %v4584 = vadd.f32 %v808, %v4583
  %v4585 = vpop.f32.mrf.mxu0
  %v4586 = vpop.f32.mrf.mxu0
  %v4587 = vadd.f32 %v808, %v4586
  %v4588 = vpop.f32.mrf.mxu0
  %4589 = vmatprep.mubr.bf16.mxu0 0
  %4590 = vmatmul.mubr.bf16.gmra.mxu0 %v3005
  %v4591 = vpop.f32.mrf.mxu0
  %v4592 = vadd.f32 %v808, %v4591
  %v4593 = vpop.f32.mrf.mxu0
  %v4594 = vpop.f32.mrf.mxu0
  %v4595 = vadd.f32 %v808, %v4594
  %v4596 = vpop.f32.mrf.mxu0
  %4597 = vmatprep.mubr.bf16.mxu0 0
  %4598 = vmatmul.mubr.bf16.gmra.mxu0 %v3008
  %v4599 = vpop.f32.mrf.mxu0
  %v4600 = vadd.f32 %v808, %v4599
  %v4601 = vpop.f32.mrf.mxu0
  %v4602 = vpop.f32.mrf.mxu0
  %v4603 = vadd.f32 %v808, %v4602
  %v4604 = vpop.f32.mrf.mxu0
  %4605 = vmatprep.mubr.bf16.mxu0 0
  %4606 = vmatmul.mubr.bf16.gmra.mxu0 %v3011
  %v4607 = vpop.f32.mrf.mxu0
  %v4608 = vadd.f32 %v808, %v4607
  %v4609 = vpop.f32.mrf.mxu0
  %v4610 = vpop.f32.mrf.mxu0
  %v4611 = vadd.f32 %v808, %v4610
  %v4612 = vpop.f32.mrf.mxu0
  %4613 = vmatprep.mubr.bf16.mxu0 0
  %4614 = vmatmul.mubr.bf16.gmra.mxu0 %v3014
  %v4615 = vpop.f32.mrf.mxu0
  %v4616 = vadd.f32 %v808, %v4615
  %v4617 = vpop.f32.mrf.mxu0
  %v4618 = vpop.f32.mrf.mxu0
  %v4619 = vadd.f32 %v808, %v4618
  %v4620 = vpop.f32.mrf.mxu0
  %4621 = vmatprep.mubr.bf16.mxu0 0
  %4622 = vmatmul.mubr.bf16.gmra.mxu0 %v3017
  %v4623 = vpop.f32.mrf.mxu0
  %v4624 = vadd.f32 %v808, %v4623
  %v4625 = vpop.f32.mrf.mxu0
  %v4626 = vpop.f32.mrf.mxu0
  %v4627 = vadd.f32 %v808, %v4626
  %v4628 = vpop.f32.mrf.mxu0
  %4629 = vmatprep.mubr.bf16.mxu0 0
  %4630 = vmatmul.mubr.bf16.gmra.mxu0 %v3020
  %v4631 = vpop.f32.mrf.mxu0
  %v4632 = vadd.f32 %v808, %v4631
  %v4633 = vpop.f32.mrf.mxu0
  %v4634 = vpop.f32.mrf.mxu0
  %v4635 = vadd.f32 %v808, %v4634
  %v4636 = vpop.f32.mrf.mxu0
  %4637 = vmatprep.mubr.bf16.mxu0 0
  %4638 = vmatmul.mubr.bf16.gmra.mxu0 %v3023
  %v4639 = vpop.f32.mrf.mxu0
  %v4640 = vadd.f32 %v808, %v4639
  %v4641 = vpop.f32.mrf.mxu0
  %v4642 = vpop.f32.mrf.mxu0
  %v4643 = vadd.f32 %v808, %v4642
  %v4644 = vpop.f32.mrf.mxu0
  %4645 = vmatprep.mubr.bf16.mxu0 0
  %4646 = vmatmul.mubr.bf16.gmra.mxu0 %v3026
  %v4647 = vpop.f32.mrf.mxu0
  %v4648 = vadd.f32 %v808, %v4647
  %v4649 = vpop.f32.mrf.mxu0
  %v4650 = vpop.f32.mrf.mxu0
  %v4651 = vadd.f32 %v808, %v4650
  %v4652 = vpop.f32.mrf.mxu0
  %4653 = vmatprep.mubr.bf16.mxu0 0
  %4654 = vmatmul.mubr.bf16.gmra.mxu0 %v3029
  %v4655 = vpop.f32.mrf.mxu0
  %v4656 = vadd.f32 %v808, %v4655
  %v4657 = vpop.f32.mrf.mxu0
  %v4658 = vpop.f32.mrf.mxu0
  %v4659 = vadd.f32 %v808, %v4658
  %v4660 = vpop.f32.mrf.mxu0
  %4661 = vmatprep.mubr.bf16.mxu0 0
  %4662 = vmatmul.mubr.bf16.gmra.mxu0 %v3032
  %v4663 = vpop.f32.mrf.mxu0
  %v4664 = vadd.f32 %v808, %v4663
  %v4665 = vpop.f32.mrf.mxu0
  %v4666 = vpop.f32.mrf.mxu0
  %v4667 = vadd.f32 %v808, %v4666
  %v4668 = vpop.f32.mrf.mxu0
  %4669 = vmatprep.mubr.bf16.mxu0 0
  %4670 = vmatmul.mubr.bf16.gmra.mxu0 %v3035
  %v4671 = vpop.f32.mrf.mxu0
  %v4672 = vadd.f32 %v808, %v4671
  %v4673 = vpop.f32.mrf.mxu0
  %v4674 = vpop.f32.mrf.mxu0
  %v4675 = vadd.f32 %v808, %v4674
  %v4676 = vpop.f32.mrf.mxu0
  %4677 = vmatprep.mubr.bf16.mxu0 0
  %4678 = vmatmul.mubr.bf16.gmra.mxu0 %v3038
  %v4679 = vpop.f32.mrf.mxu0
  %v4680 = vadd.f32 %v808, %v4679
  %v4681 = vpop.f32.mrf.mxu0
  %v4682 = vpop.f32.mrf.mxu0
  %v4683 = vadd.f32 %v808, %v4682
  %v4684 = vpop.f32.mrf.mxu0
  %4685 = vmatprep.mubr.bf16.mxu0 0
  %4686 = vmatmul.mubr.bf16.gmra.mxu0 %v3041
  %v4687 = vpop.f32.mrf.mxu0
  %v4688 = vadd.f32 %v808, %v4687
  %v4689 = vpop.f32.mrf.mxu0
  %v4690 = vpop.f32.mrf.mxu0
  %v4691 = vadd.f32 %v808, %v4690
  %v4692 = vpop.f32.mrf.mxu0
  %4693 = vmatprep.mubr.bf16.mxu0 0
  %4694 = vmatmul.mubr.bf16.gmra.mxu0 %v3044
  %v4695 = vpop.f32.mrf.mxu0
  %v4696 = vadd.f32 %v808, %v4695
  %v4697 = vpop.f32.mrf.mxu0
  %v4698 = vpop.f32.mrf.mxu0
  %v4699 = vadd.f32 %v808, %v4698
  %v4700 = vpop.f32.mrf.mxu0
  %4701 = vmatprep.mubr.bf16.mxu0 0
  %4702 = vmatmul.mubr.bf16.gmra.mxu0 %v3047
  %v4703 = vpop.f32.mrf.mxu0
  %v4704 = vadd.f32 %v808, %v4703
  %v4705 = vpop.f32.mrf.mxu0
  %v4706 = vpop.f32.mrf.mxu0
  %v4707 = vadd.f32 %v808, %v4706
  %v4708 = vpop.f32.mrf.mxu0
  %4709 = vmatprep.mubr.bf16.mxu0 0
  %4710 = vmatmul.mubr.bf16.gmra.mxu0 %v3050
  %v4711 = vpop.f32.mrf.mxu0
  %v4712 = vadd.f32 %v808, %v4711
  %v4713 = vpop.f32.mrf.mxu0
  %v4714 = vpop.f32.mrf.mxu0
  %v4715 = vadd.f32 %v808, %v4714
  %v4716 = vpop.f32.mrf.mxu0
  %4717 = vmatprep.mubr.bf16.mxu0 0
  %4718 = vmatmul.mubr.bf16.gmra.mxu0 %v3053
  %v4719 = vpop.f32.mrf.mxu0
  %v4720 = vadd.f32 %v808, %v4719
  %v4721 = vpop.f32.mrf.mxu0
  %v4722 = vpop.f32.mrf.mxu0
  %v4723 = vadd.f32 %v808, %v4722
  %v4724 = vpop.f32.mrf.mxu0
  %4725 = vmatprep.mubr.bf16.mxu0 0
  %4726 = vmatmul.mubr.bf16.gmra.mxu0 %v3056
  %v4727 = vpop.f32.mrf.mxu0
  %v4728 = vadd.f32 %v808, %v4727
  %v4729 = vpop.f32.mrf.mxu0
  %v4730 = vpop.f32.mrf.mxu0
  %v4731 = vadd.f32 %v808, %v4730
  %v4732 = vpop.f32.mrf.mxu0
  %4733 = vmatprep.mubr.bf16.mxu0 0
  %4734 = vmatmul.mubr.bf16.gmra.mxu0 %v3059
  %v4735 = vpop.f32.mrf.mxu0
  %v4736 = vadd.f32 %v808, %v4735
  %v4737 = vpop.f32.mrf.mxu0
  %v4738 = vpop.f32.mrf.mxu0
  %v4739 = vadd.f32 %v808, %v4738
  %v4740 = vpop.f32.mrf.mxu0
  %4741 = vmatprep.mubr.bf16.mxu0 0
  %4742 = vmatmul.mubr.bf16.gmra.mxu0 %v3062
  %v4743 = vpop.f32.mrf.mxu0
  %v4744 = vadd.f32 %v808, %v4743
  %v4745 = vpop.f32.mrf.mxu0
  %v4746 = vpop.f32.mrf.mxu0
  %v4747 = vadd.f32 %v808, %v4746
  %v4748 = vpop.f32.mrf.mxu0
  %4749 = vmatprep.mubr.bf16.mxu0 0
  %4750 = vmatmul.mubr.bf16.gmra.mxu0 %v3065
  %v4751 = vpop.f32.mrf.mxu0
  %v4752 = vadd.f32 %v808, %v4751
  %v4753 = vpop.f32.mrf.mxu0
  %v4754 = vpop.f32.mrf.mxu0
  %v4755 = vadd.f32 %v808, %v4754
  %v4756 = vpop.f32.mrf.mxu0
  %4757 = vmatprep.mubr.bf16.mxu0 0
  %4758 = vmatmul.mubr.bf16.gmra.mxu0 %v3068
  %v4759 = vpop.f32.mrf.mxu0
  %v4760 = vadd.f32 %v808, %v4759
  %v4761 = vpop.f32.mrf.mxu0
  %v4762 = vpop.f32.mrf.mxu0
  %v4763 = vadd.f32 %v808, %v4762
  %v4764 = vpop.f32.mrf.mxu0
  %4765 = vmatprep.mubr.bf16.mxu0 0
  %4766 = vmatmul.mubr.bf16.gmra.mxu0 %v3071
  %v4767 = vpop.f32.mrf.mxu0
  %v4768 = vadd.f32 %v808, %v4767
  %v4769 = vpop.f32.mrf.mxu0
  %v4770 = vpop.f32.mrf.mxu0
  %v4771 = vadd.f32 %v808, %v4770
  %v4772 = vpop.f32.mrf.mxu0
  %4773 = vmatprep.mubr.bf16.mxu0 0
  %4774 = vmatmul.mubr.bf16.gmra.mxu0 %v3074
  %v4775 = vpop.f32.mrf.mxu0
  %v4776 = vadd.f32 %v808, %v4775
  %v4777 = vpop.f32.mrf.mxu0
  %v4778 = vpop.f32.mrf.mxu0
  %v4779 = vadd.f32 %v808, %v4778
  %v4780 = vpop.f32.mrf.mxu0
  %4781 = vmatprep.mubr.bf16.mxu0 0
  %4782 = vmatmul.mubr.bf16.gmra.mxu0 %v3077
  %v4783 = vpop.f32.mrf.mxu0
  %v4784 = vadd.f32 %v808, %v4783
  %v4785 = vpop.f32.mrf.mxu0
  %v4786 = vpop.f32.mrf.mxu0
  %v4787 = vadd.f32 %v808, %v4786
  %v4788 = vpop.f32.mrf.mxu0
  %4789 = vmatprep.mubr.bf16.mxu0 0
  %4790 = vmatmul.mubr.bf16.gmra.mxu0 %v3080
  %v4791 = vpop.f32.mrf.mxu0
  %v4792 = vadd.f32 %v808, %v4791
  %v4793 = vpop.f32.mrf.mxu0
  %v4794 = vpop.f32.mrf.mxu0
  %v4795 = vadd.f32 %v808, %v4794
  %v4796 = vpop.f32.mrf.mxu0
  %4797 = vmatprep.mubr.bf16.mxu0 0
  %4798 = vmatmul.mubr.bf16.gmra.mxu0 %v3083
  %v4799 = vpop.f32.mrf.mxu0
  %v4800 = vadd.f32 %v808, %v4799
  %v4801 = vpop.f32.mrf.mxu0
  %v4802 = vpop.f32.mrf.mxu0
  %v4803 = vadd.f32 %v808, %v4802
  %v4804 = vpop.f32.mrf.mxu0
  %4805 = vmatprep.mubr.bf16.mxu0 0
  %4806 = vmatmul.mubr.bf16.gmra.mxu0 %v3086
  %v4807 = vpop.f32.mrf.mxu0
  %v4808 = vadd.f32 %v808, %v4807
  %v4809 = vpop.f32.mrf.mxu0
  %v4810 = vpop.f32.mrf.mxu0
  %v4811 = vadd.f32 %v808, %v4810
  %v4812 = vpop.f32.mrf.mxu0
  %4813 = vmatprep.mubr.bf16.mxu0 0
  %4814 = vmatmul.mubr.bf16.gmra.mxu0 %v3089
  %v4815 = vpop.f32.mrf.mxu0
  %v4816 = vadd.f32 %v808, %v4815
  %v4817 = vpop.f32.mrf.mxu0
  %v4818 = vpop.f32.mrf.mxu0
  %v4819 = vadd.f32 %v808, %v4818
  %v4820 = vpop.f32.mrf.mxu0
  %4821 = vmatprep.mubr.bf16.mxu0 0
  %4822 = vmatmul.mubr.bf16.gmra.mxu0 %v3092
  %v4823 = vpop.f32.mrf.mxu0
  %v4824 = vadd.f32 %v808, %v4823
  %v4825 = vpop.f32.mrf.mxu0
  %v4826 = vpop.f32.mrf.mxu0
  %v4827 = vadd.f32 %v808, %v4826
  %v4828 = vpop.f32.mrf.mxu0
  %4829 = vmatprep.mubr.bf16.mxu0 0
  %4830 = vmatmul.mubr.bf16.gmra.mxu0 %v3095
  %v4831 = vpop.f32.mrf.mxu0
  %v4832 = vadd.f32 %v808, %v4831
  %v4833 = vpop.f32.mrf.mxu0
  %v4834 = vpop.f32.mrf.mxu0
  %v4835 = vadd.f32 %v808, %v4834
  %v4836 = vpop.f32.mrf.mxu0
  %4837 = vmatprep.mubr.bf16.mxu0 0
  %4838 = vmatmul.mubr.bf16.gmra.mxu0 %v3098
  %v4839 = vpop.f32.mrf.mxu0
  %v4840 = vadd.f32 %v808, %v4839
  %v4841 = vpop.f32.mrf.mxu0
  %v4842 = vpop.f32.mrf.mxu0
  %v4843 = vadd.f32 %v808, %v4842
  %v4844 = vpop.f32.mrf.mxu0
  %4845 = vmatprep.mubr.bf16.mxu0 0
  %4846 = vmatmul.mubr.bf16.gmra.mxu0 %v3101
  %v4847 = vpop.f32.mrf.mxu0
  %v4848 = vadd.f32 %v808, %v4847
  %v4849 = vpop.f32.mrf.mxu0
  %v4850 = vpop.f32.mrf.mxu0
  %v4851 = vadd.f32 %v808, %v4850
  %v4852 = vpop.f32.mrf.mxu0
  %4853 = vmatprep.mubr.bf16.mxu0 0
  %4854 = vmatmul.mubr.bf16.gmra.mxu0 %v3104
  %v4855 = vpop.f32.mrf.mxu0
  %v4856 = vadd.f32 %v808, %v4855
  %v4857 = vpop.f32.mrf.mxu0
  %v4858 = vpop.f32.mrf.mxu0
  %v4859 = vadd.f32 %v808, %v4858
  %v4860 = vpop.f32.mrf.mxu0
  %4861 = vmatprep.mubr.bf16.mxu0 0
  %4862 = vmatmul.mubr.bf16.gmra.mxu0 %v3107
  %v4863 = vpop.f32.mrf.mxu0
  %v4864 = vadd.f32 %v808, %v4863
  %v4865 = vpop.f32.mrf.mxu0
  %v4866 = vpop.f32.mrf.mxu0
  %v4867 = vadd.f32 %v808, %v4866
  %v4868 = vpop.f32.mrf.mxu0
  %4869 = vmatprep.mubr.bf16.mxu0 0
  %4870 = vmatmul.mubr.bf16.gmra.mxu0 %v3110
  %v4871 = vpop.f32.mrf.mxu0
  %v4872 = vadd.f32 %v808, %v4871
  %v4873 = vpop.f32.mrf.mxu0
  %v4874 = vpop.f32.mrf.mxu0
  %v4875 = vadd.f32 %v808, %v4874
  %v4876 = vpop.f32.mrf.mxu0
  %4877 = vmatprep.mubr.bf16.mxu0 0
  %4878 = vmatmul.mubr.bf16.gmra.mxu0 %v3113
  %v4879 = vpop.f32.mrf.mxu0
  %v4880 = vadd.f32 %v808, %v4879
  %v4881 = vpop.f32.mrf.mxu0
  %v4882 = vpop.f32.mrf.mxu0
  %v4883 = vadd.f32 %v808, %v4882
  %v4884 = vpop.f32.mrf.mxu0
  %4885 = vmatprep.mubr.bf16.mxu0 0
  %4886 = vmatmul.mubr.bf16.gmra.mxu0 %v3116
  %v4887 = vpop.f32.mrf.mxu0
  %v4888 = vadd.f32 %v808, %v4887
  %v4889 = vpop.f32.mrf.mxu0
  %v4890 = vpop.f32.mrf.mxu0
  %v4891 = vadd.f32 %v808, %v4890
  %v4892 = vpop.f32.mrf.mxu0
  %4893 = vmatprep.mubr.bf16.mxu0 0
  %4894 = vmatmul.mubr.bf16.gmra.mxu0 %v3119
  %v4895 = vpop.f32.mrf.mxu0
  %v4896 = vadd.f32 %v808, %v4895
  %v4897 = vpop.f32.mrf.mxu0
  %v4898 = vpop.f32.mrf.mxu0
  %v4899 = vadd.f32 %v808, %v4898
  %v4900 = vpop.f32.mrf.mxu0
  %4901 = vmatprep.mubr.bf16.mxu0 0
  %4902 = vmatmul.mubr.bf16.gmra.mxu0 %v3122
  %v4903 = vpop.f32.mrf.mxu0
  %v4904 = vadd.f32 %v808, %v4903
  %v4905 = vpop.f32.mrf.mxu0
  %v4906 = vpop.f32.mrf.mxu0
  %v4907 = vadd.f32 %v808, %v4906
  %v4908 = vpop.f32.mrf.mxu0
  %4909 = vmatprep.mubr.bf16.mxu0 0
  %4910 = vmatmul.mubr.bf16.gmra.mxu0 %v3125
  %v4911 = vpop.f32.mrf.mxu0
  %v4912 = vadd.f32 %v808, %v4911
  %v4913 = vpop.f32.mrf.mxu0
  %v4914 = vpop.f32.mrf.mxu0
  %v4915 = vadd.f32 %v808, %v4914
  %v4916 = vpop.f32.mrf.mxu0
  %4917 = vmatprep.mubr.bf16.mxu0 0
  %4918 = vmatmul.mubr.bf16.gmra.mxu0 %v3128
  %v4919 = vpop.f32.mrf.mxu0
  %v4920 = vadd.f32 %v808, %v4919
  %v4921 = vpop.f32.mrf.mxu0
  %v4922 = vpop.f32.mrf.mxu0
  %v4923 = vadd.f32 %v808, %v4922
  %v4924 = vpop.f32.mrf.mxu0
  %4925 = vmatprep.mubr.bf16.mxu0 0
  %4926 = vmatmul.mubr.bf16.gmra.mxu0 %v3131
  %v4927 = vpop.f32.mrf.mxu0
  %v4928 = vadd.f32 %v808, %v4927
  %v4929 = vpop.f32.mrf.mxu0
  %v4930 = vpop.f32.mrf.mxu0
  %v4931 = vadd.f32 %v808, %v4930
  %v4932 = vpop.f32.mrf.mxu0
  %4933 = vmatprep.mubr.bf16.mxu0 0
  %4934 = vmatmul.mubr.bf16.gmra.mxu0 %v3134
  %v4935 = vpop.f32.mrf.mxu0
  %v4936 = vadd.f32 %v808, %v4935
  %v4937 = vpop.f32.mrf.mxu0
  %v4938 = vpop.f32.mrf.mxu0
  %v4939 = vadd.f32 %v808, %v4938
  %v4940 = vpop.f32.mrf.mxu0
  %4941 = vmatprep.mubr.bf16.mxu0 0
  %4942 = vmatmul.mubr.bf16.gmra.mxu0 %v3137
  %v4943 = vpop.f32.mrf.mxu0
  %v4944 = vadd.f32 %v808, %v4943
  %v4945 = vpop.f32.mrf.mxu0
  %v4946 = vpop.f32.mrf.mxu0
  %v4947 = vadd.f32 %v808, %v4946
  %v4948 = vpop.f32.mrf.mxu0
  %4949 = vmatprep.mubr.bf16.mxu0 0
  %4950 = vmatmul.mubr.bf16.gmra.mxu0 %v3140
  %v4951 = vpop.f32.mrf.mxu0
  %v4952 = vadd.f32 %v808, %v4951
  %v4953 = vpop.f32.mrf.mxu0
  %v4954 = vpop.f32.mrf.mxu0
  %v4955 = vadd.f32 %v808, %v4954
  %v4956 = vpop.f32.mrf.mxu0
  %4957 = vmatprep.mubr.bf16.mxu0 0
  %4958 = vmatmul.mubr.bf16.gmra.mxu0 %v3143
  %v4959 = vpop.f32.mrf.mxu0
  %v4960 = vadd.f32 %v808, %v4959
  %v4961 = vpop.f32.mrf.mxu0
  %v4962 = vpop.f32.mrf.mxu0
  %v4963 = vadd.f32 %v808, %v4962
  %v4964 = vpop.f32.mrf.mxu0
  %4965 = vmatprep.mubr.bf16.mxu0 0
  %4966 = vmatmul.mubr.bf16.gmra.mxu0 %v3146
  %v4967 = vpop.f32.mrf.mxu0
  %v4968 = vadd.f32 %v808, %v4967
  %v4969 = vpop.f32.mrf.mxu0
  %v4970 = vpop.f32.mrf.mxu0
  %v4971 = vadd.f32 %v808, %v4970
  %v4972 = vpop.f32.mrf.mxu0
  %4973 = vmatprep.mubr.bf16.mxu0 0
  %4974 = vmatmul.mubr.bf16.gmra.mxu0 %v3149
  %v4975 = vpop.f32.mrf.mxu0
  %v4976 = vadd.f32 %v808, %v4975
  %v4977 = vpop.f32.mrf.mxu0
  %v4978 = vpop.f32.mrf.mxu0
  %v4979 = vadd.f32 %v808, %v4978
  %v4980 = vpop.f32.mrf.mxu0
  %4981 = vmatprep.mubr.bf16.mxu0 0
  %4982 = vmatmul.mubr.bf16.gmra.mxu0 %v3152
  %v4983 = vpop.f32.mrf.mxu0
  %v4984 = vadd.f32 %v808, %v4983
  %v4985 = vpop.f32.mrf.mxu0
  %v4986 = vpop.f32.mrf.mxu0
  %v4987 = vadd.f32 %v808, %v4986
  %v4988 = vpop.f32.mrf.mxu0
  %4989 = vmatprep.mubr.bf16.mxu0 0
  %4990 = vmatmul.mubr.bf16.gmra.mxu0 %v3155
  %v4991 = vpop.f32.mrf.mxu0
  %v4992 = vadd.f32 %v808, %v4991
  %v4993 = vpop.f32.mrf.mxu0
  %v4994 = vpop.f32.mrf.mxu0
  %v4995 = vadd.f32 %v808, %v4994
  %v4996 = vpop.f32.mrf.mxu0
  %4997 = vmatprep.mubr.bf16.mxu0 0
  %4998 = vmatmul.mubr.bf16.gmra.mxu0 %v3158
  %v4999 = vpop.f32.mrf.mxu0
  %v5000 = vadd.f32 %v808, %v4999
  %v5001 = vpop.f32.mrf.mxu0
  %v5002 = vpop.f32.mrf.mxu0
  %v5003 = vadd.f32 %v808, %v5002
  %v5004 = vpop.f32.mrf.mxu0
  %5005 = vmatprep.mubr.bf16.mxu0 0
  %5006 = vmatmul.mubr.bf16.gmra.mxu0 %v3161
  %v5007 = vpop.f32.mrf.mxu0
  %v5008 = vadd.f32 %v808, %v5007
  %v5009 = vpop.f32.mrf.mxu0
  %v5010 = vpop.f32.mrf.mxu0
  %v5011 = vadd.f32 %v808, %v5010
  %v5012 = vpop.f32.mrf.mxu0
  %5013 = vmatprep.mubr.bf16.mxu0 0
  %5014 = vmatmul.mubr.bf16.gmra.mxu0 %v3164
  %v5015 = vpop.f32.mrf.mxu0
  %v5016 = vadd.f32 %v808, %v5015
  %v5017 = vpop.f32.mrf.mxu0
  %v5018 = vpop.f32.mrf.mxu0
  %v5019 = vadd.f32 %v808, %v5018
  %v5020 = vpop.f32.mrf.mxu0
  %5021 = vmatprep.mubr.bf16.mxu0 0
  %5022 = vmatmul.mubr.bf16.gmra.mxu0 %v3167
  %v5023 = vpop.f32.mrf.mxu0
  %v5024 = vadd.f32 %v808, %v5023
  %v5025 = vpop.f32.mrf.mxu0
  %v5026 = vpop.f32.mrf.mxu0
  %v5027 = vadd.f32 %v808, %v5026
  %v5028 = vpop.f32.mrf.mxu0
  %5029 = vmatprep.mubr.bf16.mxu0 0
  %5030 = vmatmul.mubr.bf16.gmra.mxu0 %v3170
  %v5031 = vpop.f32.mrf.mxu0
  %v5032 = vadd.f32 %v808, %v5031
  %v5033 = vpop.f32.mrf.mxu0
  %v5034 = vpop.f32.mrf.mxu0
  %v5035 = vadd.f32 %v808, %v5034
  %v5036 = vpop.f32.mrf.mxu0
  %5037 = vmatprep.mubr.bf16.mxu0 0
  %5038 = vmatmul.mubr.bf16.gmra.mxu0 %v3173
  %v5039 = vpop.f32.mrf.mxu0
  %v5040 = vadd.f32 %v808, %v5039
  %v5041 = vpop.f32.mrf.mxu0
  %v5042 = vpop.f32.mrf.mxu0
  %v5043 = vadd.f32 %v808, %v5042
  %v5044 = vpop.f32.mrf.mxu0
  %5045 = vmatprep.mubr.bf16.mxu0 0
  %5046 = vmatmul.mubr.bf16.gmra.mxu0 %v3176
  %v5047 = vpop.f32.mrf.mxu0
  %v5048 = vadd.f32 %v808, %v5047
  %v5049 = vpop.f32.mrf.mxu0
  %v5050 = vpop.f32.mrf.mxu0
  %v5051 = vadd.f32 %v808, %v5050
  %v5052 = vpop.f32.mrf.mxu0
  %5053 = vmatprep.mubr.bf16.mxu0 0
  %5054 = vmatmul.mubr.bf16.gmra.mxu0 %v3179
  %v5055 = vpop.f32.mrf.mxu0
  %v5056 = vadd.f32 %v808, %v5055
  %v5057 = vpop.f32.mrf.mxu0
  %v5058 = vpop.f32.mrf.mxu0
  %v5059 = vadd.f32 %v808, %v5058
  %v5060 = vpop.f32.mrf.mxu0
  %5061 = vmatprep.mubr.bf16.mxu0 0
  %5062 = vmatmul.mubr.bf16.gmra.mxu0 %v3182
  %v5063 = vpop.f32.mrf.mxu0
  %v5064 = vadd.f32 %v808, %v5063
  %v5065 = vpop.f32.mrf.mxu0
  %v5066 = vpop.f32.mrf.mxu0
  %v5067 = vadd.f32 %v808, %v5066
  %v5068 = vpop.f32.mrf.mxu0
  %5069 = vmatprep.mubr.bf16.mxu0 0
  %5070 = vmatmul.mubr.bf16.gmra.mxu0 %v3185
  %v5071 = vpop.f32.mrf.mxu0
  %v5072 = vadd.f32 %v808, %v5071
  %v5073 = vpop.f32.mrf.mxu0
  %v5074 = vpop.f32.mrf.mxu0
  %v5075 = vadd.f32 %v808, %v5074
  %v5076 = vpop.f32.mrf.mxu0
  %5077 = vmatprep.mubr.bf16.mxu0 0
  %5078 = vmatmul.mubr.bf16.gmra.mxu0 %v3188
  %v5079 = vpop.f32.mrf.mxu0
  %v5080 = vadd.f32 %v808, %v5079
  %v5081 = vpop.f32.mrf.mxu0
  %v5082 = vpop.f32.mrf.mxu0
  %v5083 = vadd.f32 %v808, %v5082
  %v5084 = vpop.f32.mrf.mxu0
  %5085 = vmatprep.mubr.bf16.mxu0 0
  %5086 = vmatmul.mubr.bf16.gmra.mxu0 %v3191
  %v5087 = vpop.f32.mrf.mxu0
  %v5088 = vadd.f32 %v808, %v5087
  %v5089 = vpop.f32.mrf.mxu0
  %v5090 = vpop.f32.mrf.mxu0
  %v5091 = vadd.f32 %v808, %v5090
  %v5092 = vpop.f32.mrf.mxu0
  %5093 = vmatprep.mubr.bf16.mxu0 0
  %5094 = vmatmul.mubr.bf16.gmra.mxu0 %v3194
  %v5095 = vpop.f32.mrf.mxu0
  %v5096 = vadd.f32 %v808, %v5095
  %v5097 = vpop.f32.mrf.mxu0
  %v5098 = vpop.f32.mrf.mxu0
  %v5099 = vadd.f32 %v808, %v5098
  %v5100 = vpop.f32.mrf.mxu0
  %5101 = vmatprep.mubr.bf16.mxu0 0
  %5102 = vmatmul.mubr.bf16.gmra.mxu0 %v3197
  %v5103 = vpop.f32.mrf.mxu0
  %v5104 = vadd.f32 %v808, %v5103
  %v5105 = vpop.f32.mrf.mxu0
  %v5106 = vpop.f32.mrf.mxu0
  %v5107 = vadd.f32 %v808, %v5106
  %v5108 = vpop.f32.mrf.mxu0
  %5109 = vmatprep.mubr.bf16.mxu0 0
  %5110 = vmatmul.mubr.bf16.gmra.mxu0 %v3200
  %v5111 = vpop.f32.mrf.mxu0
  %v5112 = vadd.f32 %v808, %v5111
  %v5113 = vpop.f32.mrf.mxu0
  %v5114 = vpop.f32.mrf.mxu0
  %v5115 = vadd.f32 %v808, %v5114
  %v5116 = vpop.f32.mrf.mxu0
  %5117 = vmatprep.mubr.bf16.mxu0 0
  %5118 = vmatmul.mubr.bf16.gmra.mxu0 %v3203
  %v5119 = vpop.f32.mrf.mxu0
  %v5120 = vadd.f32 %v808, %v5119
  %v5121 = vpop.f32.mrf.mxu0
  %v5122 = vpop.f32.mrf.mxu0
  %v5123 = vadd.f32 %v808, %v5122
  %v5124 = vpop.f32.mrf.mxu0
  %5125 = vmatprep.mubr.bf16.mxu0 0
  %5126 = vmatmul.mubr.bf16.gmra.mxu0 %v3206
  %v5127 = vpop.f32.mrf.mxu0
  %v5128 = vadd.f32 %v808, %v5127
  %v5129 = vpop.f32.mrf.mxu0
  %v5130 = vpop.f32.mrf.mxu0
  %v5131 = vadd.f32 %v808, %v5130
  %v5132 = vpop.f32.mrf.mxu0
  %5133 = vmatprep.mubr.bf16.mxu0 0
  %5134 = vmatmul.mubr.bf16.gmra.mxu0 %v3209
  %v5135 = vpop.f32.mrf.mxu0
  %v5136 = vadd.f32 %v808, %v5135
  %v5137 = vpop.f32.mrf.mxu0
  %v5138 = vpop.f32.mrf.mxu0
  %v5139 = vadd.f32 %v808, %v5138
  %v5140 = vpop.f32.mrf.mxu0
  %5141 = vmatprep.mubr.bf16.mxu0 0
  %5142 = vmatmul.mubr.bf16.gmra.mxu0 %v3212
  %v5143 = vpop.f32.mrf.mxu0
  %v5144 = vadd.f32 %v808, %v5143
  %v5145 = vpop.f32.mrf.mxu0
  %v5146 = vpop.f32.mrf.mxu0
  %v5147 = vadd.f32 %v808, %v5146
  %v5148 = vpop.f32.mrf.mxu0
  %5149 = vmatprep.mubr.bf16.mxu0 0
  %5150 = vmatmul.mubr.bf16.gmra.mxu0 %v3215
  %v5151 = vpop.f32.mrf.mxu0
  %v5152 = vadd.f32 %v808, %v5151
  %v5153 = vpop.f32.mrf.mxu0
  %v5154 = vpop.f32.mrf.mxu0
  %v5155 = vadd.f32 %v808, %v5154
  %v5156 = vpop.f32.mrf.mxu0
  %5157 = vmatprep.mubr.bf16.mxu0 0
  %5158 = vmatmul.mubr.bf16.gmra.mxu0 %v3218
  %v5159 = vpop.f32.mrf.mxu0
  %v5160 = vadd.f32 %v808, %v5159
  %v5161 = vpop.f32.mrf.mxu0
  %v5162 = vpop.f32.mrf.mxu0
  %v5163 = vadd.f32 %v808, %v5162
  %v5164 = vpop.f32.mrf.mxu0
  %5165 = vmatprep.mubr.bf16.mxu0 0
  %5166 = vmatmul.mubr.bf16.gmra.mxu0 %v3221
  %v5167 = vpop.f32.mrf.mxu0
  %v5168 = vadd.f32 %v808, %v5167
  %v5169 = vpop.f32.mrf.mxu0
  %v5170 = vpop.f32.mrf.mxu0
  %v5171 = vadd.f32 %v808, %v5170
  %v5172 = vpop.f32.mrf.mxu0
  %5173 = vmatprep.mubr.bf16.mxu0 0
  %5174 = vmatmul.mubr.bf16.gmra.mxu0 %v3224
  %v5175 = vpop.f32.mrf.mxu0
  %v5176 = vadd.f32 %v808, %v5175
  %v5177 = vpop.f32.mrf.mxu0
  %v5178 = vpop.f32.mrf.mxu0
  %v5179 = vadd.f32 %v808, %v5178
  %v5180 = vpop.f32.mrf.mxu0
  %5181 = vmatprep.mubr.bf16.mxu0 0
  %5182 = vmatmul.mubr.bf16.gmra.mxu0 %v3227
  %v5183 = vpop.f32.mrf.mxu0
  %v5184 = vadd.f32 %v808, %v5183
  %v5185 = vpop.f32.mrf.mxu0
  %v5186 = vpop.f32.mrf.mxu0
  %v5187 = vadd.f32 %v808, %v5186
  %v5188 = vpop.f32.mrf.mxu0
  %5189 = vmatprep.mubr.bf16.mxu0 0
  %5190 = vmatmul.mubr.bf16.gmra.mxu0 %v3230
  %v5191 = vpop.f32.mrf.mxu0
  %v5192 = vadd.f32 %v808, %v5191
  %v5193 = vpop.f32.mrf.mxu0
  %v5194 = vpop.f32.mrf.mxu0
  %v5195 = vadd.f32 %v808, %v5194
  %v5196 = vpop.f32.mrf.mxu0
  %5197 = vmatprep.mubr.bf16.mxu0 0
  %5198 = vmatmul.mubr.bf16.gmra.mxu0 %v3233
  %v5199 = vpop.f32.mrf.mxu0
  %v5200 = vadd.f32 %v808, %v5199
  %v5201 = vpop.f32.mrf.mxu0
  %v5202 = vpop.f32.mrf.mxu0
  %v5203 = vadd.f32 %v808, %v5202
  %v5204 = vpop.f32.mrf.mxu0
  %5205 = vmatprep.mubr.bf16.mxu0 0
  %5206 = vmatmul.mubr.bf16.gmra.mxu0 %v3236
  %v5207 = vpop.f32.mrf.mxu0
  %v5208 = vadd.f32 %v808, %v5207
  %v5209 = vpop.f32.mrf.mxu0
  %v5210 = vpop.f32.mrf.mxu0
  %v5211 = vadd.f32 %v808, %v5210
  %v5212 = vpop.f32.mrf.mxu0
  %5213 = vmatprep.mubr.bf16.mxu0 0
  %5214 = vmatmul.mubr.bf16.gmra.mxu0 %v3239
  %v5215 = vpop.f32.mrf.mxu0
  %v5216 = vadd.f32 %v808, %v5215
  %v5217 = vpop.f32.mrf.mxu0
  %v5218 = vpop.f32.mrf.mxu0
  %v5219 = vadd.f32 %v808, %v5218
  %v5220 = vpop.f32.mrf.mxu0
  %5221 = vmatprep.mubr.bf16.mxu0 0
  %5222 = vmatmul.mubr.bf16.gmra.mxu0 %v3242
  %v5223 = vpop.f32.mrf.mxu0
  %v5224 = vadd.f32 %v808, %v5223
  %v5225 = vpop.f32.mrf.mxu0
  %v5226 = vpop.f32.mrf.mxu0
  %v5227 = vadd.f32 %v808, %v5226
  %v5228 = vpop.f32.mrf.mxu0
  %5229 = vmatprep.mubr.bf16.mxu0 0
  %5230 = vmatmul.mubr.bf16.gmra.mxu0 %v3245
  %v5231 = vpop.f32.mrf.mxu0
  %v5232 = vadd.f32 %v808, %v5231
  %v5233 = vpop.f32.mrf.mxu0
  %v5234 = vpop.f32.mrf.mxu0
  %v5235 = vadd.f32 %v808, %v5234
  %v5236 = vpop.f32.mrf.mxu0
  %5237 = vmatprep.mubr.bf16.mxu0 0
  %5238 = vmatmul.mubr.bf16.gmra.mxu0 %v3248
  %v5239 = vpop.f32.mrf.mxu0
  %v5240 = vadd.f32 %v808, %v5239
  %v5241 = vpop.f32.mrf.mxu0
  %v5242 = vpop.f32.mrf.mxu0
  %v5243 = vadd.f32 %v808, %v5242
  %v5244 = vpop.f32.mrf.mxu0
  %5245 = vmatprep.mubr.bf16.mxu0 0
  %5246 = vmatmul.mubr.bf16.gmra.mxu0 %v3251
  %v5247 = vpop.f32.mrf.mxu0
  %v5248 = vadd.f32 %v808, %v5247
  %v5249 = vpop.f32.mrf.mxu0
  %v5250 = vpop.f32.mrf.mxu0
  %v5251 = vadd.f32 %v808, %v5250
  %v5252 = vpop.f32.mrf.mxu0
  %5253 = vmatprep.mubr.bf16.mxu0 0
  %5254 = vmatmul.mubr.bf16.gmra.mxu0 %v3254
  %v5255 = vpop.f32.mrf.mxu0
  %v5256 = vadd.f32 %v808, %v5255
  %v5257 = vpop.f32.mrf.mxu0
  %v5258 = vpop.f32.mrf.mxu0
  %v5259 = vadd.f32 %v808, %v5258
  %v5260 = vpop.f32.mrf.mxu0
  %5261 = vmatprep.mubr.bf16.mxu0 0
  %5262 = vmatmul.mubr.bf16.gmra.mxu0 %v3257
  %v5263 = vpop.f32.mrf.mxu0
  %v5264 = vadd.f32 %v808, %v5263
  %v5265 = vpop.f32.mrf.mxu0
  %v5266 = vpop.f32.mrf.mxu0
  %v5267 = vadd.f32 %v808, %v5266
  %v5268 = vpop.f32.mrf.mxu0
  %5269 = vmatprep.mubr.bf16.mxu0 0
  %5270 = vmatmul.mubr.bf16.gmra.mxu0 %v3260
  %v5271 = vpop.f32.mrf.mxu0
  %v5272 = vadd.f32 %v808, %v5271
  %v5273 = vpop.f32.mrf.mxu0
  %v5274 = vpop.f32.mrf.mxu0
  %v5275 = vadd.f32 %v808, %v5274
  %v5276 = vpop.f32.mrf.mxu0
  %5277 = vmatprep.mubr.bf16.mxu0 0
  %5278 = vmatmul.mubr.bf16.gmra.mxu0 %v3263
  %v5279 = vpop.f32.mrf.mxu0
  %v5280 = vadd.f32 %v808, %v5279
  %v5281 = vpop.f32.mrf.mxu0
  %v5282 = vpop.f32.mrf.mxu0
  %v5283 = vadd.f32 %v808, %v5282
  %v5284 = vpop.f32.mrf.mxu0
  %5285 = vmatprep.mubr.bf16.mxu0 0
  %5286 = vmatmul.mubr.bf16.gmra.mxu0 %v3266
  %v5287 = vpop.f32.mrf.mxu0
  %v5288 = vadd.f32 %v808, %v5287
  %v5289 = vpop.f32.mrf.mxu0
  %v5290 = vpop.f32.mrf.mxu0
  %v5291 = vadd.f32 %v808, %v5290
  %v5292 = vpop.f32.mrf.mxu0
  %5293 = vmatprep.mubr.bf16.mxu0 0
  %5294 = vmatmul.mubr.bf16.gmra.mxu0 %v3269
  %v5295 = vpop.f32.mrf.mxu0
  %v5296 = vadd.f32 %v808, %v5295
  %v5297 = vpop.f32.mrf.mxu0
  %v5298 = vpop.f32.mrf.mxu0
  %v5299 = vadd.f32 %v808, %v5298
  %v5300 = vpop.f32.mrf.mxu0
  %5301 = vmatprep.mubr.bf16.mxu0 0
  %5302 = vmatmul.mubr.bf16.gmra.mxu0 %v3272
  %v5303 = vpop.f32.mrf.mxu0
  %v5304 = vadd.f32 %v808, %v5303
  %v5305 = vpop.f32.mrf.mxu0
  %v5306 = vpop.f32.mrf.mxu0
  %v5307 = vadd.f32 %v808, %v5306
  %v5308 = vpop.f32.mrf.mxu0
  %5309 = vmatprep.mubr.bf16.mxu0 0
  %5310 = vmatmul.mubr.bf16.gmra.mxu0 %v3275
  %v5311 = vpop.f32.mrf.mxu0
  %v5312 = vadd.f32 %v808, %v5311
  %v5313 = vpop.f32.mrf.mxu0
  %v5314 = vpop.f32.mrf.mxu0
  %v5315 = vadd.f32 %v808, %v5314
  %v5316 = vpop.f32.mrf.mxu0
  %5317 = vmatprep.mubr.bf16.mxu0 0
  %5318 = vmatmul.mubr.bf16.gmra.mxu0 %v3278
  %v5319 = vpop.f32.mrf.mxu0
  %v5320 = vadd.f32 %v808, %v5319
  %v5321 = vpop.f32.mrf.mxu0
  %v5322 = vpop.f32.mrf.mxu0
  %v5323 = vadd.f32 %v808, %v5322
  %v5324 = vpop.f32.mrf.mxu0
  %5325 = vmatprep.mubr.bf16.mxu0 0
  %5326 = vmatmul.mubr.bf16.gmra.mxu0 %v3281
  %v5327 = vpop.f32.mrf.mxu0
  %v5328 = vadd.f32 %v808, %v5327
  %v5329 = vpop.f32.mrf.mxu0
  %v5330 = vpop.f32.mrf.mxu0
  %v5331 = vadd.f32 %v808, %v5330
  %v5332 = vpop.f32.mrf.mxu0
  %5333 = vmatprep.mubr.bf16.mxu0 0
  %5334 = vmatmul.mubr.bf16.gmra.mxu0 %v3284
  %v5335 = vpop.f32.mrf.mxu0
  %v5336 = vadd.f32 %v808, %v5335
  %v5337 = vpop.f32.mrf.mxu0
  %v5338 = vpop.f32.mrf.mxu0
  %v5339 = vadd.f32 %v808, %v5338
  %v5340 = vpop.f32.mrf.mxu0
  %5341 = vmatprep.mubr.bf16.mxu0 0
  %5342 = vmatmul.mubr.bf16.gmra.mxu0 %v3287
  %v5343 = vpop.f32.mrf.mxu0
  %v5344 = vadd.f32 %v808, %v5343
  %v5345 = vpop.f32.mrf.mxu0
  %v5346 = vpop.f32.mrf.mxu0
  %v5347 = vadd.f32 %v808, %v5346
  %v5348 = vpop.f32.mrf.mxu0
  %5349 = vmatprep.mubr.bf16.mxu0 0
  %5350 = vmatmul.mubr.bf16.gmra.mxu0 %v3290
  %v5351 = vpop.f32.mrf.mxu0
  %v5352 = vadd.f32 %v808, %v5351
  %v5353 = vpop.f32.mrf.mxu0
  %v5354 = vpop.f32.mrf.mxu0
  %v5355 = vadd.f32 %v808, %v5354
  %v5356 = vpop.f32.mrf.mxu0
  %5357 = vmatprep.mubr.bf16.mxu0 0
  %5358 = vmatmul.mubr.bf16.gmra.mxu0 %v3293
  %v5359 = vpop.f32.mrf.mxu0
  %v5360 = vadd.f32 %v808, %v5359
  %v5361 = vpop.f32.mrf.mxu0
  %v5362 = vpop.f32.mrf.mxu0
  %v5363 = vadd.f32 %v808, %v5362
  %v5364 = vpop.f32.mrf.mxu0
  %5365 = vmatprep.mubr.bf16.mxu0 0
  %5366 = vmatmul.mubr.bf16.gmra.mxu0 %v3296
  %v5367 = vpop.f32.mrf.mxu0
  %v5368 = vadd.f32 %v808, %v5367
  %v5369 = vpop.f32.mrf.mxu0
  %v5370 = vpop.f32.mrf.mxu0
  %v5371 = vadd.f32 %v808, %v5370
  %v5372 = vpop.f32.mrf.mxu0
  %5373 = vmatprep.mubr.bf16.mxu0 0
  %5374 = vmatmul.mubr.bf16.gmra.mxu0 %v3299
  %v5375 = vpop.f32.mrf.mxu0
  %v5376 = vadd.f32 %v808, %v5375
  %v5377 = vpop.f32.mrf.mxu0
  %v5378 = vpop.f32.mrf.mxu0
  %v5379 = vadd.f32 %v808, %v5378
  %v5380 = vpop.f32.mrf.mxu0
  %5381 = vmatprep.mubr.bf16.mxu0 0
  %5382 = vmatmul.mubr.bf16.gmra.mxu0 %v3302
  %v5383 = vpop.f32.mrf.mxu0
  %v5384 = vadd.f32 %v808, %v5383
  %v5385 = vpop.f32.mrf.mxu0
  %v5386 = vpop.f32.mrf.mxu0
  %v5387 = vadd.f32 %v808, %v5386
  %v5388 = vpop.f32.mrf.mxu0
  %5389 = vmatprep.mubr.bf16.mxu0 0
  %5390 = vmatmul.mubr.bf16.gmra.mxu0 %v3305
  %v5391 = vpop.f32.mrf.mxu0
  %v5392 = vadd.f32 %v808, %v5391
  %v5393 = vpop.f32.mrf.mxu0
  %v5394 = vpop.f32.mrf.mxu0
  %v5395 = vadd.f32 %v808, %v5394
  %v5396 = vpop.f32.mrf.mxu0
  %5397 = vmatprep.mubr.bf16.mxu0 0
  %5398 = vmatmul.mubr.bf16.gmra.mxu0 %v3308
  %v5399 = vpop.f32.mrf.mxu0
  %v5400 = vadd.f32 %v808, %v5399
  %v5401 = vpop.f32.mrf.mxu0
  %v5402 = vpop.f32.mrf.mxu0
  %v5403 = vadd.f32 %v808, %v5402
  %v5404 = vpop.f32.mrf.mxu0
  %5405 = vmatprep.mubr.bf16.mxu0 0
  %5406 = vmatmul.mubr.bf16.gmra.mxu0 %v3311
  %v5407 = vpop.f32.mrf.mxu0
  %v5408 = vadd.f32 %v808, %v5407
  %v5409 = vpop.f32.mrf.mxu0
  %v5410 = vpop.f32.mrf.mxu0
  %v5411 = vadd.f32 %v808, %v5410
  %v5412 = vpop.f32.mrf.mxu0
  %5413 = vmatprep.mubr.bf16.mxu0 0
  %5414 = vmatmul.mubr.bf16.gmra.mxu0 %v3314
  %v5415 = vpop.f32.mrf.mxu0
  %v5416 = vadd.f32 %v808, %v5415
  %v5417 = vpop.f32.mrf.mxu0
  %v5418 = vpop.f32.mrf.mxu0
  %v5419 = vadd.f32 %v808, %v5418
  %v5420 = vpop.f32.mrf.mxu0
  %5421 = vmatprep.mubr.bf16.mxu0 0
  %5422 = vmatmul.mubr.bf16.gmra.mxu0 %v3317
  %v5423 = vpop.f32.mrf.mxu0
  %v5424 = vadd.f32 %v808, %v5423
  %v5425 = vpop.f32.mrf.mxu0
  %v5426 = vpop.f32.mrf.mxu0
  %v5427 = vadd.f32 %v808, %v5426
  %v5428 = vpop.f32.mrf.mxu0
  %5429 = vmatprep.mubr.bf16.mxu0 0
  %5430 = vmatmul.mubr.bf16.gmra.mxu0 %v3320
  %v5431 = vpop.f32.mrf.mxu0
  %v5432 = vadd.f32 %v808, %v5431
  %v5433 = vpop.f32.mrf.mxu0
  %v5434 = vpop.f32.mrf.mxu0
  %v5435 = vadd.f32 %v808, %v5434
  %v5436 = vpop.f32.mrf.mxu0
  %5437 = vmatprep.mubr.bf16.mxu0 0
  %5438 = vmatmul.mubr.bf16.gmra.mxu0 %v3323
  %v5439 = vpop.f32.mrf.mxu0
  %v5440 = vadd.f32 %v808, %v5439
  %v5441 = vpop.f32.mrf.mxu0
  %v5442 = vpop.f32.mrf.mxu0
  %v5443 = vadd.f32 %v808, %v5442
  %v5444 = vpop.f32.mrf.mxu0
  %5445 = vmatprep.mubr.bf16.mxu0 0
  %5446 = vmatmul.mubr.bf16.gmra.mxu0 %v3326
  %v5447 = vpop.f32.mrf.mxu0
  %v5448 = vadd.f32 %v808, %v5447
  %v5449 = vpop.f32.mrf.mxu0
  %v5450 = vpop.f32.mrf.mxu0
  %v5451 = vadd.f32 %v808, %v5450
  %v5452 = vpop.f32.mrf.mxu0
  %5453 = vmatprep.mubr.bf16.mxu0 0
  %5454 = vmatmul.mubr.bf16.gmra.mxu0 %v3329
  %v5455 = vpop.f32.mrf.mxu0
  %v5456 = vadd.f32 %v808, %v5455
  %v5457 = vpop.f32.mrf.mxu0
  %v5458 = vpop.f32.mrf.mxu0
  %v5459 = vadd.f32 %v808, %v5458
  %v5460 = vpop.f32.mrf.mxu0
  %5461 = vmatprep.mubr.bf16.mxu0 0
  %5462 = vmatmul.mubr.bf16.gmra.mxu0 %v3332
  %v5463 = vpop.f32.mrf.mxu0
  %v5464 = vadd.f32 %v808, %v5463
  %v5465 = vpop.f32.mrf.mxu0
  %v5466 = vpop.f32.mrf.mxu0
  %v5467 = vadd.f32 %v808, %v5466
  %v5468 = vpop.f32.mrf.mxu0
  %5469 = vmatprep.mubr.bf16.mxu0 0
  %5470 = vmatmul.mubr.bf16.gmra.mxu0 %v3335
  %v5471 = vpop.f32.mrf.mxu0
  %v5472 = vadd.f32 %v808, %v5471
  %v5473 = vpop.f32.mrf.mxu0
  %v5474 = vpop.f32.mrf.mxu0
  %v5475 = vadd.f32 %v808, %v5474
  %v5476 = vpop.f32.mrf.mxu0
  %5477 = vmatprep.mubr.bf16.mxu0 0
  %5478 = vmatmul.mubr.bf16.gmra.mxu0 %v3338
  %v5479 = vpop.f32.mrf.mxu0
  %v5480 = vadd.f32 %v808, %v5479
  %v5481 = vpop.f32.mrf.mxu0
  %v5482 = vpop.f32.mrf.mxu0
  %v5483 = vadd.f32 %v808, %v5482
  %v5484 = vpop.f32.mrf.mxu0
  %5485 = vmatprep.mubr.bf16.mxu0 0
  %5486 = vmatmul.mubr.bf16.gmra.mxu0 %v3341
  %v5487 = vpop.f32.mrf.mxu0
  %v5488 = vadd.f32 %v808, %v5487
  %v5489 = vpop.f32.mrf.mxu0
  %v5490 = vpop.f32.mrf.mxu0
  %v5491 = vadd.f32 %v808, %v5490
  %v5492 = vpop.f32.mrf.mxu0
  %5493 = vmatprep.mubr.bf16.mxu0 0
  %5494 = vmatmul.mubr.bf16.gmra.mxu0 %v3344
  %v5495 = vpop.f32.mrf.mxu0
  %v5496 = vadd.f32 %v808, %v5495
  %v5497 = vpop.f32.mrf.mxu0
  %v5498 = vpop.f32.mrf.mxu0
  %v5499 = vadd.f32 %v808, %v5498
  %v5500 = vpop.f32.mrf.mxu0
  %5501 = vmatprep.mubr.bf16.mxu0 0
  %5502 = vmatmul.mubr.bf16.gmra.mxu0 %v3347
  %v5503 = vpop.f32.mrf.mxu0
  %v5504 = vadd.f32 %v808, %v5503
  %v5505 = vpop.f32.mrf.mxu0
  %v5506 = vpop.f32.mrf.mxu0
  %v5507 = vadd.f32 %v808, %v5506
  %v5508 = vpop.f32.mrf.mxu0
  %5509 = vmatprep.mubr.bf16.mxu0 0
  %5510 = vmatmul.mubr.bf16.gmra.mxu0 %v3350
  %v5511 = vpop.f32.mrf.mxu0
  %v5512 = vadd.f32 %v808, %v5511
  %v5513 = vpop.f32.mrf.mxu0
  %v5514 = vpop.f32.mrf.mxu0
  %v5515 = vadd.f32 %v808, %v5514
  %v5516 = vpop.f32.mrf.mxu0
  %5517 = vmatprep.mubr.bf16.mxu0 0
  %5518 = vmatmul.mubr.bf16.gmra.mxu0 %v3353
  %v5519 = vpop.f32.mrf.mxu0
  %v5520 = vadd.f32 %v808, %v5519
  %v5521 = vpop.f32.mrf.mxu0
  %v5522 = vpop.f32.mrf.mxu0
  %v5523 = vadd.f32 %v808, %v5522
  %v5524 = vpop.f32.mrf.mxu0
  %5525 = vmatprep.mubr.bf16.mxu0 0
  %5526 = vmatmul.mubr.bf16.gmra.mxu0 %v3356
  %v5527 = vpop.f32.mrf.mxu0
  %v5528 = vadd.f32 %v808, %v5527
  %v5529 = vpop.f32.mrf.mxu0
  %v5530 = vpop.f32.mrf.mxu0
  %v5531 = vadd.f32 %v808, %v5530
  %v5532 = vpop.f32.mrf.mxu0
  %5533 = vmatprep.mubr.bf16.mxu0 0
  %5534 = vmatmul.mubr.bf16.gmra.mxu0 %v3359
  %v5535 = vpop.f32.mrf.mxu0
  %v5536 = vadd.f32 %v808, %v5535
  %v5537 = vpop.f32.mrf.mxu0
  %v5538 = vpop.f32.mrf.mxu0
  %v5539 = vadd.f32 %v808, %v5538
  %v5540 = vpop.f32.mrf.mxu0
  %5541 = vmatprep.mubr.bf16.mxu0 0
  %5542 = vmatmul.mubr.bf16.gmra.mxu0 %v3362
  %v5543 = vpop.f32.mrf.mxu0
  %v5544 = vadd.f32 %v808, %v5543
  %v5545 = vpop.f32.mrf.mxu0
  %v5546 = vpop.f32.mrf.mxu0
  %v5547 = vadd.f32 %v808, %v5546
  %v5548 = vpop.f32.mrf.mxu0
  %5549 = vmatprep.mubr.bf16.mxu0 0
  %5550 = vmatmul.mubr.bf16.gmra.mxu0 %v3365
  %v5551 = vpop.f32.mrf.mxu0
  %v5552 = vadd.f32 %v808, %v5551
  %v5553 = vpop.f32.mrf.mxu0
  %v5554 = vpop.f32.mrf.mxu0
  %v5555 = vadd.f32 %v808, %v5554
  %v5556 = vpop.f32.mrf.mxu0
  %5557 = vmatprep.mubr.bf16.mxu0 0
  %5558 = vmatmul.mubr.bf16.gmra.mxu0 %v3368
  %v5559 = vpop.f32.mrf.mxu0
  %v5560 = vadd.f32 %v808, %v5559
  %v5561 = vpop.f32.mrf.mxu0
  %v5562 = vpop.f32.mrf.mxu0
  %v5563 = vadd.f32 %v808, %v5562
  %v5564 = vpop.f32.mrf.mxu0
  %5565 = vmatprep.mubr.bf16.mxu0 0
  %5566 = vmatmul.mubr.bf16.gmra.mxu0 %v3371
  %v5567 = vpop.f32.mrf.mxu0
  %v5568 = vadd.f32 %v808, %v5567
  %v5569 = vpop.f32.mrf.mxu0
  %v5570 = vpop.f32.mrf.mxu0
  %v5571 = vadd.f32 %v808, %v5570
  %v5572 = vpop.f32.mrf.mxu0
  %5573 = vmatprep.mubr.bf16.mxu0 0
  %5574 = vmatmul.mubr.bf16.gmra.mxu0 %v3374
  %v5575 = vpop.f32.mrf.mxu0
  %v5576 = vadd.f32 %v808, %v5575
  %v5577 = vpop.f32.mrf.mxu0
  %v5578 = vpop.f32.mrf.mxu0
  %v5579 = vadd.f32 %v808, %v5578
  %v5580 = vpop.f32.mrf.mxu0
  %5581 = vmatprep.mubr.bf16.mxu0 0
  %5582 = vmatmul.mubr.bf16.gmra.mxu0 %v3377
  %v5583 = vpop.f32.mrf.mxu0
  %v5584 = vadd.f32 %v808, %v5583
  %v5585 = vpop.f32.mrf.mxu0
  %v5586 = vpop.f32.mrf.mxu0
  %v5587 = vadd.f32 %v808, %v5586
  %v5588 = vpop.f32.mrf.mxu0
  %5589 = vmatprep.mubr.bf16.mxu0 0
  %5590 = vmatmul.mubr.bf16.gmra.mxu0 %v3380
  %v5591 = vpop.f32.mrf.mxu0
  %v5592 = vadd.f32 %v808, %v5591
  %v5593 = vpop.f32.mrf.mxu0
  %v5594 = vpop.f32.mrf.mxu0
  %v5595 = vadd.f32 %v808, %v5594
  %v5596 = vpop.f32.mrf.mxu0
  %5597 = vmatprep.mubr.bf16.mxu0 0
  %5598 = vmatmul.mubr.bf16.gmra.mxu0 %v3383
  %v5599 = vpop.f32.mrf.mxu0
  %v5600 = vadd.f32 %v808, %v5599
  %v5601 = vpop.f32.mrf.mxu0
  %v5602 = vpop.f32.mrf.mxu0
  %v5603 = vadd.f32 %v808, %v5602
  %v5604 = vpop.f32.mrf.mxu0
  %5605 = vmatprep.mubr.bf16.mxu0 0
  %5606 = vmatmul.mubr.bf16.gmra.mxu0 %v3386
  %v5607 = vpop.f32.mrf.mxu0
  %v5608 = vadd.f32 %v808, %v5607
  %v5609 = vpop.f32.mrf.mxu0
  %v5610 = vpop.f32.mrf.mxu0
  %v5611 = vadd.f32 %v808, %v5610
  %v5612 = vpop.f32.mrf.mxu0
  %5613 = vmatprep.mubr.bf16.mxu0 0
  %5614 = vmatmul.mubr.bf16.gmra.mxu0 %v3389
  %v5615 = vpop.f32.mrf.mxu0
  %v5616 = vadd.f32 %v808, %v5615
  %v5617 = vpop.f32.mrf.mxu0
  %v5618 = vpop.f32.mrf.mxu0
  %v5619 = vadd.f32 %v808, %v5618
  %v5620 = vpop.f32.mrf.mxu0
  %5621 = vmatprep.mubr.bf16.mxu0 0
  %5622 = vmatmul.mubr.bf16.gmra.mxu0 %v3392
  %v5623 = vpop.f32.mrf.mxu0
  %v5624 = vadd.f32 %v808, %v5623
  %v5625 = vpop.f32.mrf.mxu0
  %v5626 = vpop.f32.mrf.mxu0
  %v5627 = vadd.f32 %v808, %v5626
  %v5628 = vpop.f32.mrf.mxu0
  %5629 = vmatprep.mubr.bf16.mxu0 0
  %5630 = vmatmul.mubr.bf16.gmra.mxu0 %v3395
  %v5631 = vpop.f32.mrf.mxu0
  %v5632 = vadd.f32 %v808, %v5631
  %v5633 = vpop.f32.mrf.mxu0
  %v5634 = vpop.f32.mrf.mxu0
  %v5635 = vadd.f32 %v808, %v5634
  %v5636 = vpop.f32.mrf.mxu0
  %5637 = vmatprep.mubr.bf16.mxu0 0
  %5638 = vmatmul.mubr.bf16.gmra.mxu0 %v3398
  %v5639 = vpop.f32.mrf.mxu0
  %v5640 = vadd.f32 %v808, %v5639
  %v5641 = vpop.f32.mrf.mxu0
  %v5642 = vpop.f32.mrf.mxu0
  %v5643 = vadd.f32 %v808, %v5642
  %v5644 = vpop.f32.mrf.mxu0
  %5645 = vmatprep.mubr.bf16.mxu0 0
  %5646 = vmatmul.mubr.bf16.gmra.mxu0 %v3401
  %v5647 = vpop.f32.mrf.mxu0
  %v5648 = vadd.f32 %v808, %v5647
  %v5649 = vpop.f32.mrf.mxu0
  %v5650 = vpop.f32.mrf.mxu0
  %v5651 = vadd.f32 %v808, %v5650
  %v5652 = vpop.f32.mrf.mxu0
  %5653 = vmatprep.mubr.bf16.mxu0 0
  %5654 = vmatmul.mubr.bf16.gmra.mxu0 %v3404
  %v5655 = vpop.f32.mrf.mxu0
  %v5656 = vadd.f32 %v808, %v5655
  %v5657 = vpop.f32.mrf.mxu0
  %v5658 = vpop.f32.mrf.mxu0
  %v5659 = vadd.f32 %v808, %v5658
  %v5660 = vpop.f32.mrf.mxu0
  %5661 = vmatprep.mubr.bf16.mxu0 0
  %5662 = vmatmul.mubr.bf16.gmra.mxu0 %v3407
  %v5663 = vpop.f32.mrf.mxu0
  %v5664 = vadd.f32 %v808, %v5663
  %v5665 = vpop.f32.mrf.mxu0
  %v5666 = vpop.f32.mrf.mxu0
  %v5667 = vadd.f32 %v808, %v5666
  %v5668 = vpop.f32.mrf.mxu0
  %5669 = vmatprep.mubr.bf16.mxu0 0
  %5670 = vmatmul.mubr.bf16.gmra.mxu0 %v3410
  %v5671 = vpop.f32.mrf.mxu0
  %v5672 = vadd.f32 %v808, %v5671
  %v5673 = vpop.f32.mrf.mxu0
  %v5674 = vpop.f32.mrf.mxu0
  %v5675 = vadd.f32 %v808, %v5674
  %v5676 = vpop.f32.mrf.mxu0
  %5677 = vmatprep.mubr.bf16.mxu0 0
  %5678 = vmatmul.mubr.bf16.gmra.mxu0 %v3413
  %v5679 = vpop.f32.mrf.mxu0
  %v5680 = vadd.f32 %v808, %v5679
  %v5681 = vpop.f32.mrf.mxu0
  %v5682 = vpop.f32.mrf.mxu0
  %v5683 = vadd.f32 %v808, %v5682
  %v5684 = vpop.f32.mrf.mxu0
  %5685 = vmatprep.mubr.bf16.mxu0 0
  %5686 = vmatmul.mubr.bf16.gmra.mxu0 %v3416
  %v5687 = vpop.f32.mrf.mxu0
  %v5688 = vadd.f32 %v808, %v5687
  %v5689 = vpop.f32.mrf.mxu0
  %v5690 = vpop.f32.mrf.mxu0
  %v5691 = vadd.f32 %v808, %v5690
  %v5692 = vpop.f32.mrf.mxu0
  %5693 = vmatprep.mubr.bf16.mxu0 0
  %5694 = vmatmul.mubr.bf16.gmra.mxu0 %v3419
  %v5695 = vpop.f32.mrf.mxu0
  %v5696 = vadd.f32 %v808, %v5695
  %v5697 = vpop.f32.mrf.mxu0
  %v5698 = vpop.f32.mrf.mxu0
  %v5699 = vadd.f32 %v808, %v5698
  %v5700 = vpop.f32.mrf.mxu0
  %5701 = vmatprep.mubr.bf16.mxu0 0
  %5702 = vmatmul.mubr.bf16.gmra.mxu0 %v3422
  %v5703 = vpop.f32.mrf.mxu0
  %v5704 = vadd.f32 %v808, %v5703
  %v5705 = vpop.f32.mrf.mxu0
  %v5706 = vpop.f32.mrf.mxu0
  %v5707 = vadd.f32 %v808, %v5706
  %v5708 = vpop.f32.mrf.mxu0
  %5709 = vmatprep.mubr.bf16.mxu0 0
  %5710 = vmatmul.mubr.bf16.gmra.mxu0 %v3425
  %v5711 = vpop.f32.mrf.mxu0
  %v5712 = vadd.f32 %v808, %v5711
  %v5713 = vpop.f32.mrf.mxu0
  %v5714 = vpop.f32.mrf.mxu0
  %v5715 = vadd.f32 %v808, %v5714
  %v5716 = vpop.f32.mrf.mxu0
  %5717 = vmatprep.mubr.bf16.mxu0 0
  %5718 = vmatmul.mubr.bf16.gmra.mxu0 %v3428
  %v5719 = vpop.f32.mrf.mxu0
  %v5720 = vadd.f32 %v808, %v5719
  %v5721 = vpop.f32.mrf.mxu0
  %v5722 = vpop.f32.mrf.mxu0
  %v5723 = vadd.f32 %v808, %v5722
  %v5724 = vpop.f32.mrf.mxu0
  %5725 = vmatprep.mubr.bf16.mxu0 0
  %5726 = vmatmul.mubr.bf16.gmra.mxu0 %v3431
  %v5727 = vpop.f32.mrf.mxu0
  %v5728 = vadd.f32 %v808, %v5727
  %v5729 = vpop.f32.mrf.mxu0
  %v5730 = vpop.f32.mrf.mxu0
  %v5731 = vadd.f32 %v808, %v5730
  %v5732 = vpop.f32.mrf.mxu0
  %5733 = vmatprep.mubr.bf16.mxu0 0
  %5734 = vmatmul.mubr.bf16.gmra.mxu0 %v3434
  %v5735 = vpop.f32.mrf.mxu0
  %v5736 = vadd.f32 %v808, %v5735
  %v5737 = vpop.f32.mrf.mxu0
  %v5738 = vpop.f32.mrf.mxu0
  %v5739 = vadd.f32 %v808, %v5738
  %v5740 = vpop.f32.mrf.mxu0
  %5741 = vmatprep.mubr.bf16.mxu0 0
  %5742 = vmatmul.mubr.bf16.gmra.mxu0 %v3437
  %v5743 = vpop.f32.mrf.mxu0
  %v5744 = vadd.f32 %v808, %v5743
  %v5745 = vpop.f32.mrf.mxu0
  %v5746 = vpop.f32.mrf.mxu0
  %v5747 = vadd.f32 %v808, %v5746
  %v5748 = vpop.f32.mrf.mxu0
  %5749 = vmatprep.mubr.bf16.mxu0 0
  %5750 = vmatmul.mubr.bf16.gmra.mxu0 %v3440
  %v5751 = vpop.f32.mrf.mxu0
  %v5752 = vadd.f32 %v808, %v5751
  %v5753 = vpop.f32.mrf.mxu0
  %v5754 = vpop.f32.mrf.mxu0
  %v5755 = vadd.f32 %v808, %v5754
  %v5756 = vpop.f32.mrf.mxu0
  %5757 = vmatprep.mubr.bf16.mxu0 0
  %5758 = vmatmul.mubr.bf16.gmra.mxu0 %v3443
  %v5759 = vpop.f32.mrf.mxu0
  %v5760 = vadd.f32 %v808, %v5759
  %v5761 = vpop.f32.mrf.mxu0
  %v5762 = vpop.f32.mrf.mxu0
  %v5763 = vadd.f32 %v808, %v5762
  %v5764 = vpop.f32.mrf.mxu0
  %5765 = vmatprep.mubr.bf16.mxu0 0
  %5766 = vmatmul.mubr.bf16.gmra.mxu0 %v3446
  %v5767 = vpop.f32.mrf.mxu0
  %v5768 = vadd.f32 %v808, %v5767
  %v5769 = vpop.f32.mrf.mxu0
  %v5770 = vpop.f32.mrf.mxu0
  %v5771 = vadd.f32 %v808, %v5770
  %v5772 = vpop.f32.mrf.mxu0
  %5773 = vmatprep.mubr.bf16.mxu0 0
  %5774 = vmatmul.mubr.bf16.gmra.mxu0 %v3449
  %v5775 = vpop.f32.mrf.mxu0
  %v5776 = vadd.f32 %v808, %v5775
  %v5777 = vpop.f32.mrf.mxu0
  %v5778 = vpop.f32.mrf.mxu0
  %v5779 = vadd.f32 %v808, %v5778
  %v5780 = vpop.f32.mrf.mxu0
  %5781 = vmatprep.mubr.bf16.mxu0 0
  %5782 = vmatmul.mubr.bf16.gmra.mxu0 %v3452
  %v5783 = vpop.f32.mrf.mxu0
  %v5784 = vadd.f32 %v808, %v5783
  %v5785 = vpop.f32.mrf.mxu0
  %v5786 = vpop.f32.mrf.mxu0
  %v5787 = vadd.f32 %v808, %v5786
  %v5788 = vpop.f32.mrf.mxu0
  %5789 = vmatprep.mubr.bf16.mxu0 0
  %5790 = vmatmul.mubr.bf16.gmra.mxu0 %v3455
  %v5791 = vpop.f32.mrf.mxu0
  %v5792 = vadd.f32 %v808, %v5791
  %v5793 = vpop.f32.mrf.mxu0
  %v5794 = vpop.f32.mrf.mxu0
  %v5795 = vadd.f32 %v808, %v5794
  %v5796 = vpop.f32.mrf.mxu0
  %5797 = vmatprep.mubr.bf16.mxu0 0
  %5798 = vmatmul.mubr.bf16.gmra.mxu0 %v3458
  %v5799 = vpop.f32.mrf.mxu0
  %v5800 = vadd.f32 %v808, %v5799
  %v5801 = vpop.f32.mrf.mxu0
  %v5802 = vpop.f32.mrf.mxu0
  %v5803 = vadd.f32 %v808, %v5802
  %v5804 = vpop.f32.mrf.mxu0
  %5805 = vmatprep.mubr.bf16.mxu0 0
  %5806 = vmatmul.mubr.bf16.gmra.mxu0 %v3461
  %v5807 = vpop.f32.mrf.mxu0
  %v5808 = vadd.f32 %v808, %v5807
  %v5809 = vpop.f32.mrf.mxu0
  %v5810 = vpop.f32.mrf.mxu0
  %v5811 = vadd.f32 %v808, %v5810
  %v5812 = vpop.f32.mrf.mxu0
  %5813 = vmatprep.mubr.bf16.mxu0 0
  %5814 = vmatmul.mubr.bf16.gmra.mxu0 %v3464
  %v5815 = vpop.f32.mrf.mxu0
  %v5816 = vadd.f32 %v808, %v5815
  %v5817 = vpop.f32.mrf.mxu0
  %v5818 = vpop.f32.mrf.mxu0
  %v5819 = vadd.f32 %v808, %v5818
  %v5820 = vpop.f32.mrf.mxu0
  %5821 = vmatprep.mubr.bf16.mxu0 0
  %5822 = vmatmul.mubr.bf16.gmra.mxu0 %v3467
  %v5823 = vpop.f32.mrf.mxu0
  %v5824 = vadd.f32 %v808, %v5823
  %v5825 = vpop.f32.mrf.mxu0
  %v5826 = vpop.f32.mrf.mxu0
  %v5827 = vadd.f32 %v808, %v5826
  %v5828 = vpop.f32.mrf.mxu0
  %5829 = vmatprep.mubr.bf16.mxu0 0
  %5830 = vmatmul.mubr.bf16.gmra.mxu0 %v3470
  %v5831 = vpop.f32.mrf.mxu0
  %v5832 = vadd.f32 %v808, %v5831
  %v5833 = vpop.f32.mrf.mxu0
  %v5834 = vpop.f32.mrf.mxu0
  %v5835 = vadd.f32 %v808, %v5834
  %v5836 = vpop.f32.mrf.mxu0
  %5837 = vmatprep.mubr.bf16.mxu0 0
  %5838 = vmatmul.mubr.bf16.gmra.mxu0 %v3473
  %v5839 = vpop.f32.mrf.mxu0
  %v5840 = vadd.f32 %v808, %v5839
  %v5841 = vpop.f32.mrf.mxu0
  %v5842 = vpop.f32.mrf.mxu0
  %v5843 = vadd.f32 %v808, %v5842
  %v5844 = vpop.f32.mrf.mxu0
  %5845 = vmatprep.mubr.bf16.mxu0 0
  %5846 = vmatmul.mubr.bf16.gmra.mxu0 %v3476
  %v5847 = vpop.f32.mrf.mxu0
  %v5848 = vadd.f32 %v808, %v5847
  %v5849 = vpop.f32.mrf.mxu0
  %v5850 = vpop.f32.mrf.mxu0
  %v5851 = vadd.f32 %v808, %v5850
  %v5852 = vpop.f32.mrf.mxu0
  %5853 = vmatprep.mubr.bf16.mxu0 0
  %5854 = vmatmul.mubr.bf16.gmra.mxu0 %v3479
  %v5855 = vpop.f32.mrf.mxu0
  %v5856 = vadd.f32 %v808, %v5855
  %v5857 = vpop.f32.mrf.mxu0
  %v5858 = vpop.f32.mrf.mxu0
  %v5859 = vadd.f32 %v808, %v5858
  %v5860 = vpop.f32.mrf.mxu0
  %5861 = vmatprep.mubr.bf16.mxu0 0
  %5862 = vmatmul.mubr.bf16.gmra.mxu0 %v3482
  %v5863 = vpop.f32.mrf.mxu0
  %v5864 = vadd.f32 %v808, %v5863
  %v5865 = vpop.f32.mrf.mxu0
  %v5866 = vpop.f32.mrf.mxu0
  %v5867 = vadd.f32 %v808, %v5866
  %v5868 = vpop.f32.mrf.mxu0
  %5869 = vmatprep.mubr.bf16.mxu0 0
  %5870 = vmatmul.mubr.bf16.gmra.mxu0 %v3485
  %v5871 = vpop.f32.mrf.mxu0
  %v5872 = vadd.f32 %v808, %v5871
  %v5873 = vpop.f32.mrf.mxu0
  %v5874 = vpop.f32.mrf.mxu0
  %v5875 = vadd.f32 %v808, %v5874
  %v5876 = vpop.f32.mrf.mxu0
  %5877 = vmatprep.mubr.bf16.mxu0 0
  %5878 = vmatmul.mubr.bf16.gmra.mxu0 %v3488
  %v5879 = vpop.f32.mrf.mxu0
  %v5880 = vadd.f32 %v808, %v5879
  %v5881 = vpop.f32.mrf.mxu0
  %v5882 = vpop.f32.mrf.mxu0
  %v5883 = vadd.f32 %v808, %v5882
  %v5884 = vpop.f32.mrf.mxu0
  %5885 = vmatprep.mubr.bf16.mxu0 0
  %5886 = vmatmul.mubr.bf16.gmra.mxu0 %v3491
  %v5887 = vpop.f32.mrf.mxu0
  %v5888 = vadd.f32 %v808, %v5887
  %v5889 = vpop.f32.mrf.mxu0
  %v5890 = vpop.f32.mrf.mxu0
  %v5891 = vadd.f32 %v808, %v5890
  %v5892 = vpop.f32.mrf.mxu0
  %5893 = vmatprep.mubr.bf16.mxu0 0
  %5894 = vmatmul.mubr.bf16.gmra.mxu0 %v3494
  %v5895 = vpop.f32.mrf.mxu0
  %v5896 = vadd.f32 %v808, %v5895
  %v5897 = vpop.f32.mrf.mxu0
  %v5898 = vpop.f32.mrf.mxu0
  %v5899 = vadd.f32 %v808, %v5898
  %v5900 = vpop.f32.mrf.mxu0
  %5901 = vmatprep.mubr.bf16.mxu0 0
  %5902 = vmatmul.mubr.bf16.gmra.mxu0 %v3497
  %v5903 = vpop.f32.mrf.mxu0
  %v5904 = vadd.f32 %v808, %v5903
  %v5905 = vpop.f32.mrf.mxu0
  %v5906 = vpop.f32.mrf.mxu0
  %v5907 = vadd.f32 %v808, %v5906
  %v5908 = vpop.f32.mrf.mxu0
  %5909 = vmatprep.mubr.bf16.mxu0 0
  %5910 = vmatmul.mubr.bf16.gmra.mxu0 %v3500
  %v5911 = vpop.f32.mrf.mxu0
  %v5912 = vadd.f32 %v808, %v5911
  %v5913 = vpop.f32.mrf.mxu0
  %v5914 = vpop.f32.mrf.mxu0
  %v5915 = vadd.f32 %v808, %v5914
  %v5916 = vpop.f32.mrf.mxu0
  %5917 = vmatprep.mubr.bf16.mxu0 0
  %5918 = vmatmul.mubr.bf16.gmra.mxu0 %v3503
  %v5919 = vpop.f32.mrf.mxu0
  %v5920 = vadd.f32 %v808, %v5919
  %v5921 = vpop.f32.mrf.mxu0
  %v5922 = vpop.f32.mrf.mxu0
  %v5923 = vadd.f32 %v808, %v5922
  %v5924 = vpop.f32.mrf.mxu0
  %5925 = vmatprep.mubr.bf16.mxu0 0
  %5926 = vmatmul.mubr.bf16.gmra.mxu0 %v3506
  %v5927 = vpop.f32.mrf.mxu0
  %v5928 = vadd.f32 %v808, %v5927
  %v5929 = vpop.f32.mrf.mxu0
  %v5930 = vpop.f32.mrf.mxu0
  %v5931 = vadd.f32 %v808, %v5930
  %v5932 = vpop.f32.mrf.mxu0
  %5933 = vmatprep.mubr.bf16.mxu0 0
  %5934 = vmatmul.mubr.bf16.gmra.mxu0 %v3509
  %v5935 = vpop.f32.mrf.mxu0
  %v5936 = vadd.f32 %v808, %v5935
  %v5937 = vpop.f32.mrf.mxu0
  %v5938 = vpop.f32.mrf.mxu0
  %v5939 = vadd.f32 %v808, %v5938
  %v5940 = vpop.f32.mrf.mxu0
  %5941 = vmatprep.mubr.bf16.mxu0 0
  %5942 = vmatmul.mubr.bf16.gmra.mxu0 %v3512
  %v5943 = vpop.f32.mrf.mxu0
  %v5944 = vadd.f32 %v808, %v5943
  %v5945 = vpop.f32.mrf.mxu0
  %v5946 = vpop.f32.mrf.mxu0
  %v5947 = vadd.f32 %v808, %v5946
  %v5948 = vpop.f32.mrf.mxu0
  %5949 = vmatprep.mubr.bf16.mxu0 0
  %5950 = vmatmul.mubr.bf16.gmra.mxu0 %v3515
  %v5951 = vpop.f32.mrf.mxu0
  %v5952 = vadd.f32 %v808, %v5951
  %v5953 = vpop.f32.mrf.mxu0
  %v5954 = vpop.f32.mrf.mxu0
  %v5955 = vadd.f32 %v808, %v5954
  %v5956 = vpop.f32.mrf.mxu0
  %5957 = vmatprep.mubr.bf16.mxu0 0
  %5958 = vmatmul.mubr.bf16.gmra.mxu0 %v3518
  %v5959 = vpop.f32.mrf.mxu0
  %v5960 = vadd.f32 %v808, %v5959
  %v5961 = vpop.f32.mrf.mxu0
  %v5962 = vpop.f32.mrf.mxu0
  %v5963 = vadd.f32 %v808, %v5962
  %v5964 = vpop.f32.mrf.mxu0
  %5965 = vmatprep.mubr.bf16.mxu0 0
  %5966 = vmatmul.mubr.bf16.gmra.mxu0 %v3521
  %v5967 = vpop.f32.mrf.mxu0
  %v5968 = vadd.f32 %v808, %v5967
  %v5969 = vpop.f32.mrf.mxu0
  %v5970 = vpop.f32.mrf.mxu0
  %v5971 = vadd.f32 %v808, %v5970
  %v5972 = vpop.f32.mrf.mxu0
  %5973 = vmatprep.mubr.bf16.mxu0 0
  %5974 = vmatmul.mubr.bf16.gmra.mxu0 %v3524
  %v5975 = vpop.f32.mrf.mxu0
  %v5976 = vadd.f32 %v808, %v5975
  %v5977 = vpop.f32.mrf.mxu0
  %v5978 = vpop.f32.mrf.mxu0
  %v5979 = vadd.f32 %v808, %v5978
  %v5980 = vpop.f32.mrf.mxu0
  %5981 = vmatprep.mubr.bf16.mxu0 0
  %5982 = vmatmul.mubr.bf16.gmra.mxu0 %v3527
  %v5983 = vpop.f32.mrf.mxu0
  %v5984 = vadd.f32 %v808, %v5983
  %v5985 = vpop.f32.mrf.mxu0
  %v5986 = vpop.f32.mrf.mxu0
  %v5987 = vadd.f32 %v808, %v5986
  %v5988 = vpop.f32.mrf.mxu0
  %5989 = vmatprep.mubr.bf16.mxu0 0
  %5990 = vmatmul.mubr.bf16.gmra.mxu0 %v3530
  %v5991 = vpop.f32.mrf.mxu0
  %v5992 = vadd.f32 %v808, %v5991
  %v5993 = vpop.f32.mrf.mxu0
  %v5994 = vpop.f32.mrf.mxu0
  %v5995 = vadd.f32 %v808, %v5994
  %v5996 = vpop.f32.mrf.mxu0
  %5997 = vmatprep.mubr.bf16.mxu0 0
  %5998 = vmatmul.mubr.bf16.gmra.mxu0 %v3533
  %v5999 = vpop.f32.mrf.mxu0
  %v6000 = vadd.f32 %v808, %v5999
  %v6001 = vpop.f32.mrf.mxu0
  %v6002 = vpop.f32.mrf.mxu0
  %v6003 = vadd.f32 %v808, %v6002
  %v6004 = vpop.f32.mrf.mxu0
  %6005 = vmatprep.mubr.bf16.mxu0 0
  %6006 = vmatmul.mubr.bf16.gmra.mxu0 %v3536
  %v6007 = vpop.f32.mrf.mxu0
  %v6008 = vadd.f32 %v808, %v6007
  %v6009 = vpop.f32.mrf.mxu0
  %v6010 = vpop.f32.mrf.mxu0
  %v6011 = vadd.f32 %v808, %v6010
  %v6012 = vpop.f32.mrf.mxu0
  %6013 = vmatprep.mubr.bf16.mxu0 0
  %6014 = vmatmul.mubr.bf16.gmra.mxu0 %v3539
  %v6015 = vpop.f32.mrf.mxu0
  %v6016 = vadd.f32 %v808, %v6015
  %v6017 = vpop.f32.mrf.mxu0
  %v6018 = vpop.f32.mrf.mxu0
  %v6019 = vadd.f32 %v808, %v6018
  %v6020 = vpop.f32.mrf.mxu0
  %6021 = vmatprep.mubr.bf16.mxu0 0
  %6022 = vmatmul.mubr.bf16.gmra.mxu0 %v3542
  %v6023 = vpop.f32.mrf.mxu0
  %v6024 = vadd.f32 %v808, %v6023
  %v6025 = vpop.f32.mrf.mxu0
  %v6026 = vpop.f32.mrf.mxu0
  %v6027 = vadd.f32 %v808, %v6026
  %v6028 = vpop.f32.mrf.mxu0
  %6029 = vmatprep.mubr.bf16.mxu0 0
  %6030 = vmatmul.mubr.bf16.gmra.mxu0 %v3545
  %v6031 = vpop.f32.mrf.mxu0
  %v6032 = vadd.f32 %v808, %v6031
  %v6033 = vpop.f32.mrf.mxu0
  %v6034 = vpop.f32.mrf.mxu0
  %v6035 = vadd.f32 %v808, %v6034
  %v6036 = vpop.f32.mrf.mxu0
  %6037 = vmatprep.mubr.bf16.mxu0 0
  %6038 = vmatmul.mubr.bf16.gmra.mxu0 %v3548
  %v6039 = vpop.f32.mrf.mxu0
  %v6040 = vadd.f32 %v808, %v6039
  %v6041 = vpop.f32.mrf.mxu0
  %v6042 = vpop.f32.mrf.mxu0
  %v6043 = vadd.f32 %v808, %v6042
  %v6044 = vpop.f32.mrf.mxu0
  %6045 = vmatprep.mubr.bf16.mxu0 0
  %6046 = vmatmul.mubr.bf16.gmra.mxu0 %v3551
  %v6047 = vpop.f32.mrf.mxu0
  %v6048 = vadd.f32 %v808, %v6047
  %v6049 = vpop.f32.mrf.mxu0
  %v6050 = vpop.f32.mrf.mxu0
  %v6051 = vadd.f32 %v808, %v6050
  %v6052 = vpop.f32.mrf.mxu0
  %6053 = vmatprep.mubr.bf16.mxu0 0
  %6054 = vmatmul.mubr.bf16.gmra.mxu0 %v3554
  %v6055 = vpop.f32.mrf.mxu0
  %v6056 = vadd.f32 %v808, %v6055
  %v6057 = vpop.f32.mrf.mxu0
  %v6058 = vpop.f32.mrf.mxu0
  %v6059 = vadd.f32 %v808, %v6058
  %v6060 = vpop.f32.mrf.mxu0
  %6061 = vmatprep.mubr.bf16.mxu0 0
  %6062 = vmatmul.mubr.bf16.gmra.mxu0 %v3557
  %v6063 = vpop.f32.mrf.mxu0
  %v6064 = vadd.f32 %v808, %v6063
  %v6065 = vpop.f32.mrf.mxu0
  %v6066 = vpop.f32.mrf.mxu0
  %v6067 = vadd.f32 %v808, %v6066
  %v6068 = vpop.f32.mrf.mxu0
  %6069 = vmatprep.mubr.bf16.mxu0 0
  %6070 = vmatmul.mubr.bf16.gmra.mxu0 %v3560
  %v6071 = vpop.f32.mrf.mxu0
  %v6072 = vadd.f32 %v808, %v6071
  %v6073 = vpop.f32.mrf.mxu0
  %v6074 = vpop.f32.mrf.mxu0
  %v6075 = vadd.f32 %v808, %v6074
  %v6076 = vpop.f32.mrf.mxu0
  %6077 = vmatprep.mubr.bf16.mxu0 0
  %6078 = vmatmul.mubr.bf16.gmra.mxu0 %v3563
  %v6079 = vpop.f32.mrf.mxu0
  %v6080 = vadd.f32 %v808, %v6079
  %v6081 = vpop.f32.mrf.mxu0
  %v6082 = vpop.f32.mrf.mxu0
  %v6083 = vadd.f32 %v808, %v6082
  %v6084 = vpop.f32.mrf.mxu0
  %6085 = vmatprep.mubr.bf16.mxu0 0
  %6086 = vmatmul.mubr.bf16.gmra.mxu0 %v3566
  %v6087 = vpop.f32.mrf.mxu0
  %v6088 = vadd.f32 %v808, %v6087
  %v6089 = vpop.f32.mrf.mxu0
  %v6090 = vpop.f32.mrf.mxu0
  %v6091 = vadd.f32 %v808, %v6090
  %v6092 = vpop.f32.mrf.mxu0
  %6093 = vmatprep.mubr.bf16.mxu0 0
  %6094 = vmatmul.mubr.bf16.gmra.mxu0 %v3569
  %v6095 = vpop.f32.mrf.mxu0
  %v6096 = vadd.f32 %v808, %v6095
  %v6097 = vpop.f32.mrf.mxu0
  %v6098 = vpop.f32.mrf.mxu0
  %v6099 = vadd.f32 %v808, %v6098
  %v6100 = vpop.f32.mrf.mxu0
  %6101 = vmatprep.mubr.bf16.mxu0 0
  %6102 = vmatmul.mubr.bf16.gmra.mxu0 %v3572
  %v6103 = vpop.f32.mrf.mxu0
  %v6104 = vadd.f32 %v808, %v6103
  %v6105 = vpop.f32.mrf.mxu0
  %v6106 = vpop.f32.mrf.mxu0
  %v6107 = vadd.f32 %v808, %v6106
  %v6108 = vpop.f32.mrf.mxu0
  %6109 = vmatprep.mubr.bf16.mxu0 0
  %6110 = vmatmul.mubr.bf16.gmra.mxu0 %v3575
  %v6111 = vpop.f32.mrf.mxu0
  %v6112 = vadd.f32 %v808, %v6111
  %v6113 = vpop.f32.mrf.mxu0
  %v6114 = vpop.f32.mrf.mxu0
  %v6115 = vadd.f32 %v808, %v6114
  %v6116 = vpop.f32.mrf.mxu0
  %6117 = vmatprep.mubr.bf16.mxu0 0
  %6118 = vmatmul.mubr.bf16.gmra.mxu0 %v3578
  %v6119 = vpop.f32.mrf.mxu0
  %v6120 = vadd.f32 %v808, %v6119
  %v6121 = vpop.f32.mrf.mxu0
  %v6122 = vpop.f32.mrf.mxu0
  %v6123 = vadd.f32 %v808, %v6122
  %v6124 = vpop.f32.mrf.mxu0
  %6125 = vmatprep.mubr.bf16.mxu0 0
  %6126 = vmatmul.mubr.bf16.gmra.mxu0 %v3581
  %v6127 = vpop.f32.mrf.mxu0
  %v6128 = vadd.f32 %v808, %v6127
  %v6129 = vpop.f32.mrf.mxu0
  %v6130 = vpop.f32.mrf.mxu0
  %v6131 = vadd.f32 %v808, %v6130
  %v6132 = vpop.f32.mrf.mxu0
  %6133 = vmatprep.mubr.bf16.mxu0 0
  %6134 = vmatmul.mubr.bf16.gmra.mxu0 %v3584
  %v6135 = vpop.f32.mrf.mxu0
  %v6136 = vadd.f32 %v808, %v6135
  %v6137 = vpop.f32.mrf.mxu0
  %v6138 = vpop.f32.mrf.mxu0
  %v6139 = vadd.f32 %v808, %v6138
  %v6140 = vpop.f32.mrf.mxu0
  %6141 = vmatprep.mubr.bf16.mxu0 0
  %6142 = vmatmul.mubr.bf16.gmra.mxu0 %v3587
  %v6143 = vpop.f32.mrf.mxu0
  %v6144 = vadd.f32 %v808, %v6143
  %v6145 = vpop.f32.mrf.mxu0
  %v6146 = vpop.f32.mrf.mxu0
  %v6147 = vadd.f32 %v808, %v6146
  %v6148 = vpop.f32.mrf.mxu0
  %6149 = vmatprep.mubr.bf16.mxu0 0
  %6150 = vmatmul.mubr.bf16.gmra.mxu0 %v3590
  %v6151 = vpop.f32.mrf.mxu0
  %v6152 = vadd.f32 %v808, %v6151
  %v6153 = vpop.f32.mrf.mxu0
  %v6154 = vpop.f32.mrf.mxu0
  %v6155 = vadd.f32 %v808, %v6154
  %v6156 = vpop.f32.mrf.mxu0
  %6157 = vmatprep.mubr.bf16.mxu0 0
  %6158 = vmatmul.mubr.bf16.gmra.mxu0 %v3593
  %v6159 = vpop.f32.mrf.mxu0
  %v6160 = vadd.f32 %v808, %v6159
  %v6161 = vpop.f32.mrf.mxu0
  %v6162 = vpop.f32.mrf.mxu0
  %v6163 = vadd.f32 %v808, %v6162
  %v6164 = vpop.f32.mrf.mxu0
  %6165 = vmatprep.mubr.bf16.mxu0 0
  %6166 = vmatmul.mubr.bf16.gmra.mxu0 %v3596
  %v6167 = vpop.f32.mrf.mxu0
  %v6168 = vadd.f32 %v808, %v6167
  %v6169 = vpop.f32.mrf.mxu0
  %v6170 = vpop.f32.mrf.mxu0
  %v6171 = vadd.f32 %v808, %v6170
  %v6172 = vpop.f32.mrf.mxu0
  %6173 = vmatprep.mubr.bf16.mxu0 0
  %6174 = vmatmul.mubr.bf16.gmra.mxu0 %v3599
  %v6175 = vpop.f32.mrf.mxu0
  %v6176 = vadd.f32 %v808, %v6175
  %v6177 = vpop.f32.mrf.mxu0
  %v6178 = vpop.f32.mrf.mxu0
  %v6179 = vadd.f32 %v808, %v6178
  %v6180 = vpop.f32.mrf.mxu0
  %6181 = vmatprep.mubr.bf16.mxu0 0
  %6182 = vmatmul.mubr.bf16.gmra.mxu0 %v3602
  %v6183 = vpop.f32.mrf.mxu0
  %v6184 = vadd.f32 %v808, %v6183
  %v6185 = vpop.f32.mrf.mxu0
  %v6186 = vpop.f32.mrf.mxu0
  %v6187 = vadd.f32 %v808, %v6186
  %v6188 = vpop.f32.mrf.mxu0
  %6189 = vmatprep.mubr.bf16.mxu0 0
  %6190 = vmatmul.mubr.bf16.gmra.mxu0 %v3605
  %v6191 = vpop.f32.mrf.mxu0
  %v6192 = vadd.f32 %v808, %v6191
  %v6193 = vpop.f32.mrf.mxu0
  %v6194 = vpop.f32.mrf.mxu0
  %v6195 = vadd.f32 %v808, %v6194
  %v6196 = vpop.f32.mrf.mxu0
  %6197 = vmatprep.mubr.bf16.mxu0 0
  %6198 = vmatmul.mubr.bf16.gmra.mxu0 %v3608
  %v6199 = vpop.f32.mrf.mxu0
  %v6200 = vadd.f32 %v808, %v6199
  %v6201 = vpop.f32.mrf.mxu0
  %v6202 = vpop.f32.mrf.mxu0
  %v6203 = vadd.f32 %v808, %v6202
  %v6204 = vpop.f32.mrf.mxu0
  %6205 = vmatprep.mubr.bf16.mxu0 0
  %6206 = vmatmul.mubr.bf16.gmra.mxu0 %v3611
  %v6207 = vpop.f32.mrf.mxu0
  %v6208 = vadd.f32 %v808, %v6207
  %v6209 = vpop.f32.mrf.mxu0
  %v6210 = vpop.f32.mrf.mxu0
  %v6211 = vadd.f32 %v808, %v6210
  %v6212 = vpop.f32.mrf.mxu0
  %6213 = vmatprep.mubr.bf16.mxu0 0
  %6214 = vmatmul.mubr.bf16.gmra.mxu0 %v3614
  %v6215 = vpop.f32.mrf.mxu0
  %v6216 = vadd.f32 %v808, %v6215
  %v6217 = vpop.f32.mrf.mxu0
  %v6218 = vpop.f32.mrf.mxu0
  %v6219 = vadd.f32 %v808, %v6218
  %v6220 = vpop.f32.mrf.mxu0
  %6221 = vmatprep.mubr.bf16.mxu0 0
  %6222 = vmatmul.mubr.bf16.gmra.mxu0 %v3617
  %v6223 = vpop.f32.mrf.mxu0
  %v6224 = vadd.f32 %v808, %v6223
  %v6225 = vpop.f32.mrf.mxu0
  %v6226 = vpop.f32.mrf.mxu0
  %v6227 = vadd.f32 %v808, %v6226
  %v6228 = vpop.f32.mrf.mxu0
  %6229 = vmatprep.mubr.bf16.mxu0 0
  %6230 = vmatmul.mubr.bf16.gmra.mxu0 %v3620
  %v6231 = vpop.f32.mrf.mxu0
  %v6232 = vadd.f32 %v808, %v6231
  %v6233 = vpop.f32.mrf.mxu0
  %v6234 = vpop.f32.mrf.mxu0
  %v6235 = vadd.f32 %v808, %v6234
  %v6236 = vpop.f32.mrf.mxu0
  %6237 = vmatprep.mubr.bf16.mxu0 0
  %6238 = vmatmul.mubr.bf16.gmra.mxu0 %v3623
  %v6239 = vpop.f32.mrf.mxu0
  %v6240 = vadd.f32 %v808, %v6239
  %v6241 = vpop.f32.mrf.mxu0
  %v6242 = vpop.f32.mrf.mxu0
  %v6243 = vadd.f32 %v808, %v6242
  %v6244 = vpop.f32.mrf.mxu0
  %6245 = vmatprep.mubr.bf16.mxu0 0
  %6246 = vmatmul.mubr.bf16.gmra.mxu0 %v3626
  %v6247 = vpop.f32.mrf.mxu0
  %v6248 = vadd.f32 %v808, %v6247
  %v6249 = vpop.f32.mrf.mxu0
  %v6250 = vpop.f32.mrf.mxu0
  %v6251 = vadd.f32 %v808, %v6250
  %v6252 = vpop.f32.mrf.mxu0
  %6253 = vmatprep.mubr.bf16.mxu0 0
  %6254 = vmatmul.mubr.bf16.gmra.mxu0 %v3629
  %v6255 = vpop.f32.mrf.mxu0
  %v6256 = vadd.f32 %v808, %v6255
  %v6257 = vpop.f32.mrf.mxu0
  %v6258 = vpop.f32.mrf.mxu0
  %v6259 = vadd.f32 %v808, %v6258
  %v6260 = vpop.f32.mrf.mxu0
  %6261 = vmatprep.mubr.bf16.mxu0 0
  %6262 = vmatmul.mubr.bf16.gmra.mxu0 %v3632
  %v6263 = vpop.f32.mrf.mxu0
  %v6264 = vadd.f32 %v808, %v6263
  %v6265 = vpop.f32.mrf.mxu0
  %v6266 = vpop.f32.mrf.mxu0
  %v6267 = vadd.f32 %v808, %v6266
  %v6268 = vpop.f32.mrf.mxu0
  %6269 = vmatprep.mubr.bf16.mxu0 0
  %6270 = vmatmul.mubr.bf16.gmra.mxu0 %v3635
  %v6271 = vpop.f32.mrf.mxu0
  %v6272 = vadd.f32 %v808, %v6271
  %v6273 = vpop.f32.mrf.mxu0
  %v6274 = vpop.f32.mrf.mxu0
  %v6275 = vadd.f32 %v808, %v6274
  %v6276 = vpop.f32.mrf.mxu0
  %6277 = vmatprep.mubr.bf16.mxu0 0
  %6278 = vmatmul.mubr.bf16.gmra.mxu0 %v3638
  %v6279 = vpop.f32.mrf.mxu0
  %v6280 = vadd.f32 %v808, %v6279
  %v6281 = vpop.f32.mrf.mxu0
  %v6282 = vpop.f32.mrf.mxu0
  %v6283 = vadd.f32 %v808, %v6282
  %v6284 = vpop.f32.mrf.mxu0
  %6285 = vmatprep.mubr.bf16.mxu0 0
  %6286 = vmatmul.mubr.bf16.gmra.mxu0 %v3641
  %v6287 = vpop.f32.mrf.mxu0
  %v6288 = vadd.f32 %v808, %v6287
  %v6289 = vpop.f32.mrf.mxu0
  %v6290 = vpop.f32.mrf.mxu0
  %v6291 = vadd.f32 %v808, %v6290
  %v6292 = vpop.f32.mrf.mxu0
  %6293 = vmatprep.mubr.bf16.mxu0 0
  %6294 = vmatmul.mubr.bf16.gmra.mxu0 %v3644
  %v6295 = vpop.f32.mrf.mxu0
  %v6296 = vadd.f32 %v808, %v6295
  %v6297 = vpop.f32.mrf.mxu0
  %v6298 = vpop.f32.mrf.mxu0
  %v6299 = vadd.f32 %v808, %v6298
  %v6300 = vpop.f32.mrf.mxu0
  %6301 = vmatprep.mubr.bf16.mxu0 0
  %6302 = vmatmul.mubr.bf16.gmra.mxu0 %v3647
  %v6303 = vpop.f32.mrf.mxu0
  %v6304 = vadd.f32 %v808, %v6303
  %v6305 = vpop.f32.mrf.mxu0
  %v6306 = vpop.f32.mrf.mxu0
  %v6307 = vadd.f32 %v808, %v6306
  %v6308 = vpop.f32.mrf.mxu0
  %6309 = vmatprep.mubr.bf16.mxu0 0
  %6310 = vmatmul.mubr.bf16.gmra.mxu0 %v3650
  %v6311 = vpop.f32.mrf.mxu0
  %v6312 = vadd.f32 %v808, %v6311
  %v6313 = vpop.f32.mrf.mxu0
  %v6314 = vpop.f32.mrf.mxu0
  %v6315 = vadd.f32 %v808, %v6314
  %v6316 = vpop.f32.mrf.mxu0
  %6317 = vmatprep.mubr.bf16.mxu0 0
  %6318 = vmatmul.mubr.bf16.gmra.mxu0 %v3653
  %v6319 = vpop.f32.mrf.mxu0
  %v6320 = vadd.f32 %v808, %v6319
  %v6321 = vpop.f32.mrf.mxu0
  %v6322 = vpop.f32.mrf.mxu0
  %v6323 = vadd.f32 %v808, %v6322
  %v6324 = vpop.f32.mrf.mxu0
  %6325 = vmatprep.mubr.bf16.mxu0 0
  %6326 = vmatmul.mubr.bf16.gmra.mxu0 %v3656
  %v6327 = vpop.f32.mrf.mxu0
  %v6328 = vadd.f32 %v808, %v6327
  %v6329 = vpop.f32.mrf.mxu0
  %v6330 = vpop.f32.mrf.mxu0
  %v6331 = vadd.f32 %v808, %v6330
  %v6332 = vpop.f32.mrf.mxu0
  %6333 = vmatprep.mubr.bf16.mxu0 0
  %6334 = vmatmul.mubr.bf16.gmra.mxu0 %v3659
  %v6335 = vpop.f32.mrf.mxu0
  %v6336 = vadd.f32 %v808, %v6335
  %v6337 = vpop.f32.mrf.mxu0
  %v6338 = vpop.f32.mrf.mxu0
  %v6339 = vadd.f32 %v808, %v6338
  %v6340 = vpop.f32.mrf.mxu0
  %6341 = vmatprep.mubr.bf16.mxu0 0
  %6342 = vmatmul.mubr.bf16.gmra.mxu0 %v3662
  %v6343 = vpop.f32.mrf.mxu0
  %v6344 = vadd.f32 %v808, %v6343
  %v6345 = vpop.f32.mrf.mxu0
  %v6346 = vpop.f32.mrf.mxu0
  %v6347 = vadd.f32 %v808, %v6346
  %v6348 = vpop.f32.mrf.mxu0
  %6349 = vmatprep.mubr.bf16.mxu0 0
  %6350 = vmatmul.mubr.bf16.gmra.mxu0 %v3665
  %v6351 = vpop.f32.mrf.mxu0
  %v6352 = vadd.f32 %v808, %v6351
  %v6353 = vpop.f32.mrf.mxu0
  %v6354 = vpop.f32.mrf.mxu0
  %v6355 = vadd.f32 %v808, %v6354
  %v6356 = vpop.f32.mrf.mxu0
  %6357 = vmatprep.mubr.bf16.mxu0 0
  %6358 = vmatmul.mubr.bf16.gmra.mxu0 %v3668
  %v6359 = vpop.f32.mrf.mxu0
  %v6360 = vadd.f32 %v808, %v6359
  %v6361 = vpop.f32.mrf.mxu0
  %v6362 = vpop.f32.mrf.mxu0
  %v6363 = vadd.f32 %v808, %v6362
  %v6364 = vpop.f32.mrf.mxu0
  %6365 = vmatprep.mubr.bf16.mxu0 0
  %6366 = vmatmul.mubr.bf16.gmra.mxu0 %v3671
  %v6367 = vpop.f32.mrf.mxu0
  %v6368 = vadd.f32 %v808, %v6367
  %v6369 = vpop.f32.mrf.mxu0
  %v6370 = vpop.f32.mrf.mxu0
  %v6371 = vadd.f32 %v808, %v6370
  %v6372 = vpop.f32.mrf.mxu0
  %6373 = vmatprep.mubr.bf16.mxu0 0
  %6374 = vmatmul.mubr.bf16.gmra.mxu0 %v3674
  %v6375 = vpop.f32.mrf.mxu0
  %v6376 = vadd.f32 %v808, %v6375
  %v6377 = vpop.f32.mrf.mxu0
  %v6378 = vpop.f32.mrf.mxu0
  %v6379 = vadd.f32 %v808, %v6378
  %v6380 = vpop.f32.mrf.mxu0
  %6381 = vmatprep.mubr.bf16.mxu0 0
  %6382 = vmatmul.mubr.bf16.gmra.mxu0 %v3677
  %v6383 = vpop.f32.mrf.mxu0
  %v6384 = vadd.f32 %v808, %v6383
  %v6385 = vpop.f32.mrf.mxu0
  %v6386 = vpop.f32.mrf.mxu0
  %v6387 = vadd.f32 %v808, %v6386
  %v6388 = vpop.f32.mrf.mxu0
  %6389 = vmatprep.mubr.bf16.mxu0 0
  %6390 = vmatmul.mubr.bf16.gmra.mxu0 %v3680
  %v6391 = vpop.f32.mrf.mxu0
  %v6392 = vadd.f32 %v808, %v6391
  %v6393 = vpop.f32.mrf.mxu0
  %v6394 = vpop.f32.mrf.mxu0
  %v6395 = vadd.f32 %v808, %v6394
  %v6396 = vpop.f32.mrf.mxu0
  %6397 = vmatprep.mubr.bf16.mxu0 0
  %6398 = vmatmul.mubr.bf16.gmra.mxu0 %v3683
  %v6399 = vpop.f32.mrf.mxu0
  %v6400 = vadd.f32 %v808, %v6399
  %v6401 = vpop.f32.mrf.mxu0
  %v6402 = vpop.f32.mrf.mxu0
  %v6403 = vadd.f32 %v808, %v6402
  %v6404 = vpop.f32.mrf.mxu0
  %6405 = vmatprep.mubr.bf16.mxu0 0
  %6406 = vmatmul.mubr.bf16.gmra.mxu0 %v3686
  %v6407 = vpop.f32.mrf.mxu0
  %v6408 = vadd.f32 %v808, %v6407
  %v6409 = vpop.f32.mrf.mxu0
  %v6410 = vpop.f32.mrf.mxu0
  %v6411 = vadd.f32 %v808, %v6410
  %v6412 = vpop.f32.mrf.mxu0
  %6413 = vmatprep.mubr.bf16.mxu0 0
  %6414 = vmatmul.mubr.bf16.gmra.mxu0 %v3689
  %v6415 = vpop.f32.mrf.mxu0
  %v6416 = vadd.f32 %v808, %v6415
  %v6417 = vpop.f32.mrf.mxu0
  %v6418 = vpop.f32.mrf.mxu0
  %v6419 = vadd.f32 %v808, %v6418
  %v6420 = vpop.f32.mrf.mxu0
  %6421 = vmatprep.mubr.bf16.mxu0 0
  %6422 = vmatmul.mubr.bf16.gmra.mxu0 %v3692
  %v6423 = vpop.f32.mrf.mxu0
  %v6424 = vadd.f32 %v808, %v6423
  %v6425 = vpop.f32.mrf.mxu0
  %v6426 = vpop.f32.mrf.mxu0
  %v6427 = vadd.f32 %v808, %v6426
  %v6428 = vpop.f32.mrf.mxu0
  %6429 = vmatprep.mubr.bf16.mxu0 0
  %6430 = vmatmul.mubr.bf16.gmra.mxu0 %v3695
  %v6431 = vpop.f32.mrf.mxu0
  %v6432 = vadd.f32 %v808, %v6431
  %v6433 = vpop.f32.mrf.mxu0
  %v6434 = vpop.f32.mrf.mxu0
  %v6435 = vadd.f32 %v808, %v6434
  %v6436 = vpop.f32.mrf.mxu0
  %6437 = vmatprep.mubr.bf16.mxu0 0
  %6438 = vmatmul.mubr.bf16.gmra.mxu0 %v3698
  %v6439 = vpop.f32.mrf.mxu0
  %v6440 = vadd.f32 %v808, %v6439
  %v6441 = vpop.f32.mrf.mxu0
  %v6442 = vpop.f32.mrf.mxu0
  %v6443 = vadd.f32 %v808, %v6442
  %v6444 = vpop.f32.mrf.mxu0
  %6445 = vmatprep.mubr.bf16.mxu0 0
  %6446 = vmatmul.mubr.bf16.gmra.mxu0 %v3701
  %v6447 = vpop.f32.mrf.mxu0
  %v6448 = vadd.f32 %v808, %v6447
  %v6449 = vpop.f32.mrf.mxu0
  %v6450 = vpop.f32.mrf.mxu0
  %v6451 = vadd.f32 %v808, %v6450
  %v6452 = vpop.f32.mrf.mxu0
  %6453 = vmatprep.mubr.bf16.mxu0 0
  %6454 = vmatmul.mubr.bf16.gmra.mxu0 %v3704
  %v6455 = vpop.f32.mrf.mxu0
  %v6456 = vadd.f32 %v808, %v6455
  %v6457 = vpop.f32.mrf.mxu0
  %v6458 = vpop.f32.mrf.mxu0
  %v6459 = vadd.f32 %v808, %v6458
  %v6460 = vpop.f32.mrf.mxu0
  %6461 = vmatprep.mubr.bf16.mxu0 0
  %6462 = vmatmul.mubr.bf16.gmra.mxu0 %v3707
  %v6463 = vpop.f32.mrf.mxu0
  %v6464 = vadd.f32 %v808, %v6463
  %v6465 = vpop.f32.mrf.mxu0
  %v6466 = vpop.f32.mrf.mxu0
  %v6467 = vadd.f32 %v808, %v6466
  %v6468 = vpop.f32.mrf.mxu0
  %6469 = vmatprep.mubr.bf16.mxu0 0
  %6470 = vmatmul.mubr.bf16.gmra.mxu0 %v3710
  %v6471 = vpop.f32.mrf.mxu0
  %v6472 = vadd.f32 %v808, %v6471
  %v6473 = vpop.f32.mrf.mxu0
  %v6474 = vpop.f32.mrf.mxu0
  %v6475 = vadd.f32 %v808, %v6474
  %v6476 = vpop.f32.mrf.mxu0
  %6477 = vmatprep.mubr.bf16.mxu0 0
  %6478 = vmatmul.mubr.bf16.gmra.mxu0 %v3713
  %v6479 = vpop.f32.mrf.mxu0
  %v6480 = vadd.f32 %v808, %v6479
  %v6481 = vpop.f32.mrf.mxu0
  %v6482 = vpop.f32.mrf.mxu0
  %v6483 = vadd.f32 %v808, %v6482
  %v6484 = vpop.f32.mrf.mxu0
  %6485 = vmatprep.mubr.bf16.mxu0 0
  %6486 = vmatmul.mubr.bf16.gmra.mxu0 %v3716
  %v6487 = vpop.f32.mrf.mxu0
  %v6488 = vadd.f32 %v808, %v6487
  %v6489 = vpop.f32.mrf.mxu0
  %v6490 = vpop.f32.mrf.mxu0
  %v6491 = vadd.f32 %v808, %v6490
  %v6492 = vpop.f32.mrf.mxu0
  %6493 = vmatprep.mubr.bf16.mxu0 0
  %6494 = vmatmul.mubr.bf16.gmra.mxu0 %v3719
  %v6495 = vpop.f32.mrf.mxu0
  %v6496 = vadd.f32 %v808, %v6495
  %v6497 = vpop.f32.mrf.mxu0
  %v6498 = vpop.f32.mrf.mxu0
  %v6499 = vadd.f32 %v808, %v6498
  %v6500 = vpop.f32.mrf.mxu0
  %6501 = vmatprep.mubr.bf16.mxu0 0
  %6502 = vmatmul.mubr.bf16.gmra.mxu0 %v3722
  %v6503 = vpop.f32.mrf.mxu0
  %v6504 = vadd.f32 %v808, %v6503
  %v6505 = vpop.f32.mrf.mxu0
  %v6506 = vpop.f32.mrf.mxu0
  %v6507 = vadd.f32 %v808, %v6506
  %v6508 = vpop.f32.mrf.mxu0
  %6509 = vmatprep.mubr.bf16.mxu0 0
  %6510 = vmatmul.mubr.bf16.gmra.mxu0 %v3725
  %v6511 = vpop.f32.mrf.mxu0
  %v6512 = vadd.f32 %v808, %v6511
  %v6513 = vpop.f32.mrf.mxu0
  %v6514 = vpop.f32.mrf.mxu0
  %v6515 = vadd.f32 %v808, %v6514
  %v6516 = vpop.f32.mrf.mxu0
  %6517 = vmatprep.mubr.bf16.mxu0 0
  %6518 = vmatmul.mubr.bf16.gmra.mxu0 %v3728
  %v6519 = vpop.f32.mrf.mxu0
  %v6520 = vadd.f32 %v808, %v6519
  %v6521 = vpop.f32.mrf.mxu0
  %v6522 = vpop.f32.mrf.mxu0
  %v6523 = vadd.f32 %v808, %v6522
  %v6524 = vpop.f32.mrf.mxu0
  %6525 = vmatprep.mubr.bf16.mxu0 0
  %6526 = vmatmul.mubr.bf16.gmra.mxu0 %v3731
  %v6527 = vpop.f32.mrf.mxu0
  %v6528 = vadd.f32 %v808, %v6527
  %v6529 = vpop.f32.mrf.mxu0
  %v6530 = vpop.f32.mrf.mxu0
  %v6531 = vadd.f32 %v808, %v6530
  %v6532 = vpop.f32.mrf.mxu0
  %6533 = vmatprep.mubr.bf16.mxu0 0
  %6534 = vmatmul.mubr.bf16.gmra.mxu0 %v3734
  %v6535 = vpop.f32.mrf.mxu0
  %v6536 = vadd.f32 %v808, %v6535
  %v6537 = vpop.f32.mrf.mxu0
  %v6538 = vpop.f32.mrf.mxu0
  %v6539 = vadd.f32 %v808, %v6538
  %v6540 = vpop.f32.mrf.mxu0
  %6541 = vmatprep.mubr.bf16.mxu0 0
  %6542 = vmatmul.mubr.bf16.gmra.mxu0 %v3737
  %v6543 = vpop.f32.mrf.mxu0
  %v6544 = vadd.f32 %v808, %v6543
  %v6545 = vpop.f32.mrf.mxu0
  %v6546 = vpop.f32.mrf.mxu0
  %v6547 = vadd.f32 %v808, %v6546
  %v6548 = vpop.f32.mrf.mxu0
  %6549 = vmatprep.mubr.bf16.mxu0 0
  %6550 = vmatmul.mubr.bf16.gmra.mxu0 %v3740
  %v6551 = vpop.f32.mrf.mxu0
  %v6552 = vadd.f32 %v808, %v6551
  %v6553 = vpop.f32.mrf.mxu0
  %v6554 = vpop.f32.mrf.mxu0
  %v6555 = vadd.f32 %v808, %v6554
  %v6556 = vpop.f32.mrf.mxu0
  %6557 = vmatprep.mubr.bf16.mxu0 0
  %6558 = vmatmul.mubr.bf16.gmra.mxu0 %v3743
  %v6559 = vpop.f32.mrf.mxu0
  %v6560 = vadd.f32 %v808, %v6559
  %v6561 = vpop.f32.mrf.mxu0
  %v6562 = vpop.f32.mrf.mxu0
  %v6563 = vadd.f32 %v808, %v6562
  %v6564 = vpop.f32.mrf.mxu0
  %6565 = vmatprep.mubr.bf16.mxu0 0
  %6566 = vmatmul.mubr.bf16.gmra.mxu0 %v3746
  %v6567 = vpop.f32.mrf.mxu0
  %v6568 = vadd.f32 %v808, %v6567
  %v6569 = vpop.f32.mrf.mxu0
  %v6570 = vpop.f32.mrf.mxu0
  %v6571 = vadd.f32 %v808, %v6570
  %v6572 = vpop.f32.mrf.mxu0
  %6573 = vmatprep.mubr.bf16.mxu0 0
  %6574 = vmatmul.mubr.bf16.gmra.mxu0 %v3749
  %v6575 = vpop.f32.mrf.mxu0
  %v6576 = vadd.f32 %v808, %v6575
  %v6577 = vpop.f32.mrf.mxu0
  %v6578 = vpop.f32.mrf.mxu0
  %v6579 = vadd.f32 %v808, %v6578
  %v6580 = vpop.f32.mrf.mxu0
  %6581 = vmatprep.mubr.bf16.mxu0 0
  %6582 = vmatmul.mubr.bf16.gmra.mxu0 %v3752
  %v6583 = vpop.f32.mrf.mxu0
  %v6584 = vadd.f32 %v808, %v6583
  %v6585 = vpop.f32.mrf.mxu0
  %v6586 = vpop.f32.mrf.mxu0
  %v6587 = vadd.f32 %v808, %v6586
  %v6588 = vpop.f32.mrf.mxu0
  %6589 = vmatprep.mubr.bf16.mxu0 0
  %6590 = vmatmul.mubr.bf16.gmra.mxu0 %v3755
  %v6591 = vpop.f32.mrf.mxu0
  %v6592 = vadd.f32 %v808, %v6591
  %v6593 = vpop.f32.mrf.mxu0
  %v6594 = vpop.f32.mrf.mxu0
  %v6595 = vadd.f32 %v808, %v6594
  %v6596 = vpop.f32.mrf.mxu0
  %6597 = vmatprep.mubr.bf16.mxu0 0
  %6598 = vmatmul.mubr.bf16.gmra.mxu0 %v3758
  %v6599 = vpop.f32.mrf.mxu0
  %v6600 = vadd.f32 %v808, %v6599
  %v6601 = vpop.f32.mrf.mxu0
  %v6602 = vpop.f32.mrf.mxu0
  %v6603 = vadd.f32 %v808, %v6602
  %v6604 = vpop.f32.mrf.mxu0
  %6605 = vmatprep.mubr.bf16.mxu0 0
  %6606 = vmatmul.mubr.bf16.gmra.mxu0 %v3761
  %v6607 = vpop.f32.mrf.mxu0
  %v6608 = vadd.f32 %v808, %v6607
  %v6609 = vpop.f32.mrf.mxu0
  %v6610 = vpop.f32.mrf.mxu0
  %v6611 = vadd.f32 %v808, %v6610
  %v6612 = vpop.f32.mrf.mxu0
  %6613 = vmatprep.mubr.bf16.mxu0 0
  %6614 = vmatmul.mubr.bf16.gmra.mxu0 %v3764
  %v6615 = vpop.f32.mrf.mxu0
  %v6616 = vadd.f32 %v808, %v6615
  %v6617 = vpop.f32.mrf.mxu0
  %v6618 = vpop.f32.mrf.mxu0
  %v6619 = vadd.f32 %v808, %v6618
  %v6620 = vpop.f32.mrf.mxu0
  %6621 = vmatprep.mubr.bf16.mxu0 0
  %6622 = vmatmul.mubr.bf16.gmra.mxu0 %v3767
  %v6623 = vpop.f32.mrf.mxu0
  %v6624 = vadd.f32 %v808, %v6623
  %v6625 = vpop.f32.mrf.mxu0
  %v6626 = vpop.f32.mrf.mxu0
  %v6627 = vadd.f32 %v808, %v6626
  %v6628 = vpop.f32.mrf.mxu0
  %6629 = vmatprep.mubr.bf16.mxu0 0
  %6630 = vmatmul.mubr.bf16.gmra.mxu0 %v3770
  %v6631 = vpop.f32.mrf.mxu0
  %v6632 = vadd.f32 %v808, %v6631
  %v6633 = vpop.f32.mrf.mxu0
  %v6634 = vpop.f32.mrf.mxu0
  %v6635 = vadd.f32 %v808, %v6634
  %v6636 = vpop.f32.mrf.mxu0
  %6637 = vmatprep.mubr.bf16.mxu0 0
  %6638 = vmatmul.mubr.bf16.gmra.mxu0 %v3773
  %v6639 = vpop.f32.mrf.mxu0
  %v6640 = vadd.f32 %v808, %v6639
  %v6641 = vpop.f32.mrf.mxu0
  %v6642 = vpop.f32.mrf.mxu0
  %v6643 = vadd.f32 %v808, %v6642
  %v6644 = vpop.f32.mrf.mxu0
  %6645 = vmatprep.mubr.bf16.mxu0 0
  %6646 = vmatmul.mubr.bf16.gmra.mxu0 %v3776
  %v6647 = vpop.f32.mrf.mxu0
  %v6648 = vadd.f32 %v808, %v6647
  %v6649 = vpop.f32.mrf.mxu0
  %v6650 = vpop.f32.mrf.mxu0
  %v6651 = vadd.f32 %v808, %v6650
  %v6652 = vpop.f32.mrf.mxu0
  %6653 = vmatprep.mubr.bf16.mxu0 0
  %6654 = vmatmul.mubr.bf16.gmra.mxu0 %v3779
  %v6655 = vpop.f32.mrf.mxu0
  %v6656 = vadd.f32 %v808, %v6655
  %v6657 = vpop.f32.mrf.mxu0
  %v6658 = vpop.f32.mrf.mxu0
  %v6659 = vadd.f32 %v808, %v6658
  %v6660 = vpop.f32.mrf.mxu0
  %6661 = vmatprep.mubr.bf16.mxu0 0
  %6662 = vmatmul.mubr.bf16.gmra.mxu0 %v3782
  %v6663 = vpop.f32.mrf.mxu0
  %v6664 = vadd.f32 %v808, %v6663
  %v6665 = vpop.f32.mrf.mxu0
  %v6666 = vpop.f32.mrf.mxu0
  %v6667 = vadd.f32 %v808, %v6666
  %v6668 = vpop.f32.mrf.mxu0
  %6669 = vmatprep.mubr.bf16.mxu0 0
  %6670 = vmatmul.mubr.bf16.gmra.mxu0 %v3785
  %v6671 = vpop.f32.mrf.mxu0
  %v6672 = vadd.f32 %v808, %v6671
  %v6673 = vpop.f32.mrf.mxu0
  %v6674 = vpop.f32.mrf.mxu0
  %v6675 = vadd.f32 %v808, %v6674
  %v6676 = vpop.f32.mrf.mxu0
  %6677 = vmatprep.mubr.bf16.mxu0 0
  %6678 = vmatmul.mubr.bf16.gmra.mxu0 %v3788
  %v6679 = vpop.f32.mrf.mxu0
  %v6680 = vadd.f32 %v808, %v6679
  %v6681 = vpop.f32.mrf.mxu0
  %v6682 = vpop.f32.mrf.mxu0
  %v6683 = vadd.f32 %v808, %v6682
  %v6684 = vpop.f32.mrf.mxu0
  %6685 = vmatprep.mubr.bf16.mxu0 0
  %6686 = vmatmul.mubr.bf16.gmra.mxu0 %v3791
  %v6687 = vpop.f32.mrf.mxu0
  %v6688 = vadd.f32 %v808, %v6687
  %v6689 = vpop.f32.mrf.mxu0
  %v6690 = vpop.f32.mrf.mxu0
  %v6691 = vadd.f32 %v808, %v6690
  %v6692 = vpop.f32.mrf.mxu0
  %6693 = vmatprep.mubr.bf16.mxu0 0
  %6694 = vmatmul.mubr.bf16.gmra.mxu0 %v3794
  %v6695 = vpop.f32.mrf.mxu0
  %v6696 = vadd.f32 %v808, %v6695
  %v6697 = vpop.f32.mrf.mxu0
  %v6698 = vpop.f32.mrf.mxu0
  %v6699 = vadd.f32 %v808, %v6698
  %v6700 = vpop.f32.mrf.mxu0
  %6701 = vmatprep.mubr.bf16.mxu0 0
  %6702 = vmatmul.mubr.bf16.gmra.mxu0 %v3797
  %v6703 = vpop.f32.mrf.mxu0
  %v6704 = vadd.f32 %v808, %v6703
  %v6705 = vpop.f32.mrf.mxu0
  %v6706 = vpop.f32.mrf.mxu0
  %v6707 = vadd.f32 %v808, %v6706
  %v6708 = vpop.f32.mrf.mxu0
  %6709 = vmatprep.mubr.bf16.mxu0 0
  %6710 = vmatmul.mubr.bf16.gmra.mxu0 %v3800
  %v6711 = vpop.f32.mrf.mxu0
  %v6712 = vadd.f32 %v808, %v6711
  %v6713 = vpop.f32.mrf.mxu0
  %v6714 = vpop.f32.mrf.mxu0
  %v6715 = vadd.f32 %v808, %v6714
  %v6716 = vpop.f32.mrf.mxu0
  %6717 = vmatprep.mubr.bf16.mxu0 0
  %6718 = vmatmul.mubr.bf16.gmra.mxu0 %v3803
  %v6719 = vpop.f32.mrf.mxu0
  %v6720 = vadd.f32 %v808, %v6719
  %v6721 = vpop.f32.mrf.mxu0
  %v6722 = vpop.f32.mrf.mxu0
  %v6723 = vadd.f32 %v808, %v6722
  %v6724 = vpop.f32.mrf.mxu0
  %6725 = vmatprep.mubr.bf16.mxu0 0
  %6726 = vmatmul.mubr.bf16.gmra.mxu0 %v3806
  %v6727 = vpop.f32.mrf.mxu0
  %v6728 = vadd.f32 %v808, %v6727
  %v6729 = vpop.f32.mrf.mxu0
  %v6730 = vpop.f32.mrf.mxu0
  %v6731 = vadd.f32 %v808, %v6730
  %v6732 = vpop.f32.mrf.mxu0
  %6733 = vmatprep.mubr.bf16.mxu0 0
  %6734 = vmatmul.mubr.bf16.gmra.mxu0 %v3809
  %v6735 = vpop.f32.mrf.mxu0
  %v6736 = vadd.f32 %v808, %v6735
  %v6737 = vpop.f32.mrf.mxu0
  %v6738 = vpop.f32.mrf.mxu0
  %v6739 = vadd.f32 %v808, %v6738
  %v6740 = vpop.f32.mrf.mxu0
  %6741 = vmatprep.mubr.bf16.mxu0 0
  %6742 = vmatmul.mubr.bf16.gmra.mxu0 %v3812
  %v6743 = vpop.f32.mrf.mxu0
  %v6744 = vadd.f32 %v808, %v6743
  %v6745 = vpop.f32.mrf.mxu0
  %v6746 = vpop.f32.mrf.mxu0
  %v6747 = vadd.f32 %v808, %v6746
  %v6748 = vpop.f32.mrf.mxu0
  %6749 = vmatprep.mubr.bf16.mxu0 0
  %6750 = vmatmul.mubr.bf16.gmra.mxu0 %v3815
  %v6751 = vpop.f32.mrf.mxu0
  %v6752 = vadd.f32 %v808, %v6751
  %v6753 = vpop.f32.mrf.mxu0
  %v6754 = vpop.f32.mrf.mxu0
  %v6755 = vadd.f32 %v808, %v6754
  %v6756 = vpop.f32.mrf.mxu0
  %6757 = vmatprep.mubr.bf16.mxu0 0
  %6758 = vmatmul.mubr.bf16.gmra.mxu0 %v3818
  %v6759 = vpop.f32.mrf.mxu0
  %v6760 = vadd.f32 %v808, %v6759
  %v6761 = vpop.f32.mrf.mxu0
  %v6762 = vpop.f32.mrf.mxu0
  %v6763 = vadd.f32 %v808, %v6762
  %v6764 = vpop.f32.mrf.mxu0
  %6765 = vmatprep.mubr.bf16.mxu0 0
  %6766 = vmatmul.mubr.bf16.gmra.mxu0 %v3821
  %v6767 = vpop.f32.mrf.mxu0
  %v6768 = vadd.f32 %v808, %v6767
  %v6769 = vpop.f32.mrf.mxu0
  %v6770 = vpop.f32.mrf.mxu0
  %v6771 = vadd.f32 %v808, %v6770
  %v6772 = vpop.f32.mrf.mxu0
  %6773 = vmatprep.mubr.bf16.mxu0 0
  %6774 = vmatmul.mubr.bf16.gmra.mxu0 %v3824
  %v6775 = vpop.f32.mrf.mxu0
  %v6776 = vadd.f32 %v808, %v6775
  %v6777 = vpop.f32.mrf.mxu0
  %v6778 = vpop.f32.mrf.mxu0
  %v6779 = vadd.f32 %v808, %v6778
  %v6780 = vpop.f32.mrf.mxu0
  %6781 = vmatprep.mubr.bf16.mxu0 0
  %6782 = vmatmul.mubr.bf16.gmra.mxu0 %v3827
  %v6783 = vpop.f32.mrf.mxu0
  %v6784 = vadd.f32 %v808, %v6783
  %v6785 = vpop.f32.mrf.mxu0
  %v6786 = vpop.f32.mrf.mxu0
  %v6787 = vadd.f32 %v808, %v6786
  %v6788 = vpop.f32.mrf.mxu0
  %6789 = vmatprep.mubr.bf16.mxu0 0
  %6790 = vmatmul.mubr.bf16.gmra.mxu0 %v3830
  %v6791 = vpop.f32.mrf.mxu0
  %v6792 = vadd.f32 %v808, %v6791
  %v6793 = vpop.f32.mrf.mxu0
  %v6794 = vpop.f32.mrf.mxu0
  %v6795 = vadd.f32 %v808, %v6794
  %v6796 = vpop.f32.mrf.mxu0
  %6797 = vmatprep.mubr.bf16.mxu0 0
  %6798 = vmatmul.mubr.bf16.gmra.mxu0 %v3833
  %v6799 = vpop.f32.mrf.mxu0
  %v6800 = vadd.f32 %v808, %v6799
  %v6801 = vpop.f32.mrf.mxu0
  %v6802 = vpop.f32.mrf.mxu0
  %v6803 = vadd.f32 %v808, %v6802
  %v6804 = vpop.f32.mrf.mxu0
  %6805 = vmatprep.mubr.bf16.mxu0 0
  %6806 = vmatmul.mubr.bf16.gmra.mxu0 %v3836
  %v6807 = vpop.f32.mrf.mxu0
  %v6808 = vadd.f32 %v808, %v6807
  %v6809 = vpop.f32.mrf.mxu0
  %v6810 = vpop.f32.mrf.mxu0
  %v6811 = vadd.f32 %v808, %v6810
  %v6812 = vpop.f32.mrf.mxu0
  %6813 = vmatprep.mubr.bf16.mxu0 0
  %6814 = vmatmul.mubr.bf16.gmra.mxu0 %v3839
  %v6815 = vpop.f32.mrf.mxu0
  %v6816 = vadd.f32 %v808, %v6815
  %v6817 = vpop.f32.mrf.mxu0
  %v6818 = vpop.f32.mrf.mxu0
  %v6819 = vadd.f32 %v808, %v6818
  %v6820 = vpop.f32.mrf.mxu0
  %6821 = vmatprep.mubr.bf16.mxu0 0
  %6822 = vmatmul.mubr.bf16.gmra.mxu0 %v3842
  %v6823 = vpop.f32.mrf.mxu0
  %v6824 = vadd.f32 %v808, %v6823
  %v6825 = vpop.f32.mrf.mxu0
  %v6826 = vpop.f32.mrf.mxu0
  %v6827 = vadd.f32 %v808, %v6826
  %v6828 = vpop.f32.mrf.mxu0
  %6829 = vmatprep.mubr.bf16.mxu0 0
  %6830 = vmatmul.mubr.bf16.gmra.mxu0 %v3845
  %v6831 = vpop.f32.mrf.mxu0
  %v6832 = vadd.f32 %v808, %v6831
  %v6833 = vpop.f32.mrf.mxu0
  %v6834 = vpop.f32.mrf.mxu0
  %v6835 = vadd.f32 %v808, %v6834
  %v6836 = vpop.f32.mrf.mxu0
  %6837 = vmatprep.mubr.bf16.mxu0 0
  %6838 = vmatmul.mubr.bf16.gmra.mxu0 %v3848
  %v6839 = vpop.f32.mrf.mxu0
  %v6840 = vadd.f32 %v808, %v6839
  %v6841 = vpop.f32.mrf.mxu0
  %v6842 = vpop.f32.mrf.mxu0
  %v6843 = vadd.f32 %v808, %v6842
  %v6844 = vpop.f32.mrf.mxu0
  %6845 = vmatprep.mubr.bf16.mxu0 0
  %6846 = vmatmul.mubr.bf16.gmra.mxu0 %v3851
  %v6847 = vpop.f32.mrf.mxu0
  %v6848 = vadd.f32 %v808, %v6847
  %v6849 = vpop.f32.mrf.mxu0
  %v6850 = vpop.f32.mrf.mxu0
  %v6851 = vadd.f32 %v808, %v6850
  %v6852 = vpop.f32.mrf.mxu0
  %6853 = vmatprep.mubr.bf16.mxu0 0
  %6854 = vmatmul.mubr.bf16.gmra.mxu0 %v3854
  %v6855 = vpop.f32.mrf.mxu0
  %v6856 = vadd.f32 %v808, %v6855
  %v6857 = vpop.f32.mrf.mxu0
  %v6858 = vpop.f32.mrf.mxu0
  %v6859 = vadd.f32 %v808, %v6858
  %v6860 = vpop.f32.mrf.mxu0
  %6861 = vmatprep.mubr.bf16.mxu0 0
  %6862 = vmatmul.mubr.bf16.gmra.mxu0 %v3857
  %v6863 = vpop.f32.mrf.mxu0
  %v6864 = vadd.f32 %v808, %v6863
  %v6865 = vpop.f32.mrf.mxu0
  %v6866 = vpop.f32.mrf.mxu0
  %v6867 = vadd.f32 %v808, %v6866
  %v6868 = vpop.f32.mrf.mxu0
  %6869 = vmatprep.mubr.bf16.mxu0 0
  %6870 = vmatmul.mubr.bf16.gmra.mxu0 %v3860
  %v6871 = vpop.f32.mrf.mxu0
  %v6872 = vadd.f32 %v808, %v6871
  %v6873 = vpop.f32.mrf.mxu0
  %v6874 = vpop.f32.mrf.mxu0
  %v6875 = vadd.f32 %v808, %v6874
  %v6876 = vpop.f32.mrf.mxu0
  %6877 = vmatprep.mubr.bf16.mxu0 0
  %6878 = vmatmul.mubr.bf16.gmra.mxu0 %v3863
  %v6879 = vpop.f32.mrf.mxu0
  %v6880 = vadd.f32 %v808, %v6879
  %v6881 = vpop.f32.mrf.mxu0
  %v6882 = vpop.f32.mrf.mxu0
  %v6883 = vadd.f32 %v808, %v6882
  %v6884 = vpop.f32.mrf.mxu0
  %6885 = vmatprep.mubr.bf16.mxu0 0
  %6886 = vmatmul.mubr.bf16.gmra.mxu0 %v3866
  %v6887 = vpop.f32.mrf.mxu0
  %v6888 = vadd.f32 %v808, %v6887
  %v6889 = vpop.f32.mrf.mxu0
  %v6890 = vpop.f32.mrf.mxu0
  %v6891 = vadd.f32 %v808, %v6890
  %v6892 = vpop.f32.mrf.mxu0
  %6893 = vmatprep.mubr.bf16.mxu0 0
  %6894 = vmatmul.mubr.bf16.gmra.mxu0 %v3869
  %v6895 = vpop.f32.mrf.mxu0
  %v6896 = vadd.f32 %v808, %v6895
  %v6897 = vpop.f32.mrf.mxu0
  %v6898 = vpop.f32.mrf.mxu0
  %v6899 = vadd.f32 %v808, %v6898
  %v6900 = vpop.f32.mrf.mxu0
  %6901 = vmatprep.mubr.bf16.mxu0 0
  %6902 = vmatmul.mubr.bf16.gmra.mxu0 %v3872
  %v6903 = vpop.f32.mrf.mxu0
  %v6904 = vadd.f32 %v808, %v6903
  %v6905 = vpop.f32.mrf.mxu0
  %v6906 = vpop.f32.mrf.mxu0
  %v6907 = vadd.f32 %v808, %v6906
  %v6908 = vpop.f32.mrf.mxu0
  %6909 = vmatprep.mubr.bf16.mxu0 0
  %6910 = vmatmul.mubr.bf16.gmra.mxu0 %v3875
  %v6911 = vpop.f32.mrf.mxu0
  %v6912 = vadd.f32 %v808, %v6911
  %v6913 = vpop.f32.mrf.mxu0
  %v6914 = vpop.f32.mrf.mxu0
  %v6915 = vadd.f32 %v808, %v6914
  %v6916 = vpop.f32.mrf.mxu0
  %6917 = vmatprep.mubr.bf16.mxu0 0
  %6918 = vmatmul.mubr.bf16.gmra.mxu0 %v3878
  %v6919 = vpop.f32.mrf.mxu0
  %v6920 = vadd.f32 %v808, %v6919
  %v6921 = vpop.f32.mrf.mxu0
  %v6922 = vpop.f32.mrf.mxu0
  %v6923 = vadd.f32 %v808, %v6922
  %v6924 = vpop.f32.mrf.mxu0
  %6925 = vmatprep.mubr.bf16.mxu0 0
  %6926 = vmatmul.mubr.bf16.gmra.mxu0 %v3881
  %v6927 = vpop.f32.mrf.mxu0
  %v6928 = vadd.f32 %v808, %v6927
  %v6929 = vpop.f32.mrf.mxu0
  %v6930 = vpop.f32.mrf.mxu0
  %v6931 = vadd.f32 %v808, %v6930
  %v6932 = vpop.f32.mrf.mxu0
  %6933 = vmatprep.mubr.bf16.mxu0 0
  %6934 = vmatmul.mubr.bf16.gmra.mxu0 %v3884
  %v6935 = vpop.f32.mrf.mxu0
  %v6936 = vadd.f32 %v808, %v6935
  %v6937 = vpop.f32.mrf.mxu0
  %v6938 = vpop.f32.mrf.mxu0
  %v6939 = vadd.f32 %v808, %v6938
  %v6940 = vpop.f32.mrf.mxu0
  %6941 = vmatprep.mubr.bf16.mxu0 0
  %6942 = vmatmul.mubr.bf16.gmra.mxu0 %v3887
  %v6943 = vpop.f32.mrf.mxu0
  %v6944 = vadd.f32 %v808, %v6943
  %v6945 = vpop.f32.mrf.mxu0
  %v6946 = vpop.f32.mrf.mxu0
  %v6947 = vadd.f32 %v808, %v6946
  %v6948 = vpop.f32.mrf.mxu0
  %6949 = vmatprep.mubr.bf16.mxu0 0
  %6950 = vmatmul.mubr.bf16.gmra.mxu0 %v3890
  %v6951 = vpop.f32.mrf.mxu0
  %v6952 = vadd.f32 %v808, %v6951
  %v6953 = vpop.f32.mrf.mxu0
  %v6954 = vpop.f32.mrf.mxu0
  %v6955 = vadd.f32 %v808, %v6954
  %v6956 = vpop.f32.mrf.mxu0
  %6957 = vmatprep.mubr.bf16.mxu0 0
  %6958 = vmatmul.mubr.bf16.gmra.mxu0 %v3893
  %v6959 = vpop.f32.mrf.mxu0
  %v6960 = vadd.f32 %v808, %v6959
  %v6961 = vpop.f32.mrf.mxu0
  %v6962 = vpop.f32.mrf.mxu0
  %v6963 = vadd.f32 %v808, %v6962
  %v6964 = vpop.f32.mrf.mxu0
  %6965 = vmatprep.mubr.bf16.mxu0 0
  %6966 = vmatmul.mubr.bf16.gmra.mxu0 %v3896
  %v6967 = vpop.f32.mrf.mxu0
  %v6968 = vadd.f32 %v808, %v6967
  %v6969 = vpop.f32.mrf.mxu0
  %v6970 = vpop.f32.mrf.mxu0
  %v6971 = vadd.f32 %v808, %v6970
  %v6972 = vpop.f32.mrf.mxu0
  %6973 = vmatprep.mubr.bf16.mxu0 0
  %6974 = vmatmul.mubr.bf16.gmra.mxu0 %v3899
  %v6975 = vpop.f32.mrf.mxu0
  %v6976 = vadd.f32 %v808, %v6975
  %v6977 = vpop.f32.mrf.mxu0
  %v6978 = vpop.f32.mrf.mxu0
  %v6979 = vadd.f32 %v808, %v6978
  %v6980 = vpop.f32.mrf.mxu0
  %6981 = vmatprep.mubr.bf16.mxu0 0
  %6982 = vmatmul.mubr.bf16.gmra.mxu0 %v3902
  %v6983 = vpop.f32.mrf.mxu0
  %v6984 = vadd.f32 %v808, %v6983
  %v6985 = vpop.f32.mrf.mxu0
  %v6986 = vpop.f32.mrf.mxu0
  %v6987 = vadd.f32 %v808, %v6986
  %v6988 = vpop.f32.mrf.mxu0
  %6989 = vmatprep.mubr.bf16.mxu0 0
  %6990 = vmatmul.mubr.bf16.gmra.mxu0 %v3905
  %v6991 = vpop.f32.mrf.mxu0
  %v6992 = vadd.f32 %v808, %v6991
  %v6993 = vpop.f32.mrf.mxu0
  %v6994 = vpop.f32.mrf.mxu0
  %v6995 = vadd.f32 %v808, %v6994
  %v6996 = vpop.f32.mrf.mxu0
  %6997 = vmatprep.mubr.bf16.mxu0 0
  %6998 = vmatmul.mubr.bf16.gmra.mxu0 %v3908
  %v6999 = vpop.f32.mrf.mxu0
  %v7000 = vadd.f32 %v808, %v6999
  %v7001 = vpop.f32.mrf.mxu0
  %v7002 = vpop.f32.mrf.mxu0
  %v7003 = vadd.f32 %v808, %v7002
  %v7004 = vpop.f32.mrf.mxu0
  %7005 = vmatprep.mubr.bf16.mxu0 0
  %7006 = vmatmul.mubr.bf16.gmra.mxu0 %v3911
  %v7007 = vpop.f32.mrf.mxu0
  %v7008 = vadd.f32 %v808, %v7007
  %v7009 = vpop.f32.mrf.mxu0
  %v7010 = vpop.f32.mrf.mxu0
  %v7011 = vadd.f32 %v808, %v7010
  %v7012 = vpop.f32.mrf.mxu0
  %7013 = vmatprep.mubr.bf16.mxu0 0
  %7014 = vmatmul.mubr.bf16.gmra.mxu0 %v3914
  %v7015 = vpop.f32.mrf.mxu0
  %v7016 = vadd.f32 %v808, %v7015
  %v7017 = vpop.f32.mrf.mxu0
  %v7018 = vpop.f32.mrf.mxu0
  %v7019 = vadd.f32 %v808, %v7018
  %v7020 = vpop.f32.mrf.mxu0
  %7021 = vmatprep.mubr.bf16.mxu0 0
  %7022 = vmatmul.mubr.bf16.gmra.mxu0 %v3917
  %v7023 = vpop.f32.mrf.mxu0
  %v7024 = vadd.f32 %v808, %v7023
  %v7025 = vpop.f32.mrf.mxu0
  %v7026 = vpop.f32.mrf.mxu0
  %v7027 = vadd.f32 %v808, %v7026
  %v7028 = vpop.f32.mrf.mxu0
  %7029 = vmatprep.mubr.bf16.mxu0 0
  %7030 = vmatmul.mubr.bf16.gmra.mxu0 %v3920
  %v7031 = vpop.f32.mrf.mxu0
  %v7032 = vadd.f32 %v808, %v7031
  %v7033 = vpop.f32.mrf.mxu0
  %v7034 = vpop.f32.mrf.mxu0
  %v7035 = vadd.f32 %v808, %v7034
  %v7036 = vpop.f32.mrf.mxu0
  %7037 = vmatprep.mubr.bf16.mxu0 0
  %7038 = vmatmul.mubr.bf16.gmra.mxu0 %v3923
  %v7039 = vpop.f32.mrf.mxu0
  %v7040 = vadd.f32 %v808, %v7039
  %v7041 = vpop.f32.mrf.mxu0
  %v7042 = vpop.f32.mrf.mxu0
  %v7043 = vadd.f32 %v808, %v7042
  %v7044 = vpop.f32.mrf.mxu0
  %7045 = vmatprep.mubr.bf16.mxu0 0
  %7046 = vmatmul.mubr.bf16.gmra.mxu0 %v3926
  %v7047 = vpop.f32.mrf.mxu0
  %v7048 = vadd.f32 %v808, %v7047
  %v7049 = vpop.f32.mrf.mxu0
  %v7050 = vpop.f32.mrf.mxu0
  %v7051 = vadd.f32 %v808, %v7050
  %v7052 = vpop.f32.mrf.mxu0
  %7053 = vmatprep.mubr.bf16.mxu0 0
  %7054 = vmatmul.mubr.bf16.gmra.mxu0 %v3929
  %v7055 = vpop.f32.mrf.mxu0
  %v7056 = vadd.f32 %v808, %v7055
  %v7057 = vpop.f32.mrf.mxu0
  %v7058 = vpop.f32.mrf.mxu0
  %v7059 = vadd.f32 %v808, %v7058
  %v7060 = vpop.f32.mrf.mxu0
  %7061 = vmatprep.mubr.bf16.mxu0 0
  %7062 = vmatmul.mubr.bf16.gmra.mxu0 %v3932
  %v7063 = vpop.f32.mrf.mxu0
  %v7064 = vadd.f32 %v808, %v7063
  %v7065 = vpop.f32.mrf.mxu0
  %v7066 = vpop.f32.mrf.mxu0
  %v7067 = vadd.f32 %v808, %v7066
  %v7068 = vpop.f32.mrf.mxu0
  %7069 = vmatprep.mubr.bf16.mxu0 0
  %7070 = vmatmul.mubr.bf16.gmra.mxu0 %v3935
  %v7071 = vpop.f32.mrf.mxu0
  %v7072 = vadd.f32 %v808, %v7071
  %v7073 = vpop.f32.mrf.mxu0
  %v7074 = vpop.f32.mrf.mxu0
  %v7075 = vadd.f32 %v808, %v7074
  %v7076 = vpop.f32.mrf.mxu0
  %7077 = vmatprep.mubr.bf16.mxu0 0
  %7078 = vmatmul.mubr.bf16.gmra.mxu0 %v3938
  %v7079 = vpop.f32.mrf.mxu0
  %v7080 = vadd.f32 %v808, %v7079
  %v7081 = vpop.f32.mrf.mxu0
  %v7082 = vpop.f32.mrf.mxu0
  %v7083 = vadd.f32 %v808, %v7082
  %v7084 = vpop.f32.mrf.mxu0
  %7085 = vmatprep.mubr.bf16.mxu0 0
  %7086 = vmatmul.mubr.bf16.gmra.mxu0 %v3941
  %v7087 = vpop.f32.mrf.mxu0
  %v7088 = vadd.f32 %v808, %v7087
  %v7089 = vpop.f32.mrf.mxu0
  %v7090 = vpop.f32.mrf.mxu0
  %v7091 = vadd.f32 %v808, %v7090
  %v7092 = vpop.f32.mrf.mxu0
  %7093 = vmatprep.mubr.bf16.mxu0 0
  %7094 = vmatmul.mubr.bf16.gmra.mxu0 %v3944
  %v7095 = vpop.f32.mrf.mxu0
  %v7096 = vadd.f32 %v808, %v7095
  %v7097 = vpop.f32.mrf.mxu0
  %v7098 = vpop.f32.mrf.mxu0
  %v7099 = vadd.f32 %v808, %v7098
  %v7100 = vpop.f32.mrf.mxu0
  %7101 = vmatprep.mubr.bf16.mxu0 0
  %7102 = vmatmul.mubr.bf16.gmra.mxu0 %v3947
  %v7103 = vpop.f32.mrf.mxu0
  %v7104 = vadd.f32 %v808, %v7103
  %v7105 = vpop.f32.mrf.mxu0
  %v7106 = vpop.f32.mrf.mxu0
  %v7107 = vadd.f32 %v808, %v7106
  %v7108 = vpop.f32.mrf.mxu0
  %7109 = vmatprep.mubr.bf16.mxu0 0
  %7110 = vmatmul.mubr.bf16.gmra.mxu0 %v3950
  %v7111 = vpop.f32.mrf.mxu0
  %v7112 = vadd.f32 %v808, %v7111
  %v7113 = vpop.f32.mrf.mxu0
  %v7114 = vpop.f32.mrf.mxu0
  %v7115 = vadd.f32 %v808, %v7114
  %v7116 = vpop.f32.mrf.mxu0
  %7117 = vmatprep.mubr.bf16.mxu0 0
  %7118 = vmatmul.mubr.bf16.gmra.mxu0 %v3953
  %v7119 = vpop.f32.mrf.mxu0
  %v7120 = vadd.f32 %v808, %v7119
  %v7121 = vpop.f32.mrf.mxu0
  %v7122 = vpop.f32.mrf.mxu0
  %v7123 = vadd.f32 %v808, %v7122
  %v7124 = vpop.f32.mrf.mxu0
  %7125 = vmatprep.mubr.bf16.mxu0 0
  %7126 = vmatmul.mubr.bf16.gmra.mxu0 %v3956
  %v7127 = vpop.f32.mrf.mxu0
  %v7128 = vadd.f32 %v808, %v7127
  %v7129 = vpop.f32.mrf.mxu0
  %v7130 = vpop.f32.mrf.mxu0
  %v7131 = vadd.f32 %v808, %v7130
  %v7132 = vpop.f32.mrf.mxu0
  %7133 = vdwg.mxu0
  %v7134 = vmax.f32 %v4000, 0.0
  %v7135 = vmax.f32 %v4003, 0.0
  %v7136 = vmax.f32 %v4008, 0.0
  %v7137 = vmax.f32 %v4011, 0.0
  %v7138 = vmax.f32 %v4016, 0.0
  %v7139 = vmax.f32 %v4019, 0.0
  %v7140 = vmax.f32 %v4024, 0.0
  %v7141 = vmax.f32 %v4027, 0.0
  %v7142 = vmax.f32 %v4032, 0.0
  %v7143 = vmax.f32 %v4035, 0.0
  %v7144 = vmax.f32 %v4040, 0.0
  %v7145 = vmax.f32 %v4043, 0.0
  %v7146 = vmax.f32 %v4048, 0.0
  %v7147 = vmax.f32 %v4051, 0.0
  %v7148 = vmax.f32 %v4056, 0.0
  %v7149 = vmax.f32 %v4059, 0.0
  %v7150 = vmax.f32 %v4064, 0.0
  %v7151 = vmax.f32 %v4067, 0.0
  %v7152 = vmax.f32 %v4072, 0.0
  %v7153 = vmax.f32 %v4075, 0.0
  %v7154 = vmax.f32 %v4080, 0.0
  %v7155 = vmax.f32 %v4083, 0.0
  %v7156 = vmax.f32 %v4088, 0.0
  %v7157 = vmax.f32 %v4091, 0.0
  %v7158 = vmax.f32 %v4096, 0.0
  %v7159 = vmax.f32 %v4099, 0.0
  %v7160 = vmax.f32 %v4104, 0.0
  %v7161 = vmax.f32 %v4107, 0.0
  %v7162 = vmax.f32 %v4112, 0.0
  %v7163 = vmax.f32 %v4115, 0.0
  %v7164 = vmax.f32 %v4120, 0.0
  %v7165 = vmax.f32 %v4123, 0.0
  %v7166 = vmax.f32 %v4128, 0.0
  %v7167 = vmax.f32 %v4131, 0.0
  %v7168 = vmax.f32 %v4136, 0.0
  %v7169 = vmax.f32 %v4139, 0.0
  %v7170 = vmax.f32 %v4144, 0.0
  %v7171 = vmax.f32 %v4147, 0.0
  %v7172 = vmax.f32 %v4152, 0.0
  %v7173 = vmax.f32 %v4155, 0.0
  %v7174 = vmax.f32 %v4160, 0.0
  %v7175 = vmax.f32 %v4163, 0.0
  %v7176 = vmax.f32 %v4168, 0.0
  %v7177 = vmax.f32 %v4171, 0.0
  %v7178 = vmax.f32 %v4176, 0.0
  %v7179 = vmax.f32 %v4179, 0.0
  %v7180 = vmax.f32 %v4184, 0.0
  %v7181 = vmax.f32 %v4187, 0.0
  %v7182 = vmax.f32 %v4192, 0.0
  %v7183 = vmax.f32 %v4195, 0.0
  %v7184 = vmax.f32 %v4200, 0.0
  %v7185 = vmax.f32 %v4203, 0.0
  %v7186 = vmax.f32 %v4208, 0.0
  %v7187 = vmax.f32 %v4211, 0.0
  %v7188 = vmax.f32 %v4216, 0.0
  %v7189 = vmax.f32 %v4219, 0.0
  %v7190 = vmax.f32 %v4224, 0.0
  %v7191 = vmax.f32 %v4227, 0.0
  %v7192 = vmax.f32 %v4232, 0.0
  %v7193 = vmax.f32 %v4235, 0.0
  %v7194 = vmax.f32 %v4240, 0.0
  %v7195 = vmax.f32 %v4243, 0.0
  %v7196 = vmax.f32 %v4248, 0.0
  %v7197 = vmax.f32 %v4251, 0.0
  %v7198 = vmax.f32 %v4256, 0.0
  %v7199 = vmax.f32 %v4259, 0.0
  %v7200 = vmax.f32 %v4264, 0.0
  %v7201 = vmax.f32 %v4267, 0.0
  %v7202 = vmax.f32 %v4272, 0.0
  %v7203 = vmax.f32 %v4275, 0.0
  %v7204 = vmax.f32 %v4280, 0.0
  %v7205 = vmax.f32 %v4283, 0.0
  %v7206 = vmax.f32 %v4288, 0.0
  %v7207 = vmax.f32 %v4291, 0.0
  %v7208 = vmax.f32 %v4296, 0.0
  %v7209 = vmax.f32 %v4299, 0.0
  %v7210 = vmax.f32 %v4304, 0.0
  %v7211 = vmax.f32 %v4307, 0.0
  %v7212 = vmax.f32 %v4312, 0.0
  %v7213 = vmax.f32 %v4315, 0.0
  %v7214 = vmax.f32 %v4320, 0.0
  %v7215 = vmax.f32 %v4323, 0.0
  %v7216 = vmax.f32 %v4328, 0.0
  %v7217 = vmax.f32 %v4331, 0.0
  %v7218 = vmax.f32 %v4336, 0.0
  %v7219 = vmax.f32 %v4339, 0.0
  %v7220 = vmax.f32 %v4344, 0.0
  %v7221 = vmax.f32 %v4347, 0.0
  %v7222 = vmax.f32 %v4352, 0.0
  %v7223 = vmax.f32 %v4355, 0.0
  %v7224 = vmax.f32 %v4360, 0.0
  %v7225 = vmax.f32 %v4363, 0.0
  %v7226 = vmax.f32 %v4368, 0.0
  %v7227 = vmax.f32 %v4371, 0.0
  %v7228 = vmax.f32 %v4376, 0.0
  %v7229 = vmax.f32 %v4379, 0.0
  %v7230 = vmax.f32 %v4384, 0.0
  %v7231 = vmax.f32 %v4387, 0.0
  %v7232 = vmax.f32 %v4392, 0.0
  %v7233 = vmax.f32 %v4395, 0.0
  %v7234 = vmax.f32 %v4400, 0.0
  %v7235 = vmax.f32 %v4403, 0.0
  %v7236 = vmax.f32 %v4408, 0.0
  %v7237 = vmax.f32 %v4411, 0.0
  %v7238 = vmax.f32 %v4416, 0.0
  %v7239 = vmax.f32 %v4419, 0.0
  %v7240 = vmax.f32 %v4424, 0.0
  %v7241 = vmax.f32 %v4427, 0.0
  %v7242 = vmax.f32 %v4432, 0.0
  %v7243 = vmax.f32 %v4435, 0.0
  %v7244 = vmax.f32 %v4440, 0.0
  %v7245 = vmax.f32 %v4443, 0.0
  %v7246 = vmax.f32 %v4448, 0.0
  %v7247 = vmax.f32 %v4451, 0.0
  %v7248 = vmax.f32 %v4456, 0.0
  %v7249 = vmax.f32 %v4459, 0.0
  %v7250 = vmax.f32 %v4464, 0.0
  %v7251 = vmax.f32 %v4467, 0.0
  %v7252 = vmax.f32 %v4472, 0.0
  %v7253 = vmax.f32 %v4475, 0.0
  %v7254 = vmax.f32 %v4480, 0.0
  %v7255 = vmax.f32 %v4483, 0.0
  %v7256 = vmax.f32 %v4488, 0.0
  %v7257 = vmax.f32 %v4491, 0.0
  %v7258 = vmax.f32 %v4496, 0.0
  %v7259 = vmax.f32 %v4499, 0.0
  %v7260 = vmax.f32 %v4504, 0.0
  %v7261 = vmax.f32 %v4507, 0.0
  %v7262 = vmax.f32 %v4512, 0.0
  %v7263 = vmax.f32 %v4515, 0.0
  %v7264 = vmax.f32 %v4520, 0.0
  %v7265 = vmax.f32 %v4523, 0.0
  %v7266 = vmax.f32 %v4528, 0.0
  %v7267 = vmax.f32 %v4531, 0.0
  %v7268 = vmax.f32 %v4536, 0.0
  %v7269 = vmax.f32 %v4539, 0.0
  %v7270 = vmax.f32 %v4544, 0.0
  %v7271 = vmax.f32 %v4547, 0.0
  %v7272 = vmax.f32 %v4552, 0.0
  %v7273 = vmax.f32 %v4555, 0.0
  %v7274 = vmax.f32 %v4560, 0.0
  %v7275 = vmax.f32 %v4563, 0.0
  %v7276 = vmax.f32 %v4568, 0.0
  %v7277 = vmax.f32 %v4571, 0.0
  %v7278 = vmax.f32 %v4576, 0.0
  %v7279 = vmax.f32 %v4579, 0.0
  %v7280 = vmax.f32 %v4584, 0.0
  %v7281 = vmax.f32 %v4587, 0.0
  %v7282 = vmax.f32 %v4592, 0.0
  %v7283 = vmax.f32 %v4595, 0.0
  %v7284 = vmax.f32 %v4600, 0.0
  %v7285 = vmax.f32 %v4603, 0.0
  %v7286 = vmax.f32 %v4608, 0.0
  %v7287 = vmax.f32 %v4611, 0.0
  %v7288 = vmax.f32 %v4616, 0.0
  %v7289 = vmax.f32 %v4619, 0.0
  %v7290 = vmax.f32 %v4624, 0.0
  %v7291 = vmax.f32 %v4627, 0.0
  %v7292 = vmax.f32 %v4632, 0.0
  %v7293 = vmax.f32 %v4635, 0.0
  %v7294 = vmax.f32 %v4640, 0.0
  %v7295 = vmax.f32 %v4643, 0.0
  %v7296 = vmax.f32 %v4648, 0.0
  %v7297 = vmax.f32 %v4651, 0.0
  %v7298 = vmax.f32 %v4656, 0.0
  %v7299 = vmax.f32 %v4659, 0.0
  %v7300 = vmax.f32 %v4664, 0.0
  %v7301 = vmax.f32 %v4667, 0.0
  %v7302 = vmax.f32 %v4672, 0.0
  %v7303 = vmax.f32 %v4675, 0.0
  %v7304 = vmax.f32 %v4680, 0.0
  %v7305 = vmax.f32 %v4683, 0.0
  %v7306 = vmax.f32 %v4688, 0.0
  %v7307 = vmax.f32 %v4691, 0.0
  %v7308 = vmax.f32 %v4696, 0.0
  %v7309 = vmax.f32 %v4699, 0.0
  %v7310 = vmax.f32 %v4704, 0.0
  %v7311 = vmax.f32 %v4707, 0.0
  %v7312 = vmax.f32 %v4712, 0.0
  %v7313 = vmax.f32 %v4715, 0.0
  %v7314 = vmax.f32 %v4720, 0.0
  %v7315 = vmax.f32 %v4723, 0.0
  %v7316 = vmax.f32 %v4728, 0.0
  %v7317 = vmax.f32 %v4731, 0.0
  %v7318 = vmax.f32 %v4736, 0.0
  %v7319 = vmax.f32 %v4739, 0.0
  %v7320 = vmax.f32 %v4744, 0.0
  %v7321 = vmax.f32 %v4747, 0.0
  %v7322 = vmax.f32 %v4752, 0.0
  %v7323 = vmax.f32 %v4755, 0.0
  %v7324 = vmax.f32 %v4760, 0.0
  %v7325 = vmax.f32 %v4763, 0.0
  %v7326 = vmax.f32 %v4768, 0.0
  %v7327 = vmax.f32 %v4771, 0.0
  %v7328 = vmax.f32 %v4776, 0.0
  %v7329 = vmax.f32 %v4779, 0.0
  %v7330 = vmax.f32 %v4784, 0.0
  %v7331 = vmax.f32 %v4787, 0.0
  %v7332 = vmax.f32 %v4792, 0.0
  %v7333 = vmax.f32 %v4795, 0.0
  %v7334 = vmax.f32 %v4800, 0.0
  %v7335 = vmax.f32 %v4803, 0.0
  %v7336 = vmax.f32 %v4808, 0.0
  %v7337 = vmax.f32 %v4811, 0.0
  %v7338 = vmax.f32 %v4816, 0.0
  %v7339 = vmax.f32 %v4819, 0.0
  %v7340 = vmax.f32 %v4824, 0.0
  %v7341 = vmax.f32 %v4827, 0.0
  %v7342 = vmax.f32 %v4832, 0.0
  %v7343 = vmax.f32 %v4835, 0.0
  %v7344 = vmax.f32 %v4840, 0.0
  %v7345 = vmax.f32 %v4843, 0.0
  %v7346 = vmax.f32 %v4848, 0.0
  %v7347 = vmax.f32 %v4851, 0.0
  %v7348 = vmax.f32 %v4856, 0.0
  %v7349 = vmax.f32 %v4859, 0.0
  %v7350 = vmax.f32 %v4864, 0.0
  %v7351 = vmax.f32 %v4867, 0.0
  %v7352 = vmax.f32 %v4872, 0.0
  %v7353 = vmax.f32 %v4875, 0.0
  %v7354 = vmax.f32 %v4880, 0.0
  %v7355 = vmax.f32 %v4883, 0.0
  %v7356 = vmax.f32 %v4888, 0.0
  %v7357 = vmax.f32 %v4891, 0.0
  %v7358 = vmax.f32 %v4896, 0.0
  %v7359 = vmax.f32 %v4899, 0.0
  %v7360 = vmax.f32 %v4904, 0.0
  %v7361 = vmax.f32 %v4907, 0.0
  %v7362 = vmax.f32 %v4912, 0.0
  %v7363 = vmax.f32 %v4915, 0.0
  %v7364 = vmax.f32 %v4920, 0.0
  %v7365 = vmax.f32 %v4923, 0.0
  %v7366 = vmax.f32 %v4928, 0.0
  %v7367 = vmax.f32 %v4931, 0.0
  %v7368 = vmax.f32 %v4936, 0.0
  %v7369 = vmax.f32 %v4939, 0.0
  %v7370 = vmax.f32 %v4944, 0.0
  %v7371 = vmax.f32 %v4947, 0.0
  %v7372 = vmax.f32 %v4952, 0.0
  %v7373 = vmax.f32 %v4955, 0.0
  %v7374 = vmax.f32 %v4960, 0.0
  %v7375 = vmax.f32 %v4963, 0.0
  %v7376 = vmax.f32 %v4968, 0.0
  %v7377 = vmax.f32 %v4971, 0.0
  %v7378 = vmax.f32 %v4976, 0.0
  %v7379 = vmax.f32 %v4979, 0.0
  %v7380 = vmax.f32 %v4984, 0.0
  %v7381 = vmax.f32 %v4987, 0.0
  %v7382 = vmax.f32 %v4992, 0.0
  %v7383 = vmax.f32 %v4995, 0.0
  %v7384 = vmax.f32 %v5000, 0.0
  %v7385 = vmax.f32 %v5003, 0.0
  %v7386 = vmax.f32 %v5008, 0.0
  %v7387 = vmax.f32 %v5011, 0.0
  %v7388 = vmax.f32 %v5016, 0.0
  %v7389 = vmax.f32 %v5019, 0.0
  %v7390 = vmax.f32 %v5024, 0.0
  %v7391 = vmax.f32 %v5027, 0.0
  %v7392 = vmax.f32 %v5032, 0.0
  %v7393 = vmax.f32 %v5035, 0.0
  %v7394 = vmax.f32 %v5040, 0.0
  %v7395 = vmax.f32 %v5043, 0.0
  %v7396 = vmax.f32 %v5048, 0.0
  %v7397 = vmax.f32 %v5051, 0.0
  %v7398 = vmax.f32 %v5056, 0.0
  %v7399 = vmax.f32 %v5059, 0.0
  %v7400 = vmax.f32 %v5064, 0.0
  %v7401 = vmax.f32 %v5067, 0.0
  %v7402 = vmax.f32 %v5072, 0.0
  %v7403 = vmax.f32 %v5075, 0.0
  %v7404 = vmax.f32 %v5080, 0.0
  %v7405 = vmax.f32 %v5083, 0.0
  %v7406 = vmax.f32 %v5088, 0.0
  %v7407 = vmax.f32 %v5091, 0.0
  %v7408 = vmax.f32 %v5096, 0.0
  %v7409 = vmax.f32 %v5099, 0.0
  %v7410 = vmax.f32 %v5104, 0.0
  %v7411 = vmax.f32 %v5107, 0.0
  %v7412 = vmax.f32 %v5112, 0.0
  %v7413 = vmax.f32 %v5115, 0.0
  %v7414 = vmax.f32 %v5120, 0.0
  %v7415 = vmax.f32 %v5123, 0.0
  %v7416 = vmax.f32 %v5128, 0.0
  %v7417 = vmax.f32 %v5131, 0.0
  %v7418 = vmax.f32 %v5136, 0.0
  %v7419 = vmax.f32 %v5139, 0.0
  %v7420 = vmax.f32 %v5144, 0.0
  %v7421 = vmax.f32 %v5147, 0.0
  %v7422 = vmax.f32 %v5152, 0.0
  %v7423 = vmax.f32 %v5155, 0.0
  %v7424 = vmax.f32 %v5160, 0.0
  %v7425 = vmax.f32 %v5163, 0.0
  %v7426 = vmax.f32 %v5168, 0.0
  %v7427 = vmax.f32 %v5171, 0.0
  %v7428 = vmax.f32 %v5176, 0.0
  %v7429 = vmax.f32 %v5179, 0.0
  %v7430 = vmax.f32 %v5184, 0.0
  %v7431 = vmax.f32 %v5187, 0.0
  %v7432 = vmax.f32 %v5192, 0.0
  %v7433 = vmax.f32 %v5195, 0.0
  %v7434 = vmax.f32 %v5200, 0.0
  %v7435 = vmax.f32 %v5203, 0.0
  %v7436 = vmax.f32 %v5208, 0.0
  %v7437 = vmax.f32 %v5211, 0.0
  %v7438 = vmax.f32 %v5216, 0.0
  %v7439 = vmax.f32 %v5219, 0.0
  %v7440 = vmax.f32 %v5224, 0.0
  %v7441 = vmax.f32 %v5227, 0.0
  %v7442 = vmax.f32 %v5232, 0.0
  %v7443 = vmax.f32 %v5235, 0.0
  %v7444 = vmax.f32 %v5240, 0.0
  %v7445 = vmax.f32 %v5243, 0.0
  %v7446 = vmax.f32 %v5248, 0.0
  %v7447 = vmax.f32 %v5251, 0.0
  %v7448 = vmax.f32 %v5256, 0.0
  %v7449 = vmax.f32 %v5259, 0.0
  %v7450 = vmax.f32 %v5264, 0.0
  %v7451 = vmax.f32 %v5267, 0.0
  %v7452 = vmax.f32 %v5272, 0.0
  %v7453 = vmax.f32 %v5275, 0.0
  %v7454 = vmax.f32 %v5280, 0.0
  %v7455 = vmax.f32 %v5283, 0.0
  %v7456 = vmax.f32 %v5288, 0.0
  %v7457 = vmax.f32 %v5291, 0.0
  %v7458 = vmax.f32 %v5296, 0.0
  %v7459 = vmax.f32 %v5299, 0.0
  %v7460 = vmax.f32 %v5304, 0.0
  %v7461 = vmax.f32 %v5307, 0.0
  %v7462 = vmax.f32 %v5312, 0.0
  %v7463 = vmax.f32 %v5315, 0.0
  %v7464 = vmax.f32 %v5320, 0.0
  %v7465 = vmax.f32 %v5323, 0.0
  %v7466 = vmax.f32 %v5328, 0.0
  %v7467 = vmax.f32 %v5331, 0.0
  %v7468 = vmax.f32 %v5336, 0.0
  %v7469 = vmax.f32 %v5339, 0.0
  %v7470 = vmax.f32 %v5344, 0.0
  %v7471 = vmax.f32 %v5347, 0.0
  %v7472 = vmax.f32 %v5352, 0.0
  %v7473 = vmax.f32 %v5355, 0.0
  %v7474 = vmax.f32 %v5360, 0.0
  %v7475 = vmax.f32 %v5363, 0.0
  %v7476 = vmax.f32 %v5368, 0.0
  %v7477 = vmax.f32 %v5371, 0.0
  %v7478 = vmax.f32 %v5376, 0.0
  %v7479 = vmax.f32 %v5379, 0.0
  %v7480 = vmax.f32 %v5384, 0.0
  %v7481 = vmax.f32 %v5387, 0.0
  %v7482 = vmax.f32 %v5392, 0.0
  %v7483 = vmax.f32 %v5395, 0.0
  %v7484 = vmax.f32 %v5400, 0.0
  %v7485 = vmax.f32 %v5403, 0.0
  %v7486 = vmax.f32 %v5408, 0.0
  %v7487 = vmax.f32 %v5411, 0.0
  %v7488 = vmax.f32 %v5416, 0.0
  %v7489 = vmax.f32 %v5419, 0.0
  %v7490 = vmax.f32 %v5424, 0.0
  %v7491 = vmax.f32 %v5427, 0.0
  %v7492 = vmax.f32 %v5432, 0.0
  %v7493 = vmax.f32 %v5435, 0.0
  %v7494 = vmax.f32 %v5440, 0.0
  %v7495 = vmax.f32 %v5443, 0.0
  %v7496 = vmax.f32 %v5448, 0.0
  %v7497 = vmax.f32 %v5451, 0.0
  %v7498 = vmax.f32 %v5456, 0.0
  %v7499 = vmax.f32 %v5459, 0.0
  %v7500 = vmax.f32 %v5464, 0.0
  %v7501 = vmax.f32 %v5467, 0.0
  %v7502 = vmax.f32 %v5472, 0.0
  %v7503 = vmax.f32 %v5475, 0.0
  %v7504 = vmax.f32 %v5480, 0.0
  %v7505 = vmax.f32 %v5483, 0.0
  %v7506 = vmax.f32 %v5488, 0.0
  %v7507 = vmax.f32 %v5491, 0.0
  %v7508 = vmax.f32 %v5496, 0.0
  %v7509 = vmax.f32 %v5499, 0.0
  %v7510 = vmax.f32 %v5504, 0.0
  %v7511 = vmax.f32 %v5507, 0.0
  %v7512 = vmax.f32 %v5512, 0.0
  %v7513 = vmax.f32 %v5515, 0.0
  %v7514 = vmax.f32 %v5520, 0.0
  %v7515 = vmax.f32 %v5523, 0.0
  %v7516 = vmax.f32 %v5528, 0.0
  %v7517 = vmax.f32 %v5531, 0.0
  %v7518 = vmax.f32 %v5536, 0.0
  %v7519 = vmax.f32 %v5539, 0.0
  %v7520 = vmax.f32 %v5544, 0.0
  %v7521 = vmax.f32 %v5547, 0.0
  %v7522 = vmax.f32 %v5552, 0.0
  %v7523 = vmax.f32 %v5555, 0.0
  %v7524 = vmax.f32 %v5560, 0.0
  %v7525 = vmax.f32 %v5563, 0.0
  %v7526 = vmax.f32 %v5568, 0.0
  %v7527 = vmax.f32 %v5571, 0.0
  %v7528 = vmax.f32 %v5576, 0.0
  %v7529 = vmax.f32 %v5579, 0.0
  %v7530 = vmax.f32 %v5584, 0.0
  %v7531 = vmax.f32 %v5587, 0.0
  %v7532 = vmax.f32 %v5592, 0.0
  %v7533 = vmax.f32 %v5595, 0.0
  %v7534 = vmax.f32 %v5600, 0.0
  %v7535 = vmax.f32 %v5603, 0.0
  %v7536 = vmax.f32 %v5608, 0.0
  %v7537 = vmax.f32 %v5611, 0.0
  %v7538 = vmax.f32 %v5616, 0.0
  %v7539 = vmax.f32 %v5619, 0.0
  %v7540 = vmax.f32 %v5624, 0.0
  %v7541 = vmax.f32 %v5627, 0.0
  %v7542 = vmax.f32 %v5632, 0.0
  %v7543 = vmax.f32 %v5635, 0.0
  %v7544 = vmax.f32 %v5640, 0.0
  %v7545 = vmax.f32 %v5643, 0.0
  %v7546 = vmax.f32 %v5648, 0.0
  %v7547 = vmax.f32 %v5651, 0.0
  %v7548 = vmax.f32 %v5656, 0.0
  %v7549 = vmax.f32 %v5659, 0.0
  %v7550 = vmax.f32 %v5664, 0.0
  %v7551 = vmax.f32 %v5667, 0.0
  %v7552 = vmax.f32 %v5672, 0.0
  %v7553 = vmax.f32 %v5675, 0.0
  %v7554 = vmax.f32 %v5680, 0.0
  %v7555 = vmax.f32 %v5683, 0.0
  %v7556 = vmax.f32 %v5688, 0.0
  %v7557 = vmax.f32 %v5691, 0.0
  %v7558 = vmax.f32 %v5696, 0.0
  %v7559 = vmax.f32 %v5699, 0.0
  %v7560 = vmax.f32 %v5704, 0.0
  %v7561 = vmax.f32 %v5707, 0.0
  %v7562 = vmax.f32 %v5712, 0.0
  %v7563 = vmax.f32 %v5715, 0.0
  %v7564 = vmax.f32 %v5720, 0.0
  %v7565 = vmax.f32 %v5723, 0.0
  %v7566 = vmax.f32 %v5728, 0.0
  %v7567 = vmax.f32 %v5731, 0.0
  %v7568 = vmax.f32 %v5736, 0.0
  %v7569 = vmax.f32 %v5739, 0.0
  %v7570 = vmax.f32 %v5744, 0.0
  %v7571 = vmax.f32 %v5747, 0.0
  %v7572 = vmax.f32 %v5752, 0.0
  %v7573 = vmax.f32 %v5755, 0.0
  %v7574 = vmax.f32 %v5760, 0.0
  %v7575 = vmax.f32 %v5763, 0.0
  %v7576 = vmax.f32 %v5768, 0.0
  %v7577 = vmax.f32 %v5771, 0.0
  %v7578 = vmax.f32 %v5776, 0.0
  %v7579 = vmax.f32 %v5779, 0.0
  %v7580 = vmax.f32 %v5784, 0.0
  %v7581 = vmax.f32 %v5787, 0.0
  %v7582 = vmax.f32 %v5792, 0.0
  %v7583 = vmax.f32 %v5795, 0.0
  %v7584 = vmax.f32 %v5800, 0.0
  %v7585 = vmax.f32 %v5803, 0.0
  %v7586 = vmax.f32 %v5808, 0.0
  %v7587 = vmax.f32 %v5811, 0.0
  %v7588 = vmax.f32 %v5816, 0.0
  %v7589 = vmax.f32 %v5819, 0.0
  %v7590 = vmax.f32 %v5824, 0.0
  %v7591 = vmax.f32 %v5827, 0.0
  %v7592 = vmax.f32 %v5832, 0.0
  %v7593 = vmax.f32 %v5835, 0.0
  %v7594 = vmax.f32 %v5840, 0.0
  %v7595 = vmax.f32 %v5843, 0.0
  %v7596 = vmax.f32 %v5848, 0.0
  %v7597 = vmax.f32 %v5851, 0.0
  %v7598 = vmax.f32 %v5856, 0.0
  %v7599 = vmax.f32 %v5859, 0.0
  %v7600 = vmax.f32 %v5864, 0.0
  %v7601 = vmax.f32 %v5867, 0.0
  %v7602 = vmax.f32 %v5872, 0.0
  %v7603 = vmax.f32 %v5875, 0.0
  %v7604 = vmax.f32 %v5880, 0.0
  %v7605 = vmax.f32 %v5883, 0.0
  %v7606 = vmax.f32 %v5888, 0.0
  %v7607 = vmax.f32 %v5891, 0.0
  %v7608 = vmax.f32 %v5896, 0.0
  %v7609 = vmax.f32 %v5899, 0.0
  %v7610 = vmax.f32 %v5904, 0.0
  %v7611 = vmax.f32 %v5907, 0.0
  %v7612 = vmax.f32 %v5912, 0.0
  %v7613 = vmax.f32 %v5915, 0.0
  %v7614 = vmax.f32 %v5920, 0.0
  %v7615 = vmax.f32 %v5923, 0.0
  %v7616 = vmax.f32 %v5928, 0.0
  %v7617 = vmax.f32 %v5931, 0.0
  %v7618 = vmax.f32 %v5936, 0.0
  %v7619 = vmax.f32 %v5939, 0.0
  %v7620 = vmax.f32 %v5944, 0.0
  %v7621 = vmax.f32 %v5947, 0.0
  %v7622 = vmax.f32 %v5952, 0.0
  %v7623 = vmax.f32 %v5955, 0.0
  %v7624 = vmax.f32 %v5960, 0.0
  %v7625 = vmax.f32 %v5963, 0.0
  %v7626 = vmax.f32 %v5968, 0.0
  %v7627 = vmax.f32 %v5971, 0.0
  %v7628 = vmax.f32 %v5976, 0.0
  %v7629 = vmax.f32 %v5979, 0.0
  %v7630 = vmax.f32 %v5984, 0.0
  %v7631 = vmax.f32 %v5987, 0.0
  %v7632 = vmax.f32 %v5992, 0.0
  %v7633 = vmax.f32 %v5995, 0.0
  %v7634 = vmax.f32 %v6000, 0.0
  %v7635 = vmax.f32 %v6003, 0.0
  %v7636 = vmax.f32 %v6008, 0.0
  %v7637 = vmax.f32 %v6011, 0.0
  %v7638 = vmax.f32 %v6016, 0.0
  %v7639 = vmax.f32 %v6019, 0.0
  %v7640 = vmax.f32 %v6024, 0.0
  %v7641 = vmax.f32 %v6027, 0.0
  %v7642 = vmax.f32 %v6032, 0.0
  %v7643 = vmax.f32 %v6035, 0.0
  %v7644 = vmax.f32 %v6040, 0.0
  %v7645 = vmax.f32 %v6043, 0.0
  %v7646 = vmax.f32 %v6048, 0.0
  %v7647 = vmax.f32 %v6051, 0.0
  %v7648 = vmax.f32 %v6056, 0.0
  %v7649 = vmax.f32 %v6059, 0.0
  %v7650 = vmax.f32 %v6064, 0.0
  %v7651 = vmax.f32 %v6067, 0.0
  %v7652 = vmax.f32 %v6072, 0.0
  %v7653 = vmax.f32 %v6075, 0.0
  %v7654 = vmax.f32 %v6080, 0.0
  %v7655 = vmax.f32 %v6083, 0.0
  %v7656 = vmax.f32 %v6088, 0.0
  %v7657 = vmax.f32 %v6091, 0.0
  %v7658 = vmax.f32 %v6096, 0.0
  %v7659 = vmax.f32 %v6099, 0.0
  %v7660 = vmax.f32 %v6104, 0.0
  %v7661 = vmax.f32 %v6107, 0.0
  %v7662 = vmax.f32 %v6112, 0.0
  %v7663 = vmax.f32 %v6115, 0.0
  %v7664 = vmax.f32 %v6120, 0.0
  %v7665 = vmax.f32 %v6123, 0.0
  %v7666 = vmax.f32 %v6128, 0.0
  %v7667 = vmax.f32 %v6131, 0.0
  %v7668 = vmax.f32 %v6136, 0.0
  %v7669 = vmax.f32 %v6139, 0.0
  %v7670 = vmax.f32 %v6144, 0.0
  %v7671 = vmax.f32 %v6147, 0.0
  %v7672 = vmax.f32 %v6152, 0.0
  %v7673 = vmax.f32 %v6155, 0.0
  %v7674 = vmax.f32 %v6160, 0.0
  %v7675 = vmax.f32 %v6163, 0.0
  %v7676 = vmax.f32 %v6168, 0.0
  %v7677 = vmax.f32 %v6171, 0.0
  %v7678 = vmax.f32 %v6176, 0.0
  %v7679 = vmax.f32 %v6179, 0.0
  %v7680 = vmax.f32 %v6184, 0.0
  %v7681 = vmax.f32 %v6187, 0.0
  %v7682 = vmax.f32 %v6192, 0.0
  %v7683 = vmax.f32 %v6195, 0.0
  %v7684 = vmax.f32 %v6200, 0.0
  %v7685 = vmax.f32 %v6203, 0.0
  %v7686 = vmax.f32 %v6208, 0.0
  %v7687 = vmax.f32 %v6211, 0.0
  %v7688 = vmax.f32 %v6216, 0.0
  %v7689 = vmax.f32 %v6219, 0.0
  %v7690 = vmax.f32 %v6224, 0.0
  %v7691 = vmax.f32 %v6227, 0.0
  %v7692 = vmax.f32 %v6232, 0.0
  %v7693 = vmax.f32 %v6235, 0.0
  %v7694 = vmax.f32 %v6240, 0.0
  %v7695 = vmax.f32 %v6243, 0.0
  %v7696 = vmax.f32 %v6248, 0.0
  %v7697 = vmax.f32 %v6251, 0.0
  %v7698 = vmax.f32 %v6256, 0.0
  %v7699 = vmax.f32 %v6259, 0.0
  %v7700 = vmax.f32 %v6264, 0.0
  %v7701 = vmax.f32 %v6267, 0.0
  %v7702 = vmax.f32 %v6272, 0.0
  %v7703 = vmax.f32 %v6275, 0.0
  %v7704 = vmax.f32 %v6280, 0.0
  %v7705 = vmax.f32 %v6283, 0.0
  %v7706 = vmax.f32 %v6288, 0.0
  %v7707 = vmax.f32 %v6291, 0.0
  %v7708 = vmax.f32 %v6296, 0.0
  %v7709 = vmax.f32 %v6299, 0.0
  %v7710 = vmax.f32 %v6304, 0.0
  %v7711 = vmax.f32 %v6307, 0.0
  %v7712 = vmax.f32 %v6312, 0.0
  %v7713 = vmax.f32 %v6315, 0.0
  %v7714 = vmax.f32 %v6320, 0.0
  %v7715 = vmax.f32 %v6323, 0.0
  %v7716 = vmax.f32 %v6328, 0.0
  %v7717 = vmax.f32 %v6331, 0.0
  %v7718 = vmax.f32 %v6336, 0.0
  %v7719 = vmax.f32 %v6339, 0.0
  %v7720 = vmax.f32 %v6344, 0.0
  %v7721 = vmax.f32 %v6347, 0.0
  %v7722 = vmax.f32 %v6352, 0.0
  %v7723 = vmax.f32 %v6355, 0.0
  %v7724 = vmax.f32 %v6360, 0.0
  %v7725 = vmax.f32 %v6363, 0.0
  %v7726 = vmax.f32 %v6368, 0.0
  %v7727 = vmax.f32 %v6371, 0.0
  %v7728 = vmax.f32 %v6376, 0.0
  %v7729 = vmax.f32 %v6379, 0.0
  %v7730 = vmax.f32 %v6384, 0.0
  %v7731 = vmax.f32 %v6387, 0.0
  %v7732 = vmax.f32 %v6392, 0.0
  %v7733 = vmax.f32 %v6395, 0.0
  %v7734 = vmax.f32 %v6400, 0.0
  %v7735 = vmax.f32 %v6403, 0.0
  %v7736 = vmax.f32 %v6408, 0.0
  %v7737 = vmax.f32 %v6411, 0.0
  %v7738 = vmax.f32 %v6416, 0.0
  %v7739 = vmax.f32 %v6419, 0.0
  %v7740 = vmax.f32 %v6424, 0.0
  %v7741 = vmax.f32 %v6427, 0.0
  %v7742 = vmax.f32 %v6432, 0.0
  %v7743 = vmax.f32 %v6435, 0.0
  %v7744 = vmax.f32 %v6440, 0.0
  %v7745 = vmax.f32 %v6443, 0.0
  %v7746 = vmax.f32 %v6448, 0.0
  %v7747 = vmax.f32 %v6451, 0.0
  %v7748 = vmax.f32 %v6456, 0.0
  %v7749 = vmax.f32 %v6459, 0.0
  %v7750 = vmax.f32 %v6464, 0.0
  %v7751 = vmax.f32 %v6467, 0.0
  %v7752 = vmax.f32 %v6472, 0.0
  %v7753 = vmax.f32 %v6475, 0.0
  %v7754 = vmax.f32 %v6480, 0.0
  %v7755 = vmax.f32 %v6483, 0.0
  %v7756 = vmax.f32 %v6488, 0.0
  %v7757 = vmax.f32 %v6491, 0.0
  %v7758 = vmax.f32 %v6496, 0.0
  %v7759 = vmax.f32 %v6499, 0.0
  %v7760 = vmax.f32 %v6504, 0.0
  %v7761 = vmax.f32 %v6507, 0.0
  %v7762 = vmax.f32 %v6512, 0.0
  %v7763 = vmax.f32 %v6515, 0.0
  %v7764 = vmax.f32 %v6520, 0.0
  %v7765 = vmax.f32 %v6523, 0.0
  %v7766 = vmax.f32 %v6528, 0.0
  %v7767 = vmax.f32 %v6531, 0.0
  %v7768 = vmax.f32 %v6536, 0.0
  %v7769 = vmax.f32 %v6539, 0.0
  %v7770 = vmax.f32 %v6544, 0.0
  %v7771 = vmax.f32 %v6547, 0.0
  %v7772 = vmax.f32 %v6552, 0.0
  %v7773 = vmax.f32 %v6555, 0.0
  %v7774 = vmax.f32 %v6560, 0.0
  %v7775 = vmax.f32 %v6563, 0.0
  %v7776 = vmax.f32 %v6568, 0.0
  %v7777 = vmax.f32 %v6571, 0.0
  %v7778 = vmax.f32 %v6576, 0.0
  %v7779 = vmax.f32 %v6579, 0.0
  %v7780 = vmax.f32 %v6584, 0.0
  %v7781 = vmax.f32 %v6587, 0.0
  %v7782 = vmax.f32 %v6592, 0.0
  %v7783 = vmax.f32 %v6595, 0.0
  %v7784 = vmax.f32 %v6600, 0.0
  %v7785 = vmax.f32 %v6603, 0.0
  %v7786 = vmax.f32 %v6608, 0.0
  %v7787 = vmax.f32 %v6611, 0.0
  %v7788 = vmax.f32 %v6616, 0.0
  %v7789 = vmax.f32 %v6619, 0.0
  %v7790 = vmax.f32 %v6624, 0.0
  %v7791 = vmax.f32 %v6627, 0.0
  %v7792 = vmax.f32 %v6632, 0.0
  %v7793 = vmax.f32 %v6635, 0.0
  %v7794 = vmax.f32 %v6640, 0.0
  %v7795 = vmax.f32 %v6643, 0.0
  %v7796 = vmax.f32 %v6648, 0.0
  %v7797 = vmax.f32 %v6651, 0.0
  %v7798 = vmax.f32 %v6656, 0.0
  %v7799 = vmax.f32 %v6659, 0.0
  %v7800 = vmax.f32 %v6664, 0.0
  %v7801 = vmax.f32 %v6667, 0.0
  %v7802 = vmax.f32 %v6672, 0.0
  %v7803 = vmax.f32 %v6675, 0.0
  %v7804 = vmax.f32 %v6680, 0.0
  %v7805 = vmax.f32 %v6683, 0.0
  %v7806 = vmax.f32 %v6688, 0.0
  %v7807 = vmax.f32 %v6691, 0.0
  %v7808 = vmax.f32 %v6696, 0.0
  %v7809 = vmax.f32 %v6699, 0.0
  %v7810 = vmax.f32 %v6704, 0.0
  %v7811 = vmax.f32 %v6707, 0.0
  %v7812 = vmax.f32 %v6712, 0.0
  %v7813 = vmax.f32 %v6715, 0.0
  %v7814 = vmax.f32 %v6720, 0.0
  %v7815 = vmax.f32 %v6723, 0.0
  %v7816 = vmax.f32 %v6728, 0.0
  %v7817 = vmax.f32 %v6731, 0.0
  %v7818 = vmax.f32 %v6736, 0.0
  %v7819 = vmax.f32 %v6739, 0.0
  %v7820 = vmax.f32 %v6744, 0.0
  %v7821 = vmax.f32 %v6747, 0.0
  %v7822 = vmax.f32 %v6752, 0.0
  %v7823 = vmax.f32 %v6755, 0.0
  %v7824 = vmax.f32 %v6760, 0.0
  %v7825 = vmax.f32 %v6763, 0.0
  %v7826 = vmax.f32 %v6768, 0.0
  %v7827 = vmax.f32 %v6771, 0.0
  %v7828 = vmax.f32 %v6776, 0.0
  %v7829 = vmax.f32 %v6779, 0.0
  %v7830 = vmax.f32 %v6784, 0.0
  %v7831 = vmax.f32 %v6787, 0.0
  %v7832 = vmax.f32 %v6792, 0.0
  %v7833 = vmax.f32 %v6795, 0.0
  %v7834 = vmax.f32 %v6800, 0.0
  %v7835 = vmax.f32 %v6803, 0.0
  %v7836 = vmax.f32 %v6808, 0.0
  %v7837 = vmax.f32 %v6811, 0.0
  %v7838 = vmax.f32 %v6816, 0.0
  %v7839 = vmax.f32 %v6819, 0.0
  %v7840 = vmax.f32 %v6824, 0.0
  %v7841 = vmax.f32 %v6827, 0.0
  %v7842 = vmax.f32 %v6832, 0.0
  %v7843 = vmax.f32 %v6835, 0.0
  %v7844 = vmax.f32 %v6840, 0.0
  %v7845 = vmax.f32 %v6843, 0.0
  %v7846 = vmax.f32 %v6848, 0.0
  %v7847 = vmax.f32 %v6851, 0.0
  %v7848 = vmax.f32 %v6856, 0.0
  %v7849 = vmax.f32 %v6859, 0.0
  %v7850 = vmax.f32 %v6864, 0.0
  %v7851 = vmax.f32 %v6867, 0.0
  %v7852 = vmax.f32 %v6872, 0.0
  %v7853 = vmax.f32 %v6875, 0.0
  %v7854 = vmax.f32 %v6880, 0.0
  %v7855 = vmax.f32 %v6883, 0.0
  %v7856 = vmax.f32 %v6888, 0.0
  %v7857 = vmax.f32 %v6891, 0.0
  %v7858 = vmax.f32 %v6896, 0.0
  %v7859 = vmax.f32 %v6899, 0.0
  %v7860 = vmax.f32 %v6904, 0.0
  %v7861 = vmax.f32 %v6907, 0.0
  %v7862 = vmax.f32 %v6912, 0.0
  %v7863 = vmax.f32 %v6915, 0.0
  %v7864 = vmax.f32 %v6920, 0.0
  %v7865 = vmax.f32 %v6923, 0.0
  %v7866 = vmax.f32 %v6928, 0.0
  %v7867 = vmax.f32 %v6931, 0.0
  %v7868 = vmax.f32 %v6936, 0.0
  %v7869 = vmax.f32 %v6939, 0.0
  %v7870 = vmax.f32 %v6944, 0.0
  %v7871 = vmax.f32 %v6947, 0.0
  %v7872 = vmax.f32 %v6952, 0.0
  %v7873 = vmax.f32 %v6955, 0.0
  %v7874 = vmax.f32 %v6960, 0.0
  %v7875 = vmax.f32 %v6963, 0.0
  %v7876 = vmax.f32 %v6968, 0.0
  %v7877 = vmax.f32 %v6971, 0.0
  %v7878 = vmax.f32 %v6976, 0.0
  %v7879 = vmax.f32 %v6979, 0.0
  %v7880 = vmax.f32 %v6984, 0.0
  %v7881 = vmax.f32 %v6987, 0.0
  %v7882 = vmax.f32 %v6992, 0.0
  %v7883 = vmax.f32 %v6995, 0.0
  %v7884 = vmax.f32 %v7000, 0.0
  %v7885 = vmax.f32 %v7003, 0.0
  %v7886 = vmax.f32 %v7008, 0.0
  %v7887 = vmax.f32 %v7011, 0.0
  %v7888 = vmax.f32 %v7016, 0.0
  %v7889 = vmax.f32 %v7019, 0.0
  %v7890 = vmax.f32 %v7024, 0.0
  %v7891 = vmax.f32 %v7027, 0.0
  %v7892 = vmax.f32 %v7032, 0.0
  %v7893 = vmax.f32 %v7035, 0.0
  %v7894 = vmax.f32 %v7040, 0.0
  %v7895 = vmax.f32 %v7043, 0.0
  %v7896 = vmax.f32 %v7048, 0.0
  %v7897 = vmax.f32 %v7051, 0.0
  %v7898 = vmax.f32 %v7056, 0.0
  %v7899 = vmax.f32 %v7059, 0.0
  %v7900 = vmax.f32 %v7064, 0.0
  %v7901 = vmax.f32 %v7067, 0.0
  %v7902 = vmax.f32 %v7072, 0.0
  %v7903 = vmax.f32 %v7075, 0.0
  %v7904 = vmax.f32 %v7080, 0.0
  %v7905 = vmax.f32 %v7083, 0.0
  %v7906 = vmax.f32 %v7088, 0.0
  %v7907 = vmax.f32 %v7091, 0.0
  %v7908 = vmax.f32 %v7096, 0.0
  %v7909 = vmax.f32 %v7099, 0.0
  %v7910 = vmax.f32 %v7104, 0.0
  %v7911 = vmax.f32 %v7107, 0.0
  %v7912 = vmax.f32 %v7112, 0.0
  %v7913 = vmax.f32 %v7115, 0.0
  %v7914 = vmax.f32 %v7120, 0.0
  %v7915 = vmax.f32 %v7123, 0.0
  %v7916 = vmax.f32 %v7128, 0.0
  %v7917 = vmax.f32 %v7131, 0.0
  %v7918 = vadd.f32 %v7134, %v7330
  %v7919 = vadd.f32 %v7135, %v7331
  %v7920 = vadd.f32 %v7136, %v7332
  %v7921 = vadd.f32 %v7137, %v7333
  %v7922 = vadd.f32 %v7138, %v7334
  %v7923 = vadd.f32 %v7139, %v7335
  %v7924 = vadd.f32 %v7140, %v7336
  %v7925 = vadd.f32 %v7141, %v7337
  %v7926 = vadd.f32 %v7142, %v7338
  %v7927 = vadd.f32 %v7143, %v7339
  %v7928 = vadd.f32 %v7144, %v7340
  %v7929 = vadd.f32 %v7145, %v7341
  %v7930 = vadd.f32 %v7146, %v7342
  %v7931 = vadd.f32 %v7147, %v7343
  %v7932 = vadd.f32 %v7148, %v7344
  %v7933 = vadd.f32 %v7149, %v7345
  %v7934 = vadd.f32 %v7150, %v7346
  %v7935 = vadd.f32 %v7151, %v7347
  %v7936 = vadd.f32 %v7152, %v7348
  %v7937 = vadd.f32 %v7153, %v7349
  %v7938 = vadd.f32 %v7154, %v7350
  %v7939 = vadd.f32 %v7155, %v7351
  %v7940 = vadd.f32 %v7156, %v7352
  %v7941 = vadd.f32 %v7157, %v7353
  %v7942 = vadd.f32 %v7158, %v7354
  %v7943 = vadd.f32 %v7159, %v7355
  %v7944 = vadd.f32 %v7160, %v7356
  %v7945 = vadd.f32 %v7161, %v7357
  %v7946 = vadd.f32 %v7162, %v7358
  %v7947 = vadd.f32 %v7163, %v7359
  %v7948 = vadd.f32 %v7164, %v7360
  %v7949 = vadd.f32 %v7165, %v7361
  %v7950 = vadd.f32 %v7166, %v7362
  %v7951 = vadd.f32 %v7167, %v7363
  %v7952 = vadd.f32 %v7168, %v7364
  %v7953 = vadd.f32 %v7169, %v7365
  %v7954 = vadd.f32 %v7170, %v7366
  %v7955 = vadd.f32 %v7171, %v7367
  %v7956 = vadd.f32 %v7172, %v7368
  %v7957 = vadd.f32 %v7173, %v7369
  %v7958 = vadd.f32 %v7174, %v7370
  %v7959 = vadd.f32 %v7175, %v7371
  %v7960 = vadd.f32 %v7176, %v7372
  %v7961 = vadd.f32 %v7177, %v7373
  %v7962 = vadd.f32 %v7178, %v7374
  %v7963 = vadd.f32 %v7179, %v7375
  %v7964 = vadd.f32 %v7180, %v7376
  %v7965 = vadd.f32 %v7181, %v7377
  %v7966 = vadd.f32 %v7182, %v7378
  %v7967 = vadd.f32 %v7183, %v7379
  %v7968 = vadd.f32 %v7184, %v7380
  %v7969 = vadd.f32 %v7185, %v7381
  %v7970 = vadd.f32 %v7186, %v7382
  %v7971 = vadd.f32 %v7187, %v7383
  %v7972 = vadd.f32 %v7188, %v7384
  %v7973 = vadd.f32 %v7189, %v7385
  %v7974 = vadd.f32 %v7190, %v7386
  %v7975 = vadd.f32 %v7191, %v7387
  %v7976 = vadd.f32 %v7192, %v7388
  %v7977 = vadd.f32 %v7193, %v7389
  %v7978 = vadd.f32 %v7194, %v7390
  %v7979 = vadd.f32 %v7195, %v7391
  %v7980 = vadd.f32 %v7196, %v7392
  %v7981 = vadd.f32 %v7197, %v7393
  %v7982 = vadd.f32 %v7198, %v7394
  %v7983 = vadd.f32 %v7199, %v7395
  %v7984 = vadd.f32 %v7200, %v7396
  %v7985 = vadd.f32 %v7201, %v7397
  %v7986 = vadd.f32 %v7202, %v7398
  %v7987 = vadd.f32 %v7203, %v7399
  %v7988 = vadd.f32 %v7204, %v7400
  %v7989 = vadd.f32 %v7205, %v7401
  %v7990 = vadd.f32 %v7206, %v7402
  %v7991 = vadd.f32 %v7207, %v7403
  %v7992 = vadd.f32 %v7208, %v7404
  %v7993 = vadd.f32 %v7209, %v7405
  %v7994 = vadd.f32 %v7210, %v7406
  %v7995 = vadd.f32 %v7211, %v7407
  %v7996 = vadd.f32 %v7212, %v7408
  %v7997 = vadd.f32 %v7213, %v7409
  %v7998 = vadd.f32 %v7214, %v7410
  %v7999 = vadd.f32 %v7215, %v7411
  %v8000 = vadd.f32 %v7216, %v7412
  %v8001 = vadd.f32 %v7217, %v7413
  %v8002 = vadd.f32 %v7218, %v7414
  %v8003 = vadd.f32 %v7219, %v7415
  %v8004 = vadd.f32 %v7220, %v7416
  %v8005 = vadd.f32 %v7221, %v7417
  %v8006 = vadd.f32 %v7222, %v7418
  %v8007 = vadd.f32 %v7223, %v7419
  %v8008 = vadd.f32 %v7224, %v7420
  %v8009 = vadd.f32 %v7225, %v7421
  %v8010 = vadd.f32 %v7226, %v7422
  %v8011 = vadd.f32 %v7227, %v7423
  %v8012 = vadd.f32 %v7228, %v7424
  %v8013 = vadd.f32 %v7229, %v7425
  %v8014 = vadd.f32 %v7230, %v7426
  %v8015 = vadd.f32 %v7231, %v7427
  %v8016 = vadd.f32 %v7232, %v7428
  %v8017 = vadd.f32 %v7233, %v7429
  %v8018 = vadd.f32 %v7234, %v7430
  %v8019 = vadd.f32 %v7235, %v7431
  %v8020 = vadd.f32 %v7236, %v7432
  %v8021 = vadd.f32 %v7237, %v7433
  %v8022 = vadd.f32 %v7238, %v7434
  %v8023 = vadd.f32 %v7239, %v7435
  %v8024 = vadd.f32 %v7240, %v7436
  %v8025 = vadd.f32 %v7241, %v7437
  %v8026 = vadd.f32 %v7242, %v7438
  %v8027 = vadd.f32 %v7243, %v7439
  %v8028 = vadd.f32 %v7244, %v7440
  %v8029 = vadd.f32 %v7245, %v7441
  %v8030 = vadd.f32 %v7246, %v7442
  %v8031 = vadd.f32 %v7247, %v7443
  %v8032 = vadd.f32 %v7248, %v7444
  %v8033 = vadd.f32 %v7249, %v7445
  %v8034 = vadd.f32 %v7250, %v7446
  %v8035 = vadd.f32 %v7251, %v7447
  %v8036 = vadd.f32 %v7252, %v7448
  %v8037 = vadd.f32 %v7253, %v7449
  %v8038 = vadd.f32 %v7254, %v7450
  %v8039 = vadd.f32 %v7255, %v7451
  %v8040 = vadd.f32 %v7256, %v7452
  %v8041 = vadd.f32 %v7257, %v7453
  %v8042 = vadd.f32 %v7258, %v7454
  %v8043 = vadd.f32 %v7259, %v7455
  %v8044 = vadd.f32 %v7260, %v7456
  %v8045 = vadd.f32 %v7261, %v7457
  %v8046 = vadd.f32 %v7262, %v7458
  %v8047 = vadd.f32 %v7263, %v7459
  %v8048 = vadd.f32 %v7264, %v7460
  %v8049 = vadd.f32 %v7265, %v7461
  %v8050 = vadd.f32 %v7266, %v7462
  %v8051 = vadd.f32 %v7267, %v7463
  %v8052 = vadd.f32 %v7268, %v7464
  %v8053 = vadd.f32 %v7269, %v7465
  %v8054 = vadd.f32 %v7270, %v7466
  %v8055 = vadd.f32 %v7271, %v7467
  %v8056 = vadd.f32 %v7272, %v7468
  %v8057 = vadd.f32 %v7273, %v7469
  %v8058 = vadd.f32 %v7274, %v7470
  %v8059 = vadd.f32 %v7275, %v7471
  %v8060 = vadd.f32 %v7276, %v7472
  %v8061 = vadd.f32 %v7277, %v7473
  %v8062 = vadd.f32 %v7278, %v7474
  %v8063 = vadd.f32 %v7279, %v7475
  %v8064 = vadd.f32 %v7280, %v7476
  %v8065 = vadd.f32 %v7281, %v7477
  %v8066 = vadd.f32 %v7282, %v7478
  %v8067 = vadd.f32 %v7283, %v7479
  %v8068 = vadd.f32 %v7284, %v7480
  %v8069 = vadd.f32 %v7285, %v7481
  %v8070 = vadd.f32 %v7286, %v7482
  %v8071 = vadd.f32 %v7287, %v7483
  %v8072 = vadd.f32 %v7288, %v7484
  %v8073 = vadd.f32 %v7289, %v7485
  %v8074 = vadd.f32 %v7290, %v7486
  %v8075 = vadd.f32 %v7291, %v7487
  %v8076 = vadd.f32 %v7292, %v7488
  %v8077 = vadd.f32 %v7293, %v7489
  %v8078 = vadd.f32 %v7294, %v7490
  %v8079 = vadd.f32 %v7295, %v7491
  %v8080 = vadd.f32 %v7296, %v7492
  %v8081 = vadd.f32 %v7297, %v7493
  %v8082 = vadd.f32 %v7298, %v7494
  %v8083 = vadd.f32 %v7299, %v7495
  %v8084 = vadd.f32 %v7300, %v7496
  %v8085 = vadd.f32 %v7301, %v7497
  %v8086 = vadd.f32 %v7302, %v7498
  %v8087 = vadd.f32 %v7303, %v7499
  %v8088 = vadd.f32 %v7304, %v7500
  %v8089 = vadd.f32 %v7305, %v7501
  %v8090 = vadd.f32 %v7306, %v7502
  %v8091 = vadd.f32 %v7307, %v7503
  %v8092 = vadd.f32 %v7308, %v7504
  %v8093 = vadd.f32 %v7309, %v7505
  %v8094 = vadd.f32 %v7310, %v7506
  %v8095 = vadd.f32 %v7311, %v7507
  %v8096 = vadd.f32 %v7312, %v7508
  %v8097 = vadd.f32 %v7313, %v7509
  %v8098 = vadd.f32 %v7314, %v7510
  %v8099 = vadd.f32 %v7315, %v7511
  %v8100 = vadd.f32 %v7316, %v7512
  %v8101 = vadd.f32 %v7317, %v7513
  %v8102 = vadd.f32 %v7318, %v7514
  %v8103 = vadd.f32 %v7319, %v7515
  %v8104 = vadd.f32 %v7320, %v7516
  %v8105 = vadd.f32 %v7321, %v7517
  %v8106 = vadd.f32 %v7322, %v7518
  %v8107 = vadd.f32 %v7323, %v7519
  %v8108 = vadd.f32 %v7324, %v7520
  %v8109 = vadd.f32 %v7325, %v7521
  %v8110 = vadd.f32 %v7326, %v7522
  %v8111 = vadd.f32 %v7327, %v7523
  %v8112 = vadd.f32 %v7328, %v7524
  %v8113 = vadd.f32 %v7329, %v7525
  %v8114 = vadd.f32 %v7918, %v7526
  %v8115 = vadd.f32 %v7919, %v7527
  %v8116 = vadd.f32 %v7920, %v7528
  %v8117 = vadd.f32 %v7921, %v7529
  %v8118 = vadd.f32 %v7922, %v7530
  %v8119 = vadd.f32 %v7923, %v7531
  %v8120 = vadd.f32 %v7924, %v7532
  %v8121 = vadd.f32 %v7925, %v7533
  %v8122 = vadd.f32 %v7926, %v7534
  %v8123 = vadd.f32 %v7927, %v7535
  %v8124 = vadd.f32 %v7928, %v7536
  %v8125 = vadd.f32 %v7929, %v7537
  %v8126 = vadd.f32 %v7930, %v7538
  %v8127 = vadd.f32 %v7931, %v7539
  %v8128 = vadd.f32 %v7932, %v7540
  %v8129 = vadd.f32 %v7933, %v7541
  %v8130 = vadd.f32 %v7934, %v7542
  %v8131 = vadd.f32 %v7935, %v7543
  %v8132 = vadd.f32 %v7936, %v7544
  %v8133 = vadd.f32 %v7937, %v7545
  %v8134 = vadd.f32 %v7938, %v7546
  %v8135 = vadd.f32 %v7939, %v7547
  %v8136 = vadd.f32 %v7940, %v7548
  %v8137 = vadd.f32 %v7941, %v7549
  %v8138 = vadd.f32 %v7942, %v7550
  %v8139 = vadd.f32 %v7943, %v7551
  %v8140 = vadd.f32 %v7944, %v7552
  %v8141 = vadd.f32 %v7945, %v7553
  %v8142 = vadd.f32 %v7946, %v7554
  %v8143 = vadd.f32 %v7947, %v7555
  %v8144 = vadd.f32 %v7948, %v7556
  %v8145 = vadd.f32 %v7949, %v7557
  %v8146 = vadd.f32 %v7950, %v7558
  %v8147 = vadd.f32 %v7951, %v7559
  %v8148 = vadd.f32 %v7952, %v7560
  %v8149 = vadd.f32 %v7953, %v7561
  %v8150 = vadd.f32 %v7954, %v7562
  %v8151 = vadd.f32 %v7955, %v7563
  %v8152 = vadd.f32 %v7956, %v7564
  %v8153 = vadd.f32 %v7957, %v7565
  %v8154 = vadd.f32 %v7958, %v7566
  %v8155 = vadd.f32 %v7959, %v7567
  %v8156 = vadd.f32 %v7960, %v7568
  %v8157 = vadd.f32 %v7961, %v7569
  %v8158 = vadd.f32 %v7962, %v7570
  %v8159 = vadd.f32 %v7963, %v7571
  %v8160 = vadd.f32 %v7964, %v7572
  %v8161 = vadd.f32 %v7965, %v7573
  %v8162 = vadd.f32 %v7966, %v7574
  %v8163 = vadd.f32 %v7967, %v7575
  %v8164 = vadd.f32 %v7968, %v7576
  %v8165 = vadd.f32 %v7969, %v7577
  %v8166 = vadd.f32 %v7970, %v7578
  %v8167 = vadd.f32 %v7971, %v7579
  %v8168 = vadd.f32 %v7972, %v7580
  %v8169 = vadd.f32 %v7973, %v7581
  %v8170 = vadd.f32 %v7974, %v7582
  %v8171 = vadd.f32 %v7975, %v7583
  %v8172 = vadd.f32 %v7976, %v7584
  %v8173 = vadd.f32 %v7977, %v7585
  %v8174 = vadd.f32 %v7978, %v7586
  %v8175 = vadd.f32 %v7979, %v7587
  %v8176 = vadd.f32 %v7980, %v7588
  %v8177 = vadd.f32 %v7981, %v7589
  %v8178 = vadd.f32 %v7982, %v7590
  %v8179 = vadd.f32 %v7983, %v7591
  %v8180 = vadd.f32 %v7984, %v7592
  %v8181 = vadd.f32 %v7985, %v7593
  %v8182 = vadd.f32 %v7986, %v7594
  %v8183 = vadd.f32 %v7987, %v7595
  %v8184 = vadd.f32 %v7988, %v7596
  %v8185 = vadd.f32 %v7989, %v7597
  %v8186 = vadd.f32 %v7990, %v7598
  %v8187 = vadd.f32 %v7991, %v7599
  %v8188 = vadd.f32 %v7992, %v7600
  %v8189 = vadd.f32 %v7993, %v7601
  %v8190 = vadd.f32 %v7994, %v7602
  %v8191 = vadd.f32 %v7995, %v7603
  %v8192 = vadd.f32 %v7996, %v7604
  %v8193 = vadd.f32 %v7997, %v7605
  %v8194 = vadd.f32 %v7998, %v7606
  %v8195 = vadd.f32 %v7999, %v7607
  %v8196 = vadd.f32 %v8000, %v7608
  %v8197 = vadd.f32 %v8001, %v7609
  %v8198 = vadd.f32 %v8002, %v7610
  %v8199 = vadd.f32 %v8003, %v7611
  %v8200 = vadd.f32 %v8004, %v7612
  %v8201 = vadd.f32 %v8005, %v7613
  %v8202 = vadd.f32 %v8006, %v7614
  %v8203 = vadd.f32 %v8007, %v7615
  %v8204 = vadd.f32 %v8008, %v7616
  %v8205 = vadd.f32 %v8009, %v7617
  %v8206 = vadd.f32 %v8010, %v7618
  %v8207 = vadd.f32 %v8011, %v7619
  %v8208 = vadd.f32 %v8012, %v7620
  %v8209 = vadd.f32 %v8013, %v7621
  %v8210 = vadd.f32 %v8014, %v7622
  %v8211 = vadd.f32 %v8015, %v7623
  %v8212 = vadd.f32 %v8016, %v7624
  %v8213 = vadd.f32 %v8017, %v7625
  %v8214 = vadd.f32 %v8018, %v7626
  %v8215 = vadd.f32 %v8019, %v7627
  %v8216 = vadd.f32 %v8020, %v7628
  %v8217 = vadd.f32 %v8021, %v7629
  %v8218 = vadd.f32 %v8022, %v7630
  %v8219 = vadd.f32 %v8023, %v7631
  %v8220 = vadd.f32 %v8024, %v7632
  %v8221 = vadd.f32 %v8025, %v7633
  %v8222 = vadd.f32 %v8026, %v7634
  %v8223 = vadd.f32 %v8027, %v7635
  %v8224 = vadd.f32 %v8028, %v7636
  %v8225 = vadd.f32 %v8029, %v7637
  %v8226 = vadd.f32 %v8030, %v7638
  %v8227 = vadd.f32 %v8031, %v7639
  %v8228 = vadd.f32 %v8032, %v7640
  %v8229 = vadd.f32 %v8033, %v7641
  %v8230 = vadd.f32 %v8034, %v7642
  %v8231 = vadd.f32 %v8035, %v7643
  %v8232 = vadd.f32 %v8036, %v7644
  %v8233 = vadd.f32 %v8037, %v7645
  %v8234 = vadd.f32 %v8038, %v7646
  %v8235 = vadd.f32 %v8039, %v7647
  %v8236 = vadd.f32 %v8040, %v7648
  %v8237 = vadd.f32 %v8041, %v7649
  %v8238 = vadd.f32 %v8042, %v7650
  %v8239 = vadd.f32 %v8043, %v7651
  %v8240 = vadd.f32 %v8044, %v7652
  %v8241 = vadd.f32 %v8045, %v7653
  %v8242 = vadd.f32 %v8046, %v7654
  %v8243 = vadd.f32 %v8047, %v7655
  %v8244 = vadd.f32 %v8048, %v7656
  %v8245 = vadd.f32 %v8049, %v7657
  %v8246 = vadd.f32 %v8050, %v7658
  %v8247 = vadd.f32 %v8051, %v7659
  %v8248 = vadd.f32 %v8052, %v7660
  %v8249 = vadd.f32 %v8053, %v7661
  %v8250 = vadd.f32 %v8054, %v7662
  %v8251 = vadd.f32 %v8055, %v7663
  %v8252 = vadd.f32 %v8056, %v7664
  %v8253 = vadd.f32 %v8057, %v7665
  %v8254 = vadd.f32 %v8058, %v7666
  %v8255 = vadd.f32 %v8059, %v7667
  %v8256 = vadd.f32 %v8060, %v7668
  %v8257 = vadd.f32 %v8061, %v7669
  %v8258 = vadd.f32 %v8062, %v7670
  %v8259 = vadd.f32 %v8063, %v7671
  %v8260 = vadd.f32 %v8064, %v7672
  %v8261 = vadd.f32 %v8065, %v7673
  %v8262 = vadd.f32 %v8066, %v7674
  %v8263 = vadd.f32 %v8067, %v7675
  %v8264 = vadd.f32 %v8068, %v7676
  %v8265 = vadd.f32 %v8069, %v7677
  %v8266 = vadd.f32 %v8070, %v7678
  %v8267 = vadd.f32 %v8071, %v7679
  %v8268 = vadd.f32 %v8072, %v7680
  %v8269 = vadd.f32 %v8073, %v7681
  %v8270 = vadd.f32 %v8074, %v7682
  %v8271 = vadd.f32 %v8075, %v7683
  %v8272 = vadd.f32 %v8076, %v7684
  %v8273 = vadd.f32 %v8077, %v7685
  %v8274 = vadd.f32 %v8078, %v7686
  %v8275 = vadd.f32 %v8079, %v7687
  %v8276 = vadd.f32 %v8080, %v7688
  %v8277 = vadd.f32 %v8081, %v7689
  %v8278 = vadd.f32 %v8082, %v7690
  %v8279 = vadd.f32 %v8083, %v7691
  %v8280 = vadd.f32 %v8084, %v7692
  %v8281 = vadd.f32 %v8085, %v7693
  %v8282 = vadd.f32 %v8086, %v7694
  %v8283 = vadd.f32 %v8087, %v7695
  %v8284 = vadd.f32 %v8088, %v7696
  %v8285 = vadd.f32 %v8089, %v7697
  %v8286 = vadd.f32 %v8090, %v7698
  %v8287 = vadd.f32 %v8091, %v7699
  %v8288 = vadd.f32 %v8092, %v7700
  %v8289 = vadd.f32 %v8093, %v7701
  %v8290 = vadd.f32 %v8094, %v7702
  %v8291 = vadd.f32 %v8095, %v7703
  %v8292 = vadd.f32 %v8096, %v7704
  %v8293 = vadd.f32 %v8097, %v7705
  %v8294 = vadd.f32 %v8098, %v7706
  %v8295 = vadd.f32 %v8099, %v7707
  %v8296 = vadd.f32 %v8100, %v7708
  %v8297 = vadd.f32 %v8101, %v7709
  %v8298 = vadd.f32 %v8102, %v7710
  %v8299 = vadd.f32 %v8103, %v7711
  %v8300 = vadd.f32 %v8104, %v7712
  %v8301 = vadd.f32 %v8105, %v7713
  %v8302 = vadd.f32 %v8106, %v7714
  %v8303 = vadd.f32 %v8107, %v7715
  %v8304 = vadd.f32 %v8108, %v7716
  %v8305 = vadd.f32 %v8109, %v7717
  %v8306 = vadd.f32 %v8110, %v7718
  %v8307 = vadd.f32 %v8111, %v7719
  %v8308 = vadd.f32 %v8112, %v7720
  %v8309 = vadd.f32 %v8113, %v7721
  %v8310 = vadd.f32 %v8114, %v7722
  %v8311 = vadd.f32 %v8115, %v7723
  %v8312 = vadd.f32 %v8116, %v7724
  %v8313 = vadd.f32 %v8117, %v7725
  %v8314 = vadd.f32 %v8118, %v7726
  %v8315 = vadd.f32 %v8119, %v7727
  %v8316 = vadd.f32 %v8120, %v7728
  %v8317 = vadd.f32 %v8121, %v7729
  %v8318 = vadd.f32 %v8122, %v7730
  %v8319 = vadd.f32 %v8123, %v7731
  %v8320 = vadd.f32 %v8124, %v7732
  %v8321 = vadd.f32 %v8125, %v7733
  %v8322 = vadd.f32 %v8126, %v7734
  %v8323 = vadd.f32 %v8127, %v7735
  %v8324 = vadd.f32 %v8128, %v7736
  %v8325 = vadd.f32 %v8129, %v7737
  %v8326 = vadd.f32 %v8130, %v7738
  %v8327 = vadd.f32 %v8131, %v7739
  %v8328 = vadd.f32 %v8132, %v7740
  %v8329 = vadd.f32 %v8133, %v7741
  %v8330 = vadd.f32 %v8134, %v7742
  %v8331 = vadd.f32 %v8135, %v7743
  %v8332 = vadd.f32 %v8136, %v7744
  %v8333 = vadd.f32 %v8137, %v7745
  %v8334 = vadd.f32 %v8138, %v7746
  %v8335 = vadd.f32 %v8139, %v7747
  %v8336 = vadd.f32 %v8140, %v7748
  %v8337 = vadd.f32 %v8141, %v7749
  %v8338 = vadd.f32 %v8142, %v7750
  %v8339 = vadd.f32 %v8143, %v7751
  %v8340 = vadd.f32 %v8144, %v7752
  %v8341 = vadd.f32 %v8145, %v7753
  %v8342 = vadd.f32 %v8146, %v7754
  %v8343 = vadd.f32 %v8147, %v7755
  %v8344 = vadd.f32 %v8148, %v7756
  %v8345 = vadd.f32 %v8149, %v7757
  %v8346 = vadd.f32 %v8150, %v7758
  %v8347 = vadd.f32 %v8151, %v7759
  %v8348 = vadd.f32 %v8152, %v7760
  %v8349 = vadd.f32 %v8153, %v7761
  %v8350 = vadd.f32 %v8154, %v7762
  %v8351 = vadd.f32 %v8155, %v7763
  %v8352 = vadd.f32 %v8156, %v7764
  %v8353 = vadd.f32 %v8157, %v7765
  %v8354 = vadd.f32 %v8158, %v7766
  %v8355 = vadd.f32 %v8159, %v7767
  %v8356 = vadd.f32 %v8160, %v7768
  %v8357 = vadd.f32 %v8161, %v7769
  %v8358 = vadd.f32 %v8162, %v7770
  %v8359 = vadd.f32 %v8163, %v7771
  %v8360 = vadd.f32 %v8164, %v7772
  %v8361 = vadd.f32 %v8165, %v7773
  %v8362 = vadd.f32 %v8166, %v7774
  %v8363 = vadd.f32 %v8167, %v7775
  %v8364 = vadd.f32 %v8168, %v7776
  %v8365 = vadd.f32 %v8169, %v7777
  %v8366 = vadd.f32 %v8170, %v7778
  %v8367 = vadd.f32 %v8171, %v7779
  %v8368 = vadd.f32 %v8172, %v7780
  %v8369 = vadd.f32 %v8173, %v7781
  %v8370 = vadd.f32 %v8174, %v7782
  %v8371 = vadd.f32 %v8175, %v7783
  %v8372 = vadd.f32 %v8176, %v7784
  %v8373 = vadd.f32 %v8177, %v7785
  %v8374 = vadd.f32 %v8178, %v7786
  %v8375 = vadd.f32 %v8179, %v7787
  %v8376 = vadd.f32 %v8180, %v7788
  %v8377 = vadd.f32 %v8181, %v7789
  %v8378 = vadd.f32 %v8182, %v7790
  %v8379 = vadd.f32 %v8183, %v7791
  %v8380 = vadd.f32 %v8184, %v7792
  %v8381 = vadd.f32 %v8185, %v7793
  %v8382 = vadd.f32 %v8186, %v7794
  %v8383 = vadd.f32 %v8187, %v7795
  %v8384 = vadd.f32 %v8188, %v7796
  %v8385 = vadd.f32 %v8189, %v7797
  %v8386 = vadd.f32 %v8190, %v7798
  %v8387 = vadd.f32 %v8191, %v7799
  %v8388 = vadd.f32 %v8192, %v7800
  %v8389 = vadd.f32 %v8193, %v7801
  %v8390 = vadd.f32 %v8194, %v7802
  %v8391 = vadd.f32 %v8195, %v7803
  %v8392 = vadd.f32 %v8196, %v7804
  %v8393 = vadd.f32 %v8197, %v7805
  %v8394 = vadd.f32 %v8198, %v7806
  %v8395 = vadd.f32 %v8199, %v7807
  %v8396 = vadd.f32 %v8200, %v7808
  %v8397 = vadd.f32 %v8201, %v7809
  %v8398 = vadd.f32 %v8202, %v7810
  %v8399 = vadd.f32 %v8203, %v7811
  %v8400 = vadd.f32 %v8204, %v7812
  %v8401 = vadd.f32 %v8205, %v7813
  %v8402 = vadd.f32 %v8206, %v7814
  %v8403 = vadd.f32 %v8207, %v7815
  %v8404 = vadd.f32 %v8208, %v7816
  %v8405 = vadd.f32 %v8209, %v7817
  %v8406 = vadd.f32 %v8210, %v7818
  %v8407 = vadd.f32 %v8211, %v7819
  %v8408 = vadd.f32 %v8212, %v7820
  %v8409 = vadd.f32 %v8213, %v7821
  %v8410 = vadd.f32 %v8214, %v7822
  %v8411 = vadd.f32 %v8215, %v7823
  %v8412 = vadd.f32 %v8216, %v7824
  %v8413 = vadd.f32 %v8217, %v7825
  %v8414 = vadd.f32 %v8218, %v7826
  %v8415 = vadd.f32 %v8219, %v7827
  %v8416 = vadd.f32 %v8220, %v7828
  %v8417 = vadd.f32 %v8221, %v7829
  %v8418 = vadd.f32 %v8222, %v7830
  %v8419 = vadd.f32 %v8223, %v7831
  %v8420 = vadd.f32 %v8224, %v7832
  %v8421 = vadd.f32 %v8225, %v7833
  %v8422 = vadd.f32 %v8226, %v7834
  %v8423 = vadd.f32 %v8227, %v7835
  %v8424 = vadd.f32 %v8228, %v7836
  %v8425 = vadd.f32 %v8229, %v7837
  %v8426 = vadd.f32 %v8230, %v7838
  %v8427 = vadd.f32 %v8231, %v7839
  %v8428 = vadd.f32 %v8232, %v7840
  %v8429 = vadd.f32 %v8233, %v7841
  %v8430 = vadd.f32 %v8234, %v7842
  %v8431 = vadd.f32 %v8235, %v7843
  %v8432 = vadd.f32 %v8236, %v7844
  %v8433 = vadd.f32 %v8237, %v7845
  %v8434 = vadd.f32 %v8238, %v7846
  %v8435 = vadd.f32 %v8239, %v7847
  %v8436 = vadd.f32 %v8240, %v7848
  %v8437 = vadd.f32 %v8241, %v7849
  %v8438 = vadd.f32 %v8242, %v7850
  %v8439 = vadd.f32 %v8243, %v7851
  %v8440 = vadd.f32 %v8244, %v7852
  %v8441 = vadd.f32 %v8245, %v7853
  %v8442 = vadd.f32 %v8246, %v7854
  %v8443 = vadd.f32 %v8247, %v7855
  %v8444 = vadd.f32 %v8248, %v7856
  %v8445 = vadd.f32 %v8249, %v7857
  %v8446 = vadd.f32 %v8250, %v7858
  %v8447 = vadd.f32 %v8251, %v7859
  %v8448 = vadd.f32 %v8252, %v7860
  %v8449 = vadd.f32 %v8253, %v7861
  %v8450 = vadd.f32 %v8254, %v7862
  %v8451 = vadd.f32 %v8255, %v7863
  %v8452 = vadd.f32 %v8256, %v7864
  %v8453 = vadd.f32 %v8257, %v7865
  %v8454 = vadd.f32 %v8258, %v7866
  %v8455 = vadd.f32 %v8259, %v7867
  %v8456 = vadd.f32 %v8260, %v7868
  %v8457 = vadd.f32 %v8261, %v7869
  %v8458 = vadd.f32 %v8262, %v7870
  %v8459 = vadd.f32 %v8263, %v7871
  %v8460 = vadd.f32 %v8264, %v7872
  %v8461 = vadd.f32 %v8265, %v7873
  %v8462 = vadd.f32 %v8266, %v7874
  %v8463 = vadd.f32 %v8267, %v7875
  %v8464 = vadd.f32 %v8268, %v7876
  %v8465 = vadd.f32 %v8269, %v7877
  %v8466 = vadd.f32 %v8270, %v7878
  %v8467 = vadd.f32 %v8271, %v7879
  %v8468 = vadd.f32 %v8272, %v7880
  %v8469 = vadd.f32 %v8273, %v7881
  %v8470 = vadd.f32 %v8274, %v7882
  %v8471 = vadd.f32 %v8275, %v7883
  %v8472 = vadd.f32 %v8276, %v7884
  %v8473 = vadd.f32 %v8277, %v7885
  %v8474 = vadd.f32 %v8278, %v7886
  %v8475 = vadd.f32 %v8279, %v7887
  %v8476 = vadd.f32 %v8280, %v7888
  %v8477 = vadd.f32 %v8281, %v7889
  %v8478 = vadd.f32 %v8282, %v7890
  %v8479 = vadd.f32 %v8283, %v7891
  %v8480 = vadd.f32 %v8284, %v7892
  %v8481 = vadd.f32 %v8285, %v7893
  %v8482 = vadd.f32 %v8286, %v7894
  %v8483 = vadd.f32 %v8287, %v7895
  %v8484 = vadd.f32 %v8288, %v7896
  %v8485 = vadd.f32 %v8289, %v7897
  %v8486 = vadd.f32 %v8290, %v7898
  %v8487 = vadd.f32 %v8291, %v7899
  %v8488 = vadd.f32 %v8292, %v7900
  %v8489 = vadd.f32 %v8293, %v7901
  %v8490 = vadd.f32 %v8294, %v7902
  %v8491 = vadd.f32 %v8295, %v7903
  %v8492 = vadd.f32 %v8296, %v7904
  %v8493 = vadd.f32 %v8297, %v7905
  %v8494 = vadd.f32 %v8298, %v7906
  %v8495 = vadd.f32 %v8299, %v7907
  %v8496 = vadd.f32 %v8300, %v7908
  %v8497 = vadd.f32 %v8301, %v7909
  %v8498 = vadd.f32 %v8302, %v7910
  %v8499 = vadd.f32 %v8303, %v7911
  %v8500 = vadd.f32 %v8304, %v7912
  %v8501 = vadd.f32 %v8305, %v7913
  %v8502 = vadd.f32 %v8306, %v7914
  %v8503 = vadd.f32 %v8307, %v7915
  %v8504 = vadd.f32 %v8308, %v7916
  %v8505 = vadd.f32 %v8309, %v7917
  %v8506 = vpack.c.bf16 %v8311, %v8310
  %v8507 = vpack.c.bf16 %v8313, %v8312
  %v8508 = vpack.c.bf16 %v8315, %v8314
  %v8509 = vpack.c.bf16 %v8317, %v8316
  %v8510 = vpack.c.bf16 %v8319, %v8318
  %v8511 = vpack.c.bf16 %v8321, %v8320
  %v8512 = vpack.c.bf16 %v8323, %v8322
  %v8513 = vpack.c.bf16 %v8325, %v8324
  %v8514 = vpack.c.bf16 %v8327, %v8326
  %v8515 = vpack.c.bf16 %v8329, %v8328
  %v8516 = vpack.c.bf16 %v8331, %v8330
  %v8517 = vpack.c.bf16 %v8333, %v8332
  %v8518 = vpack.c.bf16 %v8335, %v8334
  %v8519 = vpack.c.bf16 %v8337, %v8336
  %v8520 = vpack.c.bf16 %v8339, %v8338
  %v8521 = vpack.c.bf16 %v8341, %v8340
  %v8522 = vpack.c.bf16 %v8343, %v8342
  %v8523 = vpack.c.bf16 %v8345, %v8344
  %v8524 = vpack.c.bf16 %v8347, %v8346
  %v8525 = vpack.c.bf16 %v8349, %v8348
  %v8526 = vpack.c.bf16 %v8351, %v8350
  %v8527 = vpack.c.bf16 %v8353, %v8352
  %v8528 = vpack.c.bf16 %v8355, %v8354
  %v8529 = vpack.c.bf16 %v8357, %v8356
  %v8530 = vpack.c.bf16 %v8359, %v8358
  %v8531 = vpack.c.bf16 %v8361, %v8360
  %v8532 = vpack.c.bf16 %v8363, %v8362
  %v8533 = vpack.c.bf16 %v8365, %v8364
  %v8534 = vpack.c.bf16 %v8367, %v8366
  %v8535 = vpack.c.bf16 %v8369, %v8368
  %v8536 = vpack.c.bf16 %v8371, %v8370
  %v8537 = vpack.c.bf16 %v8373, %v8372
  %v8538 = vpack.c.bf16 %v8375, %v8374
  %v8539 = vpack.c.bf16 %v8377, %v8376
  %v8540 = vpack.c.bf16 %v8379, %v8378
  %v8541 = vpack.c.bf16 %v8381, %v8380
  %v8542 = vpack.c.bf16 %v8383, %v8382
  %v8543 = vpack.c.bf16 %v8385, %v8384
  %v8544 = vpack.c.bf16 %v8387, %v8386
  %v8545 = vpack.c.bf16 %v8389, %v8388
  %v8546 = vpack.c.bf16 %v8391, %v8390
  %v8547 = vpack.c.bf16 %v8393, %v8392
  %v8548 = vpack.c.bf16 %v8395, %v8394
  %v8549 = vpack.c.bf16 %v8397, %v8396
  %v8550 = vpack.c.bf16 %v8399, %v8398
  %v8551 = vpack.c.bf16 %v8401, %v8400
  %v8552 = vpack.c.bf16 %v8403, %v8402
  %v8553 = vpack.c.bf16 %v8405, %v8404
  %v8554 = vpack.c.bf16 %v8407, %v8406
  %v8555 = vpack.c.bf16 %v8409, %v8408
  %v8556 = vpack.c.bf16 %v8411, %v8410
  %v8557 = vpack.c.bf16 %v8413, %v8412
  %v8558 = vpack.c.bf16 %v8415, %v8414
  %v8559 = vpack.c.bf16 %v8417, %v8416
  %v8560 = vpack.c.bf16 %v8419, %v8418
  %v8561 = vpack.c.bf16 %v8421, %v8420
  %v8562 = vpack.c.bf16 %v8423, %v8422
  %v8563 = vpack.c.bf16 %v8425, %v8424
  %v8564 = vpack.c.bf16 %v8427, %v8426
  %v8565 = vpack.c.bf16 %v8429, %v8428
  %v8566 = vpack.c.bf16 %v8431, %v8430
  %v8567 = vpack.c.bf16 %v8433, %v8432
  %v8568 = vpack.c.bf16 %v8435, %v8434
  %v8569 = vpack.c.bf16 %v8437, %v8436
  %v8570 = vpack.c.bf16 %v8439, %v8438
  %v8571 = vpack.c.bf16 %v8441, %v8440
  %v8572 = vpack.c.bf16 %v8443, %v8442
  %v8573 = vpack.c.bf16 %v8445, %v8444
  %v8574 = vpack.c.bf16 %v8447, %v8446
  %v8575 = vpack.c.bf16 %v8449, %v8448
  %v8576 = vpack.c.bf16 %v8451, %v8450
  %v8577 = vpack.c.bf16 %v8453, %v8452
  %v8578 = vpack.c.bf16 %v8455, %v8454
  %v8579 = vpack.c.bf16 %v8457, %v8456
  %v8580 = vpack.c.bf16 %v8459, %v8458
  %v8581 = vpack.c.bf16 %v8461, %v8460
  %v8582 = vpack.c.bf16 %v8463, %v8462
  %v8583 = vpack.c.bf16 %v8465, %v8464
  %v8584 = vpack.c.bf16 %v8467, %v8466
  %v8585 = vpack.c.bf16 %v8469, %v8468
  %v8586 = vpack.c.bf16 %v8471, %v8470
  %v8587 = vpack.c.bf16 %v8473, %v8472
  %v8588 = vpack.c.bf16 %v8475, %v8474
  %v8589 = vpack.c.bf16 %v8477, %v8476
  %v8590 = vpack.c.bf16 %v8479, %v8478
  %v8591 = vpack.c.bf16 %v8481, %v8480
  %v8592 = vpack.c.bf16 %v8483, %v8482
  %v8593 = vpack.c.bf16 %v8485, %v8484
  %v8594 = vpack.c.bf16 %v8487, %v8486
  %v8595 = vpack.c.bf16 %v8489, %v8488
  %v8596 = vpack.c.bf16 %v8491, %v8490
  %v8597 = vpack.c.bf16 %v8493, %v8492
  %v8598 = vpack.c.bf16 %v8495, %v8494
  %v8599 = vpack.c.bf16 %v8497, %v8496
  %v8600 = vpack.c.bf16 %v8499, %v8498
  %v8601 = vpack.c.bf16 %v8501, %v8500
  %v8602 = vpack.c.bf16 %v8503, %v8502
  %v8603 = vpack.c.bf16 %v8505, %v8504
  %v8702 = vunpack.c.l.b16 %v8506
  %v8703 = vunpack.c.h.b16 %v8506
  %v8704 = vunpack.c.l.b16 %v8507
  %v8705 = vunpack.c.h.b16 %v8507
  %v8706 = vunpack.c.l.b16 %v8508
  %v8707 = vunpack.c.h.b16 %v8508
  %v8708 = vunpack.c.l.b16 %v8509
  %v8709 = vunpack.c.h.b16 %v8509
  %v8710 = vunpack.c.l.b16 %v8510
  %v8711 = vunpack.c.h.b16 %v8510
  %v8712 = vunpack.c.l.b16 %v8511
  %v8713 = vunpack.c.h.b16 %v8511
  %v8714 = vunpack.c.l.b16 %v8512
  %v8715 = vunpack.c.h.b16 %v8512
  %v8716 = vunpack.c.l.b16 %v8513
  %v8717 = vunpack.c.h.b16 %v8513
  %v8718 = vunpack.c.l.b16 %v8514
  %v8719 = vunpack.c.h.b16 %v8514
  %v8720 = vunpack.c.l.b16 %v8515
  %v8721 = vunpack.c.h.b16 %v8515
  %v8722 = vunpack.c.l.b16 %v8516
  %v8723 = vunpack.c.h.b16 %v8516
  %v8724 = vunpack.c.l.b16 %v8517
  %v8725 = vunpack.c.h.b16 %v8517
  %v8726 = vunpack.c.l.b16 %v8518
  %v8727 = vunpack.c.h.b16 %v8518
  %v8728 = vunpack.c.l.b16 %v8519
  %v8729 = vunpack.c.h.b16 %v8519
  %v8730 = vunpack.c.l.b16 %v8520
  %v8731 = vunpack.c.h.b16 %v8520
  %v8732 = vunpack.c.l.b16 %v8521
  %v8733 = vunpack.c.h.b16 %v8521
  %v8734 = vunpack.c.l.b16 %v8522
  %v8735 = vunpack.c.h.b16 %v8522
  %v8736 = vunpack.c.l.b16 %v8523
  %v8737 = vunpack.c.h.b16 %v8523
  %v8738 = vunpack.c.l.b16 %v8524
  %v8739 = vunpack.c.h.b16 %v8524
  %v8740 = vunpack.c.l.b16 %v8525
  %v8741 = vunpack.c.h.b16 %v8525
  %v8742 = vunpack.c.l.b16 %v8526
  %v8743 = vunpack.c.h.b16 %v8526
  %v8744 = vunpack.c.l.b16 %v8527
  %v8745 = vunpack.c.h.b16 %v8527
  %v8746 = vunpack.c.l.b16 %v8528
  %v8747 = vunpack.c.h.b16 %v8528
  %v8748 = vunpack.c.l.b16 %v8529
  %v8749 = vunpack.c.h.b16 %v8529
  %v8750 = vunpack.c.l.b16 %v8530
  %v8751 = vunpack.c.h.b16 %v8530
  %v8752 = vunpack.c.l.b16 %v8531
  %v8753 = vunpack.c.h.b16 %v8531
  %v8754 = vunpack.c.l.b16 %v8532
  %v8755 = vunpack.c.h.b16 %v8532
  %v8756 = vunpack.c.l.b16 %v8533
  %v8757 = vunpack.c.h.b16 %v8533
  %v8758 = vunpack.c.l.b16 %v8534
  %v8759 = vunpack.c.h.b16 %v8534
  %v8760 = vunpack.c.l.b16 %v8535
  %v8761 = vunpack.c.h.b16 %v8535
  %v8762 = vunpack.c.l.b16 %v8536
  %v8763 = vunpack.c.h.b16 %v8536
  %v8764 = vunpack.c.l.b16 %v8537
  %v8765 = vunpack.c.h.b16 %v8537
  %v8766 = vunpack.c.l.b16 %v8538
  %v8767 = vunpack.c.h.b16 %v8538
  %v8768 = vunpack.c.l.b16 %v8539
  %v8769 = vunpack.c.h.b16 %v8539
  %v8770 = vunpack.c.l.b16 %v8540
  %v8771 = vunpack.c.h.b16 %v8540
  %v8772 = vunpack.c.l.b16 %v8541
  %v8773 = vunpack.c.h.b16 %v8541
  %v8774 = vunpack.c.l.b16 %v8542
  %v8775 = vunpack.c.h.b16 %v8542
  %v8776 = vunpack.c.l.b16 %v8543
  %v8777 = vunpack.c.h.b16 %v8543
  %v8778 = vunpack.c.l.b16 %v8544
  %v8779 = vunpack.c.h.b16 %v8544
  %v8780 = vunpack.c.l.b16 %v8545
  %v8781 = vunpack.c.h.b16 %v8545
  %v8782 = vunpack.c.l.b16 %v8546
  %v8783 = vunpack.c.h.b16 %v8546
  %v8784 = vunpack.c.l.b16 %v8547
  %v8785 = vunpack.c.h.b16 %v8547
  %v8786 = vunpack.c.l.b16 %v8548
  %v8787 = vunpack.c.h.b16 %v8548
  %v8788 = vunpack.c.l.b16 %v8549
  %v8789 = vunpack.c.h.b16 %v8549
  %v8790 = vunpack.c.l.b16 %v8550
  %v8791 = vunpack.c.h.b16 %v8550
  %v8792 = vunpack.c.l.b16 %v8551
  %v8793 = vunpack.c.h.b16 %v8551
  %v8794 = vunpack.c.l.b16 %v8552
  %v8795 = vunpack.c.h.b16 %v8552
  %v8796 = vunpack.c.l.b16 %v8553
  %v8797 = vunpack.c.h.b16 %v8553
  %v8798 = vunpack.c.l.b16 %v8554
  %v8799 = vunpack.c.h.b16 %v8554
  %v8800 = vunpack.c.l.b16 %v8555
  %v8801 = vunpack.c.h.b16 %v8555
  %v8802 = vunpack.c.l.b16 %v8556
  %v8803 = vunpack.c.h.b16 %v8556
  %v8804 = vunpack.c.l.b16 %v8557
  %v8805 = vunpack.c.h.b16 %v8557
  %v8806 = vunpack.c.l.b16 %v8558
  %v8807 = vunpack.c.h.b16 %v8558
  %v8808 = vunpack.c.l.b16 %v8559
  %v8809 = vunpack.c.h.b16 %v8559
  %v8810 = vunpack.c.l.b16 %v8560
  %v8811 = vunpack.c.h.b16 %v8560
  %v8812 = vunpack.c.l.b16 %v8561
  %v8813 = vunpack.c.h.b16 %v8561
  %v8814 = vunpack.c.l.b16 %v8562
  %v8815 = vunpack.c.h.b16 %v8562
  %v8816 = vunpack.c.l.b16 %v8563
  %v8817 = vunpack.c.h.b16 %v8563
  %v8818 = vunpack.c.l.b16 %v8564
  %v8819 = vunpack.c.h.b16 %v8564
  %v8820 = vunpack.c.l.b16 %v8565
  %v8821 = vunpack.c.h.b16 %v8565
  %v8822 = vunpack.c.l.b16 %v8566
  %v8823 = vunpack.c.h.b16 %v8566
  %v8824 = vunpack.c.l.b16 %v8567
  %v8825 = vunpack.c.h.b16 %v8567
  %v8826 = vunpack.c.l.b16 %v8568
  %v8827 = vunpack.c.h.b16 %v8568
  %v8828 = vunpack.c.l.b16 %v8569
  %v8829 = vunpack.c.h.b16 %v8569
  %v8830 = vunpack.c.l.b16 %v8570
  %v8831 = vunpack.c.h.b16 %v8570
  %v8832 = vunpack.c.l.b16 %v8571
  %v8833 = vunpack.c.h.b16 %v8571
  %v8834 = vunpack.c.l.b16 %v8572
  %v8835 = vunpack.c.h.b16 %v8572
  %v8836 = vunpack.c.l.b16 %v8573
  %v8837 = vunpack.c.h.b16 %v8573
  %v8838 = vunpack.c.l.b16 %v8574
  %v8839 = vunpack.c.h.b16 %v8574
  %v8840 = vunpack.c.l.b16 %v8575
  %v8841 = vunpack.c.h.b16 %v8575
  %v8842 = vunpack.c.l.b16 %v8576
  %v8843 = vunpack.c.h.b16 %v8576
  %v8844 = vunpack.c.l.b16 %v8577
  %v8845 = vunpack.c.h.b16 %v8577
  %v8846 = vunpack.c.l.b16 %v8578
  %v8847 = vunpack.c.h.b16 %v8578
  %v8848 = vunpack.c.l.b16 %v8579
  %v8849 = vunpack.c.h.b16 %v8579
  %v8850 = vunpack.c.l.b16 %v8580
  %v8851 = vunpack.c.h.b16 %v8580
  %v8852 = vunpack.c.l.b16 %v8581
  %v8853 = vunpack.c.h.b16 %v8581
  %v8854 = vunpack.c.l.b16 %v8582
  %v8855 = vunpack.c.h.b16 %v8582
  %v8856 = vunpack.c.l.b16 %v8583
  %v8857 = vunpack.c.h.b16 %v8583
  %v8858 = vunpack.c.l.b16 %v8584
  %v8859 = vunpack.c.h.b16 %v8584
  %v8860 = vunpack.c.l.b16 %v8585
  %v8861 = vunpack.c.h.b16 %v8585
  %v8862 = vunpack.c.l.b16 %v8586
  %v8863 = vunpack.c.h.b16 %v8586
  %v8864 = vunpack.c.l.b16 %v8587
  %v8865 = vunpack.c.h.b16 %v8587
  %v8866 = vunpack.c.l.b16 %v8588
  %v8867 = vunpack.c.h.b16 %v8588
  %v8868 = vunpack.c.l.b16 %v8589
  %v8869 = vunpack.c.h.b16 %v8589
  %v8870 = vunpack.c.l.b16 %v8590
  %v8871 = vunpack.c.h.b16 %v8590
  %v8872 = vunpack.c.l.b16 %v8591
  %v8873 = vunpack.c.h.b16 %v8591
  %v8874 = vunpack.c.l.b16 %v8592
  %v8875 = vunpack.c.h.b16 %v8592
  %v8876 = vunpack.c.l.b16 %v8593
  %v8877 = vunpack.c.h.b16 %v8593
  %v8878 = vunpack.c.l.b16 %v8594
  %v8879 = vunpack.c.h.b16 %v8594
  %v8880 = vunpack.c.l.b16 %v8595
  %v8881 = vunpack.c.h.b16 %v8595
  %v8882 = vunpack.c.l.b16 %v8596
  %v8883 = vunpack.c.h.b16 %v8596
  %v8884 = vunpack.c.l.b16 %v8597
  %v8885 = vunpack.c.h.b16 %v8597
  %v8886 = vunpack.c.l.b16 %v8598
  %v8887 = vunpack.c.h.b16 %v8598
  %v8888 = vunpack.c.l.b16 %v8599
  %v8889 = vunpack.c.h.b16 %v8599
  %v8890 = vunpack.c.l.b16 %v8600
  %v8891 = vunpack.c.h.b16 %v8600
  %v8892 = vunpack.c.l.b16 %v8601
  %v8893 = vunpack.c.h.b16 %v8601
  %v8894 = vunpack.c.l.b16 %v8602
  %v8895 = vunpack.c.h.b16 %v8602
  %v8896 = vunpack.c.l.b16 %v8603
  %v8897 = vunpack.c.h.b16 %v8603
  %v8898 = vpack.c.b16 %v8702, %v8702
  %v8899 = vpack.c.b16 %v8703, %v8703
  %v8900 = vpack.c.b16 %v8704, %v8704
  %v8901 = vpack.c.b16 %v8705, %v8705
  %v8902 = vpack.c.b16 %v8706, %v8706
  %v8903 = vpack.c.b16 %v8707, %v8707
  %v8904 = vpack.c.b16 %v8708, %v8708
  %v8905 = vpack.c.b16 %v8709, %v8709
  %v8906 = vpack.c.b16 %v8710, %v8710
  %v8907 = vpack.c.b16 %v8711, %v8711
  %v8908 = vpack.c.b16 %v8712, %v8712
  %v8909 = vpack.c.b16 %v8713, %v8713
  %v8910 = vpack.c.b16 %v8714, %v8714
  %v8911 = vpack.c.b16 %v8715, %v8715
  %v8912 = vpack.c.b16 %v8716, %v8716
  %v8913 = vpack.c.b16 %v8717, %v8717
  %v8914 = vpack.c.b16 %v8718, %v8718
  %v8915 = vpack.c.b16 %v8719, %v8719
  %v8916 = vpack.c.b16 %v8720, %v8720
  %v8917 = vpack.c.b16 %v8721, %v8721
  %v8918 = vpack.c.b16 %v8722, %v8722
  %v8919 = vpack.c.b16 %v8723, %v8723
  %v8920 = vpack.c.b16 %v8724, %v8724
  %v8921 = vpack.c.b16 %v8725, %v8725
  %v8922 = vpack.c.b16 %v8726, %v8726
  %v8923 = vpack.c.b16 %v8727, %v8727
  %v8924 = vpack.c.b16 %v8728, %v8728
  %v8925 = vpack.c.b16 %v8729, %v8729
  %v8926 = vpack.c.b16 %v8730, %v8730
  %v8927 = vpack.c.b16 %v8731, %v8731
  %v8928 = vpack.c.b16 %v8732, %v8732
  %v8929 = vpack.c.b16 %v8733, %v8733
  %v8930 = vpack.c.b16 %v8734, %v8734
  %v8931 = vpack.c.b16 %v8735, %v8735
  %v8932 = vpack.c.b16 %v8736, %v8736
  %v8933 = vpack.c.b16 %v8737, %v8737
  %v8934 = vpack.c.b16 %v8738, %v8738
  %v8935 = vpack.c.b16 %v8739, %v8739
  %v8936 = vpack.c.b16 %v8740, %v8740
  %v8937 = vpack.c.b16 %v8741, %v8741
  %v8938 = vpack.c.b16 %v8742, %v8742
  %v8939 = vpack.c.b16 %v8743, %v8743
  %v8940 = vpack.c.b16 %v8744, %v8744
  %v8941 = vpack.c.b16 %v8745, %v8745
  %v8942 = vpack.c.b16 %v8746, %v8746
  %v8943 = vpack.c.b16 %v8747, %v8747
  %v8944 = vpack.c.b16 %v8748, %v8748
  %v8945 = vpack.c.b16 %v8749, %v8749
  %v8946 = vpack.c.b16 %v8750, %v8750
  %v8947 = vpack.c.b16 %v8751, %v8751
  %v8948 = vpack.c.b16 %v8752, %v8752
  %v8949 = vpack.c.b16 %v8753, %v8753
  %v8950 = vpack.c.b16 %v8754, %v8754
  %v8951 = vpack.c.b16 %v8755, %v8755
  %v8952 = vpack.c.b16 %v8756, %v8756
  %v8953 = vpack.c.b16 %v8757, %v8757
  %v8954 = vpack.c.b16 %v8758, %v8758
  %v8955 = vpack.c.b16 %v8759, %v8759
  %v8956 = vpack.c.b16 %v8760, %v8760
  %v8957 = vpack.c.b16 %v8761, %v8761
  %v8958 = vpack.c.b16 %v8762, %v8762
  %v8959 = vpack.c.b16 %v8763, %v8763
  %v8960 = vpack.c.b16 %v8764, %v8764
  %v8961 = vpack.c.b16 %v8765, %v8765
  %v8962 = vpack.c.b16 %v8766, %v8766
  %v8963 = vpack.c.b16 %v8767, %v8767
  %v8964 = vpack.c.b16 %v8768, %v8768
  %v8965 = vpack.c.b16 %v8769, %v8769
  %v8966 = vpack.c.b16 %v8770, %v8770
  %v8967 = vpack.c.b16 %v8771, %v8771
  %v8968 = vpack.c.b16 %v8772, %v8772
  %v8969 = vpack.c.b16 %v8773, %v8773
  %v8970 = vpack.c.b16 %v8774, %v8774
  %v8971 = vpack.c.b16 %v8775, %v8775
  %v8972 = vpack.c.b16 %v8776, %v8776
  %v8973 = vpack.c.b16 %v8777, %v8777
  %v8974 = vpack.c.b16 %v8778, %v8778
  %v8975 = vpack.c.b16 %v8779, %v8779
  %v8976 = vpack.c.b16 %v8780, %v8780
  %v8977 = vpack.c.b16 %v8781, %v8781
  %v8978 = vpack.c.b16 %v8782, %v8782
  %v8979 = vpack.c.b16 %v8783, %v8783
  %v8980 = vpack.c.b16 %v8784, %v8784
  %v8981 = vpack.c.b16 %v8785, %v8785
  %v8982 = vpack.c.b16 %v8786, %v8786
  %v8983 = vpack.c.b16 %v8787, %v8787
  %v8984 = vpack.c.b16 %v8788, %v8788
  %v8985 = vpack.c.b16 %v8789, %v8789
  %v8986 = vpack.c.b16 %v8790, %v8790
  %v8987 = vpack.c.b16 %v8791, %v8791
  %v8988 = vpack.c.b16 %v8792, %v8792
  %v8989 = vpack.c.b16 %v8793, %v8793
  %v8990 = vpack.c.b16 %v8794, %v8794
  %v8991 = vpack.c.b16 %v8795, %v8795
  %v8992 = vpack.c.b16 %v8796, %v8796
  %v8993 = vpack.c.b16 %v8797, %v8797
  %v8994 = vpack.c.b16 %v8798, %v8798
  %v8995 = vpack.c.b16 %v8799, %v8799
  %v8996 = vpack.c.b16 %v8800, %v8800
  %v8997 = vpack.c.b16 %v8801, %v8801
  %v8998 = vpack.c.b16 %v8802, %v8802
  %v8999 = vpack.c.b16 %v8803, %v8803
  %v9000 = vpack.c.b16 %v8804, %v8804
  %v9001 = vpack.c.b16 %v8805, %v8805
  %v9002 = vpack.c.b16 %v8806, %v8806
  %v9003 = vpack.c.b16 %v8807, %v8807
  %v9004 = vpack.c.b16 %v8808, %v8808
  %v9005 = vpack.c.b16 %v8809, %v8809
  %v9006 = vpack.c.b16 %v8810, %v8810
  %v9007 = vpack.c.b16 %v8811, %v8811
  %v9008 = vpack.c.b16 %v8812, %v8812
  %v9009 = vpack.c.b16 %v8813, %v8813
  %v9010 = vpack.c.b16 %v8814, %v8814
  %v9011 = vpack.c.b16 %v8815, %v8815
  %v9012 = vpack.c.b16 %v8816, %v8816
  %v9013 = vpack.c.b16 %v8817, %v8817
  %v9014 = vpack.c.b16 %v8818, %v8818
  %v9015 = vpack.c.b16 %v8819, %v8819
  %v9016 = vpack.c.b16 %v8820, %v8820
  %v9017 = vpack.c.b16 %v8821, %v8821
  %v9018 = vpack.c.b16 %v8822, %v8822
  %v9019 = vpack.c.b16 %v8823, %v8823
  %v9020 = vpack.c.b16 %v8824, %v8824
  %v9021 = vpack.c.b16 %v8825, %v8825
  %v9022 = vpack.c.b16 %v8826, %v8826
  %v9023 = vpack.c.b16 %v8827, %v8827
  %v9024 = vpack.c.b16 %v8828, %v8828
  %v9025 = vpack.c.b16 %v8829, %v8829
  %v9026 = vpack.c.b16 %v8830, %v8830
  %v9027 = vpack.c.b16 %v8831, %v8831
  %v9028 = vpack.c.b16 %v8832, %v8832
  %v9029 = vpack.c.b16 %v8833, %v8833
  %v9030 = vpack.c.b16 %v8834, %v8834
  %v9031 = vpack.c.b16 %v8835, %v8835
  %v9032 = vpack.c.b16 %v8836, %v8836
  %v9033 = vpack.c.b16 %v8837, %v8837
  %v9034 = vpack.c.b16 %v8838, %v8838
  %v9035 = vpack.c.b16 %v8839, %v8839
  %v9036 = vpack.c.b16 %v8840, %v8840
  %v9037 = vpack.c.b16 %v8841, %v8841
  %v9038 = vpack.c.b16 %v8842, %v8842
  %v9039 = vpack.c.b16 %v8843, %v8843
  %v9040 = vpack.c.b16 %v8844, %v8844
  %v9041 = vpack.c.b16 %v8845, %v8845
  %v9042 = vpack.c.b16 %v8846, %v8846
  %v9043 = vpack.c.b16 %v8847, %v8847
  %v9044 = vpack.c.b16 %v8848, %v8848
  %v9045 = vpack.c.b16 %v8849, %v8849
  %v9046 = vpack.c.b16 %v8850, %v8850
  %v9047 = vpack.c.b16 %v8851, %v8851
  %v9048 = vpack.c.b16 %v8852, %v8852
  %v9049 = vpack.c.b16 %v8853, %v8853
  %v9050 = vpack.c.b16 %v8854, %v8854
  %v9051 = vpack.c.b16 %v8855, %v8855
  %v9052 = vpack.c.b16 %v8856, %v8856
  %v9053 = vpack.c.b16 %v8857, %v8857
  %v9054 = vpack.c.b16 %v8858, %v8858
  %v9055 = vpack.c.b16 %v8859, %v8859
  %v9056 = vpack.c.b16 %v8860, %v8860
  %v9057 = vpack.c.b16 %v8861, %v8861
  %v9058 = vpack.c.b16 %v8862, %v8862
  %v9059 = vpack.c.b16 %v8863, %v8863
  %v9060 = vpack.c.b16 %v8864, %v8864
  %v9061 = vpack.c.b16 %v8865, %v8865
  %v9062 = vpack.c.b16 %v8866, %v8866
  %v9063 = vpack.c.b16 %v8867, %v8867
  %v9064 = vpack.c.b16 %v8868, %v8868
  %v9065 = vpack.c.b16 %v8869, %v8869
  %v9066 = vpack.c.b16 %v8870, %v8870
  %v9067 = vpack.c.b16 %v8871, %v8871
  %v9068 = vpack.c.b16 %v8872, %v8872
  %v9069 = vpack.c.b16 %v8873, %v8873
  %v9070 = vpack.c.b16 %v8874, %v8874
  %v9071 = vpack.c.b16 %v8875, %v8875
  %v9072 = vpack.c.b16 %v8876, %v8876
  %v9073 = vpack.c.b16 %v8877, %v8877
  %v9074 = vpack.c.b16 %v8878, %v8878
  %v9075 = vpack.c.b16 %v8879, %v8879
  %v9076 = vpack.c.b16 %v8880, %v8880
  %v9077 = vpack.c.b16 %v8881, %v8881
  %v9078 = vpack.c.b16 %v8882, %v8882
  %v9079 = vpack.c.b16 %v8883, %v8883
  %v9080 = vpack.c.b16 %v8884, %v8884
  %v9081 = vpack.c.b16 %v8885, %v8885
  %v9082 = vpack.c.b16 %v8886, %v8886
  %v9083 = vpack.c.b16 %v8887, %v8887
  %v9084 = vpack.c.b16 %v8888, %v8888
  %v9085 = vpack.c.b16 %v8889, %v8889
  %v9086 = vpack.c.b16 %v8890, %v8890
  %v9087 = vpack.c.b16 %v8891, %v8891
  %v9088 = vpack.c.b16 %v8892, %v8892
  %v9089 = vpack.c.b16 %v8893, %v8893
  %v9090 = vpack.c.b16 %v8894, %v8894
  %v9091 = vpack.c.b16 %v8895, %v8895
  %v9092 = vpack.c.b16 %v8896, %v8896
  %v9093 = vpack.c.b16 %v8897, %v8897
  %9290 = vst [vmem:[%s3] sm:$0xf] %v8898
  %9291 = vst [vmem:[%s3 + $0x4] sm:$0xf] %v8899
  %9292 = vst [vmem:[%s3 + $0x8] sm:$0xf] %v8900
  %9293 = vst [vmem:[%s3 + $0xc] sm:$0xf] %v8901
  %9294 = vst [vmem:[%s3 + $0x10] sm:$0xf] %v8902
  %9295 = vst [vmem:[%s3 + $0x14] sm:$0xf] %v8903
  %9296 = vst [vmem:[%s3 + $0x18] sm:$0xf] %v8904
  %9297 = vst [vmem:[%s3 + $0x1c] sm:$0xf] %v8905
  %9298 = vst [vmem:[%s3 + $0x20] sm:$0xf] %v8906
  %9299 = vst [vmem:[%s3 + $0x24] sm:$0xf] %v8907
  %9300 = vst [vmem:[%s3 + $0x28] sm:$0xf] %v8908
  %9301 = vst [vmem:[%s3 + $0x2c] sm:$0xf] %v8909
  %9302 = vst [vmem:[%s3 + $0x30] sm:$0xf] %v8910
  %9303 = vst [vmem:[%s3 + $0x34] sm:$0xf] %v8911
  %9304 = vst [vmem:[%s3 + $0x38] sm:$0xf] %v8912
  %9305 = vst [vmem:[%s3 + $0x3c] sm:$0xf] %v8913
  %9306 = vst [vmem:[%s3 + $0x40] sm:$0xf] %v8914
  %9307 = vst [vmem:[%s3 + $0x44] sm:$0xf] %v8915
  %9308 = vst [vmem:[%s3 + $0x48] sm:$0xf] %v8916
  %9309 = vst [vmem:[%s3 + $0x4c] sm:$0xf] %v8917
  %9310 = vst [vmem:[%s3 + $0x50] sm:$0xf] %v8918
  %9311 = vst [vmem:[%s3 + $0x54] sm:$0xf] %v8919
  %9312 = vst [vmem:[%s3 + $0x58] sm:$0xf] %v8920
  %9313 = vst [vmem:[%s3 + $0x5c] sm:$0xf] %v8921
  %9314 = vst [vmem:[%s3 + $0x60] sm:$0xf] %v8922
  %9315 = vst [vmem:[%s3 + $0x64] sm:$0xf] %v8923
  %9316 = vst [vmem:[%s3 + $0x68] sm:$0xf] %v8924
  %9317 = vst [vmem:[%s3 + $0x6c] sm:$0xf] %v8925
  %9318 = vst [vmem:[%s3 + $0x70] sm:$0xf] %v8926
  %9319 = vst [vmem:[%s3 + $0x74] sm:$0xf] %v8927
  %9320 = vst [vmem:[%s3 + $0x78] sm:$0xf] %v8928
  %9321 = vst [vmem:[%s3 + $0x7c] sm:$0xf] %v8929
  %9322 = vst [vmem:[%s3 + $0x80] sm:$0xf] %v8930
  %9323 = vst [vmem:[%s3 + $0x84] sm:$0xf] %v8931
  %9324 = vst [vmem:[%s3 + $0x88] sm:$0xf] %v8932
  %9325 = vst [vmem:[%s3 + $0x8c] sm:$0xf] %v8933
  %9326 = vst [vmem:[%s3 + $0x90] sm:$0xf] %v8934
  %9327 = vst [vmem:[%s3 + $0x94] sm:$0xf] %v8935
  %9328 = vst [vmem:[%s3 + $0x98] sm:$0xf] %v8936
  %9329 = vst [vmem:[%s3 + $0x9c] sm:$0xf] %v8937
  %9330 = vst [vmem:[%s3 + $0xa0] sm:$0xf] %v8938
  %9331 = vst [vmem:[%s3 + $0xa4] sm:$0xf] %v8939
  %9332 = vst [vmem:[%s3 + $0xa8] sm:$0xf] %v8940
  %9333 = vst [vmem:[%s3 + $0xac] sm:$0xf] %v8941
  %9334 = vst [vmem:[%s3 + $0xb0] sm:$0xf] %v8942
  %9335 = vst [vmem:[%s3 + $0xb4] sm:$0xf] %v8943
  %9336 = vst [vmem:[%s3 + $0xb8] sm:$0xf] %v8944
  %9337 = vst [vmem:[%s3 + $0xbc] sm:$0xf] %v8945
  %9338 = vst [vmem:[%s3 + $0xc0] sm:$0xf] %v8946
  %9339 = vst [vmem:[%s3 + $0xc4] sm:$0xf] %v8947
  %9340 = vst [vmem:[%s3 + $0xc8] sm:$0xf] %v8948
  %9341 = vst [vmem:[%s3 + $0xcc] sm:$0xf] %v8949
  %9342 = vst [vmem:[%s3 + $0xd0] sm:$0xf] %v8950
  %9343 = vst [vmem:[%s3 + $0xd4] sm:$0xf] %v8951
  %9344 = vst [vmem:[%s3 + $0xd8] sm:$0xf] %v8952
  %9345 = vst [vmem:[%s3 + $0xdc] sm:$0xf] %v8953
  %9346 = vst [vmem:[%s3 + $0xe0] sm:$0xf] %v8954
  %9347 = vst [vmem:[%s3 + $0xe4] sm:$0xf] %v8955
  %9348 = vst [vmem:[%s3 + $0xe8] sm:$0xf] %v8956
  %9349 = vst [vmem:[%s3 + $0xec] sm:$0xf] %v8957
  %9350 = vst [vmem:[%s3 + $0xf0] sm:$0xf] %v8958
  %9351 = vst [vmem:[%s3 + $0xf4] sm:$0xf] %v8959
  %9352 = vst [vmem:[%s3 + $0xf8] sm:$0xf] %v8960
  %9353 = vst [vmem:[%s3 + $0xfc] sm:$0xf] %v8961
  %9354 = vst [vmem:[%s3 + $0x100] sm:$0xf] %v8962
  %9355 = vst [vmem:[%s3 + $0x104] sm:$0xf] %v8963
  %9356 = vst [vmem:[%s3 + $0x108] sm:$0xf] %v8964
  %9357 = vst [vmem:[%s3 + $0x10c] sm:$0xf] %v8965
  %9358 = vst [vmem:[%s3 + $0x110] sm:$0xf] %v8966
  %9359 = vst [vmem:[%s3 + $0x114] sm:$0xf] %v8967
  %9360 = vst [vmem:[%s3 + $0x118] sm:$0xf] %v8968
  %9361 = vst [vmem:[%s3 + $0x11c] sm:$0xf] %v8969
  %9362 = vst [vmem:[%s3 + $0x120] sm:$0xf] %v8970
  %9363 = vst [vmem:[%s3 + $0x124] sm:$0xf] %v8971
  %9364 = vst [vmem:[%s3 + $0x128] sm:$0xf] %v8972
  %9365 = vst [vmem:[%s3 + $0x12c] sm:$0xf] %v8973
  %9366 = vst [vmem:[%s3 + $0x130] sm:$0xf] %v8974
  %9367 = vst [vmem:[%s3 + $0x134] sm:$0xf] %v8975
  %9368 = vst [vmem:[%s3 + $0x138] sm:$0xf] %v8976
  %9369 = vst [vmem:[%s3 + $0x13c] sm:$0xf] %v8977
  %9370 = vst [vmem:[%s3 + $0x140] sm:$0xf] %v8978
  %9371 = vst [vmem:[%s3 + $0x144] sm:$0xf] %v8979
  %9372 = vst [vmem:[%s3 + $0x148] sm:$0xf] %v8980
  %9373 = vst [vmem:[%s3 + $0x14c] sm:$0xf] %v8981
  %9374 = vst [vmem:[%s3 + $0x150] sm:$0xf] %v8982
  %9375 = vst [vmem:[%s3 + $0x154] sm:$0xf] %v8983
  %9376 = vst [vmem:[%s3 + $0x158] sm:$0xf] %v8984
  %9377 = vst [vmem:[%s3 + $0x15c] sm:$0xf] %v8985
  %9378 = vst [vmem:[%s3 + $0x160] sm:$0xf] %v8986
  %9379 = vst [vmem:[%s3 + $0x164] sm:$0xf] %v8987
  %9380 = vst [vmem:[%s3 + $0x168] sm:$0xf] %v8988
  %9381 = vst [vmem:[%s3 + $0x16c] sm:$0xf] %v8989
  %9382 = vst [vmem:[%s3 + $0x170] sm:$0xf] %v8990
  %9383 = vst [vmem:[%s3 + $0x174] sm:$0xf] %v8991
  %9384 = vst [vmem:[%s3 + $0x178] sm:$0xf] %v8992
  %9385 = vst [vmem:[%s3 + $0x17c] sm:$0xf] %v8993
  %9386 = vst [vmem:[%s3 + $0x180] sm:$0xf] %v8994
  %9387 = vst [vmem:[%s3 + $0x184] sm:$0xf] %v8995
  %9388 = vst [vmem:[%s3 + $0x188] sm:$0xf] %v8996
  %9389 = vst [vmem:[%s3 + $0x18c] sm:$0xf] %v8997
  %9390 = vst [vmem:[%s3 + $0x190] sm:$0xf] %v8998
  %9391 = vst [vmem:[%s3 + $0x194] sm:$0xf] %v8999
  %9392 = vst [vmem:[%s3 + $0x198] sm:$0xf] %v9000
  %9393 = vst [vmem:[%s3 + $0x19c] sm:$0xf] %v9001
  %9394 = vst [vmem:[%s3 + $0x1a0] sm:$0xf] %v9002
  %9395 = vst [vmem:[%s3 + $0x1a4] sm:$0xf] %v9003
  %9396 = vst [vmem:[%s3 + $0x1a8] sm:$0xf] %v9004
  %9397 = vst [vmem:[%s3 + $0x1ac] sm:$0xf] %v9005
  %9398 = vst [vmem:[%s3 + $0x1b0] sm:$0xf] %v9006
  %9399 = vst [vmem:[%s3 + $0x1b4] sm:$0xf] %v9007
  %9400 = vst [vmem:[%s3 + $0x1b8] sm:$0xf] %v9008
  %9401 = vst [vmem:[%s3 + $0x1bc] sm:$0xf] %v9009
  %9402 = vst [vmem:[%s3 + $0x1c0] sm:$0xf] %v9010
  %9403 = vst [vmem:[%s3 + $0x1c4] sm:$0xf] %v9011
  %9404 = vst [vmem:[%s3 + $0x1c8] sm:$0xf] %v9012
  %9405 = vst [vmem:[%s3 + $0x1cc] sm:$0xf] %v9013
  %9406 = vst [vmem:[%s3 + $0x1d0] sm:$0xf] %v9014
  %9407 = vst [vmem:[%s3 + $0x1d4] sm:$0xf] %v9015
  %9408 = vst [vmem:[%s3 + $0x1d8] sm:$0xf] %v9016
  %9409 = vst [vmem:[%s3 + $0x1dc] sm:$0xf] %v9017
  %9410 = vst [vmem:[%s3 + $0x1e0] sm:$0xf] %v9018
  %9411 = vst [vmem:[%s3 + $0x1e4] sm:$0xf] %v9019
  %9412 = vst [vmem:[%s3 + $0x1e8] sm:$0xf] %v9020
  %9413 = vst [vmem:[%s3 + $0x1ec] sm:$0xf] %v9021
  %9414 = vst [vmem:[%s3 + $0x1f0] sm:$0xf] %v9022
  %9415 = vst [vmem:[%s3 + $0x1f4] sm:$0xf] %v9023
  %9416 = vst [vmem:[%s3 + $0x1f8] sm:$0xf] %v9024
  %9417 = vst [vmem:[%s3 + $0x1fc] sm:$0xf] %v9025
  %9418 = vst [vmem:[%s3 + $0x200] sm:$0xf] %v9026
  %9419 = vst [vmem:[%s3 + $0x204] sm:$0xf] %v9027
  %9420 = vst [vmem:[%s3 + $0x208] sm:$0xf] %v9028
  %9421 = vst [vmem:[%s3 + $0x20c] sm:$0xf] %v9029
  %9422 = vst [vmem:[%s3 + $0x210] sm:$0xf] %v9030
  %9423 = vst [vmem:[%s3 + $0x214] sm:$0xf] %v9031
  %9424 = vst [vmem:[%s3 + $0x218] sm:$0xf] %v9032
  %9425 = vst [vmem:[%s3 + $0x21c] sm:$0xf] %v9033
  %9426 = vst [vmem:[%s3 + $0x220] sm:$0xf] %v9034
  %9427 = vst [vmem:[%s3 + $0x224] sm:$0xf] %v9035
  %9428 = vst [vmem:[%s3 + $0x228] sm:$0xf] %v9036
  %9429 = vst [vmem:[%s3 + $0x22c] sm:$0xf] %v9037
  %9430 = vst [vmem:[%s3 + $0x230] sm:$0xf] %v9038
  %9431 = vst [vmem:[%s3 + $0x234] sm:$0xf] %v9039
  %9432 = vst [vmem:[%s3 + $0x238] sm:$0xf] %v9040
  %9433 = vst [vmem:[%s3 + $0x23c] sm:$0xf] %v9041
  %9434 = vst [vmem:[%s3 + $0x240] sm:$0xf] %v9042
  %9435 = vst [vmem:[%s3 + $0x244] sm:$0xf] %v9043
  %9436 = vst [vmem:[%s3 + $0x248] sm:$0xf] %v9044
  %9437 = vst [vmem:[%s3 + $0x24c] sm:$0xf] %v9045
  %9438 = vst [vmem:[%s3 + $0x250] sm:$0xf] %v9046
  %9439 = vst [vmem:[%s3 + $0x254] sm:$0xf] %v9047
  %9440 = vst [vmem:[%s3 + $0x258] sm:$0xf] %v9048
  %9441 = vst [vmem:[%s3 + $0x25c] sm:$0xf] %v9049
  %9442 = vst [vmem:[%s3 + $0x260] sm:$0xf] %v9050
  %9443 = vst [vmem:[%s3 + $0x264] sm:$0xf] %v9051
  %9444 = vst [vmem:[%s3 + $0x268] sm:$0xf] %v9052
  %9445 = vst [vmem:[%s3 + $0x26c] sm:$0xf] %v9053
  %9446 = vst [vmem:[%s3 + $0x270] sm:$0xf] %v9054
  %9447 = vst [vmem:[%s3 + $0x274] sm:$0xf] %v9055
  %9448 = vst [vmem:[%s3 + $0x278] sm:$0xf] %v9056
  %9449 = vst [vmem:[%s3 + $0x27c] sm:$0xf] %v9057
  %9450 = vst [vmem:[%s3 + $0x280] sm:$0xf] %v9058
  %9451 = vst [vmem:[%s3 + $0x284] sm:$0xf] %v9059
  %9452 = vst [vmem:[%s3 + $0x288] sm:$0xf] %v9060
  %9453 = vst [vmem:[%s3 + $0x28c] sm:$0xf] %v9061
  %9454 = vst [vmem:[%s3 + $0x290] sm:$0xf] %v9062
  %9455 = vst [vmem:[%s3 + $0x294] sm:$0xf] %v9063
  %9456 = vst [vmem:[%s3 + $0x298] sm:$0xf] %v9064
  %9457 = vst [vmem:[%s3 + $0x29c] sm:$0xf] %v9065
  %9458 = vst [vmem:[%s3 + $0x2a0] sm:$0xf] %v9066
  %9459 = vst [vmem:[%s3 + $0x2a4] sm:$0xf] %v9067
  %9460 = vst [vmem:[%s3 + $0x2a8] sm:$0xf] %v9068
  %9461 = vst [vmem:[%s3 + $0x2ac] sm:$0xf] %v9069
  %9462 = vst [vmem:[%s3 + $0x2b0] sm:$0xf] %v9070
  %9463 = vst [vmem:[%s3 + $0x2b4] sm:$0xf] %v9071
  %9464 = vst [vmem:[%s3 + $0x2b8] sm:$0xf] %v9072
  %9465 = vst [vmem:[%s3 + $0x2bc] sm:$0xf] %v9073
  %9466 = vst [vmem:[%s3 + $0x2c0] sm:$0xf] %v9074
  %9467 = vst [vmem:[%s3 + $0x2c4] sm:$0xf] %v9075
  %9468 = vst [vmem:[%s3 + $0x2c8] sm:$0xf] %v9076
  %9469 = vst [vmem:[%s3 + $0x2cc] sm:$0xf] %v9077
  %9470 = vst [vmem:[%s3 + $0x2d0] sm:$0xf] %v9078
  %9471 = vst [vmem:[%s3 + $0x2d4] sm:$0xf] %v9079
  %9472 = vst [vmem:[%s3 + $0x2d8] sm:$0xf] %v9080
  %9473 = vst [vmem:[%s3 + $0x2dc] sm:$0xf] %v9081
  %9474 = vst [vmem:[%s3 + $0x2e0] sm:$0xf] %v9082
  %9475 = vst [vmem:[%s3 + $0x2e4] sm:$0xf] %v9083
  %9476 = vst [vmem:[%s3 + $0x2e8] sm:$0xf] %v9084
  %9477 = vst [vmem:[%s3 + $0x2ec] sm:$0xf] %v9085
  %9478 = vst [vmem:[%s3 + $0x2f0] sm:$0xf] %v9086
  %9479 = vst [vmem:[%s3 + $0x2f4] sm:$0xf] %v9087
  %9480 = vst [vmem:[%s3 + $0x2f8] sm:$0xf] %v9088
  %9481 = vst [vmem:[%s3 + $0x2fc] sm:$0xf] %v9089
  %9482 = vst [vmem:[%s3 + $0x300] sm:$0xf] %v9090
  %9483 = vst [vmem:[%s3 + $0x304] sm:$0xf] %v9091
  %9484 = vst [vmem:[%s3 + $0x308] sm:$0xf] %v9092
  %9485 = vst [vmem:[%s3 + $0x30c] sm:$0xf] %v9093
  // Predicated region
  $region14: #{lenet_forward.2} parent=0 // pred_check
    _
  $region15: #{lenet_forward.2} parent=0 // pred_check_branch
    %9487 = sbr.rel (0) target = $region17
  $region16: #{lenet_forward.2} parent=0 // pred_region
    _
  $region17: #{lenet_forward.2} parent=0 // pred_fallthru
    _
  // Predicated region
  $region18: #{lenet_forward.2} parent=0 // pred_check
    _
  $region19: #{lenet_forward.2} parent=0 // pred_check_branch
    %9489 = sbr.rel (0) target = $region21
  $region20: #{lenet_forward.2} parent=0 // pred_region
    _
  $region21: #{lenet_forward.2} parent=0 // pred_fallthru
    _

// kernel: lenet_forward.3
$region0: #{lenet_forward.3}
  #allocation0 [shape = 'u32[]', space=smem, size = 0x4, offset = 0x4, fixed_abs, tag = 'smem constant byte address 0x4 - core index']
  #allocation1 [shape = 'u32[144,128]{1,0:T(1,128)}', space=vmem, size = 0x12000, scoped, tag = 'internal scratch']
  %s0 = inlined_call_operand.vmem [shape: bf16[800,150], index: 0, kind: input, shape index: {}]
  %s1 = inlined_call_operand.vmem [shape: bf16[150,128], index: 1, kind: input, shape index: {}]
  %s2 = inlined_call_operand.vmem [shape: f32[1,128], index: 2, kind: input, shape index: {}]
  %s3 = inlined_call_operand.vmem [shape: bf16[25,128,128], index: 3, kind: input, shape index: {}]
  %s4 = inlined_call_operand.vmem [shape: f32[1,128], index: 4, kind: input, shape index: {}]
  %s5 = inlined_call_operand.vmem [shape: bf16[128,128], index: 5, kind: input, shape index: {}]
  %s6 = inlined_call_operand.vmem [shape: f32[1,128], index: 6, kind: input, shape index: {}]
  %s7 = inlined_call_operand.vmem [shape: bf16[128,128], index: 7, kind: input, shape index: {}]
  %s8 = inlined_call_operand.vmem [shape: f32[1,128], index: 8, kind: input, shape index: {}]
  %s9 = inlined_call_operand.vmem [shape: f32[8,128], index: 9, kind: output, shape index: {}]
  %s10 = sld [smem:[#allocation0]]
  $region46: #{lenet_forward.3} parent=0
    _
  %s12 = ssub.s32 1, %s10
  %s13 = scalar_select 0, %s12, %s10
  // Predicated region
  $region2: #{lenet_forward.3} parent=0 // pred_check
    _
  $region3: #{lenet_forward.3} parent=0 // pred_check_branch
    %15 = sbr.rel (0) target = $region5
  $region4: #{lenet_forward.3} parent=0 // pred_region
    _
  $region5: #{lenet_forward.3} parent=0 // pred_fallthru
    _
  // Predicated region
  $region6: #{lenet_forward.3} parent=0 // pred_check
    _
  $region7: #{lenet_forward.3} parent=0 // pred_check_branch
    %17 = sbr.rel (0) target = $region9
  $region8: #{lenet_forward.3} parent=0 // pred_region
    _
  $region9: #{lenet_forward.3} parent=0 // pred_fallthru
    _
  // Predicated region
  $region10: #{lenet_forward.3} parent=0 // pred_check
    _
  $region11: #{lenet_forward.3} parent=0 // pred_check_branch
    %19 = sbr.rel (0) target = $region13
  $region12: #{lenet_forward.3} parent=0 // pred_region
    _
  $region13: #{lenet_forward.3} parent=0 // pred_fallthru
    _
  // Predicated region
  $region14: #{lenet_forward.3} parent=0 // pred_check
    _
  $region15: #{lenet_forward.3} parent=0 // pred_check_branch
    %21 = sbr.rel (0) target = $region17
  $region16: #{lenet_forward.3} parent=0 // pred_region
    _
  $region17: #{lenet_forward.3} parent=0 // pred_fallthru
    _
  // Predicated region
  $region18: #{lenet_forward.3} parent=0 // pred_check
    _
  $region19: #{lenet_forward.3} parent=0 // pred_check_branch
    %23 = sbr.rel (0) target = $region21
  $region20: #{lenet_forward.3} parent=0 // pred_region
    _
  $region21: #{lenet_forward.3} parent=0 // pred_fallthru
    _
  // Predicated region
  $region22: #{lenet_forward.3} parent=0 // pred_check
    _
  $region23: #{lenet_forward.3} parent=0 // pred_check_branch
    %25 = sbr.rel (0) target = $region25
  $region24: #{lenet_forward.3} parent=0 // pred_region
    _
  $region25: #{lenet_forward.3} parent=0 // pred_fallthru
    _
  // Predicated region
  $region26: #{lenet_forward.3} parent=0 // pred_check
    _
  $region27: #{lenet_forward.3} parent=0 // pred_check_branch
    %27 = sbr.rel (0) target = $region29
  $region28: #{lenet_forward.3} parent=0 // pred_region
    _
  $region29: #{lenet_forward.3} parent=0 // pred_fallthru
    _
  // Predicated region
  $region30: #{lenet_forward.3} parent=0 // pred_check
    _
  $region31: #{lenet_forward.3} parent=0 // pred_check_branch
    %29 = sbr.rel (0) target = $region33
  $region32: #{lenet_forward.3} parent=0 // pred_region
    _
  $region33: #{lenet_forward.3} parent=0 // pred_fallthru
    _
  // Predicated region
  $region34: #{lenet_forward.3} parent=0 // pred_check
    _
  $region35: #{lenet_forward.3} parent=0 // pred_check_branch
    %31 = sbr.rel (0) target = $region37
  $region36: #{lenet_forward.3} parent=0 // pred_region
    _
  $region37: #{lenet_forward.3} parent=0 // pred_fallthru
    _
  %v33 = vld [vmem:[%s0] sm:$0xff]
  %v34 = vld [vmem:[%s0 + $0x8] sm:$0xff]
  %v35 = vld [vmem:[%s0 + $0x10] sm:$0xff]
  %v36 = vld [vmem:[%s0 + $0x18] sm:$0xff]
  %v37 = vld [vmem:[%s0 + $0x20] sm:$0xff]
  %v38 = vld [vmem:[%s0 + $0x28] sm:$0xff]
  %v39 = vld [vmem:[%s0 + $0x30] sm:$0xff]
  %v40 = vld [vmem:[%s0 + $0x38] sm:$0xff]
  %v41 = vld [vmem:[%s0 + $0x40] sm:$0xff]
  %v42 = vld [vmem:[%s0 + $0x48] sm:$0xff]
  %v43 = vld [vmem:[%s0 + $0x50] sm:$0xff]
  %v44 = vld [vmem:[%s0 + $0x58] sm:$0xff]
  %v45 = vld [vmem:[%s0 + $0x60] sm:$0xff]
  %v46 = vld [vmem:[%s0 + $0x68] sm:$0xff]
  %v47 = vld [vmem:[%s0 + $0x70] sm:$0xff]
  %v48 = vld [vmem:[%s0 + $0x78] sm:$0xff]
  %v49 = vld [vmem:[%s0 + $0x80] sm:$0xff]
  %v50 = vld [vmem:[%s0 + $0x88] sm:$0xff]
  %v51 = vld [vmem:[%s0 + $0x90] sm:$0xff]
  %v52 = vld [vmem:[%s0 + $0x98] sm:$0xff]
  %v53 = vld [vmem:[%s0 + $0xa0] sm:$0xff]
  %v54 = vld [vmem:[%s0 + $0xa8] sm:$0xff]
  %v55 = vld [vmem:[%s0 + $0xb0] sm:$0xff]
  %v56 = vld [vmem:[%s0 + $0xb8] sm:$0xff]
  %v57 = vld [vmem:[%s0 + $0xc0] sm:$0xff]
  %v58 = vld [vmem:[%s0 + $0xc8] sm:$0xff]
  %v59 = vld [vmem:[%s0 + $0xd0] sm:$0xff]
  %v60 = vld [vmem:[%s0 + $0xd8] sm:$0xff]
  %v61 = vld [vmem:[%s0 + $0xe0] sm:$0xff]
  %v62 = vld [vmem:[%s0 + $0xe8] sm:$0xff]
  %v63 = vld [vmem:[%s0 + $0xf0] sm:$0xff]
  %v64 = vld [vmem:[%s0 + $0xf8] sm:$0xff]
  %v65 = vld [vmem:[%s0 + $0x100] sm:$0xff]
  %v66 = vld [vmem:[%s0 + $0x108] sm:$0xff]
  %v67 = vld [vmem:[%s0 + $0x110] sm:$0xff]
  %v68 = vld [vmem:[%s0 + $0x118] sm:$0xff]
  %v69 = vld [vmem:[%s0 + $0x120] sm:$0xff]
  %v70 = vld [vmem:[%s0 + $0x128] sm:$0xff]
  %v71 = vld [vmem:[%s0 + $0x130] sm:$0xff]
  %v72 = vld [vmem:[%s0 + $0x138] sm:$0xff]
  %v73 = vld [vmem:[%s0 + $0x140] sm:$0xff]
  %v74 = vld [vmem:[%s0 + $0x148] sm:$0xff]
  %v75 = vld [vmem:[%s0 + $0x150] sm:$0xff]
  %v76 = vld [vmem:[%s0 + $0x158] sm:$0xff]
  %v77 = vld [vmem:[%s0 + $0x160] sm:$0xff]
  %v78 = vld [vmem:[%s0 + $0x168] sm:$0xff]
  %v79 = vld [vmem:[%s0 + $0x170] sm:$0xff]
  %v80 = vld [vmem:[%s0 + $0x178] sm:$0xff]
  %v81 = vld [vmem:[%s0 + $0x180] sm:$0xff]
  %v82 = vld [vmem:[%s0 + $0x188] sm:$0xff]
  %v83 = vld [vmem:[%s0 + $0x190] sm:$0xff]
  %v84 = vld [vmem:[%s0 + $0x198] sm:$0xff]
  %v85 = vld [vmem:[%s0 + $0x1a0] sm:$0xff]
  %v86 = vld [vmem:[%s0 + $0x1a8] sm:$0xff]
  %v87 = vld [vmem:[%s0 + $0x1b0] sm:$0xff]
  %v88 = vld [vmem:[%s0 + $0x1b8] sm:$0xff]
  %v89 = vld [vmem:[%s0 + $0x1c0] sm:$0xff]
  %v90 = vld [vmem:[%s0 + $0x1c8] sm:$0xff]
  %v91 = vld [vmem:[%s0 + $0x1d0] sm:$0xff]
  %v92 = vld [vmem:[%s0 + $0x1d8] sm:$0xff]
  %v93 = vld [vmem:[%s0 + $0x1e0] sm:$0xff]
  %v94 = vld [vmem:[%s0 + $0x1e8] sm:$0xff]
  %v95 = vld [vmem:[%s0 + $0x1f0] sm:$0xff]
  %v96 = vld [vmem:[%s0 + $0x1f8] sm:$0xff]
  %v97 = vld [vmem:[%s0 + $0x200] sm:$0xff]
  %v98 = vld [vmem:[%s0 + $0x208] sm:$0xff]
  %v99 = vld [vmem:[%s0 + $0x210] sm:$0xff]
  %v100 = vld [vmem:[%s0 + $0x218] sm:$0xff]
  %v101 = vld [vmem:[%s0 + $0x220] sm:$0xff]
  %v102 = vld [vmem:[%s0 + $0x228] sm:$0xff]
  %v103 = vld [vmem:[%s0 + $0x230] sm:$0xff]
  %v104 = vld [vmem:[%s0 + $0x238] sm:$0xff]
  %v105 = vld [vmem:[%s0 + $0x240] sm:$0xff]
  %v106 = vld [vmem:[%s0 + $0x248] sm:$0xff]
  %v107 = vld [vmem:[%s0 + $0x250] sm:$0xff]
  %v108 = vld [vmem:[%s0 + $0x258] sm:$0xff]
  %v109 = vld [vmem:[%s0 + $0x260] sm:$0xff]
  %v110 = vld [vmem:[%s0 + $0x268] sm:$0xff]
  %v111 = vld [vmem:[%s0 + $0x270] sm:$0xff]
  %v112 = vld [vmem:[%s0 + $0x278] sm:$0xff]
  %v113 = vld [vmem:[%s0 + $0x280] sm:$0xff]
  %v114 = vld [vmem:[%s0 + $0x288] sm:$0xff]
  %v115 = vld [vmem:[%s0 + $0x290] sm:$0xff]
  %v116 = vld [vmem:[%s0 + $0x298] sm:$0xff]
  %v117 = vld [vmem:[%s0 + $0x2a0] sm:$0xff]
  %v118 = vld [vmem:[%s0 + $0x2a8] sm:$0xff]
  %v119 = vld [vmem:[%s0 + $0x2b0] sm:$0xff]
  %v120 = vld [vmem:[%s0 + $0x2b8] sm:$0xff]
  %v121 = vld [vmem:[%s0 + $0x2c0] sm:$0xff]
  %v122 = vld [vmem:[%s0 + $0x2c8] sm:$0xff]
  %v123 = vld [vmem:[%s0 + $0x2d0] sm:$0xff]
  %v124 = vld [vmem:[%s0 + $0x2d8] sm:$0xff]
  %v125 = vld [vmem:[%s0 + $0x2e0] sm:$0xff]
  %v126 = vld [vmem:[%s0 + $0x2e8] sm:$0xff]
  %v127 = vld [vmem:[%s0 + $0x2f0] sm:$0xff]
  %v128 = vld [vmem:[%s0 + $0x2f8] sm:$0xff]
  %v129 = vld [vmem:[%s0 + $0x300] sm:$0xff]
  %v130 = vld [vmem:[%s0 + $0x308] sm:$0xff]
  %v131 = vld [vmem:[%s0 + $0x310] sm:$0xff]
  %v132 = vld [vmem:[%s0 + $0x318] sm:$0xff]
  %v133 = vld [vmem:[%s1] sm:$0xf]
  %v134 = vld [vmem:[%s1 + $0x4] sm:$0xf]
  %v135 = vld [vmem:[%s1 + $0x8] sm:$0xf]
  %v136 = vld [vmem:[%s1 + $0xc] sm:$0xf]
  %v137 = vld [vmem:[%s1 + $0x10] sm:$0xf]
  %v138 = vld [vmem:[%s1 + $0x14] sm:$0xf]
  %v139 = vld [vmem:[%s1 + $0x18] sm:$0xf]
  %v140 = vld [vmem:[%s1 + $0x1c] sm:$0xf]
  %v141 = vld [vmem:[%s1 + $0x20] sm:$0xf]
  %v142 = vld [vmem:[%s1 + $0x24] sm:$0xf]
  %v143 = vld [vmem:[%s1 + $0x28] sm:$0xf]
  %v144 = vld [vmem:[%s1 + $0x2c] sm:$0xf]
  %v145 = vld [vmem:[%s1 + $0x30] sm:$0xf]
  %v146 = vld [vmem:[%s1 + $0x34] sm:$0xf]
  %v147 = vld [vmem:[%s1 + $0x38] sm:$0xf]
  %v148 = vld [vmem:[%s1 + $0x3c] sm:$0xf]
  %v149 = vld [vmem:[%s1 + $0x40] sm:$0xf]
  %v150 = vld [vmem:[%s1 + $0x44] sm:$0xf]
  %v151 = vld [vmem:[%s1 + $0x48] sm:$0x7]
  %v152 = vld [vmem:[%s2] sm:$0x1]
  %v154 = vlaneseq
  %v155 = vshrl.u32 %v154, 7
  %v156 = vsub.s32 0, %v155
  %v157 = vrot.slane %v152, %v156
  %v259 = vunpack.c.l.b16 %v33
  %v260 = vunpack.c.h.b16 %v33
  %v261 = vunpack.c.l.b16 %v34
  %v262 = vunpack.c.h.b16 %v34
  %v263 = vunpack.c.l.b16 %v35
  %v264 = vunpack.c.h.b16 %v35
  %v265 = vunpack.c.l.b16 %v36
  %v266 = vunpack.c.h.b16 %v36
  %v267 = vunpack.c.l.b16 %v37
  %v268 = vunpack.c.h.b16 %v37
  %v269 = vunpack.c.l.b16 %v38
  %v270 = vunpack.c.h.b16 %v38
  %v271 = vunpack.c.l.b16 %v39
  %v272 = vunpack.c.h.b16 %v39
  %v273 = vunpack.c.l.b16 %v40
  %v274 = vunpack.c.h.b16 %v40
  %v275 = vunpack.c.l.b16 %v41
  %v276 = vunpack.c.h.b16 %v41
  %v277 = vunpack.c.l.b16 %v42
  %v278 = vunpack.c.h.b16 %v42
  %v279 = vunpack.c.l.b16 %v43
  %v280 = vunpack.c.h.b16 %v43
  %v281 = vunpack.c.l.b16 %v44
  %v282 = vunpack.c.h.b16 %v44
  %v283 = vunpack.c.l.b16 %v45
  %v284 = vunpack.c.h.b16 %v45
  %v285 = vunpack.c.l.b16 %v46
  %v286 = vunpack.c.h.b16 %v46
  %v287 = vunpack.c.l.b16 %v47
  %v288 = vunpack.c.h.b16 %v47
  %v289 = vunpack.c.l.b16 %v48
  %v290 = vunpack.c.h.b16 %v48
  %v291 = vunpack.c.l.b16 %v49
  %v292 = vunpack.c.h.b16 %v49
  %v293 = vunpack.c.l.b16 %v50
  %v294 = vunpack.c.h.b16 %v50
  %v295 = vunpack.c.l.b16 %v51
  %v296 = vunpack.c.h.b16 %v51
  %v297 = vunpack.c.l.b16 %v52
  %v298 = vunpack.c.h.b16 %v52
  %v299 = vunpack.c.l.b16 %v53
  %v300 = vunpack.c.h.b16 %v53
  %v301 = vunpack.c.l.b16 %v54
  %v302 = vunpack.c.h.b16 %v54
  %v303 = vunpack.c.l.b16 %v55
  %v304 = vunpack.c.h.b16 %v55
  %v305 = vunpack.c.l.b16 %v56
  %v306 = vunpack.c.h.b16 %v56
  %v307 = vunpack.c.l.b16 %v57
  %v308 = vunpack.c.h.b16 %v57
  %v309 = vunpack.c.l.b16 %v58
  %v310 = vunpack.c.h.b16 %v58
  %v311 = vunpack.c.l.b16 %v59
  %v312 = vunpack.c.h.b16 %v59
  %v313 = vunpack.c.l.b16 %v60
  %v314 = vunpack.c.h.b16 %v60
  %v315 = vunpack.c.l.b16 %v61
  %v316 = vunpack.c.h.b16 %v61
  %v317 = vunpack.c.l.b16 %v62
  %v318 = vunpack.c.h.b16 %v62
  %v319 = vunpack.c.l.b16 %v63
  %v320 = vunpack.c.h.b16 %v63
  %v321 = vunpack.c.l.b16 %v64
  %v322 = vunpack.c.h.b16 %v64
  %v323 = vunpack.c.l.b16 %v65
  %v324 = vunpack.c.h.b16 %v65
  %v325 = vunpack.c.l.b16 %v66
  %v326 = vunpack.c.h.b16 %v66
  %v327 = vunpack.c.l.b16 %v67
  %v328 = vunpack.c.h.b16 %v67
  %v329 = vunpack.c.l.b16 %v68
  %v330 = vunpack.c.h.b16 %v68
  %v331 = vunpack.c.l.b16 %v69
  %v332 = vunpack.c.h.b16 %v69
  %v333 = vunpack.c.l.b16 %v70
  %v334 = vunpack.c.h.b16 %v70
  %v335 = vunpack.c.l.b16 %v71
  %v336 = vunpack.c.h.b16 %v71
  %v337 = vunpack.c.l.b16 %v72
  %v338 = vunpack.c.h.b16 %v72
  %v339 = vunpack.c.l.b16 %v73
  %v340 = vunpack.c.h.b16 %v73
  %v341 = vunpack.c.l.b16 %v74
  %v342 = vunpack.c.h.b16 %v74
  %v343 = vunpack.c.l.b16 %v75
  %v344 = vunpack.c.h.b16 %v75
  %v345 = vunpack.c.l.b16 %v76
  %v346 = vunpack.c.h.b16 %v76
  %v347 = vunpack.c.l.b16 %v77
  %v348 = vunpack.c.h.b16 %v77
  %v349 = vunpack.c.l.b16 %v78
  %v350 = vunpack.c.h.b16 %v78
  %v351 = vunpack.c.l.b16 %v79
  %v352 = vunpack.c.h.b16 %v79
  %v353 = vunpack.c.l.b16 %v80
  %v354 = vunpack.c.h.b16 %v80
  %v355 = vunpack.c.l.b16 %v81
  %v356 = vunpack.c.h.b16 %v81
  %v357 = vunpack.c.l.b16 %v82
  %v358 = vunpack.c.h.b16 %v82
  %v359 = vunpack.c.l.b16 %v83
  %v360 = vunpack.c.h.b16 %v83
  %v361 = vunpack.c.l.b16 %v84
  %v362 = vunpack.c.h.b16 %v84
  %v363 = vunpack.c.l.b16 %v85
  %v364 = vunpack.c.h.b16 %v85
  %v365 = vunpack.c.l.b16 %v86
  %v366 = vunpack.c.h.b16 %v86
  %v367 = vunpack.c.l.b16 %v87
  %v368 = vunpack.c.h.b16 %v87
  %v369 = vunpack.c.l.b16 %v88
  %v370 = vunpack.c.h.b16 %v88
  %v371 = vunpack.c.l.b16 %v89
  %v372 = vunpack.c.h.b16 %v89
  %v373 = vunpack.c.l.b16 %v90
  %v374 = vunpack.c.h.b16 %v90
  %v375 = vunpack.c.l.b16 %v91
  %v376 = vunpack.c.h.b16 %v91
  %v377 = vunpack.c.l.b16 %v92
  %v378 = vunpack.c.h.b16 %v92
  %v379 = vunpack.c.l.b16 %v93
  %v380 = vunpack.c.h.b16 %v93
  %v381 = vunpack.c.l.b16 %v94
  %v382 = vunpack.c.h.b16 %v94
  %v383 = vunpack.c.l.b16 %v95
  %v384 = vunpack.c.h.b16 %v95
  %v385 = vunpack.c.l.b16 %v96
  %v386 = vunpack.c.h.b16 %v96
  %v387 = vunpack.c.l.b16 %v97
  %v388 = vunpack.c.h.b16 %v97
  %v389 = vunpack.c.l.b16 %v98
  %v390 = vunpack.c.h.b16 %v98
  %v391 = vunpack.c.l.b16 %v99
  %v392 = vunpack.c.h.b16 %v99
  %v393 = vunpack.c.l.b16 %v100
  %v394 = vunpack.c.h.b16 %v100
  %v395 = vunpack.c.l.b16 %v101
  %v396 = vunpack.c.h.b16 %v101
  %v397 = vunpack.c.l.b16 %v102
  %v398 = vunpack.c.h.b16 %v102
  %v399 = vunpack.c.l.b16 %v103
  %v400 = vunpack.c.h.b16 %v103
  %v401 = vunpack.c.l.b16 %v104
  %v402 = vunpack.c.h.b16 %v104
  %v403 = vunpack.c.l.b16 %v105
  %v404 = vunpack.c.h.b16 %v105
  %v405 = vunpack.c.l.b16 %v106
  %v406 = vunpack.c.h.b16 %v106
  %v407 = vunpack.c.l.b16 %v107
  %v408 = vunpack.c.h.b16 %v107
  %v409 = vunpack.c.l.b16 %v108
  %v410 = vunpack.c.h.b16 %v108
  %v411 = vunpack.c.l.b16 %v109
  %v412 = vunpack.c.h.b16 %v109
  %v413 = vunpack.c.l.b16 %v110
  %v414 = vunpack.c.h.b16 %v110
  %v415 = vunpack.c.l.b16 %v111
  %v416 = vunpack.c.h.b16 %v111
  %v417 = vunpack.c.l.b16 %v112
  %v418 = vunpack.c.h.b16 %v112
  %v419 = vunpack.c.l.b16 %v113
  %v420 = vunpack.c.h.b16 %v113
  %v421 = vunpack.c.l.b16 %v114
  %v422 = vunpack.c.h.b16 %v114
  %v423 = vunpack.c.l.b16 %v115
  %v424 = vunpack.c.h.b16 %v115
  %v425 = vunpack.c.l.b16 %v116
  %v426 = vunpack.c.h.b16 %v116
  %v427 = vunpack.c.l.b16 %v117
  %v428 = vunpack.c.h.b16 %v117
  %v429 = vunpack.c.l.b16 %v118
  %v430 = vunpack.c.h.b16 %v118
  %v431 = vunpack.c.l.b16 %v119
  %v432 = vunpack.c.h.b16 %v119
  %v433 = vunpack.c.l.b16 %v120
  %v434 = vunpack.c.h.b16 %v120
  %v435 = vunpack.c.l.b16 %v121
  %v436 = vunpack.c.h.b16 %v121
  %v437 = vunpack.c.l.b16 %v122
  %v438 = vunpack.c.h.b16 %v122
  %v439 = vunpack.c.l.b16 %v123
  %v440 = vunpack.c.h.b16 %v123
  %v441 = vunpack.c.l.b16 %v124
  %v442 = vunpack.c.h.b16 %v124
  %v443 = vunpack.c.l.b16 %v125
  %v444 = vunpack.c.h.b16 %v125
  %v445 = vunpack.c.l.b16 %v126
  %v446 = vunpack.c.h.b16 %v126
  %v447 = vunpack.c.l.b16 %v127
  %v448 = vunpack.c.h.b16 %v127
  %v449 = vunpack.c.l.b16 %v128
  %v450 = vunpack.c.h.b16 %v128
  %v451 = vunpack.c.l.b16 %v129
  %v452 = vunpack.c.h.b16 %v129
  %v453 = vunpack.c.l.b16 %v130
  %v454 = vunpack.c.h.b16 %v130
  %v455 = vunpack.c.l.b16 %v131
  %v456 = vunpack.c.h.b16 %v131
  %v457 = vunpack.c.l.b16 %v132
  %v458 = vunpack.c.h.b16 %v132
  %v459 = vpack.c.b16 %v261, %v259
  %v460 = vpack.c.b16 %v262, %v260
  %v461 = vpack.c.b16 %v265, %v263
  %v462 = vpack.c.b16 %v266, %v264
  %v463 = vpack.c.b16 %v269, %v267
  %v464 = vpack.c.b16 %v270, %v268
  %v465 = vpack.c.b16 %v273, %v271
  %v466 = vpack.c.b16 %v274, %v272
  %v467 = vpack.c.b16 %v277, %v275
  %v468 = vpack.c.b16 %v278, %v276
  %v469 = vpack.c.b16 %v281, %v279
  %v470 = vpack.c.b16 %v282, %v280
  %v471 = vpack.c.b16 %v285, %v283
  %v472 = vpack.c.b16 %v286, %v284
  %v473 = vpack.c.b16 %v289, %v287
  %v474 = vpack.c.b16 %v290, %v288
  %v475 = vpack.c.b16 %v293, %v291
  %v476 = vpack.c.b16 %v294, %v292
  %v477 = vpack.c.b16 %v297, %v295
  %v478 = vpack.c.b16 %v298, %v296
  %v479 = vpack.c.b16 %v301, %v299
  %v480 = vpack.c.b16 %v302, %v300
  %v481 = vpack.c.b16 %v305, %v303
  %v482 = vpack.c.b16 %v306, %v304
  %v483 = vpack.c.b16 %v309, %v307
  %v484 = vpack.c.b16 %v310, %v308
  %v485 = vpack.c.b16 %v313, %v311
  %v486 = vpack.c.b16 %v314, %v312
  %v487 = vpack.c.b16 %v317, %v315
  %v488 = vpack.c.b16 %v318, %v316
  %v489 = vpack.c.b16 %v321, %v319
  %v490 = vpack.c.b16 %v322, %v320
  %v491 = vpack.c.b16 %v325, %v323
  %v492 = vpack.c.b16 %v326, %v324
  %v493 = vpack.c.b16 %v329, %v327
  %v494 = vpack.c.b16 %v330, %v328
  %v495 = vpack.c.b16 %v333, %v331
  %v496 = vpack.c.b16 %v334, %v332
  %v497 = vpack.c.b16 %v337, %v335
  %v498 = vpack.c.b16 %v338, %v336
  %v499 = vpack.c.b16 %v341, %v339
  %v500 = vpack.c.b16 %v342, %v340
  %v501 = vpack.c.b16 %v345, %v343
  %v502 = vpack.c.b16 %v346, %v344
  %v503 = vpack.c.b16 %v349, %v347
  %v504 = vpack.c.b16 %v350, %v348
  %v505 = vpack.c.b16 %v353, %v351
  %v506 = vpack.c.b16 %v354, %v352
  %v507 = vpack.c.b16 %v357, %v355
  %v508 = vpack.c.b16 %v358, %v356
  %v509 = vpack.c.b16 %v361, %v359
  %v510 = vpack.c.b16 %v362, %v360
  %v511 = vpack.c.b16 %v365, %v363
  %v512 = vpack.c.b16 %v366, %v364
  %v513 = vpack.c.b16 %v369, %v367
  %v514 = vpack.c.b16 %v370, %v368
  %v515 = vpack.c.b16 %v373, %v371
  %v516 = vpack.c.b16 %v374, %v372
  %v517 = vpack.c.b16 %v377, %v375
  %v518 = vpack.c.b16 %v378, %v376
  %v519 = vpack.c.b16 %v381, %v379
  %v520 = vpack.c.b16 %v382, %v380
  %v521 = vpack.c.b16 %v385, %v383
  %v522 = vpack.c.b16 %v386, %v384
  %v523 = vpack.c.b16 %v389, %v387
  %v524 = vpack.c.b16 %v390, %v388
  %v525 = vpack.c.b16 %v393, %v391
  %v526 = vpack.c.b16 %v394, %v392
  %v527 = vpack.c.b16 %v397, %v395
  %v528 = vpack.c.b16 %v398, %v396
  %v529 = vpack.c.b16 %v401, %v399
  %v530 = vpack.c.b16 %v402, %v400
  %v531 = vpack.c.b16 %v405, %v403
  %v532 = vpack.c.b16 %v406, %v404
  %v533 = vpack.c.b16 %v409, %v407
  %v534 = vpack.c.b16 %v410, %v408
  %v535 = vpack.c.b16 %v413, %v411
  %v536 = vpack.c.b16 %v414, %v412
  %v537 = vpack.c.b16 %v417, %v415
  %v538 = vpack.c.b16 %v418, %v416
  %v539 = vpack.c.b16 %v421, %v419
  %v540 = vpack.c.b16 %v422, %v420
  %v541 = vpack.c.b16 %v425, %v423
  %v542 = vpack.c.b16 %v426, %v424
  %v543 = vpack.c.b16 %v429, %v427
  %v544 = vpack.c.b16 %v430, %v428
  %v545 = vpack.c.b16 %v433, %v431
  %v546 = vpack.c.b16 %v434, %v432
  %v547 = vpack.c.b16 %v437, %v435
  %v548 = vpack.c.b16 %v438, %v436
  %v549 = vpack.c.b16 %v441, %v439
  %v550 = vpack.c.b16 %v442, %v440
  %v551 = vpack.c.b16 %v445, %v443
  %v552 = vpack.c.b16 %v446, %v444
  %v553 = vpack.c.b16 %v449, %v447
  %v554 = vpack.c.b16 %v450, %v448
  %v555 = vpack.c.b16 %v453, %v451
  %v556 = vpack.c.b16 %v454, %v452
  %v557 = vpack.c.b16 %v457, %v455
  %v558 = vpack.c.b16 %v458, %v456
  %v628 = vunpack.c.l.b16 %v133
  %v629 = vunpack.c.l.b16 %v134
  %v630 = vunpack.c.l.b16 %v135
  %v631 = vunpack.c.l.b16 %v136
  %v632 = vunpack.c.l.b16 %v137
  %v633 = vunpack.c.l.b16 %v138
  %v634 = vunpack.c.l.b16 %v139
  %v635 = vunpack.c.l.b16 %v140
  %v636 = vunpack.c.l.b16 %v141
  %v637 = vunpack.c.l.b16 %v142
  %v638 = vunpack.c.l.b16 %v143
  %v639 = vunpack.c.l.b16 %v144
  %v640 = vunpack.c.l.b16 %v145
  %v641 = vunpack.c.l.b16 %v146
  %v642 = vunpack.c.l.b16 %v147
  %v643 = vunpack.c.l.b16 %v148
  %v644 = vunpack.c.l.b16 %v149
  %v645 = vunpack.c.l.b16 %v150
  %v646 = vunpack.c.l.b16 %v151
  %v647 = vpack.c.b16 %v629, %v628
  %v648 = vpack.c.b16 %v631, %v630
  %v649 = vpack.c.b16 %v633, %v632
  %v650 = vpack.c.b16 %v635, %v634
  %v651 = vpack.c.b16 %v637, %v636
  %v652 = vpack.c.b16 %v639, %v638
  %v653 = vpack.c.b16 %v641, %v640
  %v654 = vpack.c.b16 %v643, %v642
  %v655 = vpack.c.b16 %v645, %v644
  %v656 = vpack.c.b16 %v646, %v646
  %vm666 = vcmask 179200
  %v668 = vsel %vm666, %v460, 0
  %v671 = vsel %vm666, %v462, 0
  %v674 = vsel %vm666, %v464, 0
  %v677 = vsel %vm666, %v466, 0
  %v680 = vsel %vm666, %v468, 0
  %v683 = vsel %vm666, %v470, 0
  %v686 = vsel %vm666, %v472, 0
  %v689 = vsel %vm666, %v474, 0
  %v692 = vsel %vm666, %v476, 0
  %v695 = vsel %vm666, %v478, 0
  %v698 = vsel %vm666, %v480, 0
  %v701 = vsel %vm666, %v482, 0
  %v704 = vsel %vm666, %v484, 0
  %v707 = vsel %vm666, %v486, 0
  %v710 = vsel %vm666, %v488, 0
  %v713 = vsel %vm666, %v490, 0
  %v716 = vsel %vm666, %v492, 0
  %v719 = vsel %vm666, %v494, 0
  %v722 = vsel %vm666, %v496, 0
  %v725 = vsel %vm666, %v498, 0
  %v728 = vsel %vm666, %v500, 0
  %v731 = vsel %vm666, %v502, 0
  %v734 = vsel %vm666, %v504, 0
  %v737 = vsel %vm666, %v506, 0
  %v740 = vsel %vm666, %v508, 0
  %v743 = vsel %vm666, %v510, 0
  %v746 = vsel %vm666, %v512, 0
  %v749 = vsel %vm666, %v514, 0
  %v752 = vsel %vm666, %v516, 0
  %v755 = vsel %vm666, %v518, 0
  %v758 = vsel %vm666, %v520, 0
  %v761 = vsel %vm666, %v522, 0
  %v764 = vsel %vm666, %v524, 0
  %v767 = vsel %vm666, %v526, 0
  %v770 = vsel %vm666, %v528, 0
  %v773 = vsel %vm666, %v530, 0
  %v776 = vsel %vm666, %v532, 0
  %v779 = vsel %vm666, %v534, 0
  %v782 = vsel %vm666, %v536, 0
  %v785 = vsel %vm666, %v538, 0
  %v788 = vsel %vm666, %v540, 0
  %v791 = vsel %vm666, %v542, 0
  %v794 = vsel %vm666, %v544, 0
  %v797 = vsel %vm666, %v546, 0
  %v800 = vsel %vm666, %v548, 0
  %v803 = vsel %vm666, %v550, 0
  %v806 = vsel %vm666, %v552, 0
  %v809 = vsel %vm666, %v554, 0
  %v812 = vsel %vm666, %v556, 0
  %v815 = vsel %vm666, %v558, 0
  %vm817 = vcmask 1042432
  %v819 = vsel %vm817, %v656, 0
  %821 = vmatprep.subr.bf16.mxu0 0
  %822 = vmatpush1.bf16.msra.mxu0 %v654
  %823 = vmatprep.subr.bf16.mxu0 0
  %824 = vmatpush1.bf16.msra.mxu0 %v653
  %825 = vmatprep.subr.bf16.mxu0 0
  %826 = vmatpush1.bf16.msra.mxu0 %v652
  %827 = vmatprep.subr.bf16.mxu0 0
  %828 = vmatpush1.bf16.msra.mxu0 %v651
  %829 = vmatprep.subr.bf16.mxu0 0
  %830 = vmatpush1.bf16.msra.mxu0 %v650
  %831 = vmatprep.subr.bf16.mxu0 0
  %832 = vmatpush1.bf16.msra.mxu0 %v649
  %833 = vmatprep.subr.bf16.mxu0 0
  %834 = vmatpush1.bf16.msra.mxu0 %v648
  %835 = vmatprep.subr.bf16.mxu0 0
  %836 = vmatpush1.bf16.msra.mxu0 %v647
  %837 = vmatprep.subr.bf16.mxu0 0
  %838 = vmatpush2.bf16.msra.mxu0 0
  %839 = vmatprep.subr.bf16.mxu0 0
  %840 = vmatpush2.bf16.msra.mxu0 0
  %841 = vmatprep.subr.bf16.mxu0 0
  %842 = vmatpush2.bf16.msra.mxu0 0
  %843 = vmatprep.subr.bf16.mxu0 0
  %844 = vmatpush2.bf16.msra.mxu0 0
  %845 = vmatprep.subr.bf16.mxu0 0
  %846 = vmatpush2.bf16.msra.mxu0 0
  %847 = vmatprep.subr.bf16.mxu0 0
  %848 = vmatpush2.bf16.msra.mxu0 0
  %849 = vmatprep.subr.bf16.mxu0 0
  %850 = vmatpush2.bf16.msra.mxu0 %v819
  %851 = vmatprep.subr.bf16.mxu0 0
  %852 = vmatpush2.bf16.msra.mxu0 %v655
  %853 = vmatprep.mubr.bf16.mxu0 %v668
  %854 = vmatmul.mubr.bf16.gmra.mxu0 %v459
  %v855 = vpop.f32.mrf.mxu0
  %v856 = vadd.f32 %v157, %v855
  %v857 = vpop.f32.mrf.mxu0
  %v858 = vpop.f32.mrf.mxu0
  %v859 = vadd.f32 %v157, %v858
  %v860 = vpop.f32.mrf.mxu0
  %861 = vmatprep.mubr.bf16.mxu0 %v671
  %862 = vmatmul.mubr.bf16.gmra.mxu0 %v461
  %v863 = vpop.f32.mrf.mxu0
  %v864 = vadd.f32 %v157, %v863
  %v865 = vpop.f32.mrf.mxu0
  %v866 = vpop.f32.mrf.mxu0
  %v867 = vadd.f32 %v157, %v866
  %v868 = vpop.f32.mrf.mxu0
  %869 = vmatprep.mubr.bf16.mxu0 %v674
  %870 = vmatmul.mubr.bf16.gmra.mxu0 %v463
  %v871 = vpop.f32.mrf.mxu0
  %v872 = vadd.f32 %v157, %v871
  %v873 = vpop.f32.mrf.mxu0
  %v874 = vpop.f32.mrf.mxu0
  %v875 = vadd.f32 %v157, %v874
  %v876 = vpop.f32.mrf.mxu0
  %877 = vmatprep.mubr.bf16.mxu0 %v677
  %878 = vmatmul.mubr.bf16.gmra.mxu0 %v465
  %v879 = vpop.f32.mrf.mxu0
  %v880 = vadd.f32 %v157, %v879
  %v881 = vpop.f32.mrf.mxu0
  %v882 = vpop.f32.mrf.mxu0
  %v883 = vadd.f32 %v157, %v882
  %v884 = vpop.f32.mrf.mxu0
  %885 = vmatprep.mubr.bf16.mxu0 %v680
  %886 = vmatmul.mubr.bf16.gmra.mxu0 %v467
  %v887 = vpop.f32.mrf.mxu0
  %v888 = vadd.f32 %v157, %v887
  %v889 = vpop.f32.mrf.mxu0
  %v890 = vpop.f32.mrf.mxu0
  %v891 = vadd.f32 %v157, %v890
  %v892 = vpop.f32.mrf.mxu0
  %893 = vmatprep.mubr.bf16.mxu0 %v683
  %894 = vmatmul.mubr.bf16.gmra.mxu0 %v469
  %v895 = vpop.f32.mrf.mxu0
  %v896 = vadd.f32 %v157, %v895
  %v897 = vpop.f32.mrf.mxu0
  %v898 = vpop.f32.mrf.mxu0
  %v899 = vadd.f32 %v157, %v898
  %v900 = vpop.f32.mrf.mxu0
  %901 = vmatprep.mubr.bf16.mxu0 %v686
  %902 = vmatmul.mubr.bf16.gmra.mxu0 %v471
  %v903 = vpop.f32.mrf.mxu0
  %v904 = vadd.f32 %v157, %v903
  %v905 = vpop.f32.mrf.mxu0
  %v906 = vpop.f32.mrf.mxu0
  %v907 = vadd.f32 %v157, %v906
  %v908 = vpop.f32.mrf.mxu0
  %909 = vmatprep.mubr.bf16.mxu0 %v689
  %910 = vmatmul.mubr.bf16.gmra.mxu0 %v473
  %v911 = vpop.f32.mrf.mxu0
  %v912 = vadd.f32 %v157, %v911
  %v913 = vpop.f32.mrf.mxu0
  %v914 = vpop.f32.mrf.mxu0
  %v915 = vadd.f32 %v157, %v914
  %v916 = vpop.f32.mrf.mxu0
  %917 = vmatprep.mubr.bf16.mxu0 %v692
  %918 = vmatmul.mubr.bf16.gmra.mxu0 %v475
  %v919 = vpop.f32.mrf.mxu0
  %v920 = vadd.f32 %v157, %v919
  %v921 = vpop.f32.mrf.mxu0
  %v922 = vpop.f32.mrf.mxu0
  %v923 = vadd.f32 %v157, %v922
  %v924 = vpop.f32.mrf.mxu0
  %925 = vmatprep.mubr.bf16.mxu0 %v695
  %926 = vmatmul.mubr.bf16.gmra.mxu0 %v477
  %v927 = vpop.f32.mrf.mxu0
  %v928 = vadd.f32 %v157, %v927
  %v929 = vpop.f32.mrf.mxu0
  %v930 = vpop.f32.mrf.mxu0
  %v931 = vadd.f32 %v157, %v930
  %v932 = vpop.f32.mrf.mxu0
  %933 = vmatprep.mubr.bf16.mxu0 %v698
  %934 = vmatmul.mubr.bf16.gmra.mxu0 %v479
  %v935 = vpop.f32.mrf.mxu0
  %v936 = vadd.f32 %v157, %v935
  %v937 = vpop.f32.mrf.mxu0
  %v938 = vpop.f32.mrf.mxu0
  %v939 = vadd.f32 %v157, %v938
  %v940 = vpop.f32.mrf.mxu0
  %941 = vmatprep.mubr.bf16.mxu0 %v701
  %942 = vmatmul.mubr.bf16.gmra.mxu0 %v481
  %v943 = vpop.f32.mrf.mxu0
  %v944 = vadd.f32 %v157, %v943
  %v945 = vpop.f32.mrf.mxu0
  %v946 = vpop.f32.mrf.mxu0
  %v947 = vadd.f32 %v157, %v946
  %v948 = vpop.f32.mrf.mxu0
  %949 = vmatprep.mubr.bf16.mxu0 %v704
  %950 = vmatmul.mubr.bf16.gmra.mxu0 %v483
  %v951 = vpop.f32.mrf.mxu0
  %v952 = vadd.f32 %v157, %v951
  %v953 = vpop.f32.mrf.mxu0
  %v954 = vpop.f32.mrf.mxu0
  %v955 = vadd.f32 %v157, %v954
  %v956 = vpop.f32.mrf.mxu0
  %957 = vmatprep.mubr.bf16.mxu0 %v707
  %958 = vmatmul.mubr.bf16.gmra.mxu0 %v485
  %v959 = vpop.f32.mrf.mxu0
  %v960 = vadd.f32 %v157, %v959
  %v961 = vpop.f32.mrf.mxu0
  %v962 = vpop.f32.mrf.mxu0
  %v963 = vadd.f32 %v157, %v962
  %v964 = vpop.f32.mrf.mxu0
  %965 = vmatprep.mubr.bf16.mxu0 %v710
  %966 = vmatmul.mubr.bf16.gmra.mxu0 %v487
  %v967 = vpop.f32.mrf.mxu0
  %v968 = vadd.f32 %v157, %v967
  %v969 = vpop.f32.mrf.mxu0
  %v970 = vpop.f32.mrf.mxu0
  %v971 = vadd.f32 %v157, %v970
  %v972 = vpop.f32.mrf.mxu0
  %973 = vmatprep.mubr.bf16.mxu0 %v713
  %974 = vmatmul.mubr.bf16.gmra.mxu0 %v489
  %v975 = vpop.f32.mrf.mxu0
  %v976 = vadd.f32 %v157, %v975
  %v977 = vpop.f32.mrf.mxu0
  %v978 = vpop.f32.mrf.mxu0
  %v979 = vadd.f32 %v157, %v978
  %v980 = vpop.f32.mrf.mxu0
  %981 = vmatprep.mubr.bf16.mxu0 %v716
  %982 = vmatmul.mubr.bf16.gmra.mxu0 %v491
  %v983 = vpop.f32.mrf.mxu0
  %v984 = vadd.f32 %v157, %v983
  %v985 = vpop.f32.mrf.mxu0
  %v986 = vpop.f32.mrf.mxu0
  %v987 = vadd.f32 %v157, %v986
  %v988 = vpop.f32.mrf.mxu0
  %989 = vmatprep.mubr.bf16.mxu0 %v719
  %990 = vmatmul.mubr.bf16.gmra.mxu0 %v493
  %v991 = vpop.f32.mrf.mxu0
  %v992 = vadd.f32 %v157, %v991
  %v993 = vpop.f32.mrf.mxu0
  %v994 = vpop.f32.mrf.mxu0
  %v995 = vadd.f32 %v157, %v994
  %v996 = vpop.f32.mrf.mxu0
  %997 = vmatprep.mubr.bf16.mxu0 %v722
  %998 = vmatmul.mubr.bf16.gmra.mxu0 %v495
  %v999 = vpop.f32.mrf.mxu0
  %v1000 = vadd.f32 %v157, %v999
  %v1001 = vpop.f32.mrf.mxu0
  %v1002 = vpop.f32.mrf.mxu0
  %v1003 = vadd.f32 %v157, %v1002
  %v1004 = vpop.f32.mrf.mxu0
  %1005 = vmatprep.mubr.bf16.mxu0 %v725
  %1006 = vmatmul.mubr.bf16.gmra.mxu0 %v497
  %v1007 = vpop.f32.mrf.mxu0
  %v1008 = vadd.f32 %v157, %v1007
  %v1009 = vpop.f32.mrf.mxu0
  %v1010 = vpop.f32.mrf.mxu0
  %v1011 = vadd.f32 %v157, %v1010
  %v1012 = vpop.f32.mrf.mxu0
  %1013 = vmatprep.mubr.bf16.mxu0 %v728
  %1014 = vmatmul.mubr.bf16.gmra.mxu0 %v499
  %v1015 = vpop.f32.mrf.mxu0
  %v1016 = vadd.f32 %v157, %v1015
  %v1017 = vpop.f32.mrf.mxu0
  %v1018 = vpop.f32.mrf.mxu0
  %v1019 = vadd.f32 %v157, %v1018
  %v1020 = vpop.f32.mrf.mxu0
  %1021 = vmatprep.mubr.bf16.mxu0 %v731
  %1022 = vmatmul.mubr.bf16.gmra.mxu0 %v501
  %v1023 = vpop.f32.mrf.mxu0
  %v1024 = vadd.f32 %v157, %v1023
  %v1025 = vpop.f32.mrf.mxu0
  %v1026 = vpop.f32.mrf.mxu0
  %v1027 = vadd.f32 %v157, %v1026
  %v1028 = vpop.f32.mrf.mxu0
  %1029 = vmatprep.mubr.bf16.mxu0 %v734
  %1030 = vmatmul.mubr.bf16.gmra.mxu0 %v503
  %v1031 = vpop.f32.mrf.mxu0
  %v1032 = vadd.f32 %v157, %v1031
  %v1033 = vpop.f32.mrf.mxu0
  %v1034 = vpop.f32.mrf.mxu0
  %v1035 = vadd.f32 %v157, %v1034
  %v1036 = vpop.f32.mrf.mxu0
  %1037 = vmatprep.mubr.bf16.mxu0 %v737
  %1038 = vmatmul.mubr.bf16.gmra.mxu0 %v505
  %v1039 = vpop.f32.mrf.mxu0
  %v1040 = vadd.f32 %v157, %v1039
  %v1041 = vpop.f32.mrf.mxu0
  %v1042 = vpop.f32.mrf.mxu0
  %v1043 = vadd.f32 %v157, %v1042
  %v1044 = vpop.f32.mrf.mxu0
  %1045 = vmatprep.mubr.bf16.mxu0 %v740
  %1046 = vmatmul.mubr.bf16.gmra.mxu0 %v507
  %v1047 = vpop.f32.mrf.mxu0
  %v1048 = vadd.f32 %v157, %v1047
  %v1049 = vpop.f32.mrf.mxu0
  %v1050 = vpop.f32.mrf.mxu0
  %v1051 = vadd.f32 %v157, %v1050
  %v1052 = vpop.f32.mrf.mxu0
  %1053 = vmatprep.mubr.bf16.mxu0 %v743
  %1054 = vmatmul.mubr.bf16.gmra.mxu0 %v509
  %v1055 = vpop.f32.mrf.mxu0
  %v1056 = vadd.f32 %v157, %v1055
  %v1057 = vpop.f32.mrf.mxu0
  %v1058 = vpop.f32.mrf.mxu0
  %v1059 = vadd.f32 %v157, %v1058
  %v1060 = vpop.f32.mrf.mxu0
  %1061 = vmatprep.mubr.bf16.mxu0 %v746
  %1062 = vmatmul.mubr.bf16.gmra.mxu0 %v511
  %v1063 = vpop.f32.mrf.mxu0
  %v1064 = vadd.f32 %v157, %v1063
  %v1065 = vpop.f32.mrf.mxu0
  %v1066 = vpop.f32.mrf.mxu0
  %v1067 = vadd.f32 %v157, %v1066
  %v1068 = vpop.f32.mrf.mxu0
  %1069 = vmatprep.mubr.bf16.mxu0 %v749
  %1070 = vmatmul.mubr.bf16.gmra.mxu0 %v513
  %v1071 = vpop.f32.mrf.mxu0
  %v1072 = vadd.f32 %v157, %v1071
  %v1073 = vpop.f32.mrf.mxu0
  %v1074 = vpop.f32.mrf.mxu0
  %v1075 = vadd.f32 %v157, %v1074
  %v1076 = vpop.f32.mrf.mxu0
  %1077 = vmatprep.mubr.bf16.mxu0 %v752
  %1078 = vmatmul.mubr.bf16.gmra.mxu0 %v515
  %v1079 = vpop.f32.mrf.mxu0
  %v1080 = vadd.f32 %v157, %v1079
  %v1081 = vpop.f32.mrf.mxu0
  %v1082 = vpop.f32.mrf.mxu0
  %v1083 = vadd.f32 %v157, %v1082
  %v1084 = vpop.f32.mrf.mxu0
  %1085 = vmatprep.mubr.bf16.mxu0 %v755
  %1086 = vmatmul.mubr.bf16.gmra.mxu0 %v517
  %v1087 = vpop.f32.mrf.mxu0
  %v1088 = vadd.f32 %v157, %v1087
  %v1089 = vpop.f32.mrf.mxu0
  %v1090 = vpop.f32.mrf.mxu0
  %v1091 = vadd.f32 %v157, %v1090
  %v1092 = vpop.f32.mrf.mxu0
  %1093 = vmatprep.mubr.bf16.mxu0 %v758
  %1094 = vmatmul.mubr.bf16.gmra.mxu0 %v519
  %v1095 = vpop.f32.mrf.mxu0
  %v1096 = vadd.f32 %v157, %v1095
  %v1097 = vpop.f32.mrf.mxu0
  %v1098 = vpop.f32.mrf.mxu0
  %v1099 = vadd.f32 %v157, %v1098
  %v1100 = vpop.f32.mrf.mxu0
  %1101 = vmatprep.mubr.bf16.mxu0 %v761
  %1102 = vmatmul.mubr.bf16.gmra.mxu0 %v521
  %v1103 = vpop.f32.mrf.mxu0
  %v1104 = vadd.f32 %v157, %v1103
  %v1105 = vpop.f32.mrf.mxu0
  %v1106 = vpop.f32.mrf.mxu0
  %v1107 = vadd.f32 %v157, %v1106
  %v1108 = vpop.f32.mrf.mxu0
  %1109 = vmatprep.mubr.bf16.mxu0 %v764
  %1110 = vmatmul.mubr.bf16.gmra.mxu0 %v523
  %v1111 = vpop.f32.mrf.mxu0
  %v1112 = vadd.f32 %v157, %v1111
  %v1113 = vpop.f32.mrf.mxu0
  %v1114 = vpop.f32.mrf.mxu0
  %v1115 = vadd.f32 %v157, %v1114
  %v1116 = vpop.f32.mrf.mxu0
  %1117 = vmatprep.mubr.bf16.mxu0 %v767
  %1118 = vmatmul.mubr.bf16.gmra.mxu0 %v525
  %v1119 = vpop.f32.mrf.mxu0
  %v1120 = vadd.f32 %v157, %v1119
  %v1121 = vpop.f32.mrf.mxu0
  %v1122 = vpop.f32.mrf.mxu0
  %v1123 = vadd.f32 %v157, %v1122
  %v1124 = vpop.f32.mrf.mxu0
  %1125 = vmatprep.mubr.bf16.mxu0 %v770
  %1126 = vmatmul.mubr.bf16.gmra.mxu0 %v527
  %v1127 = vpop.f32.mrf.mxu0
  %v1128 = vadd.f32 %v157, %v1127
  %v1129 = vpop.f32.mrf.mxu0
  %v1130 = vpop.f32.mrf.mxu0
  %v1131 = vadd.f32 %v157, %v1130
  %v1132 = vpop.f32.mrf.mxu0
  %1133 = vmatprep.mubr.bf16.mxu0 %v773
  %1134 = vmatmul.mubr.bf16.gmra.mxu0 %v529
  %v1135 = vpop.f32.mrf.mxu0
  %v1136 = vadd.f32 %v157, %v1135
  %v1137 = vpop.f32.mrf.mxu0
  %v1138 = vpop.f32.mrf.mxu0
  %v1139 = vadd.f32 %v157, %v1138
  %v1140 = vpop.f32.mrf.mxu0
  %1141 = vmatprep.mubr.bf16.mxu0 %v776
  %1142 = vmatmul.mubr.bf16.gmra.mxu0 %v531
  %v1143 = vpop.f32.mrf.mxu0
  %v1144 = vadd.f32 %v157, %v1143
  %v1145 = vpop.f32.mrf.mxu0
  %v1146 = vpop.f32.mrf.mxu0
  %v1147 = vadd.f32 %v157, %v1146
  %v1148 = vpop.f32.mrf.mxu0
  %1149 = vmatprep.mubr.bf16.mxu0 %v779
  %1150 = vmatmul.mubr.bf16.gmra.mxu0 %v533
  %v1151 = vpop.f32.mrf.mxu0
  %v1152 = vadd.f32 %v157, %v1151
  %v1153 = vpop.f32.mrf.mxu0
  %v1154 = vpop.f32.mrf.mxu0
  %v1155 = vadd.f32 %v157, %v1154
  %v1156 = vpop.f32.mrf.mxu0
  %1157 = vmatprep.mubr.bf16.mxu0 %v782
  %1158 = vmatmul.mubr.bf16.gmra.mxu0 %v535
  %v1159 = vpop.f32.mrf.mxu0
  %v1160 = vadd.f32 %v157, %v1159
  %v1161 = vpop.f32.mrf.mxu0
  %v1162 = vpop.f32.mrf.mxu0
  %v1163 = vadd.f32 %v157, %v1162
  %v1164 = vpop.f32.mrf.mxu0
  %1165 = vmatprep.mubr.bf16.mxu0 %v785
  %1166 = vmatmul.mubr.bf16.gmra.mxu0 %v537
  %v1167 = vpop.f32.mrf.mxu0
  %v1168 = vadd.f32 %v157, %v1167
  %v1169 = vpop.f32.mrf.mxu0
  %v1170 = vpop.f32.mrf.mxu0
  %v1171 = vadd.f32 %v157, %v1170
  %v1172 = vpop.f32.mrf.mxu0
  %1173 = vmatprep.mubr.bf16.mxu0 %v788
  %1174 = vmatmul.mubr.bf16.gmra.mxu0 %v539
  %v1175 = vpop.f32.mrf.mxu0
  %v1176 = vadd.f32 %v157, %v1175
  %v1177 = vpop.f32.mrf.mxu0
  %v1178 = vpop.f32.mrf.mxu0
  %v1179 = vadd.f32 %v157, %v1178
  %v1180 = vpop.f32.mrf.mxu0
  %1181 = vmatprep.mubr.bf16.mxu0 %v791
  %1182 = vmatmul.mubr.bf16.gmra.mxu0 %v541
  %v1183 = vpop.f32.mrf.mxu0
  %v1184 = vadd.f32 %v157, %v1183
  %v1185 = vpop.f32.mrf.mxu0
  %v1186 = vpop.f32.mrf.mxu0
  %v1187 = vadd.f32 %v157, %v1186
  %v1188 = vpop.f32.mrf.mxu0
  %1189 = vmatprep.mubr.bf16.mxu0 %v794
  %1190 = vmatmul.mubr.bf16.gmra.mxu0 %v543
  %v1191 = vpop.f32.mrf.mxu0
  %v1192 = vadd.f32 %v157, %v1191
  %v1193 = vpop.f32.mrf.mxu0
  %v1194 = vpop.f32.mrf.mxu0
  %v1195 = vadd.f32 %v157, %v1194
  %v1196 = vpop.f32.mrf.mxu0
  %1197 = vmatprep.mubr.bf16.mxu0 %v797
  %1198 = vmatmul.mubr.bf16.gmra.mxu0 %v545
  %v1199 = vpop.f32.mrf.mxu0
  %v1200 = vadd.f32 %v157, %v1199
  %v1201 = vpop.f32.mrf.mxu0
  %v1202 = vpop.f32.mrf.mxu0
  %v1203 = vadd.f32 %v157, %v1202
  %v1204 = vpop.f32.mrf.mxu0
  %1205 = vmatprep.mubr.bf16.mxu0 %v800
  %1206 = vmatmul.mubr.bf16.gmra.mxu0 %v547
  %v1207 = vpop.f32.mrf.mxu0
  %v1208 = vadd.f32 %v157, %v1207
  %v1209 = vpop.f32.mrf.mxu0
  %v1210 = vpop.f32.mrf.mxu0
  %v1211 = vadd.f32 %v157, %v1210
  %v1212 = vpop.f32.mrf.mxu0
  %1213 = vmatprep.mubr.bf16.mxu0 %v803
  %1214 = vmatmul.mubr.bf16.gmra.mxu0 %v549
  %v1215 = vpop.f32.mrf.mxu0
  %v1216 = vadd.f32 %v157, %v1215
  %v1217 = vpop.f32.mrf.mxu0
  %v1218 = vpop.f32.mrf.mxu0
  %v1219 = vadd.f32 %v157, %v1218
  %v1220 = vpop.f32.mrf.mxu0
  %1221 = vmatprep.mubr.bf16.mxu0 %v806
  %1222 = vmatmul.mubr.bf16.gmra.mxu0 %v551
  %v1223 = vpop.f32.mrf.mxu0
  %v1224 = vadd.f32 %v157, %v1223
  %v1225 = vpop.f32.mrf.mxu0
  %v1226 = vpop.f32.mrf.mxu0
  %v1227 = vadd.f32 %v157, %v1226
  %v1228 = vpop.f32.mrf.mxu0
  %1229 = vmatprep.mubr.bf16.mxu0 %v809
  %1230 = vmatmul.mubr.bf16.gmra.mxu0 %v553
  %v1231 = vpop.f32.mrf.mxu0
  %v1232 = vadd.f32 %v157, %v1231
  %v1233 = vpop.f32.mrf.mxu0
  %v1234 = vpop.f32.mrf.mxu0
  %v1235 = vadd.f32 %v157, %v1234
  %v1236 = vpop.f32.mrf.mxu0
  %1237 = vmatprep.mubr.bf16.mxu0 %v812
  %1238 = vmatmul.mubr.bf16.gmra.mxu0 %v555
  %v1239 = vpop.f32.mrf.mxu0
  %v1240 = vadd.f32 %v157, %v1239
  %v1241 = vpop.f32.mrf.mxu0
  %v1242 = vpop.f32.mrf.mxu0
  %v1243 = vadd.f32 %v157, %v1242
  %v1244 = vpop.f32.mrf.mxu0
  %1245 = vmatprep.mubr.bf16.mxu0 %v815
  %1246 = vmatmul.mubr.bf16.gmra.mxu0 %v557
  %v1247 = vpop.f32.mrf.mxu0
  %v1248 = vadd.f32 %v157, %v1247
  %v1249 = vpop.f32.mrf.mxu0
  %v1250 = vpop.f32.mrf.mxu0
  %v1251 = vadd.f32 %v157, %v1250
  %v1252 = vpop.f32.mrf.mxu0
  %1253 = vdwg.mxu0
  %v1254 = vmax.f32 %v856, 0.0
  %v1255 = vmax.f32 %v859, 0.0
  %v1256 = vmax.f32 %v864, 0.0
  %v1257 = vmax.f32 %v867, 0.0
  %v1258 = vmax.f32 %v872, 0.0
  %v1259 = vmax.f32 %v875, 0.0
  %v1260 = vmax.f32 %v880, 0.0
  %v1261 = vmax.f32 %v883, 0.0
  %v1262 = vmax.f32 %v888, 0.0
  %v1263 = vmax.f32 %v891, 0.0
  %v1264 = vmax.f32 %v896, 0.0
  %v1265 = vmax.f32 %v899, 0.0
  %v1266 = vmax.f32 %v904, 0.0
  %v1267 = vmax.f32 %v907, 0.0
  %v1268 = vmax.f32 %v912, 0.0
  %v1269 = vmax.f32 %v915, 0.0
  %v1270 = vmax.f32 %v920, 0.0
  %v1271 = vmax.f32 %v923, 0.0
  %v1272 = vmax.f32 %v928, 0.0
  %v1273 = vmax.f32 %v931, 0.0
  %v1274 = vmax.f32 %v936, 0.0
  %v1275 = vmax.f32 %v939, 0.0
  %v1276 = vmax.f32 %v944, 0.0
  %v1277 = vmax.f32 %v947, 0.0
  %v1278 = vmax.f32 %v952, 0.0
  %v1279 = vmax.f32 %v955, 0.0
  %v1280 = vmax.f32 %v960, 0.0
  %v1281 = vmax.f32 %v963, 0.0
  %v1282 = vmax.f32 %v968, 0.0
  %v1283 = vmax.f32 %v971, 0.0
  %v1284 = vmax.f32 %v976, 0.0
  %v1285 = vmax.f32 %v979, 0.0
  %v1286 = vmax.f32 %v984, 0.0
  %v1287 = vmax.f32 %v987, 0.0
  %v1288 = vmax.f32 %v992, 0.0
  %v1289 = vmax.f32 %v995, 0.0
  %v1290 = vmax.f32 %v1000, 0.0
  %v1291 = vmax.f32 %v1003, 0.0
  %v1292 = vmax.f32 %v1008, 0.0
  %v1293 = vmax.f32 %v1011, 0.0
  %v1294 = vmax.f32 %v1016, 0.0
  %v1295 = vmax.f32 %v1019, 0.0
  %v1296 = vmax.f32 %v1024, 0.0
  %v1297 = vmax.f32 %v1027, 0.0
  %v1298 = vmax.f32 %v1032, 0.0
  %v1299 = vmax.f32 %v1035, 0.0
  %v1300 = vmax.f32 %v1040, 0.0
  %v1301 = vmax.f32 %v1043, 0.0
  %v1302 = vmax.f32 %v1048, 0.0
  %v1303 = vmax.f32 %v1051, 0.0
  %v1304 = vmax.f32 %v1056, 0.0
  %v1305 = vmax.f32 %v1059, 0.0
  %v1306 = vmax.f32 %v1064, 0.0
  %v1307 = vmax.f32 %v1067, 0.0
  %v1308 = vmax.f32 %v1072, 0.0
  %v1309 = vmax.f32 %v1075, 0.0
  %v1310 = vmax.f32 %v1080, 0.0
  %v1311 = vmax.f32 %v1083, 0.0
  %v1312 = vmax.f32 %v1088, 0.0
  %v1313 = vmax.f32 %v1091, 0.0
  %v1314 = vmax.f32 %v1096, 0.0
  %v1315 = vmax.f32 %v1099, 0.0
  %v1316 = vmax.f32 %v1104, 0.0
  %v1317 = vmax.f32 %v1107, 0.0
  %v1318 = vmax.f32 %v1112, 0.0
  %v1319 = vmax.f32 %v1115, 0.0
  %v1320 = vmax.f32 %v1120, 0.0
  %v1321 = vmax.f32 %v1123, 0.0
  %v1322 = vmax.f32 %v1128, 0.0
  %v1323 = vmax.f32 %v1131, 0.0
  %v1324 = vmax.f32 %v1136, 0.0
  %v1325 = vmax.f32 %v1139, 0.0
  %v1326 = vmax.f32 %v1144, 0.0
  %v1327 = vmax.f32 %v1147, 0.0
  %v1328 = vmax.f32 %v1152, 0.0
  %v1329 = vmax.f32 %v1155, 0.0
  %v1330 = vmax.f32 %v1160, 0.0
  %v1331 = vmax.f32 %v1163, 0.0
  %v1332 = vmax.f32 %v1168, 0.0
  %v1333 = vmax.f32 %v1171, 0.0
  %v1334 = vmax.f32 %v1176, 0.0
  %v1335 = vmax.f32 %v1179, 0.0
  %v1336 = vmax.f32 %v1184, 0.0
  %v1337 = vmax.f32 %v1187, 0.0
  %v1338 = vmax.f32 %v1192, 0.0
  %v1339 = vmax.f32 %v1195, 0.0
  %v1340 = vmax.f32 %v1200, 0.0
  %v1341 = vmax.f32 %v1203, 0.0
  %v1342 = vmax.f32 %v1208, 0.0
  %v1343 = vmax.f32 %v1211, 0.0
  %v1344 = vmax.f32 %v1216, 0.0
  %v1345 = vmax.f32 %v1219, 0.0
  %v1346 = vmax.f32 %v1224, 0.0
  %v1347 = vmax.f32 %v1227, 0.0
  %v1348 = vmax.f32 %v1232, 0.0
  %v1349 = vmax.f32 %v1235, 0.0
  %v1350 = vmax.f32 %v1240, 0.0
  %v1351 = vmax.f32 %v1243, 0.0
  %v1352 = vmax.f32 %v1248, 0.0
  %v1353 = vmax.f32 %v1251, 0.0
  %v1354 = vadd.f32 %v1254, %v1279
  %v1355 = vadd.f32 %v1255, %v1280
  %v1356 = vadd.f32 %v1256, %v1281
  %v1357 = vadd.f32 %v1257, %v1282
  %v1358 = vadd.f32 %v1258, %v1283
  %v1359 = vadd.f32 %v1259, %v1284
  %v1360 = vadd.f32 %v1260, %v1285
  %v1361 = vadd.f32 %v1261, %v1286
  %v1362 = vadd.f32 %v1262, %v1287
  %v1363 = vadd.f32 %v1263, %v1288
  %v1364 = vadd.f32 %v1264, %v1289
  %v1365 = vadd.f32 %v1265, %v1290
  %v1366 = vadd.f32 %v1266, %v1291
  %v1367 = vadd.f32 %v1267, %v1292
  %v1368 = vadd.f32 %v1268, %v1293
  %v1369 = vadd.f32 %v1269, %v1294
  %v1370 = vadd.f32 %v1270, %v1295
  %v1371 = vadd.f32 %v1271, %v1296
  %v1372 = vadd.f32 %v1272, %v1297
  %v1373 = vadd.f32 %v1273, %v1298
  %v1374 = vadd.f32 %v1274, %v1299
  %v1375 = vadd.f32 %v1275, %v1300
  %v1376 = vadd.f32 %v1276, %v1301
  %v1377 = vadd.f32 %v1277, %v1302
  %v1378 = vadd.f32 %v1278, %v1303
  %v1379 = vadd.f32 %v1354, %v1304
  %v1380 = vadd.f32 %v1355, %v1305
  %v1381 = vadd.f32 %v1356, %v1306
  %v1382 = vadd.f32 %v1357, %v1307
  %v1383 = vadd.f32 %v1358, %v1308
  %v1384 = vadd.f32 %v1359, %v1309
  %v1385 = vadd.f32 %v1360, %v1310
  %v1386 = vadd.f32 %v1361, %v1311
  %v1387 = vadd.f32 %v1362, %v1312
  %v1388 = vadd.f32 %v1363, %v1313
  %v1389 = vadd.f32 %v1364, %v1314
  %v1390 = vadd.f32 %v1365, %v1315
  %v1391 = vadd.f32 %v1366, %v1316
  %v1392 = vadd.f32 %v1367, %v1317
  %v1393 = vadd.f32 %v1368, %v1318
  %v1394 = vadd.f32 %v1369, %v1319
  %v1395 = vadd.f32 %v1370, %v1320
  %v1396 = vadd.f32 %v1371, %v1321
  %v1397 = vadd.f32 %v1372, %v1322
  %v1398 = vadd.f32 %v1373, %v1323
  %v1399 = vadd.f32 %v1374, %v1324
  %v1400 = vadd.f32 %v1375, %v1325
  %v1401 = vadd.f32 %v1376, %v1326
  %v1402 = vadd.f32 %v1377, %v1327
  %v1403 = vadd.f32 %v1378, %v1328
  %v1404 = vadd.f32 %v1379, %v1329
  %v1405 = vadd.f32 %v1380, %v1330
  %v1406 = vadd.f32 %v1381, %v1331
  %v1407 = vadd.f32 %v1382, %v1332
  %v1408 = vadd.f32 %v1383, %v1333
  %v1409 = vadd.f32 %v1384, %v1334
  %v1410 = vadd.f32 %v1385, %v1335
  %v1411 = vadd.f32 %v1386, %v1336
  %v1412 = vadd.f32 %v1387, %v1337
  %v1413 = vadd.f32 %v1388, %v1338
  %v1414 = vadd.f32 %v1389, %v1339
  %v1415 = vadd.f32 %v1390, %v1340
  %v1416 = vadd.f32 %v1391, %v1341
  %v1417 = vadd.f32 %v1392, %v1342
  %v1418 = vadd.f32 %v1393, %v1343
  %v1419 = vadd.f32 %v1394, %v1344
  %v1420 = vadd.f32 %v1395, %v1345
  %v1421 = vadd.f32 %v1396, %v1346
  %v1422 = vadd.f32 %v1397, %v1347
  %v1423 = vadd.f32 %v1398, %v1348
  %v1424 = vadd.f32 %v1399, %v1349
  %v1425 = vadd.f32 %v1400, %v1350
  %v1426 = vadd.f32 %v1401, %v1351
  %v1427 = vadd.f32 %v1402, %v1352
  %v1428 = vadd.f32 %v1403, %v1353
  %v1429 = vpack.c.bf16 %v1405, %v1404
  %v1430 = vpack.c.bf16 %v1407, %v1406
  %v1431 = vpack.c.bf16 %v1409, %v1408
  %v1432 = vpack.c.bf16 %v1411, %v1410
  %v1433 = vpack.c.bf16 %v1413, %v1412
  %v1434 = vpack.c.bf16 %v1415, %v1414
  %v1435 = vpack.c.bf16 %v1417, %v1416
  %v1436 = vpack.c.bf16 %v1419, %v1418
  %v1437 = vpack.c.bf16 %v1421, %v1420
  %v1438 = vpack.c.bf16 %v1423, %v1422
  %v1439 = vpack.c.bf16 %v1425, %v1424
  %v1440 = vpack.c.bf16 %v1427, %v1426
  %v1441 = vpack.c.bf16 %v1428, %v1428
  %v1442 = vld [vmem:[%s3] sm:$0xf]
  %v1443 = vld [vmem:[%s3 + $0x4] sm:$0xf]
  %v1444 = vld [vmem:[%s3 + $0x8] sm:$0xf]
  %v1445 = vld [vmem:[%s3 + $0xc] sm:$0xf]
  %v1446 = vld [vmem:[%s3 + $0x10] sm:$0xf]
  %v1447 = vld [vmem:[%s3 + $0x14] sm:$0xf]
  %v1448 = vld [vmem:[%s3 + $0x18] sm:$0xf]
  %v1449 = vld [vmem:[%s3 + $0x1c] sm:$0xf]
  %v1450 = vld [vmem:[%s3 + $0x20] sm:$0xf]
  %v1451 = vld [vmem:[%s3 + $0x24] sm:$0xf]
  %v1452 = vld [vmem:[%s3 + $0x28] sm:$0xf]
  %v1453 = vld [vmem:[%s3 + $0x2c] sm:$0xf]
  %v1454 = vld [vmem:[%s3 + $0x30] sm:$0xf]
  %v1455 = vld [vmem:[%s3 + $0x34] sm:$0xf]
  %v1456 = vld [vmem:[%s3 + $0x38] sm:$0xf]
  %v1457 = vld [vmem:[%s3 + $0x3c] sm:$0xf]
  %s1458 = scalar_lea.vmem %s3, 64
  %v1459 = vld [vmem:[%s1458] sm:$0xf]
  %v1460 = vld [vmem:[%s1458 + $0x4] sm:$0xf]
  %v1461 = vld [vmem:[%s1458 + $0x8] sm:$0xf]
  %v1462 = vld [vmem:[%s1458 + $0xc] sm:$0xf]
  %v1463 = vld [vmem:[%s1458 + $0x10] sm:$0xf]
  %v1464 = vld [vmem:[%s1458 + $0x14] sm:$0xf]
  %v1465 = vld [vmem:[%s1458 + $0x18] sm:$0xf]
  %v1466 = vld [vmem:[%s1458 + $0x1c] sm:$0xf]
  %v1467 = vld [vmem:[%s1458 + $0x20] sm:$0xf]
  %v1468 = vld [vmem:[%s1458 + $0x24] sm:$0xf]
  %v1469 = vld [vmem:[%s1458 + $0x28] sm:$0xf]
  %v1470 = vld [vmem:[%s1458 + $0x2c] sm:$0xf]
  %v1471 = vld [vmem:[%s1458 + $0x30] sm:$0xf]
  %v1472 = vld [vmem:[%s1458 + $0x34] sm:$0xf]
  %v1473 = vld [vmem:[%s1458 + $0x38] sm:$0xf]
  %v1474 = vld [vmem:[%s1458 + $0x3c] sm:$0xf]
  %v1476 = vrot.slane %v1429, 4
  %v1494 = vunpack.c.l.b16 %v1459
  %v1495 = vunpack.c.l.b16 %v1460
  %v1496 = vunpack.c.l.b16 %v1461
  %v1497 = vunpack.c.l.b16 %v1462
  %v1498 = vunpack.c.l.b16 %v1463
  %v1499 = vunpack.c.l.b16 %v1464
  %v1500 = vunpack.c.l.b16 %v1465
  %v1501 = vunpack.c.l.b16 %v1466
  %v1502 = vunpack.c.l.b16 %v1467
  %v1503 = vunpack.c.l.b16 %v1468
  %v1504 = vunpack.c.l.b16 %v1469
  %v1505 = vunpack.c.l.b16 %v1470
  %v1506 = vunpack.c.l.b16 %v1471
  %v1507 = vunpack.c.l.b16 %v1472
  %v1508 = vunpack.c.l.b16 %v1473
  %v1509 = vunpack.c.l.b16 %v1474
  %v1510 = vpack.c.b16 %v1495, %v1494
  %v1511 = vpack.c.b16 %v1497, %v1496
  %v1512 = vpack.c.b16 %v1499, %v1498
  %v1513 = vpack.c.b16 %v1501, %v1500
  %v1514 = vpack.c.b16 %v1503, %v1502
  %v1515 = vpack.c.b16 %v1505, %v1504
  %v1516 = vpack.c.b16 %v1507, %v1506
  %v1517 = vpack.c.b16 %v1509, %v1508
  %1526 = vmatprep.subr.bf16.mxu0 0
  %1527 = vmatpush1.bf16.msra.mxu0 %v1517
  %1528 = vmatprep.subr.bf16.mxu0 0
  %1529 = vmatpush1.bf16.msra.mxu0 %v1516
  %1530 = vmatprep.subr.bf16.mxu0 0
  %1531 = vmatpush1.bf16.msra.mxu0 %v1515
  %1532 = vmatprep.subr.bf16.mxu0 0
  %1533 = vmatpush1.bf16.msra.mxu0 %v1514
  %1534 = vmatprep.subr.bf16.mxu0 0
  %1535 = vmatpush1.bf16.msra.mxu0 %v1513
  %1536 = vmatprep.subr.bf16.mxu0 0
  %1537 = vmatpush1.bf16.msra.mxu0 %v1512
  %1538 = vmatprep.subr.bf16.mxu0 0
  %1539 = vmatpush1.bf16.msra.mxu0 %v1511
  %1540 = vmatprep.subr.bf16.mxu0 0
  %1541 = vmatpush1.bf16.msra.mxu0 %v1510
  %1542 = vmatprep.subr.bf16.mxu0 0
  %1543 = vmatpush2.bf16.msra.mxu0 0
  %1544 = vmatprep.subr.bf16.mxu0 0
  %1545 = vmatpush2.bf16.msra.mxu0 0
  %1546 = vmatprep.subr.bf16.mxu0 0
  %1547 = vmatpush2.bf16.msra.mxu0 0
  %1548 = vmatprep.subr.bf16.mxu0 0
  %1549 = vmatpush2.bf16.msra.mxu0 0
  %1550 = vmatprep.subr.bf16.mxu0 0
  %1551 = vmatpush2.bf16.msra.mxu0 0
  %1552 = vmatprep.subr.bf16.mxu0 0
  %1553 = vmatpush2.bf16.msra.mxu0 0
  %1554 = vmatprep.subr.bf16.mxu0 0
  %1555 = vmatpush2.bf16.msra.mxu0 0
  %1556 = vmatprep.subr.bf16.mxu0 0
  %1557 = vmatpush2.bf16.msra.mxu0 0
  %1558 = vmatprep.mubr.bf16.mxu0 0
  %1559 = vmatmul.mubr.bf16.gmra.mxu0 %v1476
  %v1560 = vpop.f32.mrf.mxu0
  %v1561 = vadd.f32 0.0, %v1560
  %v1562 = vpop.f32.mrf.mxu0
  %v1563 = vpop.f32.mrf.mxu0
  %v1564 = vpop.f32.mrf.mxu0
  %1565 = vdwg.mxu0
  %v1582 = vunpack.c.l.b16 %v1442
  %v1583 = vunpack.c.l.b16 %v1443
  %v1584 = vunpack.c.l.b16 %v1444
  %v1585 = vunpack.c.l.b16 %v1445
  %v1586 = vunpack.c.l.b16 %v1446
  %v1587 = vunpack.c.l.b16 %v1447
  %v1588 = vunpack.c.l.b16 %v1448
  %v1589 = vunpack.c.l.b16 %v1449
  %v1590 = vunpack.c.l.b16 %v1450
  %v1591 = vunpack.c.l.b16 %v1451
  %v1592 = vunpack.c.l.b16 %v1452
  %v1593 = vunpack.c.l.b16 %v1453
  %v1594 = vunpack.c.l.b16 %v1454
  %v1595 = vunpack.c.l.b16 %v1455
  %v1596 = vunpack.c.l.b16 %v1456
  %v1597 = vunpack.c.l.b16 %v1457
  %v1598 = vpack.c.b16 %v1583, %v1582
  %v1599 = vpack.c.b16 %v1585, %v1584
  %v1600 = vpack.c.b16 %v1587, %v1586
  %v1601 = vpack.c.b16 %v1589, %v1588
  %v1602 = vpack.c.b16 %v1591, %v1590
  %v1603 = vpack.c.b16 %v1593, %v1592
  %v1604 = vpack.c.b16 %v1595, %v1594
  %v1605 = vpack.c.b16 %v1597, %v1596
  %1614 = vmatprep.subr.bf16.mxu0 0
  %1615 = vmatpush1.bf16.msra.mxu0 %v1605
  %1616 = vmatprep.subr.bf16.mxu0 0
  %1617 = vmatpush1.bf16.msra.mxu0 %v1604
  %1618 = vmatprep.subr.bf16.mxu0 0
  %1619 = vmatpush1.bf16.msra.mxu0 %v1603
  %1620 = vmatprep.subr.bf16.mxu0 0
  %1621 = vmatpush1.bf16.msra.mxu0 %v1602
  %1622 = vmatprep.subr.bf16.mxu0 0
  %1623 = vmatpush1.bf16.msra.mxu0 %v1601
  %1624 = vmatprep.subr.bf16.mxu0 0
  %1625 = vmatpush1.bf16.msra.mxu0 %v1600
  %1626 = vmatprep.subr.bf16.mxu0 0
  %1627 = vmatpush1.bf16.msra.mxu0 %v1599
  %1628 = vmatprep.subr.bf16.mxu0 0
  %1629 = vmatpush1.bf16.msra.mxu0 %v1598
  %1630 = vmatprep.subr.bf16.mxu0 0
  %1631 = vmatpush2.bf16.msra.mxu0 0
  %1632 = vmatprep.subr.bf16.mxu0 0
  %1633 = vmatpush2.bf16.msra.mxu0 0
  %1634 = vmatprep.subr.bf16.mxu0 0
  %1635 = vmatpush2.bf16.msra.mxu0 0
  %1636 = vmatprep.subr.bf16.mxu0 0
  %1637 = vmatpush2.bf16.msra.mxu0 0
  %1638 = vmatprep.subr.bf16.mxu0 0
  %1639 = vmatpush2.bf16.msra.mxu0 0
  %1640 = vmatprep.subr.bf16.mxu0 0
  %1641 = vmatpush2.bf16.msra.mxu0 0
  %1642 = vmatprep.subr.bf16.mxu0 0
  %1643 = vmatpush2.bf16.msra.mxu0 0
  %1644 = vmatprep.subr.bf16.mxu0 0
  %1645 = vmatpush2.bf16.msra.mxu0 0
  %1646 = vmatprep.mubr.bf16.mxu0 0
  %1647 = vmatmul.mubr.bf16.gmra.mxu0 %v1429
  %v1648 = vpop.f32.mrf.mxu0
  %v1649 = vadd.f32 %v1561, %v1648
  %v1650 = vpop.f32.mrf.mxu0
  %v1651 = vpop.f32.mrf.mxu0
  %v1652 = vpop.f32.mrf.mxu0
  %1653 = vdwg.mxu0
  %s1654 = scalar_lea.vmem %s3, 128
  %v1655 = vld [vmem:[%s1654] sm:$0xf]
  %v1656 = vld [vmem:[%s1654 + $0x4] sm:$0xf]
  %v1657 = vld [vmem:[%s1654 + $0x8] sm:$0xf]
  %v1658 = vld [vmem:[%s1654 + $0xc] sm:$0xf]
  %v1659 = vld [vmem:[%s1654 + $0x10] sm:$0xf]
  %v1660 = vld [vmem:[%s1654 + $0x14] sm:$0xf]
  %v1661 = vld [vmem:[%s1654 + $0x18] sm:$0xf]
  %v1662 = vld [vmem:[%s1654 + $0x1c] sm:$0xf]
  %v1663 = vld [vmem:[%s1654 + $0x20] sm:$0xf]
  %v1664 = vld [vmem:[%s1654 + $0x24] sm:$0xf]
  %v1665 = vld [vmem:[%s1654 + $0x28] sm:$0xf]
  %v1666 = vld [vmem:[%s1654 + $0x2c] sm:$0xf]
  %v1667 = vld [vmem:[%s1654 + $0x30] sm:$0xf]
  %v1668 = vld [vmem:[%s1654 + $0x34] sm:$0xf]
  %v1669 = vld [vmem:[%s1654 + $0x38] sm:$0xf]
  %v1670 = vld [vmem:[%s1654 + $0x3c] sm:$0xf]
  %v1687 = vunpack.c.l.b16 %v1655
  %v1688 = vunpack.c.l.b16 %v1656
  %v1689 = vunpack.c.l.b16 %v1657
  %v1690 = vunpack.c.l.b16 %v1658
  %v1691 = vunpack.c.l.b16 %v1659
  %v1692 = vunpack.c.l.b16 %v1660
  %v1693 = vunpack.c.l.b16 %v1661
  %v1694 = vunpack.c.l.b16 %v1662
  %v1695 = vunpack.c.l.b16 %v1663
  %v1696 = vunpack.c.l.b16 %v1664
  %v1697 = vunpack.c.l.b16 %v1665
  %v1698 = vunpack.c.l.b16 %v1666
  %v1699 = vunpack.c.l.b16 %v1667
  %v1700 = vunpack.c.l.b16 %v1668
  %v1701 = vunpack.c.l.b16 %v1669
  %v1702 = vunpack.c.l.b16 %v1670
  %v1703 = vpack.c.b16 %v1688, %v1687
  %v1704 = vpack.c.b16 %v1690, %v1689
  %v1705 = vpack.c.b16 %v1692, %v1691
  %v1706 = vpack.c.b16 %v1694, %v1693
  %v1707 = vpack.c.b16 %v1696, %v1695
  %v1708 = vpack.c.b16 %v1698, %v1697
  %v1709 = vpack.c.b16 %v1700, %v1699
  %v1710 = vpack.c.b16 %v1702, %v1701
  %1719 = vmatprep.subr.bf16.mxu0 0
  %1720 = vmatpush1.bf16.msra.mxu0 %v1710
  %1721 = vmatprep.subr.bf16.mxu0 0
  %1722 = vmatpush1.bf16.msra.mxu0 %v1709
  %1723 = vmatprep.subr.bf16.mxu0 0
  %1724 = vmatpush1.bf16.msra.mxu0 %v1708
  %1725 = vmatprep.subr.bf16.mxu0 0
  %1726 = vmatpush1.bf16.msra.mxu0 %v1707
  %1727 = vmatprep.subr.bf16.mxu0 0
  %1728 = vmatpush1.bf16.msra.mxu0 %v1706
  %1729 = vmatprep.subr.bf16.mxu0 0
  %1730 = vmatpush1.bf16.msra.mxu0 %v1705
  %1731 = vmatprep.subr.bf16.mxu0 0
  %1732 = vmatpush1.bf16.msra.mxu0 %v1704
  %1733 = vmatprep.subr.bf16.mxu0 0
  %1734 = vmatpush1.bf16.msra.mxu0 %v1703
  %1735 = vmatprep.subr.bf16.mxu0 0
  %1736 = vmatpush2.bf16.msra.mxu0 0
  %1737 = vmatprep.subr.bf16.mxu0 0
  %1738 = vmatpush2.bf16.msra.mxu0 0
  %1739 = vmatprep.subr.bf16.mxu0 0
  %1740 = vmatpush2.bf16.msra.mxu0 0
  %1741 = vmatprep.subr.bf16.mxu0 0
  %1742 = vmatpush2.bf16.msra.mxu0 0
  %1743 = vmatprep.subr.bf16.mxu0 0
  %1744 = vmatpush2.bf16.msra.mxu0 0
  %1745 = vmatprep.subr.bf16.mxu0 0
  %1746 = vmatpush2.bf16.msra.mxu0 0
  %1747 = vmatprep.subr.bf16.mxu0 0
  %1748 = vmatpush2.bf16.msra.mxu0 0
  %1749 = vmatprep.subr.bf16.mxu0 0
  %1750 = vmatpush2.bf16.msra.mxu0 0
  %1751 = vmatprep.mubr.bf16.mxu0 0
  %1752 = vmatmul.mubr.bf16.gmra.mxu0 %v1430
  %v1753 = vpop.f32.mrf.mxu0
  %v1754 = vadd.f32 0.0, %v1753
  %v1755 = vpop.f32.mrf.mxu0
  %v1756 = vpop.f32.mrf.mxu0
  %v1757 = vpop.f32.mrf.mxu0
  %1758 = vdwg.mxu0
  %v1759 = vadd.f32 %v1649, %v1754
  %s1760 = scalar_lea.vmem %s3, 192
  %v1761 = vld [vmem:[%s1760] sm:$0xf]
  %v1762 = vld [vmem:[%s1760 + $0x4] sm:$0xf]
  %v1763 = vld [vmem:[%s1760 + $0x8] sm:$0xf]
  %v1764 = vld [vmem:[%s1760 + $0xc] sm:$0xf]
  %v1765 = vld [vmem:[%s1760 + $0x10] sm:$0xf]
  %v1766 = vld [vmem:[%s1760 + $0x14] sm:$0xf]
  %v1767 = vld [vmem:[%s1760 + $0x18] sm:$0xf]
  %v1768 = vld [vmem:[%s1760 + $0x1c] sm:$0xf]
  %v1769 = vld [vmem:[%s1760 + $0x20] sm:$0xf]
  %v1770 = vld [vmem:[%s1760 + $0x24] sm:$0xf]
  %v1771 = vld [vmem:[%s1760 + $0x28] sm:$0xf]
  %v1772 = vld [vmem:[%s1760 + $0x2c] sm:$0xf]
  %v1773 = vld [vmem:[%s1760 + $0x30] sm:$0xf]
  %v1774 = vld [vmem:[%s1760 + $0x34] sm:$0xf]
  %v1775 = vld [vmem:[%s1760 + $0x38] sm:$0xf]
  %v1776 = vld [vmem:[%s1760 + $0x3c] sm:$0xf]
  %v1778 = vrot.slane %v1430, 4
  %v1796 = vunpack.c.l.b16 %v1761
  %v1797 = vunpack.c.l.b16 %v1762
  %v1798 = vunpack.c.l.b16 %v1763
  %v1799 = vunpack.c.l.b16 %v1764
  %v1800 = vunpack.c.l.b16 %v1765
  %v1801 = vunpack.c.l.b16 %v1766
  %v1802 = vunpack.c.l.b16 %v1767
  %v1803 = vunpack.c.l.b16 %v1768
  %v1804 = vunpack.c.l.b16 %v1769
  %v1805 = vunpack.c.l.b16 %v1770
  %v1806 = vunpack.c.l.b16 %v1771
  %v1807 = vunpack.c.l.b16 %v1772
  %v1808 = vunpack.c.l.b16 %v1773
  %v1809 = vunpack.c.l.b16 %v1774
  %v1810 = vunpack.c.l.b16 %v1775
  %v1811 = vunpack.c.l.b16 %v1776
  %v1812 = vpack.c.b16 %v1797, %v1796
  %v1813 = vpack.c.b16 %v1799, %v1798
  %v1814 = vpack.c.b16 %v1801, %v1800
  %v1815 = vpack.c.b16 %v1803, %v1802
  %v1816 = vpack.c.b16 %v1805, %v1804
  %v1817 = vpack.c.b16 %v1807, %v1806
  %v1818 = vpack.c.b16 %v1809, %v1808
  %v1819 = vpack.c.b16 %v1811, %v1810
  %1828 = vmatprep.subr.bf16.mxu0 0
  %1829 = vmatpush1.bf16.msra.mxu0 %v1819
  %1830 = vmatprep.subr.bf16.mxu0 0
  %1831 = vmatpush1.bf16.msra.mxu0 %v1818
  %1832 = vmatprep.subr.bf16.mxu0 0
  %1833 = vmatpush1.bf16.msra.mxu0 %v1817
  %1834 = vmatprep.subr.bf16.mxu0 0
  %1835 = vmatpush1.bf16.msra.mxu0 %v1816
  %1836 = vmatprep.subr.bf16.mxu0 0
  %1837 = vmatpush1.bf16.msra.mxu0 %v1815
  %1838 = vmatprep.subr.bf16.mxu0 0
  %1839 = vmatpush1.bf16.msra.mxu0 %v1814
  %1840 = vmatprep.subr.bf16.mxu0 0
  %1841 = vmatpush1.bf16.msra.mxu0 %v1813
  %1842 = vmatprep.subr.bf16.mxu0 0
  %1843 = vmatpush1.bf16.msra.mxu0 %v1812
  %1844 = vmatprep.subr.bf16.mxu0 0
  %1845 = vmatpush2.bf16.msra.mxu0 0
  %1846 = vmatprep.subr.bf16.mxu0 0
  %1847 = vmatpush2.bf16.msra.mxu0 0
  %1848 = vmatprep.subr.bf16.mxu0 0
  %1849 = vmatpush2.bf16.msra.mxu0 0
  %1850 = vmatprep.subr.bf16.mxu0 0
  %1851 = vmatpush2.bf16.msra.mxu0 0
  %1852 = vmatprep.subr.bf16.mxu0 0
  %1853 = vmatpush2.bf16.msra.mxu0 0
  %1854 = vmatprep.subr.bf16.mxu0 0
  %1855 = vmatpush2.bf16.msra.mxu0 0
  %1856 = vmatprep.subr.bf16.mxu0 0
  %1857 = vmatpush2.bf16.msra.mxu0 0
  %1858 = vmatprep.subr.bf16.mxu0 0
  %1859 = vmatpush2.bf16.msra.mxu0 0
  %1860 = vmatprep.mubr.bf16.mxu0 0
  %1861 = vmatmul.mubr.bf16.gmra.mxu0 %v1778
  %v1862 = vpop.f32.mrf.mxu0
  %v1863 = vadd.f32 0.0, %v1862
  %v1864 = vpop.f32.mrf.mxu0
  %v1865 = vpop.f32.mrf.mxu0
  %v1866 = vpop.f32.mrf.mxu0
  %1867 = vdwg.mxu0
  %v1868 = vadd.f32 %v1759, %v1863
  %s1869 = scalar_lea.vmem %s3, 256
  %v1870 = vld [vmem:[%s1869] sm:$0xf]
  %v1871 = vld [vmem:[%s1869 + $0x4] sm:$0xf]
  %v1872 = vld [vmem:[%s1869 + $0x8] sm:$0xf]
  %v1873 = vld [vmem:[%s1869 + $0xc] sm:$0xf]
  %v1874 = vld [vmem:[%s1869 + $0x10] sm:$0xf]
  %v1875 = vld [vmem:[%s1869 + $0x14] sm:$0xf]
  %v1876 = vld [vmem:[%s1869 + $0x18] sm:$0xf]
  %v1877 = vld [vmem:[%s1869 + $0x1c] sm:$0xf]
  %v1878 = vld [vmem:[%s1869 + $0x20] sm:$0xf]
  %v1879 = vld [vmem:[%s1869 + $0x24] sm:$0xf]
  %v1880 = vld [vmem:[%s1869 + $0x28] sm:$0xf]
  %v1881 = vld [vmem:[%s1869 + $0x2c] sm:$0xf]
  %v1882 = vld [vmem:[%s1869 + $0x30] sm:$0xf]
  %v1883 = vld [vmem:[%s1869 + $0x34] sm:$0xf]
  %v1884 = vld [vmem:[%s1869 + $0x38] sm:$0xf]
  %v1885 = vld [vmem:[%s1869 + $0x3c] sm:$0xf]
  %v1902 = vunpack.c.l.b16 %v1870
  %v1903 = vunpack.c.l.b16 %v1871
  %v1904 = vunpack.c.l.b16 %v1872
  %v1905 = vunpack.c.l.b16 %v1873
  %v1906 = vunpack.c.l.b16 %v1874
  %v1907 = vunpack.c.l.b16 %v1875
  %v1908 = vunpack.c.l.b16 %v1876
  %v1909 = vunpack.c.l.b16 %v1877
  %v1910 = vunpack.c.l.b16 %v1878
  %v1911 = vunpack.c.l.b16 %v1879
  %v1912 = vunpack.c.l.b16 %v1880
  %v1913 = vunpack.c.l.b16 %v1881
  %v1914 = vunpack.c.l.b16 %v1882
  %v1915 = vunpack.c.l.b16 %v1883
  %v1916 = vunpack.c.l.b16 %v1884
  %v1917 = vunpack.c.l.b16 %v1885
  %v1918 = vpack.c.b16 %v1903, %v1902
  %v1919 = vpack.c.b16 %v1905, %v1904
  %v1920 = vpack.c.b16 %v1907, %v1906
  %v1921 = vpack.c.b16 %v1909, %v1908
  %v1922 = vpack.c.b16 %v1911, %v1910
  %v1923 = vpack.c.b16 %v1913, %v1912
  %v1924 = vpack.c.b16 %v1915, %v1914
  %v1925 = vpack.c.b16 %v1917, %v1916
  %1934 = vmatprep.subr.bf16.mxu0 0
  %1935 = vmatpush1.bf16.msra.mxu0 %v1925
  %1936 = vmatprep.subr.bf16.mxu0 0
  %1937 = vmatpush1.bf16.msra.mxu0 %v1924
  %1938 = vmatprep.subr.bf16.mxu0 0
  %1939 = vmatpush1.bf16.msra.mxu0 %v1923
  %1940 = vmatprep.subr.bf16.mxu0 0
  %1941 = vmatpush1.bf16.msra.mxu0 %v1922
  %1942 = vmatprep.subr.bf16.mxu0 0
  %1943 = vmatpush1.bf16.msra.mxu0 %v1921
  %1944 = vmatprep.subr.bf16.mxu0 0
  %1945 = vmatpush1.bf16.msra.mxu0 %v1920
  %1946 = vmatprep.subr.bf16.mxu0 0
  %1947 = vmatpush1.bf16.msra.mxu0 %v1919
  %1948 = vmatprep.subr.bf16.mxu0 0
  %1949 = vmatpush1.bf16.msra.mxu0 %v1918
  %1950 = vmatprep.subr.bf16.mxu0 0
  %1951 = vmatpush2.bf16.msra.mxu0 0
  %1952 = vmatprep.subr.bf16.mxu0 0
  %1953 = vmatpush2.bf16.msra.mxu0 0
  %1954 = vmatprep.subr.bf16.mxu0 0
  %1955 = vmatpush2.bf16.msra.mxu0 0
  %1956 = vmatprep.subr.bf16.mxu0 0
  %1957 = vmatpush2.bf16.msra.mxu0 0
  %1958 = vmatprep.subr.bf16.mxu0 0
  %1959 = vmatpush2.bf16.msra.mxu0 0
  %1960 = vmatprep.subr.bf16.mxu0 0
  %1961 = vmatpush2.bf16.msra.mxu0 0
  %1962 = vmatprep.subr.bf16.mxu0 0
  %1963 = vmatpush2.bf16.msra.mxu0 0
  %1964 = vmatprep.subr.bf16.mxu0 0
  %1965 = vmatpush2.bf16.msra.mxu0 0
  %1966 = vmatprep.mubr.bf16.mxu0 0
  %1967 = vmatmul.mubr.bf16.gmra.mxu0 %v1431
  %v1968 = vpop.f32.mrf.mxu0
  %v1969 = vadd.f32 0.0, %v1968
  %v1970 = vpop.f32.mrf.mxu0
  %v1971 = vpop.f32.mrf.mxu0
  %v1972 = vpop.f32.mrf.mxu0
  %1973 = vdwg.mxu0
  %v1974 = vadd.f32 %v1868, %v1969
  %s1975 = scalar_lea.vmem %s3, 320
  %v1976 = vld [vmem:[%s1975] sm:$0xf]
  %v1977 = vld [vmem:[%s1975 + $0x4] sm:$0xf]
  %v1978 = vld [vmem:[%s1975 + $0x8] sm:$0xf]
  %v1979 = vld [vmem:[%s1975 + $0xc] sm:$0xf]
  %v1980 = vld [vmem:[%s1975 + $0x10] sm:$0xf]
  %v1981 = vld [vmem:[%s1975 + $0x14] sm:$0xf]
  %v1982 = vld [vmem:[%s1975 + $0x18] sm:$0xf]
  %v1983 = vld [vmem:[%s1975 + $0x1c] sm:$0xf]
  %v1984 = vld [vmem:[%s1975 + $0x20] sm:$0xf]
  %v1985 = vld [vmem:[%s1975 + $0x24] sm:$0xf]
  %v1986 = vld [vmem:[%s1975 + $0x28] sm:$0xf]
  %v1987 = vld [vmem:[%s1975 + $0x2c] sm:$0xf]
  %v1988 = vld [vmem:[%s1975 + $0x30] sm:$0xf]
  %v1989 = vld [vmem:[%s1975 + $0x34] sm:$0xf]
  %v1990 = vld [vmem:[%s1975 + $0x38] sm:$0xf]
  %v1991 = vld [vmem:[%s1975 + $0x3c] sm:$0xf]
  %v1993 = vrot.slane %v1431, 4
  %v2011 = vunpack.c.l.b16 %v1976
  %v2012 = vunpack.c.l.b16 %v1977
  %v2013 = vunpack.c.l.b16 %v1978
  %v2014 = vunpack.c.l.b16 %v1979
  %v2015 = vunpack.c.l.b16 %v1980
  %v2016 = vunpack.c.l.b16 %v1981
  %v2017 = vunpack.c.l.b16 %v1982
  %v2018 = vunpack.c.l.b16 %v1983
  %v2019 = vunpack.c.l.b16 %v1984
  %v2020 = vunpack.c.l.b16 %v1985
  %v2021 = vunpack.c.l.b16 %v1986
  %v2022 = vunpack.c.l.b16 %v1987
  %v2023 = vunpack.c.l.b16 %v1988
  %v2024 = vunpack.c.l.b16 %v1989
  %v2025 = vunpack.c.l.b16 %v1990
  %v2026 = vunpack.c.l.b16 %v1991
  %v2027 = vpack.c.b16 %v2012, %v2011
  %v2028 = vpack.c.b16 %v2014, %v2013
  %v2029 = vpack.c.b16 %v2016, %v2015
  %v2030 = vpack.c.b16 %v2018, %v2017
  %v2031 = vpack.c.b16 %v2020, %v2019
  %v2032 = vpack.c.b16 %v2022, %v2021
  %v2033 = vpack.c.b16 %v2024, %v2023
  %v2034 = vpack.c.b16 %v2026, %v2025
  %2043 = vmatprep.subr.bf16.mxu0 0
  %2044 = vmatpush1.bf16.msra.mxu0 %v2034
  %2045 = vmatprep.subr.bf16.mxu0 0
  %2046 = vmatpush1.bf16.msra.mxu0 %v2033
  %2047 = vmatprep.subr.bf16.mxu0 0
  %2048 = vmatpush1.bf16.msra.mxu0 %v2032
  %2049 = vmatprep.subr.bf16.mxu0 0
  %2050 = vmatpush1.bf16.msra.mxu0 %v2031
  %2051 = vmatprep.subr.bf16.mxu0 0
  %2052 = vmatpush1.bf16.msra.mxu0 %v2030
  %2053 = vmatprep.subr.bf16.mxu0 0
  %2054 = vmatpush1.bf16.msra.mxu0 %v2029
  %2055 = vmatprep.subr.bf16.mxu0 0
  %2056 = vmatpush1.bf16.msra.mxu0 %v2028
  %2057 = vmatprep.subr.bf16.mxu0 0
  %2058 = vmatpush1.bf16.msra.mxu0 %v2027
  %2059 = vmatprep.subr.bf16.mxu0 0
  %2060 = vmatpush2.bf16.msra.mxu0 0
  %2061 = vmatprep.subr.bf16.mxu0 0
  %2062 = vmatpush2.bf16.msra.mxu0 0
  %2063 = vmatprep.subr.bf16.mxu0 0
  %2064 = vmatpush2.bf16.msra.mxu0 0
  %2065 = vmatprep.subr.bf16.mxu0 0
  %2066 = vmatpush2.bf16.msra.mxu0 0
  %2067 = vmatprep.subr.bf16.mxu0 0
  %2068 = vmatpush2.bf16.msra.mxu0 0
  %2069 = vmatprep.subr.bf16.mxu0 0
  %2070 = vmatpush2.bf16.msra.mxu0 0
  %2071 = vmatprep.subr.bf16.mxu0 0
  %2072 = vmatpush2.bf16.msra.mxu0 0
  %2073 = vmatprep.subr.bf16.mxu0 0
  %2074 = vmatpush2.bf16.msra.mxu0 0
  %2075 = vmatprep.mubr.bf16.mxu0 0
  %2076 = vmatmul.mubr.bf16.gmra.mxu0 %v1993
  %v2077 = vpop.f32.mrf.mxu0
  %v2078 = vadd.f32 0.0, %v2077
  %v2079 = vpop.f32.mrf.mxu0
  %v2080 = vpop.f32.mrf.mxu0
  %v2081 = vpop.f32.mrf.mxu0
  %2082 = vdwg.mxu0
  %v2083 = vadd.f32 %v1974, %v2078
  %s2084 = scalar_lea.vmem %s3, 384
  %v2085 = vld [vmem:[%s2084] sm:$0xf]
  %v2086 = vld [vmem:[%s2084 + $0x4] sm:$0xf]
  %v2087 = vld [vmem:[%s2084 + $0x8] sm:$0xf]
  %v2088 = vld [vmem:[%s2084 + $0xc] sm:$0xf]
  %v2089 = vld [vmem:[%s2084 + $0x10] sm:$0xf]
  %v2090 = vld [vmem:[%s2084 + $0x14] sm:$0xf]
  %v2091 = vld [vmem:[%s2084 + $0x18] sm:$0xf]
  %v2092 = vld [vmem:[%s2084 + $0x1c] sm:$0xf]
  %v2093 = vld [vmem:[%s2084 + $0x20] sm:$0xf]
  %v2094 = vld [vmem:[%s2084 + $0x24] sm:$0xf]
  %v2095 = vld [vmem:[%s2084 + $0x28] sm:$0xf]
  %v2096 = vld [vmem:[%s2084 + $0x2c] sm:$0xf]
  %v2097 = vld [vmem:[%s2084 + $0x30] sm:$0xf]
  %v2098 = vld [vmem:[%s2084 + $0x34] sm:$0xf]
  %v2099 = vld [vmem:[%s2084 + $0x38] sm:$0xf]
  %v2100 = vld [vmem:[%s2084 + $0x3c] sm:$0xf]
  %v2117 = vunpack.c.l.b16 %v2085
  %v2118 = vunpack.c.l.b16 %v2086
  %v2119 = vunpack.c.l.b16 %v2087
  %v2120 = vunpack.c.l.b16 %v2088
  %v2121 = vunpack.c.l.b16 %v2089
  %v2122 = vunpack.c.l.b16 %v2090
  %v2123 = vunpack.c.l.b16 %v2091
  %v2124 = vunpack.c.l.b16 %v2092
  %v2125 = vunpack.c.l.b16 %v2093
  %v2126 = vunpack.c.l.b16 %v2094
  %v2127 = vunpack.c.l.b16 %v2095
  %v2128 = vunpack.c.l.b16 %v2096
  %v2129 = vunpack.c.l.b16 %v2097
  %v2130 = vunpack.c.l.b16 %v2098
  %v2131 = vunpack.c.l.b16 %v2099
  %v2132 = vunpack.c.l.b16 %v2100
  %v2133 = vpack.c.b16 %v2118, %v2117
  %v2134 = vpack.c.b16 %v2120, %v2119
  %v2135 = vpack.c.b16 %v2122, %v2121
  %v2136 = vpack.c.b16 %v2124, %v2123
  %v2137 = vpack.c.b16 %v2126, %v2125
  %v2138 = vpack.c.b16 %v2128, %v2127
  %v2139 = vpack.c.b16 %v2130, %v2129
  %v2140 = vpack.c.b16 %v2132, %v2131
  %2149 = vmatprep.subr.bf16.mxu0 0
  %2150 = vmatpush1.bf16.msra.mxu0 %v2140
  %2151 = vmatprep.subr.bf16.mxu0 0
  %2152 = vmatpush1.bf16.msra.mxu0 %v2139
  %2153 = vmatprep.subr.bf16.mxu0 0
  %2154 = vmatpush1.bf16.msra.mxu0 %v2138
  %2155 = vmatprep.subr.bf16.mxu0 0
  %2156 = vmatpush1.bf16.msra.mxu0 %v2137
  %2157 = vmatprep.subr.bf16.mxu0 0
  %2158 = vmatpush1.bf16.msra.mxu0 %v2136
  %2159 = vmatprep.subr.bf16.mxu0 0
  %2160 = vmatpush1.bf16.msra.mxu0 %v2135
  %2161 = vmatprep.subr.bf16.mxu0 0
  %2162 = vmatpush1.bf16.msra.mxu0 %v2134
  %2163 = vmatprep.subr.bf16.mxu0 0
  %2164 = vmatpush1.bf16.msra.mxu0 %v2133
  %2165 = vmatprep.subr.bf16.mxu0 0
  %2166 = vmatpush2.bf16.msra.mxu0 0
  %2167 = vmatprep.subr.bf16.mxu0 0
  %2168 = vmatpush2.bf16.msra.mxu0 0
  %2169 = vmatprep.subr.bf16.mxu0 0
  %2170 = vmatpush2.bf16.msra.mxu0 0
  %2171 = vmatprep.subr.bf16.mxu0 0
  %2172 = vmatpush2.bf16.msra.mxu0 0
  %2173 = vmatprep.subr.bf16.mxu0 0
  %2174 = vmatpush2.bf16.msra.mxu0 0
  %2175 = vmatprep.subr.bf16.mxu0 0
  %2176 = vmatpush2.bf16.msra.mxu0 0
  %2177 = vmatprep.subr.bf16.mxu0 0
  %2178 = vmatpush2.bf16.msra.mxu0 0
  %2179 = vmatprep.subr.bf16.mxu0 0
  %2180 = vmatpush2.bf16.msra.mxu0 0
  %2181 = vmatprep.mubr.bf16.mxu0 0
  %2182 = vmatmul.mubr.bf16.gmra.mxu0 %v1432
  %v2183 = vpop.f32.mrf.mxu0
  %v2184 = vadd.f32 0.0, %v2183
  %v2185 = vpop.f32.mrf.mxu0
  %v2186 = vpop.f32.mrf.mxu0
  %v2187 = vpop.f32.mrf.mxu0
  %2188 = vdwg.mxu0
  %v2189 = vadd.f32 %v2083, %v2184
  %s2190 = scalar_lea.vmem %s3, 448
  %v2191 = vld [vmem:[%s2190] sm:$0xf]
  %v2192 = vld [vmem:[%s2190 + $0x4] sm:$0xf]
  %v2193 = vld [vmem:[%s2190 + $0x8] sm:$0xf]
  %v2194 = vld [vmem:[%s2190 + $0xc] sm:$0xf]
  %v2195 = vld [vmem:[%s2190 + $0x10] sm:$0xf]
  %v2196 = vld [vmem:[%s2190 + $0x14] sm:$0xf]
  %v2197 = vld [vmem:[%s2190 + $0x18] sm:$0xf]
  %v2198 = vld [vmem:[%s2190 + $0x1c] sm:$0xf]
  %v2199 = vld [vmem:[%s2190 + $0x20] sm:$0xf]
  %v2200 = vld [vmem:[%s2190 + $0x24] sm:$0xf]
  %v2201 = vld [vmem:[%s2190 + $0x28] sm:$0xf]
  %v2202 = vld [vmem:[%s2190 + $0x2c] sm:$0xf]
  %v2203 = vld [vmem:[%s2190 + $0x30] sm:$0xf]
  %v2204 = vld [vmem:[%s2190 + $0x34] sm:$0xf]
  %v2205 = vld [vmem:[%s2190 + $0x38] sm:$0xf]
  %v2206 = vld [vmem:[%s2190 + $0x3c] sm:$0xf]
  %v2208 = vrot.slane %v1432, 4
  %v2226 = vunpack.c.l.b16 %v2191
  %v2227 = vunpack.c.l.b16 %v2192
  %v2228 = vunpack.c.l.b16 %v2193
  %v2229 = vunpack.c.l.b16 %v2194
  %v2230 = vunpack.c.l.b16 %v2195
  %v2231 = vunpack.c.l.b16 %v2196
  %v2232 = vunpack.c.l.b16 %v2197
  %v2233 = vunpack.c.l.b16 %v2198
  %v2234 = vunpack.c.l.b16 %v2199
  %v2235 = vunpack.c.l.b16 %v2200
  %v2236 = vunpack.c.l.b16 %v2201
  %v2237 = vunpack.c.l.b16 %v2202
  %v2238 = vunpack.c.l.b16 %v2203
  %v2239 = vunpack.c.l.b16 %v2204
  %v2240 = vunpack.c.l.b16 %v2205
  %v2241 = vunpack.c.l.b16 %v2206
  %v2242 = vpack.c.b16 %v2227, %v2226
  %v2243 = vpack.c.b16 %v2229, %v2228
  %v2244 = vpack.c.b16 %v2231, %v2230
  %v2245 = vpack.c.b16 %v2233, %v2232
  %v2246 = vpack.c.b16 %v2235, %v2234
  %v2247 = vpack.c.b16 %v2237, %v2236
  %v2248 = vpack.c.b16 %v2239, %v2238
  %v2249 = vpack.c.b16 %v2241, %v2240
  %2258 = vmatprep.subr.bf16.mxu0 0
  %2259 = vmatpush1.bf16.msra.mxu0 %v2249
  %2260 = vmatprep.subr.bf16.mxu0 0
  %2261 = vmatpush1.bf16.msra.mxu0 %v2248
  %2262 = vmatprep.subr.bf16.mxu0 0
  %2263 = vmatpush1.bf16.msra.mxu0 %v2247
  %2264 = vmatprep.subr.bf16.mxu0 0
  %2265 = vmatpush1.bf16.msra.mxu0 %v2246
  %2266 = vmatprep.subr.bf16.mxu0 0
  %2267 = vmatpush1.bf16.msra.mxu0 %v2245
  %2268 = vmatprep.subr.bf16.mxu0 0
  %2269 = vmatpush1.bf16.msra.mxu0 %v2244
  %2270 = vmatprep.subr.bf16.mxu0 0
  %2271 = vmatpush1.bf16.msra.mxu0 %v2243
  %2272 = vmatprep.subr.bf16.mxu0 0
  %2273 = vmatpush1.bf16.msra.mxu0 %v2242
  %2274 = vmatprep.subr.bf16.mxu0 0
  %2275 = vmatpush2.bf16.msra.mxu0 0
  %2276 = vmatprep.subr.bf16.mxu0 0
  %2277 = vmatpush2.bf16.msra.mxu0 0
  %2278 = vmatprep.subr.bf16.mxu0 0
  %2279 = vmatpush2.bf16.msra.mxu0 0
  %2280 = vmatprep.subr.bf16.mxu0 0
  %2281 = vmatpush2.bf16.msra.mxu0 0
  %2282 = vmatprep.subr.bf16.mxu0 0
  %2283 = vmatpush2.bf16.msra.mxu0 0
  %2284 = vmatprep.subr.bf16.mxu0 0
  %2285 = vmatpush2.bf16.msra.mxu0 0
  %2286 = vmatprep.subr.bf16.mxu0 0
  %2287 = vmatpush2.bf16.msra.mxu0 0
  %2288 = vmatprep.subr.bf16.mxu0 0
  %2289 = vmatpush2.bf16.msra.mxu0 0
  %2290 = vmatprep.mubr.bf16.mxu0 0
  %2291 = vmatmul.mubr.bf16.gmra.mxu0 %v2208
  %v2292 = vpop.f32.mrf.mxu0
  %v2293 = vadd.f32 0.0, %v2292
  %v2294 = vpop.f32.mrf.mxu0
  %v2295 = vpop.f32.mrf.mxu0
  %v2296 = vpop.f32.mrf.mxu0
  %2297 = vdwg.mxu0
  %v2298 = vadd.f32 %v2189, %v2293
  %s2299 = scalar_lea.vmem %s3, 512
  %v2300 = vld [vmem:[%s2299] sm:$0xf]
  %v2301 = vld [vmem:[%s2299 + $0x4] sm:$0xf]
  %v2302 = vld [vmem:[%s2299 + $0x8] sm:$0xf]
  %v2303 = vld [vmem:[%s2299 + $0xc] sm:$0xf]
  %v2304 = vld [vmem:[%s2299 + $0x10] sm:$0xf]
  %v2305 = vld [vmem:[%s2299 + $0x14] sm:$0xf]
  %v2306 = vld [vmem:[%s2299 + $0x18] sm:$0xf]
  %v2307 = vld [vmem:[%s2299 + $0x1c] sm:$0xf]
  %v2308 = vld [vmem:[%s2299 + $0x20] sm:$0xf]
  %v2309 = vld [vmem:[%s2299 + $0x24] sm:$0xf]
  %v2310 = vld [vmem:[%s2299 + $0x28] sm:$0xf]
  %v2311 = vld [vmem:[%s2299 + $0x2c] sm:$0xf]
  %v2312 = vld [vmem:[%s2299 + $0x30] sm:$0xf]
  %v2313 = vld [vmem:[%s2299 + $0x34] sm:$0xf]
  %v2314 = vld [vmem:[%s2299 + $0x38] sm:$0xf]
  %v2315 = vld [vmem:[%s2299 + $0x3c] sm:$0xf]
  %v2332 = vunpack.c.l.b16 %v2300
  %v2333 = vunpack.c.l.b16 %v2301
  %v2334 = vunpack.c.l.b16 %v2302
  %v2335 = vunpack.c.l.b16 %v2303
  %v2336 = vunpack.c.l.b16 %v2304
  %v2337 = vunpack.c.l.b16 %v2305
  %v2338 = vunpack.c.l.b16 %v2306
  %v2339 = vunpack.c.l.b16 %v2307
  %v2340 = vunpack.c.l.b16 %v2308
  %v2341 = vunpack.c.l.b16 %v2309
  %v2342 = vunpack.c.l.b16 %v2310
  %v2343 = vunpack.c.l.b16 %v2311
  %v2344 = vunpack.c.l.b16 %v2312
  %v2345 = vunpack.c.l.b16 %v2313
  %v2346 = vunpack.c.l.b16 %v2314
  %v2347 = vunpack.c.l.b16 %v2315
  %v2348 = vpack.c.b16 %v2333, %v2332
  %v2349 = vpack.c.b16 %v2335, %v2334
  %v2350 = vpack.c.b16 %v2337, %v2336
  %v2351 = vpack.c.b16 %v2339, %v2338
  %v2352 = vpack.c.b16 %v2341, %v2340
  %v2353 = vpack.c.b16 %v2343, %v2342
  %v2354 = vpack.c.b16 %v2345, %v2344
  %v2355 = vpack.c.b16 %v2347, %v2346
  %2364 = vmatprep.subr.bf16.mxu0 0
  %2365 = vmatpush1.bf16.msra.mxu0 %v2355
  %2366 = vmatprep.subr.bf16.mxu0 0
  %2367 = vmatpush1.bf16.msra.mxu0 %v2354
  %2368 = vmatprep.subr.bf16.mxu0 0
  %2369 = vmatpush1.bf16.msra.mxu0 %v2353
  %2370 = vmatprep.subr.bf16.mxu0 0
  %2371 = vmatpush1.bf16.msra.mxu0 %v2352
  %2372 = vmatprep.subr.bf16.mxu0 0
  %2373 = vmatpush1.bf16.msra.mxu0 %v2351
  %2374 = vmatprep.subr.bf16.mxu0 0
  %2375 = vmatpush1.bf16.msra.mxu0 %v2350
  %2376 = vmatprep.subr.bf16.mxu0 0
  %2377 = vmatpush1.bf16.msra.mxu0 %v2349
  %2378 = vmatprep.subr.bf16.mxu0 0
  %2379 = vmatpush1.bf16.msra.mxu0 %v2348
  %2380 = vmatprep.subr.bf16.mxu0 0
  %2381 = vmatpush2.bf16.msra.mxu0 0
  %2382 = vmatprep.subr.bf16.mxu0 0
  %2383 = vmatpush2.bf16.msra.mxu0 0
  %2384 = vmatprep.subr.bf16.mxu0 0
  %2385 = vmatpush2.bf16.msra.mxu0 0
  %2386 = vmatprep.subr.bf16.mxu0 0
  %2387 = vmatpush2.bf16.msra.mxu0 0
  %2388 = vmatprep.subr.bf16.mxu0 0
  %2389 = vmatpush2.bf16.msra.mxu0 0
  %2390 = vmatprep.subr.bf16.mxu0 0
  %2391 = vmatpush2.bf16.msra.mxu0 0
  %2392 = vmatprep.subr.bf16.mxu0 0
  %2393 = vmatpush2.bf16.msra.mxu0 0
  %2394 = vmatprep.subr.bf16.mxu0 0
  %2395 = vmatpush2.bf16.msra.mxu0 0
  %2396 = vmatprep.mubr.bf16.mxu0 0
  %2397 = vmatmul.mubr.bf16.gmra.mxu0 %v1433
  %v2398 = vpop.f32.mrf.mxu0
  %v2399 = vadd.f32 0.0, %v2398
  %v2400 = vpop.f32.mrf.mxu0
  %v2401 = vpop.f32.mrf.mxu0
  %v2402 = vpop.f32.mrf.mxu0
  %2403 = vdwg.mxu0
  %v2404 = vadd.f32 %v2298, %v2399
  %s2405 = scalar_lea.vmem %s3, 576
  %v2406 = vld [vmem:[%s2405] sm:$0xf]
  %v2407 = vld [vmem:[%s2405 + $0x4] sm:$0xf]
  %v2408 = vld [vmem:[%s2405 + $0x8] sm:$0xf]
  %v2409 = vld [vmem:[%s2405 + $0xc] sm:$0xf]
  %v2410 = vld [vmem:[%s2405 + $0x10] sm:$0xf]
  %v2411 = vld [vmem:[%s2405 + $0x14] sm:$0xf]
  %v2412 = vld [vmem:[%s2405 + $0x18] sm:$0xf]
  %v2413 = vld [vmem:[%s2405 + $0x1c] sm:$0xf]
  %v2414 = vld [vmem:[%s2405 + $0x20] sm:$0xf]
  %v2415 = vld [vmem:[%s2405 + $0x24] sm:$0xf]
  %v2416 = vld [vmem:[%s2405 + $0x28] sm:$0xf]
  %v2417 = vld [vmem:[%s2405 + $0x2c] sm:$0xf]
  %v2418 = vld [vmem:[%s2405 + $0x30] sm:$0xf]
  %v2419 = vld [vmem:[%s2405 + $0x34] sm:$0xf]
  %v2420 = vld [vmem:[%s2405 + $0x38] sm:$0xf]
  %v2421 = vld [vmem:[%s2405 + $0x3c] sm:$0xf]
  %v2423 = vrot.slane %v1433, 4
  %v2441 = vunpack.c.l.b16 %v2406
  %v2442 = vunpack.c.l.b16 %v2407
  %v2443 = vunpack.c.l.b16 %v2408
  %v2444 = vunpack.c.l.b16 %v2409
  %v2445 = vunpack.c.l.b16 %v2410
  %v2446 = vunpack.c.l.b16 %v2411
  %v2447 = vunpack.c.l.b16 %v2412
  %v2448 = vunpack.c.l.b16 %v2413
  %v2449 = vunpack.c.l.b16 %v2414
  %v2450 = vunpack.c.l.b16 %v2415
  %v2451 = vunpack.c.l.b16 %v2416
  %v2452 = vunpack.c.l.b16 %v2417
  %v2453 = vunpack.c.l.b16 %v2418
  %v2454 = vunpack.c.l.b16 %v2419
  %v2455 = vunpack.c.l.b16 %v2420
  %v2456 = vunpack.c.l.b16 %v2421
  %v2457 = vpack.c.b16 %v2442, %v2441
  %v2458 = vpack.c.b16 %v2444, %v2443
  %v2459 = vpack.c.b16 %v2446, %v2445
  %v2460 = vpack.c.b16 %v2448, %v2447
  %v2461 = vpack.c.b16 %v2450, %v2449
  %v2462 = vpack.c.b16 %v2452, %v2451
  %v2463 = vpack.c.b16 %v2454, %v2453
  %v2464 = vpack.c.b16 %v2456, %v2455
  %2473 = vmatprep.subr.bf16.mxu0 0
  %2474 = vmatpush1.bf16.msra.mxu0 %v2464
  %2475 = vmatprep.subr.bf16.mxu0 0
  %2476 = vmatpush1.bf16.msra.mxu0 %v2463
  %2477 = vmatprep.subr.bf16.mxu0 0
  %2478 = vmatpush1.bf16.msra.mxu0 %v2462
  %2479 = vmatprep.subr.bf16.mxu0 0
  %2480 = vmatpush1.bf16.msra.mxu0 %v2461
  %2481 = vmatprep.subr.bf16.mxu0 0
  %2482 = vmatpush1.bf16.msra.mxu0 %v2460
  %2483 = vmatprep.subr.bf16.mxu0 0
  %2484 = vmatpush1.bf16.msra.mxu0 %v2459
  %2485 = vmatprep.subr.bf16.mxu0 0
  %2486 = vmatpush1.bf16.msra.mxu0 %v2458
  %2487 = vmatprep.subr.bf16.mxu0 0
  %2488 = vmatpush1.bf16.msra.mxu0 %v2457
  %2489 = vmatprep.subr.bf16.mxu0 0
  %2490 = vmatpush2.bf16.msra.mxu0 0
  %2491 = vmatprep.subr.bf16.mxu0 0
  %2492 = vmatpush2.bf16.msra.mxu0 0
  %2493 = vmatprep.subr.bf16.mxu0 0
  %2494 = vmatpush2.bf16.msra.mxu0 0
  %2495 = vmatprep.subr.bf16.mxu0 0
  %2496 = vmatpush2.bf16.msra.mxu0 0
  %2497 = vmatprep.subr.bf16.mxu0 0
  %2498 = vmatpush2.bf16.msra.mxu0 0
  %2499 = vmatprep.subr.bf16.mxu0 0
  %2500 = vmatpush2.bf16.msra.mxu0 0
  %2501 = vmatprep.subr.bf16.mxu0 0
  %2502 = vmatpush2.bf16.msra.mxu0 0
  %2503 = vmatprep.subr.bf16.mxu0 0
  %2504 = vmatpush2.bf16.msra.mxu0 0
  %2505 = vmatprep.mubr.bf16.mxu0 0
  %2506 = vmatmul.mubr.bf16.gmra.mxu0 %v2423
  %v2507 = vpop.f32.mrf.mxu0
  %v2508 = vadd.f32 0.0, %v2507
  %v2509 = vpop.f32.mrf.mxu0
  %v2510 = vpop.f32.mrf.mxu0
  %v2511 = vpop.f32.mrf.mxu0
  %2512 = vdwg.mxu0
  %v2513 = vadd.f32 %v2404, %v2508
  %s2514 = scalar_lea.vmem %s3, 640
  %v2515 = vld [vmem:[%s2514] sm:$0xf]
  %v2516 = vld [vmem:[%s2514 + $0x4] sm:$0xf]
  %v2517 = vld [vmem:[%s2514 + $0x8] sm:$0xf]
  %v2518 = vld [vmem:[%s2514 + $0xc] sm:$0xf]
  %v2519 = vld [vmem:[%s2514 + $0x10] sm:$0xf]
  %v2520 = vld [vmem:[%s2514 + $0x14] sm:$0xf]
  %v2521 = vld [vmem:[%s2514 + $0x18] sm:$0xf]
  %v2522 = vld [vmem:[%s2514 + $0x1c] sm:$0xf]
  %v2523 = vld [vmem:[%s2514 + $0x20] sm:$0xf]
  %v2524 = vld [vmem:[%s2514 + $0x24] sm:$0xf]
  %v2525 = vld [vmem:[%s2514 + $0x28] sm:$0xf]
  %v2526 = vld [vmem:[%s2514 + $0x2c] sm:$0xf]
  %v2527 = vld [vmem:[%s2514 + $0x30] sm:$0xf]
  %v2528 = vld [vmem:[%s2514 + $0x34] sm:$0xf]
  %v2529 = vld [vmem:[%s2514 + $0x38] sm:$0xf]
  %v2530 = vld [vmem:[%s2514 + $0x3c] sm:$0xf]
  %v2547 = vunpack.c.l.b16 %v2515
  %v2548 = vunpack.c.l.b16 %v2516
  %v2549 = vunpack.c.l.b16 %v2517
  %v2550 = vunpack.c.l.b16 %v2518
  %v2551 = vunpack.c.l.b16 %v2519
  %v2552 = vunpack.c.l.b16 %v2520
  %v2553 = vunpack.c.l.b16 %v2521
  %v2554 = vunpack.c.l.b16 %v2522
  %v2555 = vunpack.c.l.b16 %v2523
  %v2556 = vunpack.c.l.b16 %v2524
  %v2557 = vunpack.c.l.b16 %v2525
  %v2558 = vunpack.c.l.b16 %v2526
  %v2559 = vunpack.c.l.b16 %v2527
  %v2560 = vunpack.c.l.b16 %v2528
  %v2561 = vunpack.c.l.b16 %v2529
  %v2562 = vunpack.c.l.b16 %v2530
  %v2563 = vpack.c.b16 %v2548, %v2547
  %v2564 = vpack.c.b16 %v2550, %v2549
  %v2565 = vpack.c.b16 %v2552, %v2551
  %v2566 = vpack.c.b16 %v2554, %v2553
  %v2567 = vpack.c.b16 %v2556, %v2555
  %v2568 = vpack.c.b16 %v2558, %v2557
  %v2569 = vpack.c.b16 %v2560, %v2559
  %v2570 = vpack.c.b16 %v2562, %v2561
  %2579 = vmatprep.subr.bf16.mxu0 0
  %2580 = vmatpush1.bf16.msra.mxu0 %v2570
  %2581 = vmatprep.subr.bf16.mxu0 0
  %2582 = vmatpush1.bf16.msra.mxu0 %v2569
  %2583 = vmatprep.subr.bf16.mxu0 0
  %2584 = vmatpush1.bf16.msra.mxu0 %v2568
  %2585 = vmatprep.subr.bf16.mxu0 0
  %2586 = vmatpush1.bf16.msra.mxu0 %v2567
  %2587 = vmatprep.subr.bf16.mxu0 0
  %2588 = vmatpush1.bf16.msra.mxu0 %v2566
  %2589 = vmatprep.subr.bf16.mxu0 0
  %2590 = vmatpush1.bf16.msra.mxu0 %v2565
  %2591 = vmatprep.subr.bf16.mxu0 0
  %2592 = vmatpush1.bf16.msra.mxu0 %v2564
  %2593 = vmatprep.subr.bf16.mxu0 0
  %2594 = vmatpush1.bf16.msra.mxu0 %v2563
  %2595 = vmatprep.subr.bf16.mxu0 0
  %2596 = vmatpush2.bf16.msra.mxu0 0
  %2597 = vmatprep.subr.bf16.mxu0 0
  %2598 = vmatpush2.bf16.msra.mxu0 0
  %2599 = vmatprep.subr.bf16.mxu0 0
  %2600 = vmatpush2.bf16.msra.mxu0 0
  %2601 = vmatprep.subr.bf16.mxu0 0
  %2602 = vmatpush2.bf16.msra.mxu0 0
  %2603 = vmatprep.subr.bf16.mxu0 0
  %2604 = vmatpush2.bf16.msra.mxu0 0
  %2605 = vmatprep.subr.bf16.mxu0 0
  %2606 = vmatpush2.bf16.msra.mxu0 0
  %2607 = vmatprep.subr.bf16.mxu0 0
  %2608 = vmatpush2.bf16.msra.mxu0 0
  %2609 = vmatprep.subr.bf16.mxu0 0
  %2610 = vmatpush2.bf16.msra.mxu0 0
  %2611 = vmatprep.mubr.bf16.mxu0 0
  %2612 = vmatmul.mubr.bf16.gmra.mxu0 %v1434
  %v2613 = vpop.f32.mrf.mxu0
  %v2614 = vadd.f32 0.0, %v2613
  %v2615 = vpop.f32.mrf.mxu0
  %v2616 = vpop.f32.mrf.mxu0
  %v2617 = vpop.f32.mrf.mxu0
  %2618 = vdwg.mxu0
  %v2619 = vadd.f32 %v2513, %v2614
  %s2620 = scalar_lea.vmem %s3, 704
  %v2621 = vld [vmem:[%s2620] sm:$0xf]
  %v2622 = vld [vmem:[%s2620 + $0x4] sm:$0xf]
  %v2623 = vld [vmem:[%s2620 + $0x8] sm:$0xf]
  %v2624 = vld [vmem:[%s2620 + $0xc] sm:$0xf]
  %v2625 = vld [vmem:[%s2620 + $0x10] sm:$0xf]
  %v2626 = vld [vmem:[%s2620 + $0x14] sm:$0xf]
  %v2627 = vld [vmem:[%s2620 + $0x18] sm:$0xf]
  %v2628 = vld [vmem:[%s2620 + $0x1c] sm:$0xf]
  %v2629 = vld [vmem:[%s2620 + $0x20] sm:$0xf]
  %v2630 = vld [vmem:[%s2620 + $0x24] sm:$0xf]
  %v2631 = vld [vmem:[%s2620 + $0x28] sm:$0xf]
  %v2632 = vld [vmem:[%s2620 + $0x2c] sm:$0xf]
  %v2633 = vld [vmem:[%s2620 + $0x30] sm:$0xf]
  %v2634 = vld [vmem:[%s2620 + $0x34] sm:$0xf]
  %v2635 = vld [vmem:[%s2620 + $0x38] sm:$0xf]
  %v2636 = vld [vmem:[%s2620 + $0x3c] sm:$0xf]
  %v2638 = vrot.slane %v1434, 4
  %v2656 = vunpack.c.l.b16 %v2621
  %v2657 = vunpack.c.l.b16 %v2622
  %v2658 = vunpack.c.l.b16 %v2623
  %v2659 = vunpack.c.l.b16 %v2624
  %v2660 = vunpack.c.l.b16 %v2625
  %v2661 = vunpack.c.l.b16 %v2626
  %v2662 = vunpack.c.l.b16 %v2627
  %v2663 = vunpack.c.l.b16 %v2628
  %v2664 = vunpack.c.l.b16 %v2629
  %v2665 = vunpack.c.l.b16 %v2630
  %v2666 = vunpack.c.l.b16 %v2631
  %v2667 = vunpack.c.l.b16 %v2632
  %v2668 = vunpack.c.l.b16 %v2633
  %v2669 = vunpack.c.l.b16 %v2634
  %v2670 = vunpack.c.l.b16 %v2635
  %v2671 = vunpack.c.l.b16 %v2636
  %v2672 = vpack.c.b16 %v2657, %v2656
  %v2673 = vpack.c.b16 %v2659, %v2658
  %v2674 = vpack.c.b16 %v2661, %v2660
  %v2675 = vpack.c.b16 %v2663, %v2662
  %v2676 = vpack.c.b16 %v2665, %v2664
  %v2677 = vpack.c.b16 %v2667, %v2666
  %v2678 = vpack.c.b16 %v2669, %v2668
  %v2679 = vpack.c.b16 %v2671, %v2670
  %2688 = vmatprep.subr.bf16.mxu0 0
  %2689 = vmatpush1.bf16.msra.mxu0 %v2679
  %2690 = vmatprep.subr.bf16.mxu0 0
  %2691 = vmatpush1.bf16.msra.mxu0 %v2678
  %2692 = vmatprep.subr.bf16.mxu0 0
  %2693 = vmatpush1.bf16.msra.mxu0 %v2677
  %2694 = vmatprep.subr.bf16.mxu0 0
  %2695 = vmatpush1.bf16.msra.mxu0 %v2676
  %2696 = vmatprep.subr.bf16.mxu0 0
  %2697 = vmatpush1.bf16.msra.mxu0 %v2675
  %2698 = vmatprep.subr.bf16.mxu0 0
  %2699 = vmatpush1.bf16.msra.mxu0 %v2674
  %2700 = vmatprep.subr.bf16.mxu0 0
  %2701 = vmatpush1.bf16.msra.mxu0 %v2673
  %2702 = vmatprep.subr.bf16.mxu0 0
  %2703 = vmatpush1.bf16.msra.mxu0 %v2672
  %2704 = vmatprep.subr.bf16.mxu0 0
  %2705 = vmatpush2.bf16.msra.mxu0 0
  %2706 = vmatprep.subr.bf16.mxu0 0
  %2707 = vmatpush2.bf16.msra.mxu0 0
  %2708 = vmatprep.subr.bf16.mxu0 0
  %2709 = vmatpush2.bf16.msra.mxu0 0
  %2710 = vmatprep.subr.bf16.mxu0 0
  %2711 = vmatpush2.bf16.msra.mxu0 0
  %2712 = vmatprep.subr.bf16.mxu0 0
  %2713 = vmatpush2.bf16.msra.mxu0 0
  %2714 = vmatprep.subr.bf16.mxu0 0
  %2715 = vmatpush2.bf16.msra.mxu0 0
  %2716 = vmatprep.subr.bf16.mxu0 0
  %2717 = vmatpush2.bf16.msra.mxu0 0
  %2718 = vmatprep.subr.bf16.mxu0 0
  %2719 = vmatpush2.bf16.msra.mxu0 0
  %2720 = vmatprep.mubr.bf16.mxu0 0
  %2721 = vmatmul.mubr.bf16.gmra.mxu0 %v2638
  %v2722 = vpop.f32.mrf.mxu0
  %v2723 = vadd.f32 0.0, %v2722
  %v2724 = vpop.f32.mrf.mxu0
  %v2725 = vpop.f32.mrf.mxu0
  %v2726 = vpop.f32.mrf.mxu0
  %2727 = vdwg.mxu0
  %v2728 = vadd.f32 %v2619, %v2723
  %s2729 = scalar_lea.vmem %s3, 768
  %v2730 = vld [vmem:[%s2729] sm:$0xf]
  %v2731 = vld [vmem:[%s2729 + $0x4] sm:$0xf]
  %v2732 = vld [vmem:[%s2729 + $0x8] sm:$0xf]
  %v2733 = vld [vmem:[%s2729 + $0xc] sm:$0xf]
  %v2734 = vld [vmem:[%s2729 + $0x10] sm:$0xf]
  %v2735 = vld [vmem:[%s2729 + $0x14] sm:$0xf]
  %v2736 = vld [vmem:[%s2729 + $0x18] sm:$0xf]
  %v2737 = vld [vmem:[%s2729 + $0x1c] sm:$0xf]
  %v2738 = vld [vmem:[%s2729 + $0x20] sm:$0xf]
  %v2739 = vld [vmem:[%s2729 + $0x24] sm:$0xf]
  %v2740 = vld [vmem:[%s2729 + $0x28] sm:$0xf]
  %v2741 = vld [vmem:[%s2729 + $0x2c] sm:$0xf]
  %v2742 = vld [vmem:[%s2729 + $0x30] sm:$0xf]
  %v2743 = vld [vmem:[%s2729 + $0x34] sm:$0xf]
  %v2744 = vld [vmem:[%s2729 + $0x38] sm:$0xf]
  %v2745 = vld [vmem:[%s2729 + $0x3c] sm:$0xf]
  %v2762 = vunpack.c.l.b16 %v2730
  %v2763 = vunpack.c.l.b16 %v2731
  %v2764 = vunpack.c.l.b16 %v2732
  %v2765 = vunpack.c.l.b16 %v2733
  %v2766 = vunpack.c.l.b16 %v2734
  %v2767 = vunpack.c.l.b16 %v2735
  %v2768 = vunpack.c.l.b16 %v2736
  %v2769 = vunpack.c.l.b16 %v2737
  %v2770 = vunpack.c.l.b16 %v2738
  %v2771 = vunpack.c.l.b16 %v2739
  %v2772 = vunpack.c.l.b16 %v2740
  %v2773 = vunpack.c.l.b16 %v2741
  %v2774 = vunpack.c.l.b16 %v2742
  %v2775 = vunpack.c.l.b16 %v2743
  %v2776 = vunpack.c.l.b16 %v2744
  %v2777 = vunpack.c.l.b16 %v2745
  %v2778 = vpack.c.b16 %v2763, %v2762
  %v2779 = vpack.c.b16 %v2765, %v2764
  %v2780 = vpack.c.b16 %v2767, %v2766
  %v2781 = vpack.c.b16 %v2769, %v2768
  %v2782 = vpack.c.b16 %v2771, %v2770
  %v2783 = vpack.c.b16 %v2773, %v2772
  %v2784 = vpack.c.b16 %v2775, %v2774
  %v2785 = vpack.c.b16 %v2777, %v2776
  %2794 = vmatprep.subr.bf16.mxu0 0
  %2795 = vmatpush1.bf16.msra.mxu0 %v2785
  %2796 = vmatprep.subr.bf16.mxu0 0
  %2797 = vmatpush1.bf16.msra.mxu0 %v2784
  %2798 = vmatprep.subr.bf16.mxu0 0
  %2799 = vmatpush1.bf16.msra.mxu0 %v2783
  %2800 = vmatprep.subr.bf16.mxu0 0
  %2801 = vmatpush1.bf16.msra.mxu0 %v2782
  %2802 = vmatprep.subr.bf16.mxu0 0
  %2803 = vmatpush1.bf16.msra.mxu0 %v2781
  %2804 = vmatprep.subr.bf16.mxu0 0
  %2805 = vmatpush1.bf16.msra.mxu0 %v2780
  %2806 = vmatprep.subr.bf16.mxu0 0
  %2807 = vmatpush1.bf16.msra.mxu0 %v2779
  %2808 = vmatprep.subr.bf16.mxu0 0
  %2809 = vmatpush1.bf16.msra.mxu0 %v2778
  %2810 = vmatprep.subr.bf16.mxu0 0
  %2811 = vmatpush2.bf16.msra.mxu0 0
  %2812 = vmatprep.subr.bf16.mxu0 0
  %2813 = vmatpush2.bf16.msra.mxu0 0
  %2814 = vmatprep.subr.bf16.mxu0 0
  %2815 = vmatpush2.bf16.msra.mxu0 0
  %2816 = vmatprep.subr.bf16.mxu0 0
  %2817 = vmatpush2.bf16.msra.mxu0 0
  %2818 = vmatprep.subr.bf16.mxu0 0
  %2819 = vmatpush2.bf16.msra.mxu0 0
  %2820 = vmatprep.subr.bf16.mxu0 0
  %2821 = vmatpush2.bf16.msra.mxu0 0
  %2822 = vmatprep.subr.bf16.mxu0 0
  %2823 = vmatpush2.bf16.msra.mxu0 0
  %2824 = vmatprep.subr.bf16.mxu0 0
  %2825 = vmatpush2.bf16.msra.mxu0 0
  %2826 = vmatprep.mubr.bf16.mxu0 0
  %2827 = vmatmul.mubr.bf16.gmra.mxu0 %v1435
  %v2828 = vpop.f32.mrf.mxu0
  %v2829 = vadd.f32 0.0, %v2828
  %v2830 = vpop.f32.mrf.mxu0
  %v2831 = vpop.f32.mrf.mxu0
  %v2832 = vpop.f32.mrf.mxu0
  %2833 = vdwg.mxu0
  %v2834 = vadd.f32 %v2728, %v2829
  %s2835 = scalar_lea.vmem %s3, 832
  %v2836 = vld [vmem:[%s2835] sm:$0xf]
  %v2837 = vld [vmem:[%s2835 + $0x4] sm:$0xf]
  %v2838 = vld [vmem:[%s2835 + $0x8] sm:$0xf]
  %v2839 = vld [vmem:[%s2835 + $0xc] sm:$0xf]
  %v2840 = vld [vmem:[%s2835 + $0x10] sm:$0xf]
  %v2841 = vld [vmem:[%s2835 + $0x14] sm:$0xf]
  %v2842 = vld [vmem:[%s2835 + $0x18] sm:$0xf]
  %v2843 = vld [vmem:[%s2835 + $0x1c] sm:$0xf]
  %v2844 = vld [vmem:[%s2835 + $0x20] sm:$0xf]
  %v2845 = vld [vmem:[%s2835 + $0x24] sm:$0xf]
  %v2846 = vld [vmem:[%s2835 + $0x28] sm:$0xf]
  %v2847 = vld [vmem:[%s2835 + $0x2c] sm:$0xf]
  %v2848 = vld [vmem:[%s2835 + $0x30] sm:$0xf]
  %v2849 = vld [vmem:[%s2835 + $0x34] sm:$0xf]
  %v2850 = vld [vmem:[%s2835 + $0x38] sm:$0xf]
  %v2851 = vld [vmem:[%s2835 + $0x3c] sm:$0xf]
  %v2853 = vrot.slane %v1435, 4
  %v2871 = vunpack.c.l.b16 %v2836
  %v2872 = vunpack.c.l.b16 %v2837
  %v2873 = vunpack.c.l.b16 %v2838
  %v2874 = vunpack.c.l.b16 %v2839
  %v2875 = vunpack.c.l.b16 %v2840
  %v2876 = vunpack.c.l.b16 %v2841
  %v2877 = vunpack.c.l.b16 %v2842
  %v2878 = vunpack.c.l.b16 %v2843
  %v2879 = vunpack.c.l.b16 %v2844
  %v2880 = vunpack.c.l.b16 %v2845
  %v2881 = vunpack.c.l.b16 %v2846
  %v2882 = vunpack.c.l.b16 %v2847
  %v2883 = vunpack.c.l.b16 %v2848
  %v2884 = vunpack.c.l.b16 %v2849
  %v2885 = vunpack.c.l.b16 %v2850
  %v2886 = vunpack.c.l.b16 %v2851
  %v2887 = vpack.c.b16 %v2872, %v2871
  %v2888 = vpack.c.b16 %v2874, %v2873
  %v2889 = vpack.c.b16 %v2876, %v2875
  %v2890 = vpack.c.b16 %v2878, %v2877
  %v2891 = vpack.c.b16 %v2880, %v2879
  %v2892 = vpack.c.b16 %v2882, %v2881
  %v2893 = vpack.c.b16 %v2884, %v2883
  %v2894 = vpack.c.b16 %v2886, %v2885
  %2903 = vmatprep.subr.bf16.mxu0 0
  %2904 = vmatpush1.bf16.msra.mxu0 %v2894
  %2905 = vmatprep.subr.bf16.mxu0 0
  %2906 = vmatpush1.bf16.msra.mxu0 %v2893
  %2907 = vmatprep.subr.bf16.mxu0 0
  %2908 = vmatpush1.bf16.msra.mxu0 %v2892
  %2909 = vmatprep.subr.bf16.mxu0 0
  %2910 = vmatpush1.bf16.msra.mxu0 %v2891
  %2911 = vmatprep.subr.bf16.mxu0 0
  %2912 = vmatpush1.bf16.msra.mxu0 %v2890
  %2913 = vmatprep.subr.bf16.mxu0 0
  %2914 = vmatpush1.bf16.msra.mxu0 %v2889
  %2915 = vmatprep.subr.bf16.mxu0 0
  %2916 = vmatpush1.bf16.msra.mxu0 %v2888
  %2917 = vmatprep.subr.bf16.mxu0 0
  %2918 = vmatpush1.bf16.msra.mxu0 %v2887
  %2919 = vmatprep.subr.bf16.mxu0 0
  %2920 = vmatpush2.bf16.msra.mxu0 0
  %2921 = vmatprep.subr.bf16.mxu0 0
  %2922 = vmatpush2.bf16.msra.mxu0 0
  %2923 = vmatprep.subr.bf16.mxu0 0
  %2924 = vmatpush2.bf16.msra.mxu0 0
  %2925 = vmatprep.subr.bf16.mxu0 0
  %2926 = vmatpush2.bf16.msra.mxu0 0
  %2927 = vmatprep.subr.bf16.mxu0 0
  %2928 = vmatpush2.bf16.msra.mxu0 0
  %2929 = vmatprep.subr.bf16.mxu0 0
  %2930 = vmatpush2.bf16.msra.mxu0 0
  %2931 = vmatprep.subr.bf16.mxu0 0
  %2932 = vmatpush2.bf16.msra.mxu0 0
  %2933 = vmatprep.subr.bf16.mxu0 0
  %2934 = vmatpush2.bf16.msra.mxu0 0
  %2935 = vmatprep.mubr.bf16.mxu0 0
  %2936 = vmatmul.mubr.bf16.gmra.mxu0 %v2853
  %v2937 = vpop.f32.mrf.mxu0
  %v2938 = vadd.f32 0.0, %v2937
  %v2939 = vpop.f32.mrf.mxu0
  %v2940 = vpop.f32.mrf.mxu0
  %v2941 = vpop.f32.mrf.mxu0
  %2942 = vdwg.mxu0
  %v2943 = vadd.f32 %v2834, %v2938
  %s2944 = scalar_lea.vmem %s3, 896
  %v2945 = vld [vmem:[%s2944] sm:$0xf]
  %v2946 = vld [vmem:[%s2944 + $0x4] sm:$0xf]
  %v2947 = vld [vmem:[%s2944 + $0x8] sm:$0xf]
  %v2948 = vld [vmem:[%s2944 + $0xc] sm:$0xf]
  %v2949 = vld [vmem:[%s2944 + $0x10] sm:$0xf]
  %v2950 = vld [vmem:[%s2944 + $0x14] sm:$0xf]
  %v2951 = vld [vmem:[%s2944 + $0x18] sm:$0xf]
  %v2952 = vld [vmem:[%s2944 + $0x1c] sm:$0xf]
  %v2953 = vld [vmem:[%s2944 + $0x20] sm:$0xf]
  %v2954 = vld [vmem:[%s2944 + $0x24] sm:$0xf]
  %v2955 = vld [vmem:[%s2944 + $0x28] sm:$0xf]
  %v2956 = vld [vmem:[%s2944 + $0x2c] sm:$0xf]
  %v2957 = vld [vmem:[%s2944 + $0x30] sm:$0xf]
  %v2958 = vld [vmem:[%s2944 + $0x34] sm:$0xf]
  %v2959 = vld [vmem:[%s2944 + $0x38] sm:$0xf]
  %v2960 = vld [vmem:[%s2944 + $0x3c] sm:$0xf]
  %v2977 = vunpack.c.l.b16 %v2945
  %v2978 = vunpack.c.l.b16 %v2946
  %v2979 = vunpack.c.l.b16 %v2947
  %v2980 = vunpack.c.l.b16 %v2948
  %v2981 = vunpack.c.l.b16 %v2949
  %v2982 = vunpack.c.l.b16 %v2950
  %v2983 = vunpack.c.l.b16 %v2951
  %v2984 = vunpack.c.l.b16 %v2952
  %v2985 = vunpack.c.l.b16 %v2953
  %v2986 = vunpack.c.l.b16 %v2954
  %v2987 = vunpack.c.l.b16 %v2955
  %v2988 = vunpack.c.l.b16 %v2956
  %v2989 = vunpack.c.l.b16 %v2957
  %v2990 = vunpack.c.l.b16 %v2958
  %v2991 = vunpack.c.l.b16 %v2959
  %v2992 = vunpack.c.l.b16 %v2960
  %v2993 = vpack.c.b16 %v2978, %v2977
  %v2994 = vpack.c.b16 %v2980, %v2979
  %v2995 = vpack.c.b16 %v2982, %v2981
  %v2996 = vpack.c.b16 %v2984, %v2983
  %v2997 = vpack.c.b16 %v2986, %v2985
  %v2998 = vpack.c.b16 %v2988, %v2987
  %v2999 = vpack.c.b16 %v2990, %v2989
  %v3000 = vpack.c.b16 %v2992, %v2991
  %3009 = vmatprep.subr.bf16.mxu0 0
  %3010 = vmatpush1.bf16.msra.mxu0 %v3000
  %3011 = vmatprep.subr.bf16.mxu0 0
  %3012 = vmatpush1.bf16.msra.mxu0 %v2999
  %3013 = vmatprep.subr.bf16.mxu0 0
  %3014 = vmatpush1.bf16.msra.mxu0 %v2998
  %3015 = vmatprep.subr.bf16.mxu0 0
  %3016 = vmatpush1.bf16.msra.mxu0 %v2997
  %3017 = vmatprep.subr.bf16.mxu0 0
  %3018 = vmatpush1.bf16.msra.mxu0 %v2996
  %3019 = vmatprep.subr.bf16.mxu0 0
  %3020 = vmatpush1.bf16.msra.mxu0 %v2995
  %3021 = vmatprep.subr.bf16.mxu0 0
  %3022 = vmatpush1.bf16.msra.mxu0 %v2994
  %3023 = vmatprep.subr.bf16.mxu0 0
  %3024 = vmatpush1.bf16.msra.mxu0 %v2993
  %3025 = vmatprep.subr.bf16.mxu0 0
  %3026 = vmatpush2.bf16.msra.mxu0 0
  %3027 = vmatprep.subr.bf16.mxu0 0
  %3028 = vmatpush2.bf16.msra.mxu0 0
  %3029 = vmatprep.subr.bf16.mxu0 0
  %3030 = vmatpush2.bf16.msra.mxu0 0
  %3031 = vmatprep.subr.bf16.mxu0 0
  %3032 = vmatpush2.bf16.msra.mxu0 0
  %3033 = vmatprep.subr.bf16.mxu0 0
  %3034 = vmatpush2.bf16.msra.mxu0 0
  %3035 = vmatprep.subr.bf16.mxu0 0
  %3036 = vmatpush2.bf16.msra.mxu0 0
  %3037 = vmatprep.subr.bf16.mxu0 0
  %3038 = vmatpush2.bf16.msra.mxu0 0
  %3039 = vmatprep.subr.bf16.mxu0 0
  %3040 = vmatpush2.bf16.msra.mxu0 0
  %3041 = vmatprep.mubr.bf16.mxu0 0
  %3042 = vmatmul.mubr.bf16.gmra.mxu0 %v1436
  %v3043 = vpop.f32.mrf.mxu0
  %v3044 = vadd.f32 0.0, %v3043
  %v3045 = vpop.f32.mrf.mxu0
  %v3046 = vpop.f32.mrf.mxu0
  %v3047 = vpop.f32.mrf.mxu0
  %3048 = vdwg.mxu0
  %v3049 = vadd.f32 %v2943, %v3044
  %s3050 = scalar_lea.vmem %s3, 960
  %v3051 = vld [vmem:[%s3050] sm:$0xf]
  %v3052 = vld [vmem:[%s3050 + $0x4] sm:$0xf]
  %v3053 = vld [vmem:[%s3050 + $0x8] sm:$0xf]
  %v3054 = vld [vmem:[%s3050 + $0xc] sm:$0xf]
  %v3055 = vld [vmem:[%s3050 + $0x10] sm:$0xf]
  %v3056 = vld [vmem:[%s3050 + $0x14] sm:$0xf]
  %v3057 = vld [vmem:[%s3050 + $0x18] sm:$0xf]
  %v3058 = vld [vmem:[%s3050 + $0x1c] sm:$0xf]
  %v3059 = vld [vmem:[%s3050 + $0x20] sm:$0xf]
  %v3060 = vld [vmem:[%s3050 + $0x24] sm:$0xf]
  %v3061 = vld [vmem:[%s3050 + $0x28] sm:$0xf]
  %v3062 = vld [vmem:[%s3050 + $0x2c] sm:$0xf]
  %v3063 = vld [vmem:[%s3050 + $0x30] sm:$0xf]
  %v3064 = vld [vmem:[%s3050 + $0x34] sm:$0xf]
  %v3065 = vld [vmem:[%s3050 + $0x38] sm:$0xf]
  %v3066 = vld [vmem:[%s3050 + $0x3c] sm:$0xf]
  %v3068 = vrot.slane %v1436, 4
  %v3086 = vunpack.c.l.b16 %v3051
  %v3087 = vunpack.c.l.b16 %v3052
  %v3088 = vunpack.c.l.b16 %v3053
  %v3089 = vunpack.c.l.b16 %v3054
  %v3090 = vunpack.c.l.b16 %v3055
  %v3091 = vunpack.c.l.b16 %v3056
  %v3092 = vunpack.c.l.b16 %v3057
  %v3093 = vunpack.c.l.b16 %v3058
  %v3094 = vunpack.c.l.b16 %v3059
  %v3095 = vunpack.c.l.b16 %v3060
  %v3096 = vunpack.c.l.b16 %v3061
  %v3097 = vunpack.c.l.b16 %v3062
  %v3098 = vunpack.c.l.b16 %v3063
  %v3099 = vunpack.c.l.b16 %v3064
  %v3100 = vunpack.c.l.b16 %v3065
  %v3101 = vunpack.c.l.b16 %v3066
  %v3102 = vpack.c.b16 %v3087, %v3086
  %v3103 = vpack.c.b16 %v3089, %v3088
  %v3104 = vpack.c.b16 %v3091, %v3090
  %v3105 = vpack.c.b16 %v3093, %v3092
  %v3106 = vpack.c.b16 %v3095, %v3094
  %v3107 = vpack.c.b16 %v3097, %v3096
  %v3108 = vpack.c.b16 %v3099, %v3098
  %v3109 = vpack.c.b16 %v3101, %v3100
  %3118 = vmatprep.subr.bf16.mxu0 0
  %3119 = vmatpush1.bf16.msra.mxu0 %v3109
  %3120 = vmatprep.subr.bf16.mxu0 0
  %3121 = vmatpush1.bf16.msra.mxu0 %v3108
  %3122 = vmatprep.subr.bf16.mxu0 0
  %3123 = vmatpush1.bf16.msra.mxu0 %v3107
  %3124 = vmatprep.subr.bf16.mxu0 0
  %3125 = vmatpush1.bf16.msra.mxu0 %v3106
  %3126 = vmatprep.subr.bf16.mxu0 0
  %3127 = vmatpush1.bf16.msra.mxu0 %v3105
  %3128 = vmatprep.subr.bf16.mxu0 0
  %3129 = vmatpush1.bf16.msra.mxu0 %v3104
  %3130 = vmatprep.subr.bf16.mxu0 0
  %3131 = vmatpush1.bf16.msra.mxu0 %v3103
  %3132 = vmatprep.subr.bf16.mxu0 0
  %3133 = vmatpush1.bf16.msra.mxu0 %v3102
  %3134 = vmatprep.subr.bf16.mxu0 0
  %3135 = vmatpush2.bf16.msra.mxu0 0
  %3136 = vmatprep.subr.bf16.mxu0 0
  %3137 = vmatpush2.bf16.msra.mxu0 0
  %3138 = vmatprep.subr.bf16.mxu0 0
  %3139 = vmatpush2.bf16.msra.mxu0 0
  %3140 = vmatprep.subr.bf16.mxu0 0
  %3141 = vmatpush2.bf16.msra.mxu0 0
  %3142 = vmatprep.subr.bf16.mxu0 0
  %3143 = vmatpush2.bf16.msra.mxu0 0
  %3144 = vmatprep.subr.bf16.mxu0 0
  %3145 = vmatpush2.bf16.msra.mxu0 0
  %3146 = vmatprep.subr.bf16.mxu0 0
  %3147 = vmatpush2.bf16.msra.mxu0 0
  %3148 = vmatprep.subr.bf16.mxu0 0
  %3149 = vmatpush2.bf16.msra.mxu0 0
  %3150 = vmatprep.mubr.bf16.mxu0 0
  %3151 = vmatmul.mubr.bf16.gmra.mxu0 %v3068
  %v3152 = vpop.f32.mrf.mxu0
  %v3153 = vadd.f32 0.0, %v3152
  %v3154 = vpop.f32.mrf.mxu0
  %v3155 = vpop.f32.mrf.mxu0
  %v3156 = vpop.f32.mrf.mxu0
  %3157 = vdwg.mxu0
  %v3158 = vadd.f32 %v3049, %v3153
  %s3159 = scalar_lea.vmem %s3, 1024
  %v3160 = vld [vmem:[%s3159] sm:$0xf]
  %v3161 = vld [vmem:[%s3159 + $0x4] sm:$0xf]
  %v3162 = vld [vmem:[%s3159 + $0x8] sm:$0xf]
  %v3163 = vld [vmem:[%s3159 + $0xc] sm:$0xf]
  %v3164 = vld [vmem:[%s3159 + $0x10] sm:$0xf]
  %v3165 = vld [vmem:[%s3159 + $0x14] sm:$0xf]
  %v3166 = vld [vmem:[%s3159 + $0x18] sm:$0xf]
  %v3167 = vld [vmem:[%s3159 + $0x1c] sm:$0xf]
  %v3168 = vld [vmem:[%s3159 + $0x20] sm:$0xf]
  %v3169 = vld [vmem:[%s3159 + $0x24] sm:$0xf]
  %v3170 = vld [vmem:[%s3159 + $0x28] sm:$0xf]
  %v3171 = vld [vmem:[%s3159 + $0x2c] sm:$0xf]
  %v3172 = vld [vmem:[%s3159 + $0x30] sm:$0xf]
  %v3173 = vld [vmem:[%s3159 + $0x34] sm:$0xf]
  %v3174 = vld [vmem:[%s3159 + $0x38] sm:$0xf]
  %v3175 = vld [vmem:[%s3159 + $0x3c] sm:$0xf]
  %v3192 = vunpack.c.l.b16 %v3160
  %v3193 = vunpack.c.l.b16 %v3161
  %v3194 = vunpack.c.l.b16 %v3162
  %v3195 = vunpack.c.l.b16 %v3163
  %v3196 = vunpack.c.l.b16 %v3164
  %v3197 = vunpack.c.l.b16 %v3165
  %v3198 = vunpack.c.l.b16 %v3166
  %v3199 = vunpack.c.l.b16 %v3167
  %v3200 = vunpack.c.l.b16 %v3168
  %v3201 = vunpack.c.l.b16 %v3169
  %v3202 = vunpack.c.l.b16 %v3170
  %v3203 = vunpack.c.l.b16 %v3171
  %v3204 = vunpack.c.l.b16 %v3172
  %v3205 = vunpack.c.l.b16 %v3173
  %v3206 = vunpack.c.l.b16 %v3174
  %v3207 = vunpack.c.l.b16 %v3175
  %v3208 = vpack.c.b16 %v3193, %v3192
  %v3209 = vpack.c.b16 %v3195, %v3194
  %v3210 = vpack.c.b16 %v3197, %v3196
  %v3211 = vpack.c.b16 %v3199, %v3198
  %v3212 = vpack.c.b16 %v3201, %v3200
  %v3213 = vpack.c.b16 %v3203, %v3202
  %v3214 = vpack.c.b16 %v3205, %v3204
  %v3215 = vpack.c.b16 %v3207, %v3206
  %3224 = vmatprep.subr.bf16.mxu0 0
  %3225 = vmatpush1.bf16.msra.mxu0 %v3215
  %3226 = vmatprep.subr.bf16.mxu0 0
  %3227 = vmatpush1.bf16.msra.mxu0 %v3214
  %3228 = vmatprep.subr.bf16.mxu0 0
  %3229 = vmatpush1.bf16.msra.mxu0 %v3213
  %3230 = vmatprep.subr.bf16.mxu0 0
  %3231 = vmatpush1.bf16.msra.mxu0 %v3212
  %3232 = vmatprep.subr.bf16.mxu0 0
  %3233 = vmatpush1.bf16.msra.mxu0 %v3211
  %3234 = vmatprep.subr.bf16.mxu0 0
  %3235 = vmatpush1.bf16.msra.mxu0 %v3210
  %3236 = vmatprep.subr.bf16.mxu0 0
  %3237 = vmatpush1.bf16.msra.mxu0 %v3209
  %3238 = vmatprep.subr.bf16.mxu0 0
  %3239 = vmatpush1.bf16.msra.mxu0 %v3208
  %3240 = vmatprep.subr.bf16.mxu0 0
  %3241 = vmatpush2.bf16.msra.mxu0 0
  %3242 = vmatprep.subr.bf16.mxu0 0
  %3243 = vmatpush2.bf16.msra.mxu0 0
  %3244 = vmatprep.subr.bf16.mxu0 0
  %3245 = vmatpush2.bf16.msra.mxu0 0
  %3246 = vmatprep.subr.bf16.mxu0 0
  %3247 = vmatpush2.bf16.msra.mxu0 0
  %3248 = vmatprep.subr.bf16.mxu0 0
  %3249 = vmatpush2.bf16.msra.mxu0 0
  %3250 = vmatprep.subr.bf16.mxu0 0
  %3251 = vmatpush2.bf16.msra.mxu0 0
  %3252 = vmatprep.subr.bf16.mxu0 0
  %3253 = vmatpush2.bf16.msra.mxu0 0
  %3254 = vmatprep.subr.bf16.mxu0 0
  %3255 = vmatpush2.bf16.msra.mxu0 0
  %3256 = vmatprep.mubr.bf16.mxu0 0
  %3257 = vmatmul.mubr.bf16.gmra.mxu0 %v1437
  %v3258 = vpop.f32.mrf.mxu0
  %v3259 = vadd.f32 0.0, %v3258
  %v3260 = vpop.f32.mrf.mxu0
  %v3261 = vpop.f32.mrf.mxu0
  %v3262 = vpop.f32.mrf.mxu0
  %3263 = vdwg.mxu0
  %v3264 = vadd.f32 %v3158, %v3259
  %s3265 = scalar_lea.vmem %s3, 1088
  %v3266 = vld [vmem:[%s3265] sm:$0xf]
  %v3267 = vld [vmem:[%s3265 + $0x4] sm:$0xf]
  %v3268 = vld [vmem:[%s3265 + $0x8] sm:$0xf]
  %v3269 = vld [vmem:[%s3265 + $0xc] sm:$0xf]
  %v3270 = vld [vmem:[%s3265 + $0x10] sm:$0xf]
  %v3271 = vld [vmem:[%s3265 + $0x14] sm:$0xf]
  %v3272 = vld [vmem:[%s3265 + $0x18] sm:$0xf]
  %v3273 = vld [vmem:[%s3265 + $0x1c] sm:$0xf]
  %v3274 = vld [vmem:[%s3265 + $0x20] sm:$0xf]
  %v3275 = vld [vmem:[%s3265 + $0x24] sm:$0xf]
  %v3276 = vld [vmem:[%s3265 + $0x28] sm:$0xf]
  %v3277 = vld [vmem:[%s3265 + $0x2c] sm:$0xf]
  %v3278 = vld [vmem:[%s3265 + $0x30] sm:$0xf]
  %v3279 = vld [vmem:[%s3265 + $0x34] sm:$0xf]
  %v3280 = vld [vmem:[%s3265 + $0x38] sm:$0xf]
  %v3281 = vld [vmem:[%s3265 + $0x3c] sm:$0xf]
  %v3283 = vrot.slane %v1437, 4
  %v3301 = vunpack.c.l.b16 %v3266
  %v3302 = vunpack.c.l.b16 %v3267
  %v3303 = vunpack.c.l.b16 %v3268
  %v3304 = vunpack.c.l.b16 %v3269
  %v3305 = vunpack.c.l.b16 %v3270
  %v3306 = vunpack.c.l.b16 %v3271
  %v3307 = vunpack.c.l.b16 %v3272
  %v3308 = vunpack.c.l.b16 %v3273
  %v3309 = vunpack.c.l.b16 %v3274
  %v3310 = vunpack.c.l.b16 %v3275
  %v3311 = vunpack.c.l.b16 %v3276
  %v3312 = vunpack.c.l.b16 %v3277
  %v3313 = vunpack.c.l.b16 %v3278
  %v3314 = vunpack.c.l.b16 %v3279
  %v3315 = vunpack.c.l.b16 %v3280
  %v3316 = vunpack.c.l.b16 %v3281
  %v3317 = vpack.c.b16 %v3302, %v3301
  %v3318 = vpack.c.b16 %v3304, %v3303
  %v3319 = vpack.c.b16 %v3306, %v3305
  %v3320 = vpack.c.b16 %v3308, %v3307
  %v3321 = vpack.c.b16 %v3310, %v3309
  %v3322 = vpack.c.b16 %v3312, %v3311
  %v3323 = vpack.c.b16 %v3314, %v3313
  %v3324 = vpack.c.b16 %v3316, %v3315
  %3333 = vmatprep.subr.bf16.mxu0 0
  %3334 = vmatpush1.bf16.msra.mxu0 %v3324
  %3335 = vmatprep.subr.bf16.mxu0 0
  %3336 = vmatpush1.bf16.msra.mxu0 %v3323
  %3337 = vmatprep.subr.bf16.mxu0 0
  %3338 = vmatpush1.bf16.msra.mxu0 %v3322
  %3339 = vmatprep.subr.bf16.mxu0 0
  %3340 = vmatpush1.bf16.msra.mxu0 %v3321
  %3341 = vmatprep.subr.bf16.mxu0 0
  %3342 = vmatpush1.bf16.msra.mxu0 %v3320
  %3343 = vmatprep.subr.bf16.mxu0 0
  %3344 = vmatpush1.bf16.msra.mxu0 %v3319
  %3345 = vmatprep.subr.bf16.mxu0 0
  %3346 = vmatpush1.bf16.msra.mxu0 %v3318
  %3347 = vmatprep.subr.bf16.mxu0 0
  %3348 = vmatpush1.bf16.msra.mxu0 %v3317
  %3349 = vmatprep.subr.bf16.mxu0 0
  %3350 = vmatpush2.bf16.msra.mxu0 0
  %3351 = vmatprep.subr.bf16.mxu0 0
  %3352 = vmatpush2.bf16.msra.mxu0 0
  %3353 = vmatprep.subr.bf16.mxu0 0
  %3354 = vmatpush2.bf16.msra.mxu0 0
  %3355 = vmatprep.subr.bf16.mxu0 0
  %3356 = vmatpush2.bf16.msra.mxu0 0
  %3357 = vmatprep.subr.bf16.mxu0 0
  %3358 = vmatpush2.bf16.msra.mxu0 0
  %3359 = vmatprep.subr.bf16.mxu0 0
  %3360 = vmatpush2.bf16.msra.mxu0 0
  %3361 = vmatprep.subr.bf16.mxu0 0
  %3362 = vmatpush2.bf16.msra.mxu0 0
  %3363 = vmatprep.subr.bf16.mxu0 0
  %3364 = vmatpush2.bf16.msra.mxu0 0
  %3365 = vmatprep.mubr.bf16.mxu0 0
  %3366 = vmatmul.mubr.bf16.gmra.mxu0 %v3283
  %v3367 = vpop.f32.mrf.mxu0
  %v3368 = vadd.f32 0.0, %v3367
  %v3369 = vpop.f32.mrf.mxu0
  %v3370 = vpop.f32.mrf.mxu0
  %v3371 = vpop.f32.mrf.mxu0
  %3372 = vdwg.mxu0
  %v3373 = vadd.f32 %v3264, %v3368
  %s3374 = scalar_lea.vmem %s3, 1152
  %v3375 = vld [vmem:[%s3374] sm:$0xf]
  %v3376 = vld [vmem:[%s3374 + $0x4] sm:$0xf]
  %v3377 = vld [vmem:[%s3374 + $0x8] sm:$0xf]
  %v3378 = vld [vmem:[%s3374 + $0xc] sm:$0xf]
  %v3379 = vld [vmem:[%s3374 + $0x10] sm:$0xf]
  %v3380 = vld [vmem:[%s3374 + $0x14] sm:$0xf]
  %v3381 = vld [vmem:[%s3374 + $0x18] sm:$0xf]
  %v3382 = vld [vmem:[%s3374 + $0x1c] sm:$0xf]
  %v3383 = vld [vmem:[%s3374 + $0x20] sm:$0xf]
  %v3384 = vld [vmem:[%s3374 + $0x24] sm:$0xf]
  %v3385 = vld [vmem:[%s3374 + $0x28] sm:$0xf]
  %v3386 = vld [vmem:[%s3374 + $0x2c] sm:$0xf]
  %v3387 = vld [vmem:[%s3374 + $0x30] sm:$0xf]
  %v3388 = vld [vmem:[%s3374 + $0x34] sm:$0xf]
  %v3389 = vld [vmem:[%s3374 + $0x38] sm:$0xf]
  %v3390 = vld [vmem:[%s3374 + $0x3c] sm:$0xf]
  %v3407 = vunpack.c.l.b16 %v3375
  %v3408 = vunpack.c.l.b16 %v3376
  %v3409 = vunpack.c.l.b16 %v3377
  %v3410 = vunpack.c.l.b16 %v3378
  %v3411 = vunpack.c.l.b16 %v3379
  %v3412 = vunpack.c.l.b16 %v3380
  %v3413 = vunpack.c.l.b16 %v3381
  %v3414 = vunpack.c.l.b16 %v3382
  %v3415 = vunpack.c.l.b16 %v3383
  %v3416 = vunpack.c.l.b16 %v3384
  %v3417 = vunpack.c.l.b16 %v3385
  %v3418 = vunpack.c.l.b16 %v3386
  %v3419 = vunpack.c.l.b16 %v3387
  %v3420 = vunpack.c.l.b16 %v3388
  %v3421 = vunpack.c.l.b16 %v3389
  %v3422 = vunpack.c.l.b16 %v3390
  %v3423 = vpack.c.b16 %v3408, %v3407
  %v3424 = vpack.c.b16 %v3410, %v3409
  %v3425 = vpack.c.b16 %v3412, %v3411
  %v3426 = vpack.c.b16 %v3414, %v3413
  %v3427 = vpack.c.b16 %v3416, %v3415
  %v3428 = vpack.c.b16 %v3418, %v3417
  %v3429 = vpack.c.b16 %v3420, %v3419
  %v3430 = vpack.c.b16 %v3422, %v3421
  %3439 = vmatprep.subr.bf16.mxu0 0
  %3440 = vmatpush1.bf16.msra.mxu0 %v3430
  %3441 = vmatprep.subr.bf16.mxu0 0
  %3442 = vmatpush1.bf16.msra.mxu0 %v3429
  %3443 = vmatprep.subr.bf16.mxu0 0
  %3444 = vmatpush1.bf16.msra.mxu0 %v3428
  %3445 = vmatprep.subr.bf16.mxu0 0
  %3446 = vmatpush1.bf16.msra.mxu0 %v3427
  %3447 = vmatprep.subr.bf16.mxu0 0
  %3448 = vmatpush1.bf16.msra.mxu0 %v3426
  %3449 = vmatprep.subr.bf16.mxu0 0
  %3450 = vmatpush1.bf16.msra.mxu0 %v3425
  %3451 = vmatprep.subr.bf16.mxu0 0
  %3452 = vmatpush1.bf16.msra.mxu0 %v3424
  %3453 = vmatprep.subr.bf16.mxu0 0
  %3454 = vmatpush1.bf16.msra.mxu0 %v3423
  %3455 = vmatprep.subr.bf16.mxu0 0
  %3456 = vmatpush2.bf16.msra.mxu0 0
  %3457 = vmatprep.subr.bf16.mxu0 0
  %3458 = vmatpush2.bf16.msra.mxu0 0
  %3459 = vmatprep.subr.bf16.mxu0 0
  %3460 = vmatpush2.bf16.msra.mxu0 0
  %3461 = vmatprep.subr.bf16.mxu0 0
  %3462 = vmatpush2.bf16.msra.mxu0 0
  %3463 = vmatprep.subr.bf16.mxu0 0
  %3464 = vmatpush2.bf16.msra.mxu0 0
  %3465 = vmatprep.subr.bf16.mxu0 0
  %3466 = vmatpush2.bf16.msra.mxu0 0
  %3467 = vmatprep.subr.bf16.mxu0 0
  %3468 = vmatpush2.bf16.msra.mxu0 0
  %3469 = vmatprep.subr.bf16.mxu0 0
  %3470 = vmatpush2.bf16.msra.mxu0 0
  %3471 = vmatprep.mubr.bf16.mxu0 0
  %3472 = vmatmul.mubr.bf16.gmra.mxu0 %v1438
  %v3473 = vpop.f32.mrf.mxu0
  %v3474 = vadd.f32 0.0, %v3473
  %v3475 = vpop.f32.mrf.mxu0
  %v3476 = vpop.f32.mrf.mxu0
  %v3477 = vpop.f32.mrf.mxu0
  %3478 = vdwg.mxu0
  %v3479 = vadd.f32 %v3373, %v3474
  %s3480 = scalar_lea.vmem %s3, 1216
  %v3481 = vld [vmem:[%s3480] sm:$0xf]
  %v3482 = vld [vmem:[%s3480 + $0x4] sm:$0xf]
  %v3483 = vld [vmem:[%s3480 + $0x8] sm:$0xf]
  %v3484 = vld [vmem:[%s3480 + $0xc] sm:$0xf]
  %v3485 = vld [vmem:[%s3480 + $0x10] sm:$0xf]
  %v3486 = vld [vmem:[%s3480 + $0x14] sm:$0xf]
  %v3487 = vld [vmem:[%s3480 + $0x18] sm:$0xf]
  %v3488 = vld [vmem:[%s3480 + $0x1c] sm:$0xf]
  %v3489 = vld [vmem:[%s3480 + $0x20] sm:$0xf]
  %v3490 = vld [vmem:[%s3480 + $0x24] sm:$0xf]
  %v3491 = vld [vmem:[%s3480 + $0x28] sm:$0xf]
  %v3492 = vld [vmem:[%s3480 + $0x2c] sm:$0xf]
  %v3493 = vld [vmem:[%s3480 + $0x30] sm:$0xf]
  %v3494 = vld [vmem:[%s3480 + $0x34] sm:$0xf]
  %v3495 = vld [vmem:[%s3480 + $0x38] sm:$0xf]
  %v3496 = vld [vmem:[%s3480 + $0x3c] sm:$0xf]
  %v3498 = vrot.slane %v1438, 4
  %v3516 = vunpack.c.l.b16 %v3481
  %v3517 = vunpack.c.l.b16 %v3482
  %v3518 = vunpack.c.l.b16 %v3483
  %v3519 = vunpack.c.l.b16 %v3484
  %v3520 = vunpack.c.l.b16 %v3485
  %v3521 = vunpack.c.l.b16 %v3486
  %v3522 = vunpack.c.l.b16 %v3487
  %v3523 = vunpack.c.l.b16 %v3488
  %v3524 = vunpack.c.l.b16 %v3489
  %v3525 = vunpack.c.l.b16 %v3490
  %v3526 = vunpack.c.l.b16 %v3491
  %v3527 = vunpack.c.l.b16 %v3492
  %v3528 = vunpack.c.l.b16 %v3493
  %v3529 = vunpack.c.l.b16 %v3494
  %v3530 = vunpack.c.l.b16 %v3495
  %v3531 = vunpack.c.l.b16 %v3496
  %v3532 = vpack.c.b16 %v3517, %v3516
  %v3533 = vpack.c.b16 %v3519, %v3518
  %v3534 = vpack.c.b16 %v3521, %v3520
  %v3535 = vpack.c.b16 %v3523, %v3522
  %v3536 = vpack.c.b16 %v3525, %v3524
  %v3537 = vpack.c.b16 %v3527, %v3526
  %v3538 = vpack.c.b16 %v3529, %v3528
  %v3539 = vpack.c.b16 %v3531, %v3530
  %3548 = vmatprep.subr.bf16.mxu0 0
  %3549 = vmatpush1.bf16.msra.mxu0 %v3539
  %3550 = vmatprep.subr.bf16.mxu0 0
  %3551 = vmatpush1.bf16.msra.mxu0 %v3538
  %3552 = vmatprep.subr.bf16.mxu0 0
  %3553 = vmatpush1.bf16.msra.mxu0 %v3537
  %3554 = vmatprep.subr.bf16.mxu0 0
  %3555 = vmatpush1.bf16.msra.mxu0 %v3536
  %3556 = vmatprep.subr.bf16.mxu0 0
  %3557 = vmatpush1.bf16.msra.mxu0 %v3535
  %3558 = vmatprep.subr.bf16.mxu0 0
  %3559 = vmatpush1.bf16.msra.mxu0 %v3534
  %3560 = vmatprep.subr.bf16.mxu0 0
  %3561 = vmatpush1.bf16.msra.mxu0 %v3533
  %3562 = vmatprep.subr.bf16.mxu0 0
  %3563 = vmatpush1.bf16.msra.mxu0 %v3532
  %3564 = vmatprep.subr.bf16.mxu0 0
  %3565 = vmatpush2.bf16.msra.mxu0 0
  %3566 = vmatprep.subr.bf16.mxu0 0
  %3567 = vmatpush2.bf16.msra.mxu0 0
  %3568 = vmatprep.subr.bf16.mxu0 0
  %3569 = vmatpush2.bf16.msra.mxu0 0
  %3570 = vmatprep.subr.bf16.mxu0 0
  %3571 = vmatpush2.bf16.msra.mxu0 0
  %3572 = vmatprep.subr.bf16.mxu0 0
  %3573 = vmatpush2.bf16.msra.mxu0 0
  %3574 = vmatprep.subr.bf16.mxu0 0
  %3575 = vmatpush2.bf16.msra.mxu0 0
  %3576 = vmatprep.subr.bf16.mxu0 0
  %3577 = vmatpush2.bf16.msra.mxu0 0
  %3578 = vmatprep.subr.bf16.mxu0 0
  %3579 = vmatpush2.bf16.msra.mxu0 0
  %3580 = vmatprep.mubr.bf16.mxu0 0
  %3581 = vmatmul.mubr.bf16.gmra.mxu0 %v3498
  %v3582 = vpop.f32.mrf.mxu0
  %v3583 = vadd.f32 0.0, %v3582
  %v3584 = vpop.f32.mrf.mxu0
  %v3585 = vpop.f32.mrf.mxu0
  %v3586 = vpop.f32.mrf.mxu0
  %3587 = vdwg.mxu0
  %v3588 = vadd.f32 %v3479, %v3583
  %s3589 = scalar_lea.vmem %s3, 1280
  %v3590 = vld [vmem:[%s3589] sm:$0xf]
  %v3591 = vld [vmem:[%s3589 + $0x4] sm:$0xf]
  %v3592 = vld [vmem:[%s3589 + $0x8] sm:$0xf]
  %v3593 = vld [vmem:[%s3589 + $0xc] sm:$0xf]
  %v3594 = vld [vmem:[%s3589 + $0x10] sm:$0xf]
  %v3595 = vld [vmem:[%s3589 + $0x14] sm:$0xf]
  %v3596 = vld [vmem:[%s3589 + $0x18] sm:$0xf]
  %v3597 = vld [vmem:[%s3589 + $0x1c] sm:$0xf]
  %v3598 = vld [vmem:[%s3589 + $0x20] sm:$0xf]
  %v3599 = vld [vmem:[%s3589 + $0x24] sm:$0xf]
  %v3600 = vld [vmem:[%s3589 + $0x28] sm:$0xf]
  %v3601 = vld [vmem:[%s3589 + $0x2c] sm:$0xf]
  %v3602 = vld [vmem:[%s3589 + $0x30] sm:$0xf]
  %v3603 = vld [vmem:[%s3589 + $0x34] sm:$0xf]
  %v3604 = vld [vmem:[%s3589 + $0x38] sm:$0xf]
  %v3605 = vld [vmem:[%s3589 + $0x3c] sm:$0xf]
  %v3622 = vunpack.c.l.b16 %v3590
  %v3623 = vunpack.c.l.b16 %v3591
  %v3624 = vunpack.c.l.b16 %v3592
  %v3625 = vunpack.c.l.b16 %v3593
  %v3626 = vunpack.c.l.b16 %v3594
  %v3627 = vunpack.c.l.b16 %v3595
  %v3628 = vunpack.c.l.b16 %v3596
  %v3629 = vunpack.c.l.b16 %v3597
  %v3630 = vunpack.c.l.b16 %v3598
  %v3631 = vunpack.c.l.b16 %v3599
  %v3632 = vunpack.c.l.b16 %v3600
  %v3633 = vunpack.c.l.b16 %v3601
  %v3634 = vunpack.c.l.b16 %v3602
  %v3635 = vunpack.c.l.b16 %v3603
  %v3636 = vunpack.c.l.b16 %v3604
  %v3637 = vunpack.c.l.b16 %v3605
  %v3638 = vpack.c.b16 %v3623, %v3622
  %v3639 = vpack.c.b16 %v3625, %v3624
  %v3640 = vpack.c.b16 %v3627, %v3626
  %v3641 = vpack.c.b16 %v3629, %v3628
  %v3642 = vpack.c.b16 %v3631, %v3630
  %v3643 = vpack.c.b16 %v3633, %v3632
  %v3644 = vpack.c.b16 %v3635, %v3634
  %v3645 = vpack.c.b16 %v3637, %v3636
  %3654 = vmatprep.subr.bf16.mxu0 0
  %3655 = vmatpush1.bf16.msra.mxu0 %v3645
  %3656 = vmatprep.subr.bf16.mxu0 0
  %3657 = vmatpush1.bf16.msra.mxu0 %v3644
  %3658 = vmatprep.subr.bf16.mxu0 0
  %3659 = vmatpush1.bf16.msra.mxu0 %v3643
  %3660 = vmatprep.subr.bf16.mxu0 0
  %3661 = vmatpush1.bf16.msra.mxu0 %v3642
  %3662 = vmatprep.subr.bf16.mxu0 0
  %3663 = vmatpush1.bf16.msra.mxu0 %v3641
  %3664 = vmatprep.subr.bf16.mxu0 0
  %3665 = vmatpush1.bf16.msra.mxu0 %v3640
  %3666 = vmatprep.subr.bf16.mxu0 0
  %3667 = vmatpush1.bf16.msra.mxu0 %v3639
  %3668 = vmatprep.subr.bf16.mxu0 0
  %3669 = vmatpush1.bf16.msra.mxu0 %v3638
  %3670 = vmatprep.subr.bf16.mxu0 0
  %3671 = vmatpush2.bf16.msra.mxu0 0
  %3672 = vmatprep.subr.bf16.mxu0 0
  %3673 = vmatpush2.bf16.msra.mxu0 0
  %3674 = vmatprep.subr.bf16.mxu0 0
  %3675 = vmatpush2.bf16.msra.mxu0 0
  %3676 = vmatprep.subr.bf16.mxu0 0
  %3677 = vmatpush2.bf16.msra.mxu0 0
  %3678 = vmatprep.subr.bf16.mxu0 0
  %3679 = vmatpush2.bf16.msra.mxu0 0
  %3680 = vmatprep.subr.bf16.mxu0 0
  %3681 = vmatpush2.bf16.msra.mxu0 0
  %3682 = vmatprep.subr.bf16.mxu0 0
  %3683 = vmatpush2.bf16.msra.mxu0 0
  %3684 = vmatprep.subr.bf16.mxu0 0
  %3685 = vmatpush2.bf16.msra.mxu0 0
  %3686 = vmatprep.mubr.bf16.mxu0 0
  %3687 = vmatmul.mubr.bf16.gmra.mxu0 %v1439
  %v3688 = vpop.f32.mrf.mxu0
  %v3689 = vadd.f32 0.0, %v3688
  %v3690 = vpop.f32.mrf.mxu0
  %v3691 = vpop.f32.mrf.mxu0
  %v3692 = vpop.f32.mrf.mxu0
  %3693 = vdwg.mxu0
  %v3694 = vadd.f32 %v3588, %v3689
  %s3695 = scalar_lea.vmem %s3, 1344
  %v3696 = vld [vmem:[%s3695] sm:$0xf]
  %v3697 = vld [vmem:[%s3695 + $0x4] sm:$0xf]
  %v3698 = vld [vmem:[%s3695 + $0x8] sm:$0xf]
  %v3699 = vld [vmem:[%s3695 + $0xc] sm:$0xf]
  %v3700 = vld [vmem:[%s3695 + $0x10] sm:$0xf]
  %v3701 = vld [vmem:[%s3695 + $0x14] sm:$0xf]
  %v3702 = vld [vmem:[%s3695 + $0x18] sm:$0xf]
  %v3703 = vld [vmem:[%s3695 + $0x1c] sm:$0xf]
  %v3704 = vld [vmem:[%s3695 + $0x20] sm:$0xf]
  %v3705 = vld [vmem:[%s3695 + $0x24] sm:$0xf]
  %v3706 = vld [vmem:[%s3695 + $0x28] sm:$0xf]
  %v3707 = vld [vmem:[%s3695 + $0x2c] sm:$0xf]
  %v3708 = vld [vmem:[%s3695 + $0x30] sm:$0xf]
  %v3709 = vld [vmem:[%s3695 + $0x34] sm:$0xf]
  %v3710 = vld [vmem:[%s3695 + $0x38] sm:$0xf]
  %v3711 = vld [vmem:[%s3695 + $0x3c] sm:$0xf]
  %v3713 = vrot.slane %v1439, 4
  %v3731 = vunpack.c.l.b16 %v3696
  %v3732 = vunpack.c.l.b16 %v3697
  %v3733 = vunpack.c.l.b16 %v3698
  %v3734 = vunpack.c.l.b16 %v3699
  %v3735 = vunpack.c.l.b16 %v3700
  %v3736 = vunpack.c.l.b16 %v3701
  %v3737 = vunpack.c.l.b16 %v3702
  %v3738 = vunpack.c.l.b16 %v3703
  %v3739 = vunpack.c.l.b16 %v3704
  %v3740 = vunpack.c.l.b16 %v3705
  %v3741 = vunpack.c.l.b16 %v3706
  %v3742 = vunpack.c.l.b16 %v3707
  %v3743 = vunpack.c.l.b16 %v3708
  %v3744 = vunpack.c.l.b16 %v3709
  %v3745 = vunpack.c.l.b16 %v3710
  %v3746 = vunpack.c.l.b16 %v3711
  %v3747 = vpack.c.b16 %v3732, %v3731
  %v3748 = vpack.c.b16 %v3734, %v3733
  %v3749 = vpack.c.b16 %v3736, %v3735
  %v3750 = vpack.c.b16 %v3738, %v3737
  %v3751 = vpack.c.b16 %v3740, %v3739
  %v3752 = vpack.c.b16 %v3742, %v3741
  %v3753 = vpack.c.b16 %v3744, %v3743
  %v3754 = vpack.c.b16 %v3746, %v3745
  %3763 = vmatprep.subr.bf16.mxu0 0
  %3764 = vmatpush1.bf16.msra.mxu0 %v3754
  %3765 = vmatprep.subr.bf16.mxu0 0
  %3766 = vmatpush1.bf16.msra.mxu0 %v3753
  %3767 = vmatprep.subr.bf16.mxu0 0
  %3768 = vmatpush1.bf16.msra.mxu0 %v3752
  %3769 = vmatprep.subr.bf16.mxu0 0
  %3770 = vmatpush1.bf16.msra.mxu0 %v3751
  %3771 = vmatprep.subr.bf16.mxu0 0
  %3772 = vmatpush1.bf16.msra.mxu0 %v3750
  %3773 = vmatprep.subr.bf16.mxu0 0
  %3774 = vmatpush1.bf16.msra.mxu0 %v3749
  %3775 = vmatprep.subr.bf16.mxu0 0
  %3776 = vmatpush1.bf16.msra.mxu0 %v3748
  %3777 = vmatprep.subr.bf16.mxu0 0
  %3778 = vmatpush1.bf16.msra.mxu0 %v3747
  %3779 = vmatprep.subr.bf16.mxu0 0
  %3780 = vmatpush2.bf16.msra.mxu0 0
  %3781 = vmatprep.subr.bf16.mxu0 0
  %3782 = vmatpush2.bf16.msra.mxu0 0
  %3783 = vmatprep.subr.bf16.mxu0 0
  %3784 = vmatpush2.bf16.msra.mxu0 0
  %3785 = vmatprep.subr.bf16.mxu0 0
  %3786 = vmatpush2.bf16.msra.mxu0 0
  %3787 = vmatprep.subr.bf16.mxu0 0
  %3788 = vmatpush2.bf16.msra.mxu0 0
  %3789 = vmatprep.subr.bf16.mxu0 0
  %3790 = vmatpush2.bf16.msra.mxu0 0
  %3791 = vmatprep.subr.bf16.mxu0 0
  %3792 = vmatpush2.bf16.msra.mxu0 0
  %3793 = vmatprep.subr.bf16.mxu0 0
  %3794 = vmatpush2.bf16.msra.mxu0 0
  %3795 = vmatprep.mubr.bf16.mxu0 0
  %3796 = vmatmul.mubr.bf16.gmra.mxu0 %v3713
  %v3797 = vpop.f32.mrf.mxu0
  %v3798 = vadd.f32 0.0, %v3797
  %v3799 = vpop.f32.mrf.mxu0
  %v3800 = vpop.f32.mrf.mxu0
  %v3801 = vpop.f32.mrf.mxu0
  %3802 = vdwg.mxu0
  %v3803 = vadd.f32 %v3694, %v3798
  %s3804 = scalar_lea.vmem %s3, 1408
  %v3805 = vld [vmem:[%s3804] sm:$0xf]
  %v3806 = vld [vmem:[%s3804 + $0x4] sm:$0xf]
  %v3807 = vld [vmem:[%s3804 + $0x8] sm:$0xf]
  %v3808 = vld [vmem:[%s3804 + $0xc] sm:$0xf]
  %v3809 = vld [vmem:[%s3804 + $0x10] sm:$0xf]
  %v3810 = vld [vmem:[%s3804 + $0x14] sm:$0xf]
  %v3811 = vld [vmem:[%s3804 + $0x18] sm:$0xf]
  %v3812 = vld [vmem:[%s3804 + $0x1c] sm:$0xf]
  %v3813 = vld [vmem:[%s3804 + $0x20] sm:$0xf]
  %v3814 = vld [vmem:[%s3804 + $0x24] sm:$0xf]
  %v3815 = vld [vmem:[%s3804 + $0x28] sm:$0xf]
  %v3816 = vld [vmem:[%s3804 + $0x2c] sm:$0xf]
  %v3817 = vld [vmem:[%s3804 + $0x30] sm:$0xf]
  %v3818 = vld [vmem:[%s3804 + $0x34] sm:$0xf]
  %v3819 = vld [vmem:[%s3804 + $0x38] sm:$0xf]
  %v3820 = vld [vmem:[%s3804 + $0x3c] sm:$0xf]
  %v3837 = vunpack.c.l.b16 %v3805
  %v3838 = vunpack.c.l.b16 %v3806
  %v3839 = vunpack.c.l.b16 %v3807
  %v3840 = vunpack.c.l.b16 %v3808
  %v3841 = vunpack.c.l.b16 %v3809
  %v3842 = vunpack.c.l.b16 %v3810
  %v3843 = vunpack.c.l.b16 %v3811
  %v3844 = vunpack.c.l.b16 %v3812
  %v3845 = vunpack.c.l.b16 %v3813
  %v3846 = vunpack.c.l.b16 %v3814
  %v3847 = vunpack.c.l.b16 %v3815
  %v3848 = vunpack.c.l.b16 %v3816
  %v3849 = vunpack.c.l.b16 %v3817
  %v3850 = vunpack.c.l.b16 %v3818
  %v3851 = vunpack.c.l.b16 %v3819
  %v3852 = vunpack.c.l.b16 %v3820
  %v3853 = vpack.c.b16 %v3838, %v3837
  %v3854 = vpack.c.b16 %v3840, %v3839
  %v3855 = vpack.c.b16 %v3842, %v3841
  %v3856 = vpack.c.b16 %v3844, %v3843
  %v3857 = vpack.c.b16 %v3846, %v3845
  %v3858 = vpack.c.b16 %v3848, %v3847
  %v3859 = vpack.c.b16 %v3850, %v3849
  %v3860 = vpack.c.b16 %v3852, %v3851
  %3869 = vmatprep.subr.bf16.mxu0 0
  %3870 = vmatpush1.bf16.msra.mxu0 %v3860
  %3871 = vmatprep.subr.bf16.mxu0 0
  %3872 = vmatpush1.bf16.msra.mxu0 %v3859
  %3873 = vmatprep.subr.bf16.mxu0 0
  %3874 = vmatpush1.bf16.msra.mxu0 %v3858
  %3875 = vmatprep.subr.bf16.mxu0 0
  %3876 = vmatpush1.bf16.msra.mxu0 %v3857
  %3877 = vmatprep.subr.bf16.mxu0 0
  %3878 = vmatpush1.bf16.msra.mxu0 %v3856
  %3879 = vmatprep.subr.bf16.mxu0 0
  %3880 = vmatpush1.bf16.msra.mxu0 %v3855
  %3881 = vmatprep.subr.bf16.mxu0 0
  %3882 = vmatpush1.bf16.msra.mxu0 %v3854
  %3883 = vmatprep.subr.bf16.mxu0 0
  %3884 = vmatpush1.bf16.msra.mxu0 %v3853
  %3885 = vmatprep.subr.bf16.mxu0 0
  %3886 = vmatpush2.bf16.msra.mxu0 0
  %3887 = vmatprep.subr.bf16.mxu0 0
  %3888 = vmatpush2.bf16.msra.mxu0 0
  %3889 = vmatprep.subr.bf16.mxu0 0
  %3890 = vmatpush2.bf16.msra.mxu0 0
  %3891 = vmatprep.subr.bf16.mxu0 0
  %3892 = vmatpush2.bf16.msra.mxu0 0
  %3893 = vmatprep.subr.bf16.mxu0 0
  %3894 = vmatpush2.bf16.msra.mxu0 0
  %3895 = vmatprep.subr.bf16.mxu0 0
  %3896 = vmatpush2.bf16.msra.mxu0 0
  %3897 = vmatprep.subr.bf16.mxu0 0
  %3898 = vmatpush2.bf16.msra.mxu0 0
  %3899 = vmatprep.subr.bf16.mxu0 0
  %3900 = vmatpush2.bf16.msra.mxu0 0
  %3901 = vmatprep.mubr.bf16.mxu0 0
  %3902 = vmatmul.mubr.bf16.gmra.mxu0 %v1440
  %v3903 = vpop.f32.mrf.mxu0
  %v3904 = vadd.f32 0.0, %v3903
  %v3905 = vpop.f32.mrf.mxu0
  %v3906 = vpop.f32.mrf.mxu0
  %v3907 = vpop.f32.mrf.mxu0
  %3908 = vdwg.mxu0
  %v3909 = vadd.f32 %v3803, %v3904
  %s3910 = scalar_lea.vmem %s3, 1472
  %v3911 = vld [vmem:[%s3910] sm:$0xf]
  %v3912 = vld [vmem:[%s3910 + $0x4] sm:$0xf]
  %v3913 = vld [vmem:[%s3910 + $0x8] sm:$0xf]
  %v3914 = vld [vmem:[%s3910 + $0xc] sm:$0xf]
  %v3915 = vld [vmem:[%s3910 + $0x10] sm:$0xf]
  %v3916 = vld [vmem:[%s3910 + $0x14] sm:$0xf]
  %v3917 = vld [vmem:[%s3910 + $0x18] sm:$0xf]
  %v3918 = vld [vmem:[%s3910 + $0x1c] sm:$0xf]
  %v3919 = vld [vmem:[%s3910 + $0x20] sm:$0xf]
  %v3920 = vld [vmem:[%s3910 + $0x24] sm:$0xf]
  %v3921 = vld [vmem:[%s3910 + $0x28] sm:$0xf]
  %v3922 = vld [vmem:[%s3910 + $0x2c] sm:$0xf]
  %v3923 = vld [vmem:[%s3910 + $0x30] sm:$0xf]
  %v3924 = vld [vmem:[%s3910 + $0x34] sm:$0xf]
  %v3925 = vld [vmem:[%s3910 + $0x38] sm:$0xf]
  %v3926 = vld [vmem:[%s3910 + $0x3c] sm:$0xf]
  %v3928 = vrot.slane %v1440, 4
  %v3946 = vunpack.c.l.b16 %v3911
  %v3947 = vunpack.c.l.b16 %v3912
  %v3948 = vunpack.c.l.b16 %v3913
  %v3949 = vunpack.c.l.b16 %v3914
  %v3950 = vunpack.c.l.b16 %v3915
  %v3951 = vunpack.c.l.b16 %v3916
  %v3952 = vunpack.c.l.b16 %v3917
  %v3953 = vunpack.c.l.b16 %v3918
  %v3954 = vunpack.c.l.b16 %v3919
  %v3955 = vunpack.c.l.b16 %v3920
  %v3956 = vunpack.c.l.b16 %v3921
  %v3957 = vunpack.c.l.b16 %v3922
  %v3958 = vunpack.c.l.b16 %v3923
  %v3959 = vunpack.c.l.b16 %v3924
  %v3960 = vunpack.c.l.b16 %v3925
  %v3961 = vunpack.c.l.b16 %v3926
  %v3962 = vpack.c.b16 %v3947, %v3946
  %v3963 = vpack.c.b16 %v3949, %v3948
  %v3964 = vpack.c.b16 %v3951, %v3950
  %v3965 = vpack.c.b16 %v3953, %v3952
  %v3966 = vpack.c.b16 %v3955, %v3954
  %v3967 = vpack.c.b16 %v3957, %v3956
  %v3968 = vpack.c.b16 %v3959, %v3958
  %v3969 = vpack.c.b16 %v3961, %v3960
  %3978 = vmatprep.subr.bf16.mxu0 0
  %3979 = vmatpush1.bf16.msra.mxu0 %v3969
  %3980 = vmatprep.subr.bf16.mxu0 0
  %3981 = vmatpush1.bf16.msra.mxu0 %v3968
  %3982 = vmatprep.subr.bf16.mxu0 0
  %3983 = vmatpush1.bf16.msra.mxu0 %v3967
  %3984 = vmatprep.subr.bf16.mxu0 0
  %3985 = vmatpush1.bf16.msra.mxu0 %v3966
  %3986 = vmatprep.subr.bf16.mxu0 0
  %3987 = vmatpush1.bf16.msra.mxu0 %v3965
  %3988 = vmatprep.subr.bf16.mxu0 0
  %3989 = vmatpush1.bf16.msra.mxu0 %v3964
  %3990 = vmatprep.subr.bf16.mxu0 0
  %3991 = vmatpush1.bf16.msra.mxu0 %v3963
  %3992 = vmatprep.subr.bf16.mxu0 0
  %3993 = vmatpush1.bf16.msra.mxu0 %v3962
  %3994 = vmatprep.subr.bf16.mxu0 0
  %3995 = vmatpush2.bf16.msra.mxu0 0
  %3996 = vmatprep.subr.bf16.mxu0 0
  %3997 = vmatpush2.bf16.msra.mxu0 0
  %3998 = vmatprep.subr.bf16.mxu0 0
  %3999 = vmatpush2.bf16.msra.mxu0 0
  %4000 = vmatprep.subr.bf16.mxu0 0
  %4001 = vmatpush2.bf16.msra.mxu0 0
  %4002 = vmatprep.subr.bf16.mxu0 0
  %4003 = vmatpush2.bf16.msra.mxu0 0
  %4004 = vmatprep.subr.bf16.mxu0 0
  %4005 = vmatpush2.bf16.msra.mxu0 0
  %4006 = vmatprep.subr.bf16.mxu0 0
  %4007 = vmatpush2.bf16.msra.mxu0 0
  %4008 = vmatprep.subr.bf16.mxu0 0
  %4009 = vmatpush2.bf16.msra.mxu0 0
  %4010 = vmatprep.mubr.bf16.mxu0 0
  %4011 = vmatmul.mubr.bf16.gmra.mxu0 %v3928
  %v4012 = vpop.f32.mrf.mxu0
  %v4013 = vadd.f32 0.0, %v4012
  %v4014 = vpop.f32.mrf.mxu0
  %v4015 = vpop.f32.mrf.mxu0
  %v4016 = vpop.f32.mrf.mxu0
  %4017 = vdwg.mxu0
  %v4018 = vadd.f32 %v3909, %v4013
  %s4019 = scalar_lea.vmem %s3, 1536
  %v4020 = vld [vmem:[%s4019] sm:$0xf]
  %v4021 = vld [vmem:[%s4019 + $0x4] sm:$0xf]
  %v4022 = vld [vmem:[%s4019 + $0x8] sm:$0xf]
  %v4023 = vld [vmem:[%s4019 + $0xc] sm:$0xf]
  %v4024 = vld [vmem:[%s4019 + $0x10] sm:$0xf]
  %v4025 = vld [vmem:[%s4019 + $0x14] sm:$0xf]
  %v4026 = vld [vmem:[%s4019 + $0x18] sm:$0xf]
  %v4027 = vld [vmem:[%s4019 + $0x1c] sm:$0xf]
  %v4028 = vld [vmem:[%s4019 + $0x20] sm:$0xf]
  %v4029 = vld [vmem:[%s4019 + $0x24] sm:$0xf]
  %v4030 = vld [vmem:[%s4019 + $0x28] sm:$0xf]
  %v4031 = vld [vmem:[%s4019 + $0x2c] sm:$0xf]
  %v4032 = vld [vmem:[%s4019 + $0x30] sm:$0xf]
  %v4033 = vld [vmem:[%s4019 + $0x34] sm:$0xf]
  %v4034 = vld [vmem:[%s4019 + $0x38] sm:$0xf]
  %v4035 = vld [vmem:[%s4019 + $0x3c] sm:$0xf]
  %v4052 = vunpack.c.l.b16 %v4020
  %v4053 = vunpack.c.l.b16 %v4021
  %v4054 = vunpack.c.l.b16 %v4022
  %v4055 = vunpack.c.l.b16 %v4023
  %v4056 = vunpack.c.l.b16 %v4024
  %v4057 = vunpack.c.l.b16 %v4025
  %v4058 = vunpack.c.l.b16 %v4026
  %v4059 = vunpack.c.l.b16 %v4027
  %v4060 = vunpack.c.l.b16 %v4028
  %v4061 = vunpack.c.l.b16 %v4029
  %v4062 = vunpack.c.l.b16 %v4030
  %v4063 = vunpack.c.l.b16 %v4031
  %v4064 = vunpack.c.l.b16 %v4032
  %v4065 = vunpack.c.l.b16 %v4033
  %v4066 = vunpack.c.l.b16 %v4034
  %v4067 = vunpack.c.l.b16 %v4035
  %v4068 = vpack.c.b16 %v4053, %v4052
  %v4069 = vpack.c.b16 %v4055, %v4054
  %v4070 = vpack.c.b16 %v4057, %v4056
  %v4071 = vpack.c.b16 %v4059, %v4058
  %v4072 = vpack.c.b16 %v4061, %v4060
  %v4073 = vpack.c.b16 %v4063, %v4062
  %v4074 = vpack.c.b16 %v4065, %v4064
  %v4075 = vpack.c.b16 %v4067, %v4066
  %4084 = vmatprep.subr.bf16.mxu0 0
  %4085 = vmatpush1.bf16.msra.mxu0 %v4075
  %4086 = vmatprep.subr.bf16.mxu0 0
  %4087 = vmatpush1.bf16.msra.mxu0 %v4074
  %4088 = vmatprep.subr.bf16.mxu0 0
  %4089 = vmatpush1.bf16.msra.mxu0 %v4073
  %4090 = vmatprep.subr.bf16.mxu0 0
  %4091 = vmatpush1.bf16.msra.mxu0 %v4072
  %4092 = vmatprep.subr.bf16.mxu0 0
  %4093 = vmatpush1.bf16.msra.mxu0 %v4071
  %4094 = vmatprep.subr.bf16.mxu0 0
  %4095 = vmatpush1.bf16.msra.mxu0 %v4070
  %4096 = vmatprep.subr.bf16.mxu0 0
  %4097 = vmatpush1.bf16.msra.mxu0 %v4069
  %4098 = vmatprep.subr.bf16.mxu0 0
  %4099 = vmatpush1.bf16.msra.mxu0 %v4068
  %4100 = vmatprep.subr.bf16.mxu0 0
  %4101 = vmatpush2.bf16.msra.mxu0 0
  %4102 = vmatprep.subr.bf16.mxu0 0
  %4103 = vmatpush2.bf16.msra.mxu0 0
  %4104 = vmatprep.subr.bf16.mxu0 0
  %4105 = vmatpush2.bf16.msra.mxu0 0
  %4106 = vmatprep.subr.bf16.mxu0 0
  %4107 = vmatpush2.bf16.msra.mxu0 0
  %4108 = vmatprep.subr.bf16.mxu0 0
  %4109 = vmatpush2.bf16.msra.mxu0 0
  %4110 = vmatprep.subr.bf16.mxu0 0
  %4111 = vmatpush2.bf16.msra.mxu0 0
  %4112 = vmatprep.subr.bf16.mxu0 0
  %4113 = vmatpush2.bf16.msra.mxu0 0
  %4114 = vmatprep.subr.bf16.mxu0 0
  %4115 = vmatpush2.bf16.msra.mxu0 0
  %4116 = vmatprep.mubr.bf16.mxu0 0
  %4117 = vmatmul.mubr.bf16.gmra.mxu0 %v1441
  %v4118 = vpop.f32.mrf.mxu0
  %v4119 = vadd.f32 0.0, %v4118
  %v4120 = vpop.f32.mrf.mxu0
  %v4121 = vpop.f32.mrf.mxu0
  %v4122 = vpop.f32.mrf.mxu0
  %4123 = vdwg.mxu0
  %v4124 = vadd.f32 %v4018, %v4119
  %v4125 = vld [vmem:[%s4] sm:$0x1]
  %v4127 = vlaneseq
  %v4128 = vshrl.u32 %v4127, 7
  %v4129 = vsub.s32 0, %v4128
  %v4130 = vrot.slane %v4125, %v4129
  %v4132 = vadd.f32 %v4124, %v4130
  %v4133 = vmax.f32 %v4132, 0.0
  %v4134 = vpack.c.bf16 %v4133, %v4133
  %v4135 = vld [vmem:[%s5] sm:$0xf]
  %v4136 = vld [vmem:[%s5 + $0x4] sm:$0xf]
  %v4137 = vld [vmem:[%s5 + $0x8] sm:$0xf]
  %v4138 = vld [vmem:[%s5 + $0xc] sm:$0xf]
  %v4139 = vld [vmem:[%s5 + $0x10] sm:$0xf]
  %v4140 = vld [vmem:[%s5 + $0x14] sm:$0xf]
  %v4141 = vld [vmem:[%s5 + $0x18] sm:$0xf]
  %v4142 = vld [vmem:[%s5 + $0x1c] sm:$0xf]
  %v4143 = vld [vmem:[%s5 + $0x20] sm:$0xf]
  %v4144 = vld [vmem:[%s5 + $0x24] sm:$0xf]
  %v4145 = vld [vmem:[%s5 + $0x28] sm:$0xf]
  %v4146 = vld [vmem:[%s5 + $0x2c] sm:$0xf]
  %v4147 = vld [vmem:[%s5 + $0x30] sm:$0xf]
  %v4148 = vld [vmem:[%s5 + $0x34] sm:$0xf]
  %v4149 = vld [vmem:[%s5 + $0x38] sm:$0xf]
  %v4150 = vld [vmem:[%s5 + $0x3c] sm:$0xf]
  %v4151 = vld [vmem:[%s6] sm:$0x1]
  %v4153 = vlaneseq
  %v4154 = vshrl.u32 %v4153, 7
  %v4155 = vsub.s32 0, %v4154
  %v4156 = vrot.slane %v4151, %v4155
  %v4174 = vunpack.c.l.b16 %v4135
  %v4175 = vunpack.c.l.b16 %v4136
  %v4176 = vunpack.c.l.b16 %v4137
  %v4177 = vunpack.c.l.b16 %v4138
  %v4178 = vunpack.c.l.b16 %v4139
  %v4179 = vunpack.c.l.b16 %v4140
  %v4180 = vunpack.c.l.b16 %v4141
  %v4181 = vunpack.c.l.b16 %v4142
  %v4182 = vunpack.c.l.b16 %v4143
  %v4183 = vunpack.c.l.b16 %v4144
  %v4184 = vunpack.c.l.b16 %v4145
  %v4185 = vunpack.c.l.b16 %v4146
  %v4186 = vunpack.c.l.b16 %v4147
  %v4187 = vunpack.c.l.b16 %v4148
  %v4188 = vunpack.c.l.b16 %v4149
  %v4189 = vunpack.c.l.b16 %v4150
  %v4190 = vpack.c.b16 %v4175, %v4174
  %v4191 = vpack.c.b16 %v4177, %v4176
  %v4192 = vpack.c.b16 %v4179, %v4178
  %v4193 = vpack.c.b16 %v4181, %v4180
  %v4194 = vpack.c.b16 %v4183, %v4182
  %v4195 = vpack.c.b16 %v4185, %v4184
  %v4196 = vpack.c.b16 %v4187, %v4186
  %v4197 = vpack.c.b16 %v4189, %v4188
  %4206 = vmatprep.subr.bf16.mxu0 0
  %4207 = vmatpush1.bf16.msra.mxu0 %v4197
  %4208 = vmatprep.subr.bf16.mxu0 0
  %4209 = vmatpush1.bf16.msra.mxu0 %v4196
  %4210 = vmatprep.subr.bf16.mxu0 0
  %4211 = vmatpush1.bf16.msra.mxu0 %v4195
  %4212 = vmatprep.subr.bf16.mxu0 0
  %4213 = vmatpush1.bf16.msra.mxu0 %v4194
  %4214 = vmatprep.subr.bf16.mxu0 0
  %4215 = vmatpush1.bf16.msra.mxu0 %v4193
  %4216 = vmatprep.subr.bf16.mxu0 0
  %4217 = vmatpush1.bf16.msra.mxu0 %v4192
  %4218 = vmatprep.subr.bf16.mxu0 0
  %4219 = vmatpush1.bf16.msra.mxu0 %v4191
  %4220 = vmatprep.subr.bf16.mxu0 0
  %4221 = vmatpush1.bf16.msra.mxu0 %v4190
  %4222 = vmatprep.subr.bf16.mxu0 0
  %4223 = vmatpush2.bf16.msra.mxu0 0
  %4224 = vmatprep.subr.bf16.mxu0 0
  %4225 = vmatpush2.bf16.msra.mxu0 0
  %4226 = vmatprep.subr.bf16.mxu0 0
  %4227 = vmatpush2.bf16.msra.mxu0 0
  %4228 = vmatprep.subr.bf16.mxu0 0
  %4229 = vmatpush2.bf16.msra.mxu0 0
  %4230 = vmatprep.subr.bf16.mxu0 0
  %4231 = vmatpush2.bf16.msra.mxu0 0
  %4232 = vmatprep.subr.bf16.mxu0 0
  %4233 = vmatpush2.bf16.msra.mxu0 0
  %4234 = vmatprep.subr.bf16.mxu0 0
  %4235 = vmatpush2.bf16.msra.mxu0 0
  %4236 = vmatprep.subr.bf16.mxu0 0
  %4237 = vmatpush2.bf16.msra.mxu0 0
  %4238 = vmatprep.mubr.bf16.mxu0 0
  %4239 = vmatmul.mubr.bf16.gmra.mxu0 %v4134
  %v4240 = vpop.f32.mrf.mxu0
  %v4241 = vadd.f32 %v4156, %v4240
  %v4242 = vpop.f32.mrf.mxu0
  %v4243 = vpop.f32.mrf.mxu0
  %v4244 = vpop.f32.mrf.mxu0
  %4245 = vdwg.mxu0
  %v4246 = vmax.f32 %v4241, 0.0
  %v4247 = vpack.c.bf16 %v4246, %v4246
  %v4248 = vld [vmem:[%s7] sm:$0xf]
  %v4249 = vld [vmem:[%s7 + $0x4] sm:$0xf]
  %v4250 = vld [vmem:[%s7 + $0x8] sm:$0xf]
  %v4251 = vld [vmem:[%s7 + $0xc] sm:$0xf]
  %v4252 = vld [vmem:[%s7 + $0x10] sm:$0xf]
  %v4253 = vld [vmem:[%s7 + $0x14] sm:$0xf]
  %v4254 = vld [vmem:[%s7 + $0x18] sm:$0xf]
  %v4255 = vld [vmem:[%s7 + $0x1c] sm:$0xf]
  %v4256 = vld [vmem:[%s7 + $0x20] sm:$0xf]
  %v4257 = vld [vmem:[%s7 + $0x24] sm:$0xf]
  %v4258 = vld [vmem:[%s7 + $0x28] sm:$0xf]
  %v4259 = vld [vmem:[%s7 + $0x2c] sm:$0xf]
  %v4260 = vld [vmem:[%s7 + $0x30] sm:$0xf]
  %v4261 = vld [vmem:[%s7 + $0x34] sm:$0xf]
  %v4262 = vld [vmem:[%s7 + $0x38] sm:$0xf]
  %v4263 = vld [vmem:[%s7 + $0x3c] sm:$0xf]
  %v4264 = vld [vmem:[%s8] sm:$0x1]
  %v4266 = vlaneseq
  %v4267 = vshrl.u32 %v4266, 7
  %v4268 = vsub.s32 0, %v4267
  %v4269 = vrot.slane %v4264, %v4268
  %v4287 = vunpack.c.l.b16 %v4248
  %v4288 = vunpack.c.l.b16 %v4249
  %v4289 = vunpack.c.l.b16 %v4250
  %v4290 = vunpack.c.l.b16 %v4251
  %v4291 = vunpack.c.l.b16 %v4252
  %v4292 = vunpack.c.l.b16 %v4253
  %v4293 = vunpack.c.l.b16 %v4254
  %v4294 = vunpack.c.l.b16 %v4255
  %v4295 = vunpack.c.l.b16 %v4256
  %v4296 = vunpack.c.l.b16 %v4257
  %v4297 = vunpack.c.l.b16 %v4258
  %v4298 = vunpack.c.l.b16 %v4259
  %v4299 = vunpack.c.l.b16 %v4260
  %v4300 = vunpack.c.l.b16 %v4261
  %v4301 = vunpack.c.l.b16 %v4262
  %v4302 = vunpack.c.l.b16 %v4263
  %v4303 = vpack.c.b16 %v4288, %v4287
  %v4304 = vpack.c.b16 %v4290, %v4289
  %v4305 = vpack.c.b16 %v4292, %v4291
  %v4306 = vpack.c.b16 %v4294, %v4293
  %v4307 = vpack.c.b16 %v4296, %v4295
  %v4308 = vpack.c.b16 %v4298, %v4297
  %v4309 = vpack.c.b16 %v4300, %v4299
  %v4310 = vpack.c.b16 %v4302, %v4301
  %4319 = vmatprep.subr.bf16.mxu0 0
  %4320 = vmatpush1.bf16.msra.mxu0 %v4310
  %4321 = vmatprep.subr.bf16.mxu0 0
  %4322 = vmatpush1.bf16.msra.mxu0 %v4309
  %4323 = vmatprep.subr.bf16.mxu0 0
  %4324 = vmatpush1.bf16.msra.mxu0 %v4308
  %4325 = vmatprep.subr.bf16.mxu0 0
  %4326 = vmatpush1.bf16.msra.mxu0 %v4307
  %4327 = vmatprep.subr.bf16.mxu0 0
  %4328 = vmatpush1.bf16.msra.mxu0 %v4306
  %4329 = vmatprep.subr.bf16.mxu0 0
  %4330 = vmatpush1.bf16.msra.mxu0 %v4305
  %4331 = vmatprep.subr.bf16.mxu0 0
  %4332 = vmatpush1.bf16.msra.mxu0 %v4304
  %4333 = vmatprep.subr.bf16.mxu0 0
  %4334 = vmatpush1.bf16.msra.mxu0 %v4303
  %4335 = vmatprep.subr.bf16.mxu0 0
  %4336 = vmatpush2.bf16.msra.mxu0 0
  %4337 = vmatprep.subr.bf16.mxu0 0
  %4338 = vmatpush2.bf16.msra.mxu0 0
  %4339 = vmatprep.subr.bf16.mxu0 0
  %4340 = vmatpush2.bf16.msra.mxu0 0
  %4341 = vmatprep.subr.bf16.mxu0 0
  %4342 = vmatpush2.bf16.msra.mxu0 0
  %4343 = vmatprep.subr.bf16.mxu0 0
  %4344 = vmatpush2.bf16.msra.mxu0 0
  %4345 = vmatprep.subr.bf16.mxu0 0
  %4346 = vmatpush2.bf16.msra.mxu0 0
  %4347 = vmatprep.subr.bf16.mxu0 0
  %4348 = vmatpush2.bf16.msra.mxu0 0
  %4349 = vmatprep.subr.bf16.mxu0 0
  %4350 = vmatpush2.bf16.msra.mxu0 0
  %4351 = vmatprep.mubr.bf16.mxu0 0
  %4352 = vmatmul.mubr.bf16.gmra.mxu0 %v4247
  %v4353 = vpop.f32.mrf.mxu0
  %v4354 = vadd.f32 %v4269, %v4353
  %v4355 = vpop.f32.mrf.mxu0
  %v4356 = vpop.f32.mrf.mxu0
  %v4357 = vpop.f32.mrf.mxu0
  %4358 = vdwg.mxu0
  %4359 = vst [vmem:[%s9] sm:$0xff] %v4354
  // Predicated region
  $region38: #{lenet_forward.3} parent=0 // pred_check
    _
  $region39: #{lenet_forward.3} parent=0 // pred_check_branch
    %4361 = sbr.rel (0) target = $region41
  $region40: #{lenet_forward.3} parent=0 // pred_region
    _
  $region41: #{lenet_forward.3} parent=0 // pred_fallthru
    _
  // Predicated region
  $region42: #{lenet_forward.3} parent=0 // pred_check
    _
  $region43: #{lenet_forward.3} parent=0 // pred_check_branch
    %4363 = sbr.rel (0) target = $region45
  $region44: #{lenet_forward.3} parent=0 // pred_region
    _
  $region45: #{lenet_forward.3} parent=0 // pred_fallthru
    _

</llo_original>
